<compile_context>
chip_gen: v5e
topology: v5e:2x2
jax: 0.10.0
libtpu: 0.0.40
codegen_flags: <defaults>
</compile_context>

<pallas_src>
import jax
import jax.numpy as jnp
from jax import lax
from jax.experimental import pallas as pl
from jax.experimental.pallas import tpu as pltpu


# Fixed LeNet-5 / CIFAR-10 geometry (the module hardwires 32*5*5 fc features).
CIN, H0, W0 = 3, 32, 32
C1, K1 = 16, 5
H1, W1 = H0 - K1 + 1, W0 - K1 + 1          # 28, 28
H1P, W1P = H1 // 2, W1 // 2                # 14, 14
C2, K2 = 32, 5
H2, W2 = H1P - K2 + 1, W1P - K2 + 1        # 10, 10
H2P, W2P = H2 // 2, W2 // 2                # 5, 5
FC1_IN, FC1_OUT, FC2_OUT = C2 * H2P * W2P, 32, 10   # 800, 32, 10


# ----------------------------------------------------------------------------
# Fused kernel: conv1 -> pool1 -> conv2 -> pool2 -> fc1(+ReLU) -> fc2
# One grid step == TB images; batch lives in the sublane (second-to-last) dim so
# every reshape only merges/splits leading dims with a sublane-aligned factor.
# ----------------------------------------------------------------------------
def _lenet5_kernel(x_ref, t1_ref, b1_ref, t2_ref, b2_ref,
                   cs1e_ref, cs1o_ref, cs2e_ref, cs2o_ref,
                   wf1_ref, bf1_ref, wf2_ref, bf2_ref, o_ref):
    f32, bf16 = jnp.float32, jnp.bfloat16
    TB = x_ref.shape[1]                                    # batch tile (multiple of 8)

    # ---- conv1: x (H0, TB, W0*CIN) bf16 -> y1 (H1*TB, W1*C1) f32 -----------------
    xb = x_ref[...]                                        # single hoisted load (bf16)
    y1 = jnp.dot(xb[0:H1].reshape(H1 * TB, W0 * CIN), t1_ref[0],
                 preferred_element_type=f32)
    for kh in range(1, K1):
        y1 = y1 + jnp.dot(xb[kh:kh + H1].reshape(H1 * TB, W0 * CIN), t1_ref[kh],
                          preferred_element_type=f32)
    y1 = y1 + b1_ref[...]                                  # (28*TB, 448)

    # ---- maxpool1 (2x2): rows via VPU max, cols via exact 0/1 bf16 selection ------
    y1 = y1.reshape(H1P, 2, TB, W1 * C1)
    r1 = jnp.maximum(y1[:, 0], y1[:, 1])                   # (14, TB, 448) f32
    r1 = r1.reshape(H1P * TB, W1 * C1).astype(bf16)
    p1 = jnp.maximum(jnp.dot(r1, cs1e_ref[...], preferred_element_type=f32),
                     jnp.dot(r1, cs1o_ref[...], preferred_element_type=f32))
    p1 = p1.astype(bf16).reshape(H1P, TB, W1P * C1)        # (14, TB, 224)

    # ---- conv2: p1 -> y2 (H2*TB, W2*C2) f32 ---------------------------------------
    y2 = jnp.dot(p1[0:H2].reshape(H2 * TB, W1P * C1), t2_ref[0],
                 preferred_element_type=f32)
    for kh in range(1, K2):
        y2 = y2 + jnp.dot(p1[kh:kh + H2].reshape(H2 * TB, W1P * C1), t2_ref[kh],
                          preferred_element_type=f32)
    y2 = y2 + b2_ref[...]                                  # (10*TB, 320)

    # ---- maxpool2 -----------------------------------------------------------------
    y2 = y2.reshape(H2P, 2, TB, W2 * C2)
    r2 = jnp.maximum(y2[:, 0], y2[:, 1])                   # (5, TB, 320) f32
    r2 = r2.reshape(H2P * TB, W2 * C2).astype(bf16)
    p2 = jnp.maximum(jnp.dot(r2, cs2e_ref[...], preferred_element_type=f32),
                     jnp.dot(r2, cs2o_ref[...], preferred_element_type=f32))
    p2 = p2.astype(bf16).reshape(H2P, TB, W2P * C2)        # (5, TB, 160)

    # ---- fc1 (+ ReLU): contract (h, w*c) as 5 batched row matmuls -------------------
    accf = jnp.dot(p2[0], wf1_ref[0], preferred_element_type=f32)   # (TB, 32)
    for h in range(1, H2P):
        accf = accf + jnp.dot(p2[h], wf1_ref[h], preferred_element_type=f32)
    hidden = jnp.maximum(accf + bf1_ref[...], 0.0)

    # ---- fc2 ----------------------------------------------------------------------
    logits = jnp.dot(hidden.astype(bf16), wf2_ref[...],
                     preferred_element_type=f32) + bf2_ref[...]     # (TB, 10)
    o_ref[...] = logits.astype(o_ref.dtype)


# ----------------------------------------------------------------------------
# One-time weight transforms (pure XLA on tiny arrays, outside the forward)
# ----------------------------------------------------------------------------
def _banded_conv_weight(w, w_in, dtype=jnp.bfloat16):
    """[Cout, Cin, KH, KW] -> T[kh, w*Cin+ci, wo*Cout+co] banded (Toeplitz) matrices."""
    cout, cin, kh, kw = w.shape
    wo = w_in - kw + 1
    wk = jnp.transpose(w, (2, 3, 1, 0))                        # [KH, KW, Cin, Cout]
    d = jnp.arange(w_in)[:, None] - jnp.arange(wo)[None, :]    # [w_in, wo]
    valid = (d >= 0) & (d < kw)
    t = wk[:, jnp.clip(d, 0, kw - 1), :, :]                    # [KH, w_in, wo, Cin, Cout]
    t = jnp.where(valid[None, :, :, None, None], t, 0.0)
    t = jnp.transpose(t, (0, 1, 3, 2, 4))                      # [KH, w_in, Cin, wo, Cout]
    return t.reshape(kh, w_in * cin, wo * cout).astype(dtype)


def _pool_col_sel(w_in, c, offset, dtype=jnp.bfloat16):
    """Exact 0/1 selection matrix: input lane w*c_ + ch -> output lane (w//2)*c_ + ch."""
    w_out = w_in // 2
    m = (jnp.arange(w_in)[:, None] ==
         2 * jnp.arange(w_out)[None, :] + offset).astype(jnp.float32)      # [w_in, w_out]
    eye = jnp.eye(c, dtype=jnp.float32)
    t = m[:, None, :, None] * eye[None, :, None, :]                        # [w_in, c, w_out, c]
    return t.reshape(w_in * c, w_out * c).astype(dtype)


def prepare_kernel_params(p):
    """Transform PyTorch-layout params once into kernel-ready (VMEM-friendly) matrices."""
    wf1 = p["f1w"].reshape(FC1_OUT, C2, H2P, W2P)        # [o, c, h, w]
    wf1 = jnp.transpose(wf1, (2, 3, 1, 0))               # [h, w, c, o] (matches NHWC lanes)
    wf1 = wf1.reshape(H2P, W2P * C2, FC1_OUT)            # [5, 160, 32]
    return {
        "t1": _banded_conv_weight(p["c1w"], W0),                            # [5,  96, 448] bf16
        "b1": jnp.tile(p["c1b"], W1)[None, :].astype(jnp.float32),          # [1, 448]
        "t2": _banded_conv_weight(p["c2w"], W1P),                           # [5, 224, 320] bf16
        "b2": jnp.tile(p["c2b"], W2)[None, :].astype(jnp.float32),          # [1, 320]
        "cs1e": _pool_col_sel(W1, C1, 0), "cs1o": _pool_col_sel(W1, C1, 1), # [448, 224] bf16
        "cs2e": _pool_col_sel(W2, C2, 0), "cs2o": _pool_col_sel(W2, C2, 1), # [320, 160] bf16
        "wf1": wf1.astype(jnp.bfloat16),                                    # [5, 160, 32]
        "bf1": p["f1b"][None, :].astype(jnp.float32),                       # [1, 32]
        "wf2": p["f2w"].T.astype(jnp.bfloat16),                             # [32, 10]
        "bf2": p["f2b"][None, :].astype(jnp.float32),                       # [1, 10]
    }


# ----------------------------------------------------------------------------
# Forward
# ----------------------------------------------------------------------------
@jax.jit
def lenet5_forward(kp, x):
    # x: [b, 3, 32, 32]  ->  logits: [b, 10]
    b = x.shape[0]
    TB = min(64, ((b + 7) // 8) * 8)        # batch tile: multiple of 8, capped for VMEM
    nb = (b + TB - 1) // TB
    b_pad = nb * TB
    if b_pad != b:
        x = jnp.pad(x, ((0, b_pad - b), (0, 0), (0, 0), (0, 0)))

    # Single boundary relayout: NCHW -> (H, B, W*C) rows (c fastest), bf16 at the edge.
    xk = jnp.transpose(x, (2, 0, 3, 1)).reshape(H0, b_pad, W0 * CIN).astype(jnp.bfloat16)

    order = ("t1", "b1", "t2", "b2", "cs1e", "cs1o", "cs2e", "cs2o",
             "wf1", "bf1", "wf2", "bf2")
    weights = [kp[k] for k in order]

    def resident(a):
        return pl.BlockSpec(a.shape, lambda i: (0,) * a.ndim)   # constant -> VMEM-resident

    out = pl.pallas_call(
        _lenet5_kernel,
        out_shape=jax.ShapeDtypeStruct((b_pad, FC2_OUT), jnp.float32),
        grid_spec=pltpu.PrefetchScalarGridSpec(
            num_scalar_prefetch=0,
            grid=(nb,),
            in_specs=[pl.BlockSpec((H0, TB, W0 * CIN), lambda i: (0, i, 0))]
                     + [resident(a) for a in weights],
            out_specs=pl.BlockSpec((TB, FC2_OUT), lambda i: (i, 0)),
        ),
        compiler_params=pltpu.CompilerParams(
            dimension_semantics=("parallel",),          # shard batch blocks across cores
            vmem_limit_bytes=32 * 1024 * 1024,          # ~15 MiB used at TB=64; safe on all gens
        ),
    )(xk, *weights)
    return out[:b]


# ----------------------------------------------------------------------------
# Parameters + plain-JAX f32 reference (for validation only)
# ----------------------------------------------------------------------------
def init_params(key):
    ks = jax.random.split(key, 8)

    def unif(k, shape, fan_in):
        bound = 1.0 / jnp.sqrt(jnp.float32(fan_in))
        return jax.random.uniform(k, shape, jnp.float32, -bound, bound)

    return {
        "c1w": unif(ks[0], (C1, CIN, K1, K1), CIN * K1 * K1),
        "c1b": unif(ks[1], (C1,), CIN * K1 * K1),
        "c2w": unif(ks[2], (C2, C1, K2, K2), C1 * K2 * K2),
        "c2b": unif(ks[3], (C2,), C1 * K2 * K2),
        "f1w": unif(ks[4], (FC1_OUT, FC1_IN), FC1_IN),
        "f1b": unif(ks[5], (FC1_OUT,), FC1_IN),
        "f2w": unif(ks[6], (FC2_OUT, FC1_OUT), FC1_OUT),
        "f2b": unif(ks[7], (FC2_OUT,), FC1_OUT),
    }


def lenet5_reference(p, x):
    dn = ("NCHW", "OIHW", "NCHW")
    y = lax.conv_general_dilated(x, p["c1w"], (1, 1), "VALID", dimension_numbers=dn)
    y = y + p["c1b"][None, :, None, None]
    y = lax.reduce_window(y, -jnp.inf, lax.max, (1, 1, 2, 2), (1, 1, 2, 2), "VALID")
    y = lax.conv_general_dilated(y, p["c2w"], (1, 1), "VALID", dimension_numbers=dn)
    y = y + p["c2b"][None, :, None, None]
    y = lax.reduce_window(y, -jnp.inf, lax.max, (1, 1, 2, 2), (1, 1, 2, 2), "VALID")
    y = y.reshape(x.shape[0], FC1_IN)
    y = jnp.maximum(y @ p["f1w"].T + p["f1b"], 0.0)
    return y @ p["f2w"].T + p["f2b"]


if __name__ == "__main__":
    key = jax.random.PRNGKey(0)
    pkey, xkey = jax.random.split(key)
    params = init_params(pkey)
    kparams = prepare_kernel_params(params)      # one-time weight transform
    x = jax.random.normal(xkey, (2, CIN, H0, W0), dtype=jnp.float32)

    logits = lenet5_forward(kparams, x)
    jax.block_until_ready(logits)
    assert logits.shape == (2, FC2_OUT) and logits.dtype == jnp.float32

    # Validate against the f32 reference (bf16 MXU inputs -> relaxed tolerance).
    ref = lenet5_reference(params, x)
    err = float(jnp.max(jnp.abs(logits - ref)))
    assert err < 5e-2, f"max abs error {err}"
    print("KERNEL_OK")
</pallas_src>

<mosaic_0001>
module attributes {stable_mosaic.version = 11 : i64} {
  func.func @_lenet5_kernel(%arg0: i32, %arg1: memref<32x8x96xbf16, #tpu.memory_space<vmem>>, %arg2: memref<5x96x448xbf16, #tpu.memory_space<vmem>>, %arg3: memref<1x448xf32, #tpu.memory_space<vmem>>, %arg4: memref<5x224x320xbf16, #tpu.memory_space<vmem>>, %arg5: memref<1x320xf32, #tpu.memory_space<vmem>>, %arg6: memref<448x224xbf16, #tpu.memory_space<vmem>>, %arg7: memref<448x224xbf16, #tpu.memory_space<vmem>>, %arg8: memref<320x160xbf16, #tpu.memory_space<vmem>>, %arg9: memref<320x160xbf16, #tpu.memory_space<vmem>>, %arg10: memref<5x160x32xbf16, #tpu.memory_space<vmem>>, %arg11: memref<1x32xf32, #tpu.memory_space<vmem>>, %arg12: memref<32x10xbf16, #tpu.memory_space<vmem>>, %arg13: memref<1x10xf32, #tpu.memory_space<vmem>>, %arg14: memref<8x10xf32, #tpu.memory_space<vmem>>) attributes {dimension_semantics = [#tpu.dimension_semantics<parallel>], iteration_bounds = array<i64: 1>, scalar_prefetch = 0 : i64, scratch_operands = 0 : i64, tpu.core_type = #tpu.core_type<tc>, window_params = [{transform_indices = @transform_0, window_bounds = array<i64: 32, 8, 96>}, {pipeline_mode = #tpu.pipeline_mode<synchronous>, transform_indices = @transform_1, window_bounds = array<i64: 5, 96, 448>}, {pipeline_mode = #tpu.pipeline_mode<synchronous>, transform_indices = @transform_2, window_bounds = array<i64: 1, 448>}, {pipeline_mode = #tpu.pipeline_mode<synchronous>, transform_indices = @transform_3, window_bounds = array<i64: 5, 224, 320>}, {pipeline_mode = #tpu.pipeline_mode<synchronous>, transform_indices = @transform_4, window_bounds = array<i64: 1, 320>}, {pipeline_mode = #tpu.pipeline_mode<synchronous>, transform_indices = @transform_5, window_bounds = array<i64: 448, 224>}, {pipeline_mode = #tpu.pipeline_mode<synchronous>, transform_indices = @transform_6, window_bounds = array<i64: 448, 224>}, {pipeline_mode = #tpu.pipeline_mode<synchronous>, transform_indices = @transform_7, window_bounds = array<i64: 320, 160>}, {pipeline_mode = #tpu.pipeline_mode<synchronous>, transform_indices = @transform_8, window_bounds = array<i64: 320, 160>}, {pipeline_mode = #tpu.pipeline_mode<synchronous>, transform_indices = @transform_9, window_bounds = array<i64: 5, 160, 32>}, {pipeline_mode = #tpu.pipeline_mode<synchronous>, transform_indices = @transform_10, window_bounds = array<i64: 1, 32>}, {pipeline_mode = #tpu.pipeline_mode<synchronous>, transform_indices = @transform_11, window_bounds = array<i64: 32, 10>}, {pipeline_mode = #tpu.pipeline_mode<synchronous>, transform_indices = @transform_12, window_bounds = array<i64: 1, 10>}, {transform_indices = @transform_13, window_bounds = array<i64: 8, 10>}]} {
    %c0 = arith.constant 0 : index
    %c0_0 = arith.constant 0 : index
    %c0_1 = arith.constant 0 : index
    %0 = vector.load %arg1[%c0, %c0_0, %c0_1] : memref<32x8x96xbf16, #tpu.memory_space<vmem>>, vector<32x8x96xbf16>
    %1 = vector.extract_strided_slice %0 {offsets = [0, 0, 0], sizes = [28, 8, 96], strides = [1, 1, 1]} : vector<32x8x96xbf16> to vector<28x8x96xbf16>
    %2 = vector.shape_cast %1 : vector<28x8x96xbf16> to vector<224x96xbf16>
    %c0_2 = arith.constant 0 : index
    %c0_3 = arith.constant 0 : index
    %c0_4 = arith.constant 0 : index
    %3 = vector.load %arg2[%c0_2, %c0_3, %c0_4] : memref<5x96x448xbf16, #tpu.memory_space<vmem>>, vector<1x96x448xbf16>
    %4 = vector.shape_cast %3 : vector<1x96x448xbf16> to vector<96x448xbf16>
    %cst = arith.constant dense<0.000000e+00> : vector<224x448xf32>
    %5 = tpu.matmul %2, %4, %cst {dimension_numbers = #tpu.dot_dimension_numbers<[1], [0], [0], [1], [0, 0, 1, 1], [], []>} : vector<224x96xbf16>, vector<96x448xbf16>, vector<224x448xf32> -> vector<224x448xf32>
    %6 = vector.extract_strided_slice %0 {offsets = [1, 0, 0], sizes = [28, 8, 96], strides = [1, 1, 1]} : vector<32x8x96xbf16> to vector<28x8x96xbf16>
    %7 = vector.shape_cast %6 : vector<28x8x96xbf16> to vector<224x96xbf16>
    %c1 = arith.constant 1 : index
    %c0_5 = arith.constant 0 : index
    %c0_6 = arith.constant 0 : index
    %8 = vector.load %arg2[%c1, %c0_5, %c0_6] : memref<5x96x448xbf16, #tpu.memory_space<vmem>>, vector<1x96x448xbf16>
    %9 = vector.shape_cast %8 : vector<1x96x448xbf16> to vector<96x448xbf16>
    %cst_7 = arith.constant dense<0.000000e+00> : vector<224x448xf32>
    %10 = tpu.matmul %7, %9, %cst_7 {dimension_numbers = #tpu.dot_dimension_numbers<[1], [0], [0], [1], [0, 0, 1, 1], [], []>} : vector<224x96xbf16>, vector<96x448xbf16>, vector<224x448xf32> -> vector<224x448xf32>
    %11 = arith.addf %5, %10 : vector<224x448xf32>
    %12 = vector.extract_strided_slice %0 {offsets = [2, 0, 0], sizes = [28, 8, 96], strides = [1, 1, 1]} : vector<32x8x96xbf16> to vector<28x8x96xbf16>
    %13 = vector.shape_cast %12 : vector<28x8x96xbf16> to vector<224x96xbf16>
    %c2 = arith.constant 2 : index
    %c0_8 = arith.constant 0 : index
    %c0_9 = arith.constant 0 : index
    %14 = vector.load %arg2[%c2, %c0_8, %c0_9] : memref<5x96x448xbf16, #tpu.memory_space<vmem>>, vector<1x96x448xbf16>
    %15 = vector.shape_cast %14 : vector<1x96x448xbf16> to vector<96x448xbf16>
    %cst_10 = arith.constant dense<0.000000e+00> : vector<224x448xf32>
    %16 = tpu.matmul %13, %15, %cst_10 {dimension_numbers = #tpu.dot_dimension_numbers<[1], [0], [0], [1], [0, 0, 1, 1], [], []>} : vector<224x96xbf16>, vector<96x448xbf16>, vector<224x448xf32> -> vector<224x448xf32>
    %17 = arith.addf %11, %16 : vector<224x448xf32>
    %18 = vector.extract_strided_slice %0 {offsets = [3, 0, 0], sizes = [28, 8, 96], strides = [1, 1, 1]} : vector<32x8x96xbf16> to vector<28x8x96xbf16>
    %19 = vector.shape_cast %18 : vector<28x8x96xbf16> to vector<224x96xbf16>
    %c3 = arith.constant 3 : index
    %c0_11 = arith.constant 0 : index
    %c0_12 = arith.constant 0 : index
    %20 = vector.load %arg2[%c3, %c0_11, %c0_12] : memref<5x96x448xbf16, #tpu.memory_space<vmem>>, vector<1x96x448xbf16>
    %21 = vector.shape_cast %20 : vector<1x96x448xbf16> to vector<96x448xbf16>
    %cst_13 = arith.constant dense<0.000000e+00> : vector<224x448xf32>
    %22 = tpu.matmul %19, %21, %cst_13 {dimension_numbers = #tpu.dot_dimension_numbers<[1], [0], [0], [1], [0, 0, 1, 1], [], []>} : vector<224x96xbf16>, vector<96x448xbf16>, vector<224x448xf32> -> vector<224x448xf32>
    %23 = arith.addf %17, %22 : vector<224x448xf32>
    %24 = vector.extract_strided_slice %0 {offsets = [4, 0, 0], sizes = [28, 8, 96], strides = [1, 1, 1]} : vector<32x8x96xbf16> to vector<28x8x96xbf16>
    %25 = vector.shape_cast %24 : vector<28x8x96xbf16> to vector<224x96xbf16>
    %c4 = arith.constant 4 : index
    %c0_14 = arith.constant 0 : index
    %c0_15 = arith.constant 0 : index
    %26 = vector.load %arg2[%c4, %c0_14, %c0_15] : memref<5x96x448xbf16, #tpu.memory_space<vmem>>, vector<1x96x448xbf16>
    %27 = vector.shape_cast %26 : vector<1x96x448xbf16> to vector<96x448xbf16>
    %cst_16 = arith.constant dense<0.000000e+00> : vector<224x448xf32>
    %28 = tpu.matmul %25, %27, %cst_16 {dimension_numbers = #tpu.dot_dimension_numbers<[1], [0], [0], [1], [0, 0, 1, 1], [], []>} : vector<224x96xbf16>, vector<96x448xbf16>, vector<224x448xf32> -> vector<224x448xf32>
    %29 = arith.addf %23, %28 : vector<224x448xf32>
    %c0_17 = arith.constant 0 : index
    %c0_18 = arith.constant 0 : index
    %30 = vector.load %arg3[%c0_17, %c0_18] : memref<1x448xf32, #tpu.memory_space<vmem>>, vector<1x448xf32>
    %31 = vector.broadcast %30 : vector<1x448xf32> to vector<224x448xf32>
    %32 = arith.addf %29, %31 : vector<224x448xf32>
    %33 = vector.shape_cast %32 : vector<224x448xf32> to vector<14x2x8x448xf32>
    %34 = vector.extract_strided_slice %33 {offsets = [0, 0, 0, 0], sizes = [14, 1, 8, 448], strides = [1, 1, 1, 1]} : vector<14x2x8x448xf32> to vector<14x1x8x448xf32>
    %35 = vector.shape_cast %34 : vector<14x1x8x448xf32> to vector<14x8x448xf32>
    %36 = vector.extract_strided_slice %33 {offsets = [0, 1, 0, 0], sizes = [14, 1, 8, 448], strides = [1, 1, 1, 1]} : vector<14x2x8x448xf32> to vector<14x1x8x448xf32>
    %37 = vector.shape_cast %36 : vector<14x1x8x448xf32> to vector<14x8x448xf32>
    %38 = arith.maximumf %35, %37 : vector<14x8x448xf32>
    %39 = vector.shape_cast %38 : vector<14x8x448xf32> to vector<112x448xf32>
    %40 = arith.truncf %39 : vector<112x448xf32> to vector<112x448xbf16>
    %c0_19 = arith.constant 0 : index
    %c0_20 = arith.constant 0 : index
    %41 = vector.load %arg6[%c0_19, %c0_20] : memref<448x224xbf16, #tpu.memory_space<vmem>>, vector<448x224xbf16>
    %cst_21 = arith.constant dense<0.000000e+00> : vector<112x224xf32>
    %42 = tpu.matmul %40, %41, %cst_21 {dimension_numbers = #tpu.dot_dimension_numbers<[1], [0], [0], [1], [0, 0, 1, 1], [], []>} : vector<112x448xbf16>, vector<448x224xbf16>, vector<112x224xf32> -> vector<112x224xf32>
    %c0_22 = arith.constant 0 : index
    %c0_23 = arith.constant 0 : index
    %43 = vector.load %arg7[%c0_22, %c0_23] : memref<448x224xbf16, #tpu.memory_space<vmem>>, vector<448x224xbf16>
    %cst_24 = arith.constant dense<0.000000e+00> : vector<112x224xf32>
    %44 = tpu.matmul %40, %43, %cst_24 {dimension_numbers = #tpu.dot_dimension_numbers<[1], [0], [0], [1], [0, 0, 1, 1], [], []>} : vector<112x448xbf16>, vector<448x224xbf16>, vector<112x224xf32> -> vector<112x224xf32>
    %45 = arith.maximumf %42, %44 : vector<112x224xf32>
    %46 = arith.truncf %45 : vector<112x224xf32> to vector<112x224xbf16>
    %47 = vector.shape_cast %46 : vector<112x224xbf16> to vector<14x8x224xbf16>
    %48 = vector.extract_strided_slice %47 {offsets = [0, 0, 0], sizes = [10, 8, 224], strides = [1, 1, 1]} : vector<14x8x224xbf16> to vector<10x8x224xbf16>
    %49 = vector.shape_cast %48 : vector<10x8x224xbf16> to vector<80x224xbf16>
    %c0_25 = arith.constant 0 : index
    %c0_26 = arith.constant 0 : index
    %c0_27 = arith.constant 0 : index
    %50 = vector.load %arg4[%c0_25, %c0_26, %c0_27] : memref<5x224x320xbf16, #tpu.memory_space<vmem>>, vector<1x224x320xbf16>
    %51 = vector.shape_cast %50 : vector<1x224x320xbf16> to vector<224x320xbf16>
    %cst_28 = arith.constant dense<0.000000e+00> : vector<80x320xf32>
    %52 = tpu.matmul %49, %51, %cst_28 {dimension_numbers = #tpu.dot_dimension_numbers<[1], [0], [0], [1], [0, 0, 1, 1], [], []>} : vector<80x224xbf16>, vector<224x320xbf16>, vector<80x320xf32> -> vector<80x320xf32>
    %53 = vector.extract_strided_slice %47 {offsets = [1, 0, 0], sizes = [10, 8, 224], strides = [1, 1, 1]} : vector<14x8x224xbf16> to vector<10x8x224xbf16>
    %54 = vector.shape_cast %53 : vector<10x8x224xbf16> to vector<80x224xbf16>
    %c1_29 = arith.constant 1 : index
    %c0_30 = arith.constant 0 : index
    %c0_31 = arith.constant 0 : index
    %55 = vector.load %arg4[%c1_29, %c0_30, %c0_31] : memref<5x224x320xbf16, #tpu.memory_space<vmem>>, vector<1x224x320xbf16>
    %56 = vector.shape_cast %55 : vector<1x224x320xbf16> to vector<224x320xbf16>
    %cst_32 = arith.constant dense<0.000000e+00> : vector<80x320xf32>
    %57 = tpu.matmul %54, %56, %cst_32 {dimension_numbers = #tpu.dot_dimension_numbers<[1], [0], [0], [1], [0, 0, 1, 1], [], []>} : vector<80x224xbf16>, vector<224x320xbf16>, vector<80x320xf32> -> vector<80x320xf32>
    %58 = arith.addf %52, %57 : vector<80x320xf32>
    %59 = vector.extract_strided_slice %47 {offsets = [2, 0, 0], sizes = [10, 8, 224], strides = [1, 1, 1]} : vector<14x8x224xbf16> to vector<10x8x224xbf16>
    %60 = vector.shape_cast %59 : vector<10x8x224xbf16> to vector<80x224xbf16>
    %c2_33 = arith.constant 2 : index
    %c0_34 = arith.constant 0 : index
    %c0_35 = arith.constant 0 : index
    %61 = vector.load %arg4[%c2_33, %c0_34, %c0_35] : memref<5x224x320xbf16, #tpu.memory_space<vmem>>, vector<1x224x320xbf16>
    %62 = vector.shape_cast %61 : vector<1x224x320xbf16> to vector<224x320xbf16>
    %cst_36 = arith.constant dense<0.000000e+00> : vector<80x320xf32>
    %63 = tpu.matmul %60, %62, %cst_36 {dimension_numbers = #tpu.dot_dimension_numbers<[1], [0], [0], [1], [0, 0, 1, 1], [], []>} : vector<80x224xbf16>, vector<224x320xbf16>, vector<80x320xf32> -> vector<80x320xf32>
    %64 = arith.addf %58, %63 : vector<80x320xf32>
    %65 = vector.extract_strided_slice %47 {offsets = [3, 0, 0], sizes = [10, 8, 224], strides = [1, 1, 1]} : vector<14x8x224xbf16> to vector<10x8x224xbf16>
    %66 = vector.shape_cast %65 : vector<10x8x224xbf16> to vector<80x224xbf16>
    %c3_37 = arith.constant 3 : index
    %c0_38 = arith.constant 0 : index
    %c0_39 = arith.constant 0 : index
    %67 = vector.load %arg4[%c3_37, %c0_38, %c0_39] : memref<5x224x320xbf16, #tpu.memory_space<vmem>>, vector<1x224x320xbf16>
    %68 = vector.shape_cast %67 : vector<1x224x320xbf16> to vector<224x320xbf16>
    %cst_40 = arith.constant dense<0.000000e+00> : vector<80x320xf32>
    %69 = tpu.matmul %66, %68, %cst_40 {dimension_numbers = #tpu.dot_dimension_numbers<[1], [0], [0], [1], [0, 0, 1, 1], [], []>} : vector<80x224xbf16>, vector<224x320xbf16>, vector<80x320xf32> -> vector<80x320xf32>
    %70 = arith.addf %64, %69 : vector<80x320xf32>
    %71 = vector.extract_strided_slice %47 {offsets = [4, 0, 0], sizes = [10, 8, 224], strides = [1, 1, 1]} : vector<14x8x224xbf16> to vector<10x8x224xbf16>
    %72 = vector.shape_cast %71 : vector<10x8x224xbf16> to vector<80x224xbf16>
    %c4_41 = arith.constant 4 : index
    %c0_42 = arith.constant 0 : index
    %c0_43 = arith.constant 0 : index
    %73 = vector.load %arg4[%c4_41, %c0_42, %c0_43] : memref<5x224x320xbf16, #tpu.memory_space<vmem>>, vector<1x224x320xbf16>
    %74 = vector.shape_cast %73 : vector<1x224x320xbf16> to vector<224x320xbf16>
    %cst_44 = arith.constant dense<0.000000e+00> : vector<80x320xf32>
    %75 = tpu.matmul %72, %74, %cst_44 {dimension_numbers = #tpu.dot_dimension_numbers<[1], [0], [0], [1], [0, 0, 1, 1], [], []>} : vector<80x224xbf16>, vector<224x320xbf16>, vector<80x320xf32> -> vector<80x320xf32>
    %76 = arith.addf %70, %75 : vector<80x320xf32>
    %c0_45 = arith.constant 0 : index
    %c0_46 = arith.constant 0 : index
    %77 = vector.load %arg5[%c0_45, %c0_46] : memref<1x320xf32, #tpu.memory_space<vmem>>, vector<1x320xf32>
    %78 = vector.broadcast %77 : vector<1x320xf32> to vector<80x320xf32>
    %79 = arith.addf %76, %78 : vector<80x320xf32>
    %80 = vector.shape_cast %79 : vector<80x320xf32> to vector<5x2x8x320xf32>
    %81 = vector.extract_strided_slice %80 {offsets = [0, 0, 0, 0], sizes = [5, 1, 8, 320], strides = [1, 1, 1, 1]} : vector<5x2x8x320xf32> to vector<5x1x8x320xf32>
    %82 = vector.shape_cast %81 : vector<5x1x8x320xf32> to vector<5x8x320xf32>
    %83 = vector.extract_strided_slice %80 {offsets = [0, 1, 0, 0], sizes = [5, 1, 8, 320], strides = [1, 1, 1, 1]} : vector<5x2x8x320xf32> to vector<5x1x8x320xf32>
    %84 = vector.shape_cast %83 : vector<5x1x8x320xf32> to vector<5x8x320xf32>
    %85 = arith.maximumf %82, %84 : vector<5x8x320xf32>
    %86 = vector.shape_cast %85 : vector<5x8x320xf32> to vector<40x320xf32>
    %87 = arith.truncf %86 : vector<40x320xf32> to vector<40x320xbf16>
    %c0_47 = arith.constant 0 : index
    %c0_48 = arith.constant 0 : index
    %88 = vector.load %arg8[%c0_47, %c0_48] : memref<320x160xbf16, #tpu.memory_space<vmem>>, vector<320x160xbf16>
    %cst_49 = arith.constant dense<0.000000e+00> : vector<40x160xf32>
    %89 = tpu.matmul %87, %88, %cst_49 {dimension_numbers = #tpu.dot_dimension_numbers<[1], [0], [0], [1], [0, 0, 1, 1], [], []>} : vector<40x320xbf16>, vector<320x160xbf16>, vector<40x160xf32> -> vector<40x160xf32>
    %c0_50 = arith.constant 0 : index
    %c0_51 = arith.constant 0 : index
    %90 = vector.load %arg9[%c0_50, %c0_51] : memref<320x160xbf16, #tpu.memory_space<vmem>>, vector<320x160xbf16>
    %cst_52 = arith.constant dense<0.000000e+00> : vector<40x160xf32>
    %91 = tpu.matmul %87, %90, %cst_52 {dimension_numbers = #tpu.dot_dimension_numbers<[1], [0], [0], [1], [0, 0, 1, 1], [], []>} : vector<40x320xbf16>, vector<320x160xbf16>, vector<40x160xf32> -> vector<40x160xf32>
    %92 = arith.maximumf %89, %91 : vector<40x160xf32>
    %93 = arith.truncf %92 : vector<40x160xf32> to vector<40x160xbf16>
    %94 = vector.shape_cast %93 : vector<40x160xbf16> to vector<5x8x160xbf16>
    %95 = vector.extract_strided_slice %94 {offsets = [0, 0, 0], sizes = [1, 8, 160], strides = [1, 1, 1]} : vector<5x8x160xbf16> to vector<1x8x160xbf16>
    %96 = vector.shape_cast %95 : vector<1x8x160xbf16> to vector<8x160xbf16>
    %c0_53 = arith.constant 0 : index
    %c0_54 = arith.constant 0 : index
    %c0_55 = arith.constant 0 : index
    %97 = vector.load %arg10[%c0_53, %c0_54, %c0_55] : memref<5x160x32xbf16, #tpu.memory_space<vmem>>, vector<1x160x32xbf16>
    %98 = vector.shape_cast %97 : vector<1x160x32xbf16> to vector<160x32xbf16>
    %cst_56 = arith.constant dense<0.000000e+00> : vector<8x32xf32>
    %99 = tpu.matmul %96, %98, %cst_56 {dimension_numbers = #tpu.dot_dimension_numbers<[1], [0], [0], [1], [0, 0, 1, 1], [], []>} : vector<8x160xbf16>, vector<160x32xbf16>, vector<8x32xf32> -> vector<8x32xf32>
    %100 = vector.extract_strided_slice %94 {offsets = [1, 0, 0], sizes = [1, 8, 160], strides = [1, 1, 1]} : vector<5x8x160xbf16> to vector<1x8x160xbf16>
    %101 = vector.shape_cast %100 : vector<1x8x160xbf16> to vector<8x160xbf16>
    %c1_57 = arith.constant 1 : index
    %c0_58 = arith.constant 0 : index
    %c0_59 = arith.constant 0 : index
    %102 = vector.load %arg10[%c1_57, %c0_58, %c0_59] : memref<5x160x32xbf16, #tpu.memory_space<vmem>>, vector<1x160x32xbf16>
    %103 = vector.shape_cast %102 : vector<1x160x32xbf16> to vector<160x32xbf16>
    %cst_60 = arith.constant dense<0.000000e+00> : vector<8x32xf32>
    %104 = tpu.matmul %101, %103, %cst_60 {dimension_numbers = #tpu.dot_dimension_numbers<[1], [0], [0], [1], [0, 0, 1, 1], [], []>} : vector<8x160xbf16>, vector<160x32xbf16>, vector<8x32xf32> -> vector<8x32xf32>
    %105 = arith.addf %99, %104 : vector<8x32xf32>
    %106 = vector.extract_strided_slice %94 {offsets = [2, 0, 0], sizes = [1, 8, 160], strides = [1, 1, 1]} : vector<5x8x160xbf16> to vector<1x8x160xbf16>
    %107 = vector.shape_cast %106 : vector<1x8x160xbf16> to vector<8x160xbf16>
    %c2_61 = arith.constant 2 : index
    %c0_62 = arith.constant 0 : index
    %c0_63 = arith.constant 0 : index
    %108 = vector.load %arg10[%c2_61, %c0_62, %c0_63] : memref<5x160x32xbf16, #tpu.memory_space<vmem>>, vector<1x160x32xbf16>
    %109 = vector.shape_cast %108 : vector<1x160x32xbf16> to vector<160x32xbf16>
    %cst_64 = arith.constant dense<0.000000e+00> : vector<8x32xf32>
    %110 = tpu.matmul %107, %109, %cst_64 {dimension_numbers = #tpu.dot_dimension_numbers<[1], [0], [0], [1], [0, 0, 1, 1], [], []>} : vector<8x160xbf16>, vector<160x32xbf16>, vector<8x32xf32> -> vector<8x32xf32>
    %111 = arith.addf %105, %110 : vector<8x32xf32>
    %112 = vector.extract_strided_slice %94 {offsets = [3, 0, 0], sizes = [1, 8, 160], strides = [1, 1, 1]} : vector<5x8x160xbf16> to vector<1x8x160xbf16>
    %113 = vector.shape_cast %112 : vector<1x8x160xbf16> to vector<8x160xbf16>
    %c3_65 = arith.constant 3 : index
    %c0_66 = arith.constant 0 : index
    %c0_67 = arith.constant 0 : index
    %114 = vector.load %arg10[%c3_65, %c0_66, %c0_67] : memref<5x160x32xbf16, #tpu.memory_space<vmem>>, vector<1x160x32xbf16>
    %115 = vector.shape_cast %114 : vector<1x160x32xbf16> to vector<160x32xbf16>
    %cst_68 = arith.constant dense<0.000000e+00> : vector<8x32xf32>
    %116 = tpu.matmul %113, %115, %cst_68 {dimension_numbers = #tpu.dot_dimension_numbers<[1], [0], [0], [1], [0, 0, 1, 1], [], []>} : vector<8x160xbf16>, vector<160x32xbf16>, vector<8x32xf32> -> vector<8x32xf32>
    %117 = arith.addf %111, %116 : vector<8x32xf32>
    %118 = vector.extract_strided_slice %94 {offsets = [4, 0, 0], sizes = [1, 8, 160], strides = [1, 1, 1]} : vector<5x8x160xbf16> to vector<1x8x160xbf16>
    %119 = vector.shape_cast %118 : vector<1x8x160xbf16> to vector<8x160xbf16>
    %c4_69 = arith.constant 4 : index
    %c0_70 = arith.constant 0 : index
    %c0_71 = arith.constant 0 : index
    %120 = vector.load %arg10[%c4_69, %c0_70, %c0_71] : memref<5x160x32xbf16, #tpu.memory_space<vmem>>, vector<1x160x32xbf16>
    %121 = vector.shape_cast %120 : vector<1x160x32xbf16> to vector<160x32xbf16>
    %cst_72 = arith.constant dense<0.000000e+00> : vector<8x32xf32>
    %122 = tpu.matmul %119, %121, %cst_72 {dimension_numbers = #tpu.dot_dimension_numbers<[1], [0], [0], [1], [0, 0, 1, 1], [], []>} : vector<8x160xbf16>, vector<160x32xbf16>, vector<8x32xf32> -> vector<8x32xf32>
    %123 = arith.addf %117, %122 : vector<8x32xf32>
    %c0_73 = arith.constant 0 : index
    %c0_74 = arith.constant 0 : index
    %124 = vector.load %arg11[%c0_73, %c0_74] : memref<1x32xf32, #tpu.memory_space<vmem>>, vector<1x32xf32>
    %125 = vector.broadcast %124 : vector<1x32xf32> to vector<8x32xf32>
    %126 = arith.addf %123, %125 : vector<8x32xf32>
    %cst_75 = arith.constant 0.000000e+00 : f32
    %127 = vector.broadcast %cst_75 : f32 to vector<8x32xf32>
    %128 = arith.maximumf %126, %127 : vector<8x32xf32>
    %129 = arith.truncf %128 : vector<8x32xf32> to vector<8x32xbf16>
    %c0_76 = arith.constant 0 : index
    %c0_77 = arith.constant 0 : index
    %130 = vector.load %arg12[%c0_76, %c0_77] : memref<32x10xbf16, #tpu.memory_space<vmem>>, vector<32x10xbf16>
    %cst_78 = arith.constant dense<0.000000e+00> : vector<8x10xf32>
    %131 = tpu.matmul %129, %130, %cst_78 {dimension_numbers = #tpu.dot_dimension_numbers<[1], [0], [0], [1], [0, 0, 1, 1], [], []>} : vector<8x32xbf16>, vector<32x10xbf16>, vector<8x10xf32> -> vector<8x10xf32>
    %c0_79 = arith.constant 0 : index
    %c0_80 = arith.constant 0 : index
    %132 = vector.load %arg13[%c0_79, %c0_80] : memref<1x10xf32, #tpu.memory_space<vmem>>, vector<1x10xf32>
    %133 = vector.broadcast %132 : vector<1x10xf32> to vector<8x10xf32>
    %134 = arith.addf %131, %133 : vector<8x10xf32>
    %c0_81 = arith.constant 0 : index
    %c0_82 = arith.constant 0 : index
    %135 = vector.load %arg14[%c0_81, %c0_82] : memref<8x10xf32, #tpu.memory_space<vmem>>, vector<8x10xf32>
    tpu.vector_store %arg14[%c0_81, %c0_82], %134 {strides = array<i32>} : memref<8x10xf32, #tpu.memory_space<vmem>>, vector<8x10xf32>,
    return
  }
  func.func @transform_0(%arg0: i32) -> (i32, i32, i32) {
    %c0_i32 = arith.constant 0 : i32
    %c0_i32_0 = arith.constant 0 : i32
    %c0_i32_1 = arith.constant 0 : i32
    return %c0_i32, %arg0, %c0_i32_0 : i32, i32, i32
  }
  func.func @transform_1(%arg0: i32) -> (i32, i32, i32) {
    %c0_i32 = arith.constant 0 : i32
    %c0_i32_0 = arith.constant 0 : i32
    %c0_i32_1 = arith.constant 0 : i32
    %c0_i32_2 = arith.constant 0 : i32
    return %c0_i32, %c0_i32_0, %c0_i32_1 : i32, i32, i32
  }
  func.func @transform_2(%arg0: i32) -> (i32, i32) {
    %c0_i32 = arith.constant 0 : i32
    %c0_i32_0 = arith.constant 0 : i32
    %c0_i32_1 = arith.constant 0 : i32
    return %c0_i32, %c0_i32_0 : i32, i32
  }
  func.func @transform_3(%arg0: i32) -> (i32, i32, i32) {
    %c0_i32 = arith.constant 0 : i32
    %c0_i32_0 = arith.constant 0 : i32
    %c0_i32_1 = arith.constant 0 : i32
    %c0_i32_2 = arith.constant 0 : i32
    return %c0_i32, %c0_i32_0, %c0_i32_1 : i32, i32, i32
  }
  func.func @transform_4(%arg0: i32) -> (i32, i32) {
    %c0_i32 = arith.constant 0 : i32
    %c0_i32_0 = arith.constant 0 : i32
    %c0_i32_1 = arith.constant 0 : i32
    return %c0_i32, %c0_i32_0 : i32, i32
  }
  func.func @transform_5(%arg0: i32) -> (i32, i32) {
    %c0_i32 = arith.constant 0 : i32
    %c0_i32_0 = arith.constant 0 : i32
    %c0_i32_1 = arith.constant 0 : i32
    return %c0_i32, %c0_i32_0 : i32, i32
  }
  func.func @transform_6(%arg0: i32) -> (i32, i32) {
    %c0_i32 = arith.constant 0 : i32
    %c0_i32_0 = arith.constant 0 : i32
    %c0_i32_1 = arith.constant 0 : i32
    return %c0_i32, %c0_i32_0 : i32, i32
  }
  func.func @transform_7(%arg0: i32) -> (i32, i32) {
    %c0_i32 = arith.constant 0 : i32
    %c0_i32_0 = arith.constant 0 : i32
    %c0_i32_1 = arith.constant 0 : i32
    return %c0_i32, %c0_i32_0 : i32, i32
  }
  func.func @transform_8(%arg0: i32) -> (i32, i32) {
    %c0_i32 = arith.constant 0 : i32
    %c0_i32_0 = arith.constant 0 : i32
    %c0_i32_1 = arith.constant 0 : i32
    return %c0_i32, %c0_i32_0 : i32, i32
  }
  func.func @transform_9(%arg0: i32) -> (i32, i32, i32) {
    %c0_i32 = arith.constant 0 : i32
    %c0_i32_0 = arith.constant 0 : i32
    %c0_i32_1 = arith.constant 0 : i32
    %c0_i32_2 = arith.constant 0 : i32
    return %c0_i32, %c0_i32_0, %c0_i32_1 : i32, i32, i32
  }
  func.func @transform_10(%arg0: i32) -> (i32, i32) {
    %c0_i32 = arith.constant 0 : i32
    %c0_i32_0 = arith.constant 0 : i32
    %c0_i32_1 = arith.constant 0 : i32
    return %c0_i32, %c0_i32_0 : i32, i32
  }
  func.func @transform_11(%arg0: i32) -> (i32, i32) {
    %c0_i32 = arith.constant 0 : i32
    %c0_i32_0 = arith.constant 0 : i32
    %c0_i32_1 = arith.constant 0 : i32
    return %c0_i32, %c0_i32_0 : i32, i32
  }
  func.func @transform_12(%arg0: i32) -> (i32, i32) {
    %c0_i32 = arith.constant 0 : i32
    %c0_i32_0 = arith.constant 0 : i32
    %c0_i32_1 = arith.constant 0 : i32
    return %c0_i32, %c0_i32_0 : i32, i32
  }
  func.func @transform_13(%arg0: i32) -> (i32, i32) {
    %c0_i32 = arith.constant 0 : i32
    %c0_i32_0 = arith.constant 0 : i32
    return %arg0, %c0_i32 : i32, i32
  }
}

</mosaic_0001>

<llo_original>
// kernel: lenet5_forward.1
$region0: #{lenet5_forward.1}
  #allocation0 [shape = 'u32[]', space=smem, size = 0x4, offset = 0x4, fixed_abs, tag = 'smem constant byte address 0x4 - core index']
  #allocation1 [shape = 'u32[72,128]{1,0:T(1,128)}', space=vmem, size = 0x9000, scoped, tag = 'internal scratch']
  %s0 = inlined_call_operand.vmem [shape: bf16[32,8,96], index: 0, kind: input, shape index: {}]
  %s1 = inlined_call_operand.vmem [shape: bf16[5,96,448], index: 1, kind: input, shape index: {}]
  %s2 = inlined_call_operand.vmem [shape: f32[1,448], index: 2, kind: input, shape index: {}]
  %s3 = inlined_call_operand.vmem [shape: bf16[5,224,320], index: 3, kind: input, shape index: {}]
  %s4 = inlined_call_operand.vmem [shape: f32[1,320], index: 4, kind: input, shape index: {}]
  %s5 = inlined_call_operand.vmem [shape: bf16[448,224], index: 5, kind: input, shape index: {}]
  %s6 = inlined_call_operand.vmem [shape: bf16[448,224], index: 6, kind: input, shape index: {}]
  %s7 = inlined_call_operand.vmem [shape: bf16[320,160], index: 7, kind: input, shape index: {}]
  %s8 = inlined_call_operand.vmem [shape: bf16[320,160], index: 8, kind: input, shape index: {}]
  %s9 = inlined_call_operand.vmem [shape: bf16[5,160,32], index: 9, kind: input, shape index: {}]
  %s10 = inlined_call_operand.vmem [shape: f32[1,32], index: 10, kind: input, shape index: {}]
  %s11 = inlined_call_operand.vmem [shape: bf16[32,10], index: 11, kind: input, shape index: {}]
  %s12 = inlined_call_operand.vmem [shape: f32[1,10], index: 12, kind: input, shape index: {}]
  %s13 = inlined_call_operand.vmem [shape: f32[8,10], index: 13, kind: output, shape index: {}]
  %s14 = sld [smem:[#allocation0]]
  $region62: #{lenet5_forward.1} parent=0
    _
  %s16 = ssub.s32 1, %s14
  %s17 = scalar_select 0, %s16, %s14
  // Predicated region
  $region2: #{lenet5_forward.1} parent=0 // pred_check
    _
  $region3: #{lenet5_forward.1} parent=0 // pred_check_branch
    %19 = sbr.rel (0) target = $region5
  $region4: #{lenet5_forward.1} parent=0 // pred_region
    _
  $region5: #{lenet5_forward.1} parent=0 // pred_fallthru
    _
  // Predicated region
  $region6: #{lenet5_forward.1} parent=0 // pred_check
    _
  $region7: #{lenet5_forward.1} parent=0 // pred_check_branch
    %21 = sbr.rel (0) target = $region9
  $region8: #{lenet5_forward.1} parent=0 // pred_region
    _
  $region9: #{lenet5_forward.1} parent=0 // pred_fallthru
    _
  // Predicated region
  $region10: #{lenet5_forward.1} parent=0 // pred_check
    _
  $region11: #{lenet5_forward.1} parent=0 // pred_check_branch
    %23 = sbr.rel (0) target = $region13
  $region12: #{lenet5_forward.1} parent=0 // pred_region
    _
  $region13: #{lenet5_forward.1} parent=0 // pred_fallthru
    _
  // Predicated region
  $region14: #{lenet5_forward.1} parent=0 // pred_check
    _
  $region15: #{lenet5_forward.1} parent=0 // pred_check_branch
    %25 = sbr.rel (0) target = $region17
  $region16: #{lenet5_forward.1} parent=0 // pred_region
    _
  $region17: #{lenet5_forward.1} parent=0 // pred_fallthru
    _
  // Predicated region
  $region18: #{lenet5_forward.1} parent=0 // pred_check
    _
  $region19: #{lenet5_forward.1} parent=0 // pred_check_branch
    %27 = sbr.rel (0) target = $region21
  $region20: #{lenet5_forward.1} parent=0 // pred_region
    _
  $region21: #{lenet5_forward.1} parent=0 // pred_fallthru
    _
  // Predicated region
  $region22: #{lenet5_forward.1} parent=0 // pred_check
    _
  $region23: #{lenet5_forward.1} parent=0 // pred_check_branch
    %29 = sbr.rel (0) target = $region25
  $region24: #{lenet5_forward.1} parent=0 // pred_region
    _
  $region25: #{lenet5_forward.1} parent=0 // pred_fallthru
    _
  // Predicated region
  $region26: #{lenet5_forward.1} parent=0 // pred_check
    _
  $region27: #{lenet5_forward.1} parent=0 // pred_check_branch
    %31 = sbr.rel (0) target = $region29
  $region28: #{lenet5_forward.1} parent=0 // pred_region
    _
  $region29: #{lenet5_forward.1} parent=0 // pred_fallthru
    _
  // Predicated region
  $region30: #{lenet5_forward.1} parent=0 // pred_check
    _
  $region31: #{lenet5_forward.1} parent=0 // pred_check_branch
    %33 = sbr.rel (0) target = $region33
  $region32: #{lenet5_forward.1} parent=0 // pred_region
    _
  $region33: #{lenet5_forward.1} parent=0 // pred_fallthru
    _
  // Predicated region
  $region34: #{lenet5_forward.1} parent=0 // pred_check
    _
  $region35: #{lenet5_forward.1} parent=0 // pred_check_branch
    %35 = sbr.rel (0) target = $region37
  $region36: #{lenet5_forward.1} parent=0 // pred_region
    _
  $region37: #{lenet5_forward.1} parent=0 // pred_fallthru
    _
  // Predicated region
  $region38: #{lenet5_forward.1} parent=0 // pred_check
    _
  $region39: #{lenet5_forward.1} parent=0 // pred_check_branch
    %37 = sbr.rel (0) target = $region41
  $region40: #{lenet5_forward.1} parent=0 // pred_region
    _
  $region41: #{lenet5_forward.1} parent=0 // pred_fallthru
    _
  // Predicated region
  $region42: #{lenet5_forward.1} parent=0 // pred_check
    _
  $region43: #{lenet5_forward.1} parent=0 // pred_check_branch
    %39 = sbr.rel (0) target = $region45
  $region44: #{lenet5_forward.1} parent=0 // pred_region
    _
  $region45: #{lenet5_forward.1} parent=0 // pred_fallthru
    _
  // Predicated region
  $region46: #{lenet5_forward.1} parent=0 // pred_check
    _
  $region47: #{lenet5_forward.1} parent=0 // pred_check_branch
    %41 = sbr.rel (0) target = $region49
  $region48: #{lenet5_forward.1} parent=0 // pred_region
    _
  $region49: #{lenet5_forward.1} parent=0 // pred_fallthru
    _
  // Predicated region
  $region50: #{lenet5_forward.1} parent=0 // pred_check
    _
  $region51: #{lenet5_forward.1} parent=0 // pred_check_branch
    %43 = sbr.rel (0) target = $region53
  $region52: #{lenet5_forward.1} parent=0 // pred_region
    _
  $region53: #{lenet5_forward.1} parent=0 // pred_fallthru
    _
  %v45 = vld [vmem:[%s0] sm:$0xf]
  %v46 = vld [vmem:[%s0 + $0x4] sm:$0xf]
  %v47 = vld [vmem:[%s0 + $0x8] sm:$0xf]
  %v48 = vld [vmem:[%s0 + $0xc] sm:$0xf]
  %v49 = vld [vmem:[%s0 + $0x10] sm:$0xf]
  %v50 = vld [vmem:[%s0 + $0x14] sm:$0xf]
  %v51 = vld [vmem:[%s0 + $0x18] sm:$0xf]
  %v52 = vld [vmem:[%s0 + $0x1c] sm:$0xf]
  %v53 = vld [vmem:[%s0 + $0x20] sm:$0xf]
  %v54 = vld [vmem:[%s0 + $0x24] sm:$0xf]
  %v55 = vld [vmem:[%s0 + $0x28] sm:$0xf]
  %v56 = vld [vmem:[%s0 + $0x2c] sm:$0xf]
  %v57 = vld [vmem:[%s0 + $0x30] sm:$0xf]
  %v58 = vld [vmem:[%s0 + $0x34] sm:$0xf]
  %v59 = vld [vmem:[%s0 + $0x38] sm:$0xf]
  %v60 = vld [vmem:[%s0 + $0x3c] sm:$0xf]
  %v61 = vld [vmem:[%s0 + $0x40] sm:$0xf]
  %v62 = vld [vmem:[%s0 + $0x44] sm:$0xf]
  %v63 = vld [vmem:[%s0 + $0x48] sm:$0xf]
  %v64 = vld [vmem:[%s0 + $0x4c] sm:$0xf]
  %v65 = vld [vmem:[%s0 + $0x50] sm:$0xf]
  %v66 = vld [vmem:[%s0 + $0x54] sm:$0xf]
  %v67 = vld [vmem:[%s0 + $0x58] sm:$0xf]
  %v68 = vld [vmem:[%s0 + $0x5c] sm:$0xf]
  %v69 = vld [vmem:[%s0 + $0x60] sm:$0xf]
  %v70 = vld [vmem:[%s0 + $0x64] sm:$0xf]
  %v71 = vld [vmem:[%s0 + $0x68] sm:$0xf]
  %v72 = vld [vmem:[%s0 + $0x6c] sm:$0xf]
  %v73 = vld [vmem:[%s0 + $0x70] sm:$0xf]
  %v74 = vld [vmem:[%s0 + $0x74] sm:$0xf]
  %v75 = vld [vmem:[%s0 + $0x78] sm:$0xf]
  %v76 = vld [vmem:[%s0 + $0x7c] sm:$0xf]
  %v77 = vld [vmem:[%s1] sm:$0xff]
  %v78 = vld [vmem:[%s1 + $0x8] sm:$0xff]
  %v79 = vld [vmem:[%s1 + $0x10] sm:$0xff]
  %v80 = vld [vmem:[%s1 + $0x18] sm:$0xff]
  %v81 = vld [vmem:[%s1 + $0x20] sm:$0xff]
  %v82 = vld [vmem:[%s1 + $0x28] sm:$0xff]
  %v83 = vld [vmem:[%s1 + $0x30] sm:$0xff]
  %v84 = vld [vmem:[%s1 + $0x38] sm:$0xff]
  %v85 = vld [vmem:[%s1 + $0x40] sm:$0xff]
  %v86 = vld [vmem:[%s1 + $0x48] sm:$0xff]
  %v87 = vld [vmem:[%s1 + $0x50] sm:$0xff]
  %v88 = vld [vmem:[%s1 + $0x58] sm:$0xff]
  %v89 = vld [vmem:[%s1 + $0x60] sm:$0xff]
  %v90 = vld [vmem:[%s1 + $0x68] sm:$0xff]
  %v91 = vld [vmem:[%s1 + $0x70] sm:$0xff]
  %v92 = vld [vmem:[%s1 + $0x78] sm:$0xff]
  %v93 = vld [vmem:[%s1 + $0x80] sm:$0xff]
  %v94 = vld [vmem:[%s1 + $0x88] sm:$0xff]
  %v95 = vld [vmem:[%s1 + $0x90] sm:$0xff]
  %v96 = vld [vmem:[%s1 + $0x98] sm:$0xff]
  %v97 = vld [vmem:[%s1 + $0xa0] sm:$0xff]
  %v98 = vld [vmem:[%s1 + $0xa8] sm:$0xff]
  %v99 = vld [vmem:[%s1 + $0xb0] sm:$0xff]
  %v100 = vld [vmem:[%s1 + $0xb8] sm:$0xff]
  %s101 = scalar_lea.vmem %s1, 192
  %v102 = vld [vmem:[%s101] sm:$0xff]
  %v103 = vld [vmem:[%s101 + $0x8] sm:$0xff]
  %v104 = vld [vmem:[%s101 + $0x10] sm:$0xff]
  %v105 = vld [vmem:[%s101 + $0x18] sm:$0xff]
  %v106 = vld [vmem:[%s101 + $0x20] sm:$0xff]
  %v107 = vld [vmem:[%s101 + $0x28] sm:$0xff]
  %v108 = vld [vmem:[%s101 + $0x30] sm:$0xff]
  %v109 = vld [vmem:[%s101 + $0x38] sm:$0xff]
  %v110 = vld [vmem:[%s101 + $0x40] sm:$0xff]
  %v111 = vld [vmem:[%s101 + $0x48] sm:$0xff]
  %v112 = vld [vmem:[%s101 + $0x50] sm:$0xff]
  %v113 = vld [vmem:[%s101 + $0x58] sm:$0xff]
  %v114 = vld [vmem:[%s101 + $0x60] sm:$0xff]
  %v115 = vld [vmem:[%s101 + $0x68] sm:$0xff]
  %v116 = vld [vmem:[%s101 + $0x70] sm:$0xff]
  %v117 = vld [vmem:[%s101 + $0x78] sm:$0xff]
  %v118 = vld [vmem:[%s101 + $0x80] sm:$0xff]
  %v119 = vld [vmem:[%s101 + $0x88] sm:$0xff]
  %v120 = vld [vmem:[%s101 + $0x90] sm:$0xff]
  %v121 = vld [vmem:[%s101 + $0x98] sm:$0xff]
  %v122 = vld [vmem:[%s101 + $0xa0] sm:$0xff]
  %v123 = vld [vmem:[%s101 + $0xa8] sm:$0xff]
  %v124 = vld [vmem:[%s101 + $0xb0] sm:$0xff]
  %v125 = vld [vmem:[%s101 + $0xb8] sm:$0xff]
  %v154 = vunpack.c.l.b16 %v46
  %v155 = vunpack.c.l.b16 %v47
  %v156 = vunpack.c.l.b16 %v48
  %v157 = vunpack.c.l.b16 %v49
  %v158 = vunpack.c.l.b16 %v50
  %v159 = vunpack.c.l.b16 %v51
  %v160 = vunpack.c.l.b16 %v52
  %v161 = vunpack.c.l.b16 %v53
  %v162 = vunpack.c.l.b16 %v54
  %v163 = vunpack.c.l.b16 %v55
  %v164 = vunpack.c.l.b16 %v56
  %v165 = vunpack.c.l.b16 %v57
  %v166 = vunpack.c.l.b16 %v58
  %v167 = vunpack.c.l.b16 %v59
  %v168 = vunpack.c.l.b16 %v60
  %v169 = vunpack.c.l.b16 %v61
  %v170 = vunpack.c.l.b16 %v62
  %v171 = vunpack.c.l.b16 %v63
  %v172 = vunpack.c.l.b16 %v64
  %v173 = vunpack.c.l.b16 %v65
  %v174 = vunpack.c.l.b16 %v66
  %v175 = vunpack.c.l.b16 %v67
  %v176 = vunpack.c.l.b16 %v68
  %v177 = vunpack.c.l.b16 %v69
  %v178 = vunpack.c.l.b16 %v70
  %v179 = vunpack.c.l.b16 %v71
  %v180 = vunpack.c.l.b16 %v72
  %v181 = vunpack.c.l.b16 %v73
  %v182 = vpack.c.b16 %v155, %v154
  %v183 = vpack.c.b16 %v157, %v156
  %v184 = vpack.c.b16 %v159, %v158
  %v185 = vpack.c.b16 %v161, %v160
  %v186 = vpack.c.b16 %v163, %v162
  %v187 = vpack.c.b16 %v165, %v164
  %v188 = vpack.c.b16 %v167, %v166
  %v189 = vpack.c.b16 %v169, %v168
  %v190 = vpack.c.b16 %v171, %v170
  %v191 = vpack.c.b16 %v173, %v172
  %v192 = vpack.c.b16 %v175, %v174
  %v193 = vpack.c.b16 %v177, %v176
  %v194 = vpack.c.b16 %v179, %v178
  %v195 = vpack.c.b16 %v181, %v180
  %v220 = vunpack.c.l.b16 %v102
  %v221 = vunpack.c.h.b16 %v102
  %v222 = vunpack.c.l.b16 %v103
  %v223 = vunpack.c.h.b16 %v103
  %v224 = vunpack.c.l.b16 %v104
  %v225 = vunpack.c.h.b16 %v104
  %v226 = vunpack.c.l.b16 %v105
  %v227 = vunpack.c.h.b16 %v105
  %v228 = vunpack.c.l.b16 %v106
  %v229 = vunpack.c.h.b16 %v106
  %v230 = vunpack.c.l.b16 %v107
  %v231 = vunpack.c.h.b16 %v107
  %v232 = vunpack.c.l.b16 %v108
  %v233 = vunpack.c.h.b16 %v108
  %v234 = vunpack.c.l.b16 %v109
  %v235 = vunpack.c.h.b16 %v109
  %v236 = vunpack.c.l.b16 %v110
  %v237 = vunpack.c.h.b16 %v110
  %v238 = vunpack.c.l.b16 %v111
  %v239 = vunpack.c.h.b16 %v111
  %v240 = vunpack.c.l.b16 %v112
  %v241 = vunpack.c.h.b16 %v112
  %v242 = vunpack.c.l.b16 %v113
  %v243 = vunpack.c.h.b16 %v113
  %v244 = vunpack.c.l.b16 %v114
  %v245 = vunpack.c.h.b16 %v114
  %v246 = vunpack.c.l.b16 %v115
  %v247 = vunpack.c.h.b16 %v115
  %v248 = vunpack.c.l.b16 %v116
  %v249 = vunpack.c.h.b16 %v116
  %v250 = vunpack.c.l.b16 %v117
  %v251 = vunpack.c.h.b16 %v117
  %v252 = vunpack.c.l.b16 %v118
  %v253 = vunpack.c.h.b16 %v118
  %v254 = vunpack.c.l.b16 %v119
  %v255 = vunpack.c.h.b16 %v119
  %v256 = vunpack.c.l.b16 %v120
  %v257 = vunpack.c.h.b16 %v120
  %v258 = vunpack.c.l.b16 %v121
  %v259 = vunpack.c.h.b16 %v121
  %v260 = vunpack.c.l.b16 %v122
  %v261 = vunpack.c.h.b16 %v122
  %v262 = vunpack.c.l.b16 %v123
  %v263 = vunpack.c.h.b16 %v123
  %v264 = vunpack.c.l.b16 %v124
  %v265 = vunpack.c.h.b16 %v124
  %v266 = vunpack.c.l.b16 %v125
  %v267 = vunpack.c.h.b16 %v125
  %v268 = vpack.c.b16 %v224, %v220
  %v269 = vpack.c.b16 %v225, %v221
  %v270 = vpack.c.b16 %v226, %v222
  %v271 = vpack.c.b16 %v227, %v223
  %v272 = vpack.c.b16 %v232, %v228
  %v273 = vpack.c.b16 %v233, %v229
  %v274 = vpack.c.b16 %v234, %v230
  %v275 = vpack.c.b16 %v235, %v231
  %v276 = vpack.c.b16 %v240, %v236
  %v277 = vpack.c.b16 %v241, %v237
  %v278 = vpack.c.b16 %v242, %v238
  %v279 = vpack.c.b16 %v243, %v239
  %v280 = vpack.c.b16 %v248, %v244
  %v281 = vpack.c.b16 %v249, %v245
  %v282 = vpack.c.b16 %v250, %v246
  %v283 = vpack.c.b16 %v251, %v247
  %v284 = vpack.c.b16 %v256, %v252
  %v285 = vpack.c.b16 %v257, %v253
  %v286 = vpack.c.b16 %v258, %v254
  %v287 = vpack.c.b16 %v259, %v255
  %v288 = vpack.c.b16 %v264, %v260
  %v289 = vpack.c.b16 %v265, %v261
  %v290 = vpack.c.b16 %v266, %v262
  %v291 = vpack.c.b16 %v267, %v263
  %vm316 = vcmask 785408
  %v318 = vsel %vm316, %v182, 0
  %v321 = vsel %vm316, %v183, 0
  %v324 = vsel %vm316, %v184, 0
  %v327 = vsel %vm316, %v185, 0
  %v330 = vsel %vm316, %v186, 0
  %v333 = vsel %vm316, %v187, 0
  %v336 = vsel %vm316, %v188, 0
  %v339 = vsel %vm316, %v189, 0
  %v342 = vsel %vm316, %v190, 0
  %v345 = vsel %vm316, %v191, 0
  %v348 = vsel %vm316, %v192, 0
  %v351 = vsel %vm316, %v193, 0
  %v354 = vsel %vm316, %v194, 0
  %v357 = vsel %vm316, %v195, 0
  %359 = vmatpush.bf16.msra.mxu0 0
  %360 = vmatpush.bf16.msra.mxu0 0
  %361 = vmatpush.bf16.msra.mxu0 %v288
  %362 = vmatpush.bf16.msra.mxu0 %v284
  %363 = vmatpush.bf16.msra.mxu0 %v280
  %364 = vmatpush.bf16.msra.mxu0 %v276
  %365 = vmatpush.bf16.msra.mxu0 %v272
  %366 = vmatpush.bf16.msra.mxu0 %v268
  %367 = vmatmul.bf16.gmra.mxu0 %v318
  %v368 = vpop.f32.mrf.mxu0
  %v369 = vadd.f32 0.0, %v368
  %v370 = vpop.f32.mrf.mxu0
  %v371 = vadd.f32 0.0, %v370
  %372 = vmatmul.bf16.gmra.mxu0 %v321
  %v373 = vpop.f32.mrf.mxu0
  %v374 = vadd.f32 0.0, %v373
  %v375 = vpop.f32.mrf.mxu0
  %v376 = vadd.f32 0.0, %v375
  %377 = vmatmul.bf16.gmra.mxu0 %v324
  %v378 = vpop.f32.mrf.mxu0
  %v379 = vadd.f32 0.0, %v378
  %v380 = vpop.f32.mrf.mxu0
  %v381 = vadd.f32 0.0, %v380
  %382 = vmatmul.bf16.gmra.mxu0 %v327
  %v383 = vpop.f32.mrf.mxu0
  %v384 = vadd.f32 0.0, %v383
  %v385 = vpop.f32.mrf.mxu0
  %v386 = vadd.f32 0.0, %v385
  %387 = vmatmul.bf16.gmra.mxu0 %v330
  %v388 = vpop.f32.mrf.mxu0
  %v389 = vadd.f32 0.0, %v388
  %v390 = vpop.f32.mrf.mxu0
  %v391 = vadd.f32 0.0, %v390
  %392 = vmatmul.bf16.gmra.mxu0 %v333
  %v393 = vpop.f32.mrf.mxu0
  %v394 = vadd.f32 0.0, %v393
  %v395 = vpop.f32.mrf.mxu0
  %v396 = vadd.f32 0.0, %v395
  %397 = vmatmul.bf16.gmra.mxu0 %v336
  %v398 = vpop.f32.mrf.mxu0
  %v399 = vadd.f32 0.0, %v398
  %v400 = vpop.f32.mrf.mxu0
  %v401 = vadd.f32 0.0, %v400
  %402 = vmatmul.bf16.gmra.mxu0 %v339
  %v403 = vpop.f32.mrf.mxu0
  %v404 = vadd.f32 0.0, %v403
  %v405 = vpop.f32.mrf.mxu0
  %v406 = vadd.f32 0.0, %v405
  %407 = vmatmul.bf16.gmra.mxu0 %v342
  %v408 = vpop.f32.mrf.mxu0
  %v409 = vadd.f32 0.0, %v408
  %v410 = vpop.f32.mrf.mxu0
  %v411 = vadd.f32 0.0, %v410
  %412 = vmatmul.bf16.gmra.mxu0 %v345
  %v413 = vpop.f32.mrf.mxu0
  %v414 = vadd.f32 0.0, %v413
  %v415 = vpop.f32.mrf.mxu0
  %v416 = vadd.f32 0.0, %v415
  %417 = vmatmul.bf16.gmra.mxu0 %v348
  %v418 = vpop.f32.mrf.mxu0
  %v419 = vadd.f32 0.0, %v418
  %v420 = vpop.f32.mrf.mxu0
  %v421 = vadd.f32 0.0, %v420
  %422 = vmatmul.bf16.gmra.mxu0 %v351
  %v423 = vpop.f32.mrf.mxu0
  %v424 = vadd.f32 0.0, %v423
  %v425 = vpop.f32.mrf.mxu0
  %v426 = vadd.f32 0.0, %v425
  %427 = vmatmul.bf16.gmra.mxu0 %v354
  %v428 = vpop.f32.mrf.mxu0
  %v429 = vadd.f32 0.0, %v428
  %v430 = vpop.f32.mrf.mxu0
  %v431 = vadd.f32 0.0, %v430
  %432 = vmatmul.bf16.gmra.mxu0 %v357
  %v433 = vpop.f32.mrf.mxu0
  %v434 = vadd.f32 0.0, %v433
  %v435 = vpop.f32.mrf.mxu0
  %v436 = vadd.f32 0.0, %v435
  %437 = vdwg.mxu0
  %438 = vmatpush.bf16.msra.mxu0 0
  %439 = vmatpush.bf16.msra.mxu0 0
  %440 = vmatpush.bf16.msra.mxu0 %v289
  %441 = vmatpush.bf16.msra.mxu0 %v285
  %442 = vmatpush.bf16.msra.mxu0 %v281
  %443 = vmatpush.bf16.msra.mxu0 %v277
  %444 = vmatpush.bf16.msra.mxu0 %v273
  %445 = vmatpush.bf16.msra.mxu0 %v269
  %446 = vmatmul.bf16.gmra.mxu0 %v318
  %v447 = vpop.f32.mrf.mxu0
  %v448 = vadd.f32 0.0, %v447
  %v449 = vpop.f32.mrf.mxu0
  %v450 = vadd.f32 0.0, %v449
  %451 = vmatmul.bf16.gmra.mxu0 %v321
  %v452 = vpop.f32.mrf.mxu0
  %v453 = vadd.f32 0.0, %v452
  %v454 = vpop.f32.mrf.mxu0
  %v455 = vadd.f32 0.0, %v454
  %456 = vmatmul.bf16.gmra.mxu0 %v324
  %v457 = vpop.f32.mrf.mxu0
  %v458 = vadd.f32 0.0, %v457
  %v459 = vpop.f32.mrf.mxu0
  %v460 = vadd.f32 0.0, %v459
  %461 = vmatmul.bf16.gmra.mxu0 %v327
  %v462 = vpop.f32.mrf.mxu0
  %v463 = vadd.f32 0.0, %v462
  %v464 = vpop.f32.mrf.mxu0
  %v465 = vadd.f32 0.0, %v464
  %466 = vmatmul.bf16.gmra.mxu0 %v330
  %v467 = vpop.f32.mrf.mxu0
  %v468 = vadd.f32 0.0, %v467
  %v469 = vpop.f32.mrf.mxu0
  %v470 = vadd.f32 0.0, %v469
  %471 = vmatmul.bf16.gmra.mxu0 %v333
  %v472 = vpop.f32.mrf.mxu0
  %v473 = vadd.f32 0.0, %v472
  %v474 = vpop.f32.mrf.mxu0
  %v475 = vadd.f32 0.0, %v474
  %476 = vmatmul.bf16.gmra.mxu0 %v336
  %v477 = vpop.f32.mrf.mxu0
  %v478 = vadd.f32 0.0, %v477
  %v479 = vpop.f32.mrf.mxu0
  %v480 = vadd.f32 0.0, %v479
  %481 = vmatmul.bf16.gmra.mxu0 %v339
  %v482 = vpop.f32.mrf.mxu0
  %v483 = vadd.f32 0.0, %v482
  %v484 = vpop.f32.mrf.mxu0
  %v485 = vadd.f32 0.0, %v484
  %486 = vmatmul.bf16.gmra.mxu0 %v342
  %v487 = vpop.f32.mrf.mxu0
  %v488 = vadd.f32 0.0, %v487
  %v489 = vpop.f32.mrf.mxu0
  %v490 = vadd.f32 0.0, %v489
  %491 = vmatmul.bf16.gmra.mxu0 %v345
  %v492 = vpop.f32.mrf.mxu0
  %v493 = vadd.f32 0.0, %v492
  %v494 = vpop.f32.mrf.mxu0
  %v495 = vadd.f32 0.0, %v494
  %496 = vmatmul.bf16.gmra.mxu0 %v348
  %v497 = vpop.f32.mrf.mxu0
  %v498 = vadd.f32 0.0, %v497
  %v499 = vpop.f32.mrf.mxu0
  %v500 = vadd.f32 0.0, %v499
  %501 = vmatmul.bf16.gmra.mxu0 %v351
  %v502 = vpop.f32.mrf.mxu0
  %v503 = vadd.f32 0.0, %v502
  %v504 = vpop.f32.mrf.mxu0
  %v505 = vadd.f32 0.0, %v504
  %506 = vmatmul.bf16.gmra.mxu0 %v354
  %v507 = vpop.f32.mrf.mxu0
  %v508 = vadd.f32 0.0, %v507
  %v509 = vpop.f32.mrf.mxu0
  %v510 = vadd.f32 0.0, %v509
  %511 = vmatmul.bf16.gmra.mxu0 %v357
  %v512 = vpop.f32.mrf.mxu0
  %v513 = vadd.f32 0.0, %v512
  %v514 = vpop.f32.mrf.mxu0
  %v515 = vadd.f32 0.0, %v514
  %516 = vdwg.mxu0
  %517 = vmatpush.bf16.msra.mxu0 0
  %518 = vmatpush.bf16.msra.mxu0 0
  %519 = vmatpush.bf16.msra.mxu0 %v290
  %520 = vmatpush.bf16.msra.mxu0 %v286
  %521 = vmatpush.bf16.msra.mxu0 %v282
  %522 = vmatpush.bf16.msra.mxu0 %v278
  %523 = vmatpush.bf16.msra.mxu0 %v274
  %524 = vmatpush.bf16.msra.mxu0 %v270
  %525 = vmatmul.bf16.gmra.mxu0 %v318
  %v526 = vpop.f32.mrf.mxu0
  %v527 = vadd.f32 0.0, %v526
  %v528 = vpop.f32.mrf.mxu0
  %v529 = vadd.f32 0.0, %v528
  %530 = vmatmul.bf16.gmra.mxu0 %v321
  %v531 = vpop.f32.mrf.mxu0
  %v532 = vadd.f32 0.0, %v531
  %v533 = vpop.f32.mrf.mxu0
  %v534 = vadd.f32 0.0, %v533
  %535 = vmatmul.bf16.gmra.mxu0 %v324
  %v536 = vpop.f32.mrf.mxu0
  %v537 = vadd.f32 0.0, %v536
  %v538 = vpop.f32.mrf.mxu0
  %v539 = vadd.f32 0.0, %v538
  %540 = vmatmul.bf16.gmra.mxu0 %v327
  %v541 = vpop.f32.mrf.mxu0
  %v542 = vadd.f32 0.0, %v541
  %v543 = vpop.f32.mrf.mxu0
  %v544 = vadd.f32 0.0, %v543
  %545 = vmatmul.bf16.gmra.mxu0 %v330
  %v546 = vpop.f32.mrf.mxu0
  %v547 = vadd.f32 0.0, %v546
  %v548 = vpop.f32.mrf.mxu0
  %v549 = vadd.f32 0.0, %v548
  %550 = vmatmul.bf16.gmra.mxu0 %v333
  %v551 = vpop.f32.mrf.mxu0
  %v552 = vadd.f32 0.0, %v551
  %v553 = vpop.f32.mrf.mxu0
  %v554 = vadd.f32 0.0, %v553
  %555 = vmatmul.bf16.gmra.mxu0 %v336
  %v556 = vpop.f32.mrf.mxu0
  %v557 = vadd.f32 0.0, %v556
  %v558 = vpop.f32.mrf.mxu0
  %v559 = vadd.f32 0.0, %v558
  %560 = vmatmul.bf16.gmra.mxu0 %v339
  %v561 = vpop.f32.mrf.mxu0
  %v562 = vadd.f32 0.0, %v561
  %v563 = vpop.f32.mrf.mxu0
  %v564 = vadd.f32 0.0, %v563
  %565 = vmatmul.bf16.gmra.mxu0 %v342
  %v566 = vpop.f32.mrf.mxu0
  %v567 = vadd.f32 0.0, %v566
  %v568 = vpop.f32.mrf.mxu0
  %v569 = vadd.f32 0.0, %v568
  %570 = vmatmul.bf16.gmra.mxu0 %v345
  %v571 = vpop.f32.mrf.mxu0
  %v572 = vadd.f32 0.0, %v571
  %v573 = vpop.f32.mrf.mxu0
  %v574 = vadd.f32 0.0, %v573
  %575 = vmatmul.bf16.gmra.mxu0 %v348
  %v576 = vpop.f32.mrf.mxu0
  %v577 = vadd.f32 0.0, %v576
  %v578 = vpop.f32.mrf.mxu0
  %v579 = vadd.f32 0.0, %v578
  %580 = vmatmul.bf16.gmra.mxu0 %v351
  %v581 = vpop.f32.mrf.mxu0
  %v582 = vadd.f32 0.0, %v581
  %v583 = vpop.f32.mrf.mxu0
  %v584 = vadd.f32 0.0, %v583
  %585 = vmatmul.bf16.gmra.mxu0 %v354
  %v586 = vpop.f32.mrf.mxu0
  %v587 = vadd.f32 0.0, %v586
  %v588 = vpop.f32.mrf.mxu0
  %v589 = vadd.f32 0.0, %v588
  %590 = vmatmul.bf16.gmra.mxu0 %v357
  %v591 = vpop.f32.mrf.mxu0
  %v592 = vadd.f32 0.0, %v591
  %v593 = vpop.f32.mrf.mxu0
  %v594 = vadd.f32 0.0, %v593
  %595 = vdwg.mxu0
  %596 = vmatpush.bf16.msra.mxu0 0
  %597 = vmatpush.bf16.msra.mxu0 0
  %598 = vmatpush.bf16.msra.mxu0 %v291
  %599 = vmatpush.bf16.msra.mxu0 %v287
  %600 = vmatpush.bf16.msra.mxu0 %v283
  %601 = vmatpush.bf16.msra.mxu0 %v279
  %602 = vmatpush.bf16.msra.mxu0 %v275
  %603 = vmatpush.bf16.msra.mxu0 %v271
  %604 = vmatmul.bf16.gmra.mxu0 %v318
  %v605 = vpop.f32.mrf.mxu0
  %v606 = vadd.f32 0.0, %v605
  %v607 = vpop.f32.mrf.mxu0
  %v608 = vadd.f32 0.0, %v607
  %609 = vmatmul.bf16.gmra.mxu0 %v321
  %v610 = vpop.f32.mrf.mxu0
  %v611 = vadd.f32 0.0, %v610
  %v612 = vpop.f32.mrf.mxu0
  %v613 = vadd.f32 0.0, %v612
  %614 = vmatmul.bf16.gmra.mxu0 %v324
  %v615 = vpop.f32.mrf.mxu0
  %v616 = vadd.f32 0.0, %v615
  %v617 = vpop.f32.mrf.mxu0
  %v618 = vadd.f32 0.0, %v617
  %619 = vmatmul.bf16.gmra.mxu0 %v327
  %v620 = vpop.f32.mrf.mxu0
  %v621 = vadd.f32 0.0, %v620
  %v622 = vpop.f32.mrf.mxu0
  %v623 = vadd.f32 0.0, %v622
  %624 = vmatmul.bf16.gmra.mxu0 %v330
  %v625 = vpop.f32.mrf.mxu0
  %v626 = vadd.f32 0.0, %v625
  %v627 = vpop.f32.mrf.mxu0
  %v628 = vadd.f32 0.0, %v627
  %629 = vmatmul.bf16.gmra.mxu0 %v333
  %v630 = vpop.f32.mrf.mxu0
  %v631 = vadd.f32 0.0, %v630
  %v632 = vpop.f32.mrf.mxu0
  %v633 = vadd.f32 0.0, %v632
  %634 = vmatmul.bf16.gmra.mxu0 %v336
  %v635 = vpop.f32.mrf.mxu0
  %v636 = vadd.f32 0.0, %v635
  %v637 = vpop.f32.mrf.mxu0
  %v638 = vadd.f32 0.0, %v637
  %639 = vmatmul.bf16.gmra.mxu0 %v339
  %v640 = vpop.f32.mrf.mxu0
  %v641 = vadd.f32 0.0, %v640
  %v642 = vpop.f32.mrf.mxu0
  %v643 = vadd.f32 0.0, %v642
  %644 = vmatmul.bf16.gmra.mxu0 %v342
  %v645 = vpop.f32.mrf.mxu0
  %v646 = vadd.f32 0.0, %v645
  %v647 = vpop.f32.mrf.mxu0
  %v648 = vadd.f32 0.0, %v647
  %649 = vmatmul.bf16.gmra.mxu0 %v345
  %v650 = vpop.f32.mrf.mxu0
  %v651 = vadd.f32 0.0, %v650
  %v652 = vpop.f32.mrf.mxu0
  %v653 = vadd.f32 0.0, %v652
  %654 = vmatmul.bf16.gmra.mxu0 %v348
  %v655 = vpop.f32.mrf.mxu0
  %v656 = vadd.f32 0.0, %v655
  %v657 = vpop.f32.mrf.mxu0
  %v658 = vadd.f32 0.0, %v657
  %659 = vmatmul.bf16.gmra.mxu0 %v351
  %v660 = vpop.f32.mrf.mxu0
  %v661 = vadd.f32 0.0, %v660
  %v662 = vpop.f32.mrf.mxu0
  %v663 = vadd.f32 0.0, %v662
  %664 = vmatmul.bf16.gmra.mxu0 %v354
  %v665 = vpop.f32.mrf.mxu0
  %v666 = vadd.f32 0.0, %v665
  %v667 = vpop.f32.mrf.mxu0
  %v668 = vadd.f32 0.0, %v667
  %669 = vmatmul.bf16.gmra.mxu0 %v357
  %v670 = vpop.f32.mrf.mxu0
  %v671 = vadd.f32 0.0, %v670
  %v672 = vpop.f32.mrf.mxu0
  %v673 = vadd.f32 0.0, %v672
  %674 = vdwg.mxu0
  %v676 = vunpack.c.l.b16 %v45
  %v677 = vpack.c.b16 %v154, %v676
  %v678 = vpack.c.b16 %v156, %v155
  %v679 = vpack.c.b16 %v158, %v157
  %v680 = vpack.c.b16 %v160, %v159
  %v681 = vpack.c.b16 %v162, %v161
  %v682 = vpack.c.b16 %v164, %v163
  %v683 = vpack.c.b16 %v166, %v165
  %v684 = vpack.c.b16 %v168, %v167
  %v685 = vpack.c.b16 %v170, %v169
  %v686 = vpack.c.b16 %v172, %v171
  %v687 = vpack.c.b16 %v174, %v173
  %v688 = vpack.c.b16 %v176, %v175
  %v689 = vpack.c.b16 %v178, %v177
  %v690 = vpack.c.b16 %v180, %v179
  %v715 = vunpack.c.l.b16 %v77
  %v716 = vunpack.c.h.b16 %v77
  %v717 = vunpack.c.l.b16 %v78
  %v718 = vunpack.c.h.b16 %v78
  %v719 = vunpack.c.l.b16 %v79
  %v720 = vunpack.c.h.b16 %v79
  %v721 = vunpack.c.l.b16 %v80
  %v722 = vunpack.c.h.b16 %v80
  %v723 = vunpack.c.l.b16 %v81
  %v724 = vunpack.c.h.b16 %v81
  %v725 = vunpack.c.l.b16 %v82
  %v726 = vunpack.c.h.b16 %v82
  %v727 = vunpack.c.l.b16 %v83
  %v728 = vunpack.c.h.b16 %v83
  %v729 = vunpack.c.l.b16 %v84
  %v730 = vunpack.c.h.b16 %v84
  %v731 = vunpack.c.l.b16 %v85
  %v732 = vunpack.c.h.b16 %v85
  %v733 = vunpack.c.l.b16 %v86
  %v734 = vunpack.c.h.b16 %v86
  %v735 = vunpack.c.l.b16 %v87
  %v736 = vunpack.c.h.b16 %v87
  %v737 = vunpack.c.l.b16 %v88
  %v738 = vunpack.c.h.b16 %v88
  %v739 = vunpack.c.l.b16 %v89
  %v740 = vunpack.c.h.b16 %v89
  %v741 = vunpack.c.l.b16 %v90
  %v742 = vunpack.c.h.b16 %v90
  %v743 = vunpack.c.l.b16 %v91
  %v744 = vunpack.c.h.b16 %v91
  %v745 = vunpack.c.l.b16 %v92
  %v746 = vunpack.c.h.b16 %v92
  %v747 = vunpack.c.l.b16 %v93
  %v748 = vunpack.c.h.b16 %v93
  %v749 = vunpack.c.l.b16 %v94
  %v750 = vunpack.c.h.b16 %v94
  %v751 = vunpack.c.l.b16 %v95
  %v752 = vunpack.c.h.b16 %v95
  %v753 = vunpack.c.l.b16 %v96
  %v754 = vunpack.c.h.b16 %v96
  %v755 = vunpack.c.l.b16 %v97
  %v756 = vunpack.c.h.b16 %v97
  %v757 = vunpack.c.l.b16 %v98
  %v758 = vunpack.c.h.b16 %v98
  %v759 = vunpack.c.l.b16 %v99
  %v760 = vunpack.c.h.b16 %v99
  %v761 = vunpack.c.l.b16 %v100
  %v762 = vunpack.c.h.b16 %v100
  %v763 = vpack.c.b16 %v719, %v715
  %v764 = vpack.c.b16 %v720, %v716
  %v765 = vpack.c.b16 %v721, %v717
  %v766 = vpack.c.b16 %v722, %v718
  %v767 = vpack.c.b16 %v727, %v723
  %v768 = vpack.c.b16 %v728, %v724
  %v769 = vpack.c.b16 %v729, %v725
  %v770 = vpack.c.b16 %v730, %v726
  %v771 = vpack.c.b16 %v735, %v731
  %v772 = vpack.c.b16 %v736, %v732
  %v773 = vpack.c.b16 %v737, %v733
  %v774 = vpack.c.b16 %v738, %v734
  %v775 = vpack.c.b16 %v743, %v739
  %v776 = vpack.c.b16 %v744, %v740
  %v777 = vpack.c.b16 %v745, %v741
  %v778 = vpack.c.b16 %v746, %v742
  %v779 = vpack.c.b16 %v751, %v747
  %v780 = vpack.c.b16 %v752, %v748
  %v781 = vpack.c.b16 %v753, %v749
  %v782 = vpack.c.b16 %v754, %v750
  %v783 = vpack.c.b16 %v759, %v755
  %v784 = vpack.c.b16 %v760, %v756
  %v785 = vpack.c.b16 %v761, %v757
  %v786 = vpack.c.b16 %v762, %v758
  %v812 = vsel %vm316, %v677, 0
  %v815 = vsel %vm316, %v678, 0
  %v818 = vsel %vm316, %v679, 0
  %v821 = vsel %vm316, %v680, 0
  %v824 = vsel %vm316, %v681, 0
  %v827 = vsel %vm316, %v682, 0
  %v830 = vsel %vm316, %v683, 0
  %v833 = vsel %vm316, %v684, 0
  %v836 = vsel %vm316, %v685, 0
  %v839 = vsel %vm316, %v686, 0
  %v842 = vsel %vm316, %v687, 0
  %v845 = vsel %vm316, %v688, 0
  %v848 = vsel %vm316, %v689, 0
  %v851 = vsel %vm316, %v690, 0
  %853 = vmatpush.bf16.msra.mxu0 0
  %854 = vmatpush.bf16.msra.mxu0 0
  %855 = vmatpush.bf16.msra.mxu0 %v783
  %856 = vmatpush.bf16.msra.mxu0 %v779
  %857 = vmatpush.bf16.msra.mxu0 %v775
  %858 = vmatpush.bf16.msra.mxu0 %v771
  %859 = vmatpush.bf16.msra.mxu0 %v767
  %860 = vmatpush.bf16.msra.mxu0 %v763
  %861 = vmatmul.bf16.gmra.mxu0 %v812
  %v862 = vpop.f32.mrf.mxu0
  %v863 = vadd.f32 %v369, %v862
  %v864 = vpop.f32.mrf.mxu0
  %v865 = vadd.f32 %v371, %v864
  %866 = vmatmul.bf16.gmra.mxu0 %v815
  %v867 = vpop.f32.mrf.mxu0
  %v868 = vadd.f32 %v374, %v867
  %v869 = vpop.f32.mrf.mxu0
  %v870 = vadd.f32 %v376, %v869
  %871 = vmatmul.bf16.gmra.mxu0 %v818
  %v872 = vpop.f32.mrf.mxu0
  %v873 = vadd.f32 %v379, %v872
  %v874 = vpop.f32.mrf.mxu0
  %v875 = vadd.f32 %v381, %v874
  %876 = vmatmul.bf16.gmra.mxu0 %v821
  %v877 = vpop.f32.mrf.mxu0
  %v878 = vadd.f32 %v384, %v877
  %v879 = vpop.f32.mrf.mxu0
  %v880 = vadd.f32 %v386, %v879
  %881 = vmatmul.bf16.gmra.mxu0 %v824
  %v882 = vpop.f32.mrf.mxu0
  %v883 = vadd.f32 %v389, %v882
  %v884 = vpop.f32.mrf.mxu0
  %v885 = vadd.f32 %v391, %v884
  %886 = vmatmul.bf16.gmra.mxu0 %v827
  %v887 = vpop.f32.mrf.mxu0
  %v888 = vadd.f32 %v394, %v887
  %v889 = vpop.f32.mrf.mxu0
  %v890 = vadd.f32 %v396, %v889
  %891 = vmatmul.bf16.gmra.mxu0 %v830
  %v892 = vpop.f32.mrf.mxu0
  %v893 = vadd.f32 %v399, %v892
  %v894 = vpop.f32.mrf.mxu0
  %v895 = vadd.f32 %v401, %v894
  %896 = vmatmul.bf16.gmra.mxu0 %v833
  %v897 = vpop.f32.mrf.mxu0
  %v898 = vadd.f32 %v404, %v897
  %v899 = vpop.f32.mrf.mxu0
  %v900 = vadd.f32 %v406, %v899
  %901 = vmatmul.bf16.gmra.mxu0 %v836
  %v902 = vpop.f32.mrf.mxu0
  %v903 = vadd.f32 %v409, %v902
  %v904 = vpop.f32.mrf.mxu0
  %v905 = vadd.f32 %v411, %v904
  %906 = vmatmul.bf16.gmra.mxu0 %v839
  %v907 = vpop.f32.mrf.mxu0
  %v908 = vadd.f32 %v414, %v907
  %v909 = vpop.f32.mrf.mxu0
  %v910 = vadd.f32 %v416, %v909
  %911 = vmatmul.bf16.gmra.mxu0 %v842
  %v912 = vpop.f32.mrf.mxu0
  %v913 = vadd.f32 %v419, %v912
  %v914 = vpop.f32.mrf.mxu0
  %v915 = vadd.f32 %v421, %v914
  %916 = vmatmul.bf16.gmra.mxu0 %v845
  %v917 = vpop.f32.mrf.mxu0
  %v918 = vadd.f32 %v424, %v917
  %v919 = vpop.f32.mrf.mxu0
  %v920 = vadd.f32 %v426, %v919
  %921 = vmatmul.bf16.gmra.mxu0 %v848
  %v922 = vpop.f32.mrf.mxu0
  %v923 = vadd.f32 %v429, %v922
  %v924 = vpop.f32.mrf.mxu0
  %v925 = vadd.f32 %v431, %v924
  %926 = vmatmul.bf16.gmra.mxu0 %v851
  %v927 = vpop.f32.mrf.mxu0
  %v928 = vadd.f32 %v434, %v927
  %v929 = vpop.f32.mrf.mxu0
  %v930 = vadd.f32 %v436, %v929
  %931 = vdwg.mxu0
  %932 = vmatpush.bf16.msra.mxu0 0
  %933 = vmatpush.bf16.msra.mxu0 0
  %934 = vmatpush.bf16.msra.mxu0 %v784
  %935 = vmatpush.bf16.msra.mxu0 %v780
  %936 = vmatpush.bf16.msra.mxu0 %v776
  %937 = vmatpush.bf16.msra.mxu0 %v772
  %938 = vmatpush.bf16.msra.mxu0 %v768
  %939 = vmatpush.bf16.msra.mxu0 %v764
  %940 = vmatmul.bf16.gmra.mxu0 %v812
  %v941 = vpop.f32.mrf.mxu0
  %v942 = vadd.f32 %v448, %v941
  %v943 = vpop.f32.mrf.mxu0
  %v944 = vadd.f32 %v450, %v943
  %945 = vmatmul.bf16.gmra.mxu0 %v815
  %v946 = vpop.f32.mrf.mxu0
  %v947 = vadd.f32 %v453, %v946
  %v948 = vpop.f32.mrf.mxu0
  %v949 = vadd.f32 %v455, %v948
  %950 = vmatmul.bf16.gmra.mxu0 %v818
  %v951 = vpop.f32.mrf.mxu0
  %v952 = vadd.f32 %v458, %v951
  %v953 = vpop.f32.mrf.mxu0
  %v954 = vadd.f32 %v460, %v953
  %955 = vmatmul.bf16.gmra.mxu0 %v821
  %v956 = vpop.f32.mrf.mxu0
  %v957 = vadd.f32 %v463, %v956
  %v958 = vpop.f32.mrf.mxu0
  %v959 = vadd.f32 %v465, %v958
  %960 = vmatmul.bf16.gmra.mxu0 %v824
  %v961 = vpop.f32.mrf.mxu0
  %v962 = vadd.f32 %v468, %v961
  %v963 = vpop.f32.mrf.mxu0
  %v964 = vadd.f32 %v470, %v963
  %965 = vmatmul.bf16.gmra.mxu0 %v827
  %v966 = vpop.f32.mrf.mxu0
  %v967 = vadd.f32 %v473, %v966
  %v968 = vpop.f32.mrf.mxu0
  %v969 = vadd.f32 %v475, %v968
  %970 = vmatmul.bf16.gmra.mxu0 %v830
  %v971 = vpop.f32.mrf.mxu0
  %v972 = vadd.f32 %v478, %v971
  %v973 = vpop.f32.mrf.mxu0
  %v974 = vadd.f32 %v480, %v973
  %975 = vmatmul.bf16.gmra.mxu0 %v833
  %v976 = vpop.f32.mrf.mxu0
  %v977 = vadd.f32 %v483, %v976
  %v978 = vpop.f32.mrf.mxu0
  %v979 = vadd.f32 %v485, %v978
  %980 = vmatmul.bf16.gmra.mxu0 %v836
  %v981 = vpop.f32.mrf.mxu0
  %v982 = vadd.f32 %v488, %v981
  %v983 = vpop.f32.mrf.mxu0
  %v984 = vadd.f32 %v490, %v983
  %985 = vmatmul.bf16.gmra.mxu0 %v839
  %v986 = vpop.f32.mrf.mxu0
  %v987 = vadd.f32 %v493, %v986
  %v988 = vpop.f32.mrf.mxu0
  %v989 = vadd.f32 %v495, %v988
  %990 = vmatmul.bf16.gmra.mxu0 %v842
  %v991 = vpop.f32.mrf.mxu0
  %v992 = vadd.f32 %v498, %v991
  %v993 = vpop.f32.mrf.mxu0
  %v994 = vadd.f32 %v500, %v993
  %995 = vmatmul.bf16.gmra.mxu0 %v845
  %v996 = vpop.f32.mrf.mxu0
  %v997 = vadd.f32 %v503, %v996
  %v998 = vpop.f32.mrf.mxu0
  %v999 = vadd.f32 %v505, %v998
  %1000 = vmatmul.bf16.gmra.mxu0 %v848
  %v1001 = vpop.f32.mrf.mxu0
  %v1002 = vadd.f32 %v508, %v1001
  %v1003 = vpop.f32.mrf.mxu0
  %v1004 = vadd.f32 %v510, %v1003
  %1005 = vmatmul.bf16.gmra.mxu0 %v851
  %v1006 = vpop.f32.mrf.mxu0
  %v1007 = vadd.f32 %v513, %v1006
  %v1008 = vpop.f32.mrf.mxu0
  %v1009 = vadd.f32 %v515, %v1008
  %1010 = vdwg.mxu0
  %1011 = vmatpush.bf16.msra.mxu0 0
  %1012 = vmatpush.bf16.msra.mxu0 0
  %1013 = vmatpush.bf16.msra.mxu0 %v785
  %1014 = vmatpush.bf16.msra.mxu0 %v781
  %1015 = vmatpush.bf16.msra.mxu0 %v777
  %1016 = vmatpush.bf16.msra.mxu0 %v773
  %1017 = vmatpush.bf16.msra.mxu0 %v769
  %1018 = vmatpush.bf16.msra.mxu0 %v765
  %1019 = vmatmul.bf16.gmra.mxu0 %v812
  %v1020 = vpop.f32.mrf.mxu0
  %v1021 = vadd.f32 %v527, %v1020
  %v1022 = vpop.f32.mrf.mxu0
  %v1023 = vadd.f32 %v529, %v1022
  %1024 = vmatmul.bf16.gmra.mxu0 %v815
  %v1025 = vpop.f32.mrf.mxu0
  %v1026 = vadd.f32 %v532, %v1025
  %v1027 = vpop.f32.mrf.mxu0
  %v1028 = vadd.f32 %v534, %v1027
  %1029 = vmatmul.bf16.gmra.mxu0 %v818
  %v1030 = vpop.f32.mrf.mxu0
  %v1031 = vadd.f32 %v537, %v1030
  %v1032 = vpop.f32.mrf.mxu0
  %v1033 = vadd.f32 %v539, %v1032
  %1034 = vmatmul.bf16.gmra.mxu0 %v821
  %v1035 = vpop.f32.mrf.mxu0
  %v1036 = vadd.f32 %v542, %v1035
  %v1037 = vpop.f32.mrf.mxu0
  %v1038 = vadd.f32 %v544, %v1037
  %1039 = vmatmul.bf16.gmra.mxu0 %v824
  %v1040 = vpop.f32.mrf.mxu0
  %v1041 = vadd.f32 %v547, %v1040
  %v1042 = vpop.f32.mrf.mxu0
  %v1043 = vadd.f32 %v549, %v1042
  %1044 = vmatmul.bf16.gmra.mxu0 %v827
  %v1045 = vpop.f32.mrf.mxu0
  %v1046 = vadd.f32 %v552, %v1045
  %v1047 = vpop.f32.mrf.mxu0
  %v1048 = vadd.f32 %v554, %v1047
  %1049 = vmatmul.bf16.gmra.mxu0 %v830
  %v1050 = vpop.f32.mrf.mxu0
  %v1051 = vadd.f32 %v557, %v1050
  %v1052 = vpop.f32.mrf.mxu0
  %v1053 = vadd.f32 %v559, %v1052
  %1054 = vmatmul.bf16.gmra.mxu0 %v833
  %v1055 = vpop.f32.mrf.mxu0
  %v1056 = vadd.f32 %v562, %v1055
  %v1057 = vpop.f32.mrf.mxu0
  %v1058 = vadd.f32 %v564, %v1057
  %1059 = vmatmul.bf16.gmra.mxu0 %v836
  %v1060 = vpop.f32.mrf.mxu0
  %v1061 = vadd.f32 %v567, %v1060
  %v1062 = vpop.f32.mrf.mxu0
  %v1063 = vadd.f32 %v569, %v1062
  %1064 = vmatmul.bf16.gmra.mxu0 %v839
  %v1065 = vpop.f32.mrf.mxu0
  %v1066 = vadd.f32 %v572, %v1065
  %v1067 = vpop.f32.mrf.mxu0
  %v1068 = vadd.f32 %v574, %v1067
  %1069 = vmatmul.bf16.gmra.mxu0 %v842
  %v1070 = vpop.f32.mrf.mxu0
  %v1071 = vadd.f32 %v577, %v1070
  %v1072 = vpop.f32.mrf.mxu0
  %v1073 = vadd.f32 %v579, %v1072
  %1074 = vmatmul.bf16.gmra.mxu0 %v845
  %v1075 = vpop.f32.mrf.mxu0
  %v1076 = vadd.f32 %v582, %v1075
  %v1077 = vpop.f32.mrf.mxu0
  %v1078 = vadd.f32 %v584, %v1077
  %1079 = vmatmul.bf16.gmra.mxu0 %v848
  %v1080 = vpop.f32.mrf.mxu0
  %v1081 = vadd.f32 %v587, %v1080
  %v1082 = vpop.f32.mrf.mxu0
  %v1083 = vadd.f32 %v589, %v1082
  %1084 = vmatmul.bf16.gmra.mxu0 %v851
  %v1085 = vpop.f32.mrf.mxu0
  %v1086 = vadd.f32 %v592, %v1085
  %v1087 = vpop.f32.mrf.mxu0
  %v1088 = vadd.f32 %v594, %v1087
  %1089 = vdwg.mxu0
  %1090 = vmatpush.bf16.msra.mxu0 0
  %1091 = vmatpush.bf16.msra.mxu0 0
  %1092 = vmatpush.bf16.msra.mxu0 %v786
  %1093 = vmatpush.bf16.msra.mxu0 %v782
  %1094 = vmatpush.bf16.msra.mxu0 %v778
  %1095 = vmatpush.bf16.msra.mxu0 %v774
  %1096 = vmatpush.bf16.msra.mxu0 %v770
  %1097 = vmatpush.bf16.msra.mxu0 %v766
  %1098 = vmatmul.bf16.gmra.mxu0 %v812
  %v1099 = vpop.f32.mrf.mxu0
  %v1100 = vadd.f32 %v606, %v1099
  %v1101 = vpop.f32.mrf.mxu0
  %v1102 = vadd.f32 %v608, %v1101
  %1103 = vmatmul.bf16.gmra.mxu0 %v815
  %v1104 = vpop.f32.mrf.mxu0
  %v1105 = vadd.f32 %v611, %v1104
  %v1106 = vpop.f32.mrf.mxu0
  %v1107 = vadd.f32 %v613, %v1106
  %1108 = vmatmul.bf16.gmra.mxu0 %v818
  %v1109 = vpop.f32.mrf.mxu0
  %v1110 = vadd.f32 %v616, %v1109
  %v1111 = vpop.f32.mrf.mxu0
  %v1112 = vadd.f32 %v618, %v1111
  %1113 = vmatmul.bf16.gmra.mxu0 %v821
  %v1114 = vpop.f32.mrf.mxu0
  %v1115 = vadd.f32 %v621, %v1114
  %v1116 = vpop.f32.mrf.mxu0
  %v1117 = vadd.f32 %v623, %v1116
  %1118 = vmatmul.bf16.gmra.mxu0 %v824
  %v1119 = vpop.f32.mrf.mxu0
  %v1120 = vadd.f32 %v626, %v1119
  %v1121 = vpop.f32.mrf.mxu0
  %v1122 = vadd.f32 %v628, %v1121
  %1123 = vmatmul.bf16.gmra.mxu0 %v827
  %v1124 = vpop.f32.mrf.mxu0
  %v1125 = vadd.f32 %v631, %v1124
  %v1126 = vpop.f32.mrf.mxu0
  %v1127 = vadd.f32 %v633, %v1126
  %1128 = vmatmul.bf16.gmra.mxu0 %v830
  %v1129 = vpop.f32.mrf.mxu0
  %v1130 = vadd.f32 %v636, %v1129
  %v1131 = vpop.f32.mrf.mxu0
  %v1132 = vadd.f32 %v638, %v1131
  %1133 = vmatmul.bf16.gmra.mxu0 %v833
  %v1134 = vpop.f32.mrf.mxu0
  %v1135 = vadd.f32 %v641, %v1134
  %v1136 = vpop.f32.mrf.mxu0
  %v1137 = vadd.f32 %v643, %v1136
  %1138 = vmatmul.bf16.gmra.mxu0 %v836
  %v1139 = vpop.f32.mrf.mxu0
  %v1140 = vadd.f32 %v646, %v1139
  %v1141 = vpop.f32.mrf.mxu0
  %v1142 = vadd.f32 %v648, %v1141
  %1143 = vmatmul.bf16.gmra.mxu0 %v839
  %v1144 = vpop.f32.mrf.mxu0
  %v1145 = vadd.f32 %v651, %v1144
  %v1146 = vpop.f32.mrf.mxu0
  %v1147 = vadd.f32 %v653, %v1146
  %1148 = vmatmul.bf16.gmra.mxu0 %v842
  %v1149 = vpop.f32.mrf.mxu0
  %v1150 = vadd.f32 %v656, %v1149
  %v1151 = vpop.f32.mrf.mxu0
  %v1152 = vadd.f32 %v658, %v1151
  %1153 = vmatmul.bf16.gmra.mxu0 %v845
  %v1154 = vpop.f32.mrf.mxu0
  %v1155 = vadd.f32 %v661, %v1154
  %v1156 = vpop.f32.mrf.mxu0
  %v1157 = vadd.f32 %v663, %v1156
  %1158 = vmatmul.bf16.gmra.mxu0 %v848
  %v1159 = vpop.f32.mrf.mxu0
  %v1160 = vadd.f32 %v666, %v1159
  %v1161 = vpop.f32.mrf.mxu0
  %v1162 = vadd.f32 %v668, %v1161
  %1163 = vmatmul.bf16.gmra.mxu0 %v851
  %v1164 = vpop.f32.mrf.mxu0
  %v1165 = vadd.f32 %v671, %v1164
  %v1166 = vpop.f32.mrf.mxu0
  %v1167 = vadd.f32 %v673, %v1166
  %1168 = vdwg.mxu0
  %s1169 = scalar_lea.vmem %s1, 384
  %v1170 = vld [vmem:[%s1169] sm:$0xff]
  %v1171 = vld [vmem:[%s1169 + $0x8] sm:$0xff]
  %v1172 = vld [vmem:[%s1169 + $0x10] sm:$0xff]
  %v1173 = vld [vmem:[%s1169 + $0x18] sm:$0xff]
  %v1174 = vld [vmem:[%s1169 + $0x20] sm:$0xff]
  %v1175 = vld [vmem:[%s1169 + $0x28] sm:$0xff]
  %v1176 = vld [vmem:[%s1169 + $0x30] sm:$0xff]
  %v1177 = vld [vmem:[%s1169 + $0x38] sm:$0xff]
  %v1178 = vld [vmem:[%s1169 + $0x40] sm:$0xff]
  %v1179 = vld [vmem:[%s1169 + $0x48] sm:$0xff]
  %v1180 = vld [vmem:[%s1169 + $0x50] sm:$0xff]
  %v1181 = vld [vmem:[%s1169 + $0x58] sm:$0xff]
  %v1182 = vld [vmem:[%s1169 + $0x60] sm:$0xff]
  %v1183 = vld [vmem:[%s1169 + $0x68] sm:$0xff]
  %v1184 = vld [vmem:[%s1169 + $0x70] sm:$0xff]
  %v1185 = vld [vmem:[%s1169 + $0x78] sm:$0xff]
  %v1186 = vld [vmem:[%s1169 + $0x80] sm:$0xff]
  %v1187 = vld [vmem:[%s1169 + $0x88] sm:$0xff]
  %v1188 = vld [vmem:[%s1169 + $0x90] sm:$0xff]
  %v1189 = vld [vmem:[%s1169 + $0x98] sm:$0xff]
  %v1190 = vld [vmem:[%s1169 + $0xa0] sm:$0xff]
  %v1191 = vld [vmem:[%s1169 + $0xa8] sm:$0xff]
  %v1192 = vld [vmem:[%s1169 + $0xb0] sm:$0xff]
  %v1193 = vld [vmem:[%s1169 + $0xb8] sm:$0xff]
  %v1195 = vunpack.c.l.b16 %v74
  %v1196 = vpack.c.b16 %v1195, %v181
  %v1221 = vunpack.c.l.b16 %v1170
  %v1222 = vunpack.c.h.b16 %v1170
  %v1223 = vunpack.c.l.b16 %v1171
  %v1224 = vunpack.c.h.b16 %v1171
  %v1225 = vunpack.c.l.b16 %v1172
  %v1226 = vunpack.c.h.b16 %v1172
  %v1227 = vunpack.c.l.b16 %v1173
  %v1228 = vunpack.c.h.b16 %v1173
  %v1229 = vunpack.c.l.b16 %v1174
  %v1230 = vunpack.c.h.b16 %v1174
  %v1231 = vunpack.c.l.b16 %v1175
  %v1232 = vunpack.c.h.b16 %v1175
  %v1233 = vunpack.c.l.b16 %v1176
  %v1234 = vunpack.c.h.b16 %v1176
  %v1235 = vunpack.c.l.b16 %v1177
  %v1236 = vunpack.c.h.b16 %v1177
  %v1237 = vunpack.c.l.b16 %v1178
  %v1238 = vunpack.c.h.b16 %v1178
  %v1239 = vunpack.c.l.b16 %v1179
  %v1240 = vunpack.c.h.b16 %v1179
  %v1241 = vunpack.c.l.b16 %v1180
  %v1242 = vunpack.c.h.b16 %v1180
  %v1243 = vunpack.c.l.b16 %v1181
  %v1244 = vunpack.c.h.b16 %v1181
  %v1245 = vunpack.c.l.b16 %v1182
  %v1246 = vunpack.c.h.b16 %v1182
  %v1247 = vunpack.c.l.b16 %v1183
  %v1248 = vunpack.c.h.b16 %v1183
  %v1249 = vunpack.c.l.b16 %v1184
  %v1250 = vunpack.c.h.b16 %v1184
  %v1251 = vunpack.c.l.b16 %v1185
  %v1252 = vunpack.c.h.b16 %v1185
  %v1253 = vunpack.c.l.b16 %v1186
  %v1254 = vunpack.c.h.b16 %v1186
  %v1255 = vunpack.c.l.b16 %v1187
  %v1256 = vunpack.c.h.b16 %v1187
  %v1257 = vunpack.c.l.b16 %v1188
  %v1258 = vunpack.c.h.b16 %v1188
  %v1259 = vunpack.c.l.b16 %v1189
  %v1260 = vunpack.c.h.b16 %v1189
  %v1261 = vunpack.c.l.b16 %v1190
  %v1262 = vunpack.c.h.b16 %v1190
  %v1263 = vunpack.c.l.b16 %v1191
  %v1264 = vunpack.c.h.b16 %v1191
  %v1265 = vunpack.c.l.b16 %v1192
  %v1266 = vunpack.c.h.b16 %v1192
  %v1267 = vunpack.c.l.b16 %v1193
  %v1268 = vunpack.c.h.b16 %v1193
  %v1269 = vpack.c.b16 %v1225, %v1221
  %v1270 = vpack.c.b16 %v1226, %v1222
  %v1271 = vpack.c.b16 %v1227, %v1223
  %v1272 = vpack.c.b16 %v1228, %v1224
  %v1273 = vpack.c.b16 %v1233, %v1229
  %v1274 = vpack.c.b16 %v1234, %v1230
  %v1275 = vpack.c.b16 %v1235, %v1231
  %v1276 = vpack.c.b16 %v1236, %v1232
  %v1277 = vpack.c.b16 %v1241, %v1237
  %v1278 = vpack.c.b16 %v1242, %v1238
  %v1279 = vpack.c.b16 %v1243, %v1239
  %v1280 = vpack.c.b16 %v1244, %v1240
  %v1281 = vpack.c.b16 %v1249, %v1245
  %v1282 = vpack.c.b16 %v1250, %v1246
  %v1283 = vpack.c.b16 %v1251, %v1247
  %v1284 = vpack.c.b16 %v1252, %v1248
  %v1285 = vpack.c.b16 %v1257, %v1253
  %v1286 = vpack.c.b16 %v1258, %v1254
  %v1287 = vpack.c.b16 %v1259, %v1255
  %v1288 = vpack.c.b16 %v1260, %v1256
  %v1289 = vpack.c.b16 %v1265, %v1261
  %v1290 = vpack.c.b16 %v1266, %v1262
  %v1291 = vpack.c.b16 %v1267, %v1263
  %v1292 = vpack.c.b16 %v1268, %v1264
  %v1318 = vsel %vm316, %v1196, 0
  %1320 = vmatpush.bf16.msra.mxu0 0
  %1321 = vmatpush.bf16.msra.mxu0 0
  %1322 = vmatpush.bf16.msra.mxu0 %v1289
  %1323 = vmatpush.bf16.msra.mxu0 %v1285
  %1324 = vmatpush.bf16.msra.mxu0 %v1281
  %1325 = vmatpush.bf16.msra.mxu0 %v1277
  %1326 = vmatpush.bf16.msra.mxu0 %v1273
  %1327 = vmatpush.bf16.msra.mxu0 %v1269
  %1328 = vmatmul.bf16.gmra.mxu0 %v815
  %v1329 = vpop.f32.mrf.mxu0
  %v1330 = vadd.f32 0.0, %v1329
  %v1331 = vpop.f32.mrf.mxu0
  %v1332 = vadd.f32 0.0, %v1331
  %1333 = vmatmul.bf16.gmra.mxu0 %v818
  %v1334 = vpop.f32.mrf.mxu0
  %v1335 = vadd.f32 0.0, %v1334
  %v1336 = vpop.f32.mrf.mxu0
  %v1337 = vadd.f32 0.0, %v1336
  %1338 = vmatmul.bf16.gmra.mxu0 %v821
  %v1339 = vpop.f32.mrf.mxu0
  %v1340 = vadd.f32 0.0, %v1339
  %v1341 = vpop.f32.mrf.mxu0
  %v1342 = vadd.f32 0.0, %v1341
  %1343 = vmatmul.bf16.gmra.mxu0 %v824
  %v1344 = vpop.f32.mrf.mxu0
  %v1345 = vadd.f32 0.0, %v1344
  %v1346 = vpop.f32.mrf.mxu0
  %v1347 = vadd.f32 0.0, %v1346
  %1348 = vmatmul.bf16.gmra.mxu0 %v827
  %v1349 = vpop.f32.mrf.mxu0
  %v1350 = vadd.f32 0.0, %v1349
  %v1351 = vpop.f32.mrf.mxu0
  %v1352 = vadd.f32 0.0, %v1351
  %1353 = vmatmul.bf16.gmra.mxu0 %v830
  %v1354 = vpop.f32.mrf.mxu0
  %v1355 = vadd.f32 0.0, %v1354
  %v1356 = vpop.f32.mrf.mxu0
  %v1357 = vadd.f32 0.0, %v1356
  %1358 = vmatmul.bf16.gmra.mxu0 %v833
  %v1359 = vpop.f32.mrf.mxu0
  %v1360 = vadd.f32 0.0, %v1359
  %v1361 = vpop.f32.mrf.mxu0
  %v1362 = vadd.f32 0.0, %v1361
  %1363 = vmatmul.bf16.gmra.mxu0 %v836
  %v1364 = vpop.f32.mrf.mxu0
  %v1365 = vadd.f32 0.0, %v1364
  %v1366 = vpop.f32.mrf.mxu0
  %v1367 = vadd.f32 0.0, %v1366
  %1368 = vmatmul.bf16.gmra.mxu0 %v839
  %v1369 = vpop.f32.mrf.mxu0
  %v1370 = vadd.f32 0.0, %v1369
  %v1371 = vpop.f32.mrf.mxu0
  %v1372 = vadd.f32 0.0, %v1371
  %1373 = vmatmul.bf16.gmra.mxu0 %v842
  %v1374 = vpop.f32.mrf.mxu0
  %v1375 = vadd.f32 0.0, %v1374
  %v1376 = vpop.f32.mrf.mxu0
  %v1377 = vadd.f32 0.0, %v1376
  %1378 = vmatmul.bf16.gmra.mxu0 %v845
  %v1379 = vpop.f32.mrf.mxu0
  %v1380 = vadd.f32 0.0, %v1379
  %v1381 = vpop.f32.mrf.mxu0
  %v1382 = vadd.f32 0.0, %v1381
  %1383 = vmatmul.bf16.gmra.mxu0 %v848
  %v1384 = vpop.f32.mrf.mxu0
  %v1385 = vadd.f32 0.0, %v1384
  %v1386 = vpop.f32.mrf.mxu0
  %v1387 = vadd.f32 0.0, %v1386
  %1388 = vmatmul.bf16.gmra.mxu0 %v851
  %v1389 = vpop.f32.mrf.mxu0
  %v1390 = vadd.f32 0.0, %v1389
  %v1391 = vpop.f32.mrf.mxu0
  %v1392 = vadd.f32 0.0, %v1391
  %1393 = vmatmul.bf16.gmra.mxu0 %v1318
  %v1394 = vpop.f32.mrf.mxu0
  %v1395 = vadd.f32 0.0, %v1394
  %v1396 = vpop.f32.mrf.mxu0
  %v1397 = vadd.f32 0.0, %v1396
  %1398 = vdwg.mxu0
  %1399 = vmatpush.bf16.msra.mxu0 0
  %1400 = vmatpush.bf16.msra.mxu0 0
  %1401 = vmatpush.bf16.msra.mxu0 %v1290
  %1402 = vmatpush.bf16.msra.mxu0 %v1286
  %1403 = vmatpush.bf16.msra.mxu0 %v1282
  %1404 = vmatpush.bf16.msra.mxu0 %v1278
  %1405 = vmatpush.bf16.msra.mxu0 %v1274
  %1406 = vmatpush.bf16.msra.mxu0 %v1270
  %1407 = vmatmul.bf16.gmra.mxu0 %v815
  %v1408 = vpop.f32.mrf.mxu0
  %v1409 = vadd.f32 0.0, %v1408
  %v1410 = vpop.f32.mrf.mxu0
  %v1411 = vadd.f32 0.0, %v1410
  %1412 = vmatmul.bf16.gmra.mxu0 %v818
  %v1413 = vpop.f32.mrf.mxu0
  %v1414 = vadd.f32 0.0, %v1413
  %v1415 = vpop.f32.mrf.mxu0
  %v1416 = vadd.f32 0.0, %v1415
  %1417 = vmatmul.bf16.gmra.mxu0 %v821
  %v1418 = vpop.f32.mrf.mxu0
  %v1419 = vadd.f32 0.0, %v1418
  %v1420 = vpop.f32.mrf.mxu0
  %v1421 = vadd.f32 0.0, %v1420
  %1422 = vmatmul.bf16.gmra.mxu0 %v824
  %v1423 = vpop.f32.mrf.mxu0
  %v1424 = vadd.f32 0.0, %v1423
  %v1425 = vpop.f32.mrf.mxu0
  %v1426 = vadd.f32 0.0, %v1425
  %1427 = vmatmul.bf16.gmra.mxu0 %v827
  %v1428 = vpop.f32.mrf.mxu0
  %v1429 = vadd.f32 0.0, %v1428
  %v1430 = vpop.f32.mrf.mxu0
  %v1431 = vadd.f32 0.0, %v1430
  %1432 = vmatmul.bf16.gmra.mxu0 %v830
  %v1433 = vpop.f32.mrf.mxu0
  %v1434 = vadd.f32 0.0, %v1433
  %v1435 = vpop.f32.mrf.mxu0
  %v1436 = vadd.f32 0.0, %v1435
  %1437 = vmatmul.bf16.gmra.mxu0 %v833
  %v1438 = vpop.f32.mrf.mxu0
  %v1439 = vadd.f32 0.0, %v1438
  %v1440 = vpop.f32.mrf.mxu0
  %v1441 = vadd.f32 0.0, %v1440
  %1442 = vmatmul.bf16.gmra.mxu0 %v836
  %v1443 = vpop.f32.mrf.mxu0
  %v1444 = vadd.f32 0.0, %v1443
  %v1445 = vpop.f32.mrf.mxu0
  %v1446 = vadd.f32 0.0, %v1445
  %1447 = vmatmul.bf16.gmra.mxu0 %v839
  %v1448 = vpop.f32.mrf.mxu0
  %v1449 = vadd.f32 0.0, %v1448
  %v1450 = vpop.f32.mrf.mxu0
  %v1451 = vadd.f32 0.0, %v1450
  %1452 = vmatmul.bf16.gmra.mxu0 %v842
  %v1453 = vpop.f32.mrf.mxu0
  %v1454 = vadd.f32 0.0, %v1453
  %v1455 = vpop.f32.mrf.mxu0
  %v1456 = vadd.f32 0.0, %v1455
  %1457 = vmatmul.bf16.gmra.mxu0 %v845
  %v1458 = vpop.f32.mrf.mxu0
  %v1459 = vadd.f32 0.0, %v1458
  %v1460 = vpop.f32.mrf.mxu0
  %v1461 = vadd.f32 0.0, %v1460
  %1462 = vmatmul.bf16.gmra.mxu0 %v848
  %v1463 = vpop.f32.mrf.mxu0
  %v1464 = vadd.f32 0.0, %v1463
  %v1465 = vpop.f32.mrf.mxu0
  %v1466 = vadd.f32 0.0, %v1465
  %1467 = vmatmul.bf16.gmra.mxu0 %v851
  %v1468 = vpop.f32.mrf.mxu0
  %v1469 = vadd.f32 0.0, %v1468
  %v1470 = vpop.f32.mrf.mxu0
  %v1471 = vadd.f32 0.0, %v1470
  %1472 = vmatmul.bf16.gmra.mxu0 %v1318
  %v1473 = vpop.f32.mrf.mxu0
  %v1474 = vadd.f32 0.0, %v1473
  %v1475 = vpop.f32.mrf.mxu0
  %v1476 = vadd.f32 0.0, %v1475
  %1477 = vdwg.mxu0
  %1478 = vmatpush.bf16.msra.mxu0 0
  %1479 = vmatpush.bf16.msra.mxu0 0
  %1480 = vmatpush.bf16.msra.mxu0 %v1291
  %1481 = vmatpush.bf16.msra.mxu0 %v1287
  %1482 = vmatpush.bf16.msra.mxu0 %v1283
  %1483 = vmatpush.bf16.msra.mxu0 %v1279
  %1484 = vmatpush.bf16.msra.mxu0 %v1275
  %1485 = vmatpush.bf16.msra.mxu0 %v1271
  %1486 = vmatmul.bf16.gmra.mxu0 %v815
  %v1487 = vpop.f32.mrf.mxu0
  %v1488 = vadd.f32 0.0, %v1487
  %v1489 = vpop.f32.mrf.mxu0
  %v1490 = vadd.f32 0.0, %v1489
  %1491 = vmatmul.bf16.gmra.mxu0 %v818
  %v1492 = vpop.f32.mrf.mxu0
  %v1493 = vadd.f32 0.0, %v1492
  %v1494 = vpop.f32.mrf.mxu0
  %v1495 = vadd.f32 0.0, %v1494
  %1496 = vmatmul.bf16.gmra.mxu0 %v821
  %v1497 = vpop.f32.mrf.mxu0
  %v1498 = vadd.f32 0.0, %v1497
  %v1499 = vpop.f32.mrf.mxu0
  %v1500 = vadd.f32 0.0, %v1499
  %1501 = vmatmul.bf16.gmra.mxu0 %v824
  %v1502 = vpop.f32.mrf.mxu0
  %v1503 = vadd.f32 0.0, %v1502
  %v1504 = vpop.f32.mrf.mxu0
  %v1505 = vadd.f32 0.0, %v1504
  %1506 = vmatmul.bf16.gmra.mxu0 %v827
  %v1507 = vpop.f32.mrf.mxu0
  %v1508 = vadd.f32 0.0, %v1507
  %v1509 = vpop.f32.mrf.mxu0
  %v1510 = vadd.f32 0.0, %v1509
  %1511 = vmatmul.bf16.gmra.mxu0 %v830
  %v1512 = vpop.f32.mrf.mxu0
  %v1513 = vadd.f32 0.0, %v1512
  %v1514 = vpop.f32.mrf.mxu0
  %v1515 = vadd.f32 0.0, %v1514
  %1516 = vmatmul.bf16.gmra.mxu0 %v833
  %v1517 = vpop.f32.mrf.mxu0
  %v1518 = vadd.f32 0.0, %v1517
  %v1519 = vpop.f32.mrf.mxu0
  %v1520 = vadd.f32 0.0, %v1519
  %1521 = vmatmul.bf16.gmra.mxu0 %v836
  %v1522 = vpop.f32.mrf.mxu0
  %v1523 = vadd.f32 0.0, %v1522
  %v1524 = vpop.f32.mrf.mxu0
  %v1525 = vadd.f32 0.0, %v1524
  %1526 = vmatmul.bf16.gmra.mxu0 %v839
  %v1527 = vpop.f32.mrf.mxu0
  %v1528 = vadd.f32 0.0, %v1527
  %v1529 = vpop.f32.mrf.mxu0
  %v1530 = vadd.f32 0.0, %v1529
  %1531 = vmatmul.bf16.gmra.mxu0 %v842
  %v1532 = vpop.f32.mrf.mxu0
  %v1533 = vadd.f32 0.0, %v1532
  %v1534 = vpop.f32.mrf.mxu0
  %v1535 = vadd.f32 0.0, %v1534
  %1536 = vmatmul.bf16.gmra.mxu0 %v845
  %v1537 = vpop.f32.mrf.mxu0
  %v1538 = vadd.f32 0.0, %v1537
  %v1539 = vpop.f32.mrf.mxu0
  %v1540 = vadd.f32 0.0, %v1539
  %1541 = vmatmul.bf16.gmra.mxu0 %v848
  %v1542 = vpop.f32.mrf.mxu0
  %v1543 = vadd.f32 0.0, %v1542
  %v1544 = vpop.f32.mrf.mxu0
  %v1545 = vadd.f32 0.0, %v1544
  %1546 = vmatmul.bf16.gmra.mxu0 %v851
  %v1547 = vpop.f32.mrf.mxu0
  %v1548 = vadd.f32 0.0, %v1547
  %v1549 = vpop.f32.mrf.mxu0
  %v1550 = vadd.f32 0.0, %v1549
  %1551 = vmatmul.bf16.gmra.mxu0 %v1318
  %v1552 = vpop.f32.mrf.mxu0
  %v1553 = vadd.f32 0.0, %v1552
  %v1554 = vpop.f32.mrf.mxu0
  %v1555 = vadd.f32 0.0, %v1554
  %1556 = vdwg.mxu0
  %1557 = vmatpush.bf16.msra.mxu0 0
  %1558 = vmatpush.bf16.msra.mxu0 0
  %1559 = vmatpush.bf16.msra.mxu0 %v1292
  %1560 = vmatpush.bf16.msra.mxu0 %v1288
  %1561 = vmatpush.bf16.msra.mxu0 %v1284
  %1562 = vmatpush.bf16.msra.mxu0 %v1280
  %1563 = vmatpush.bf16.msra.mxu0 %v1276
  %1564 = vmatpush.bf16.msra.mxu0 %v1272
  %1565 = vmatmul.bf16.gmra.mxu0 %v815
  %v1566 = vpop.f32.mrf.mxu0
  %v1567 = vadd.f32 0.0, %v1566
  %v1568 = vpop.f32.mrf.mxu0
  %v1569 = vadd.f32 0.0, %v1568
  %1570 = vmatmul.bf16.gmra.mxu0 %v818
  %v1571 = vpop.f32.mrf.mxu0
  %v1572 = vadd.f32 0.0, %v1571
  %v1573 = vpop.f32.mrf.mxu0
  %v1574 = vadd.f32 0.0, %v1573
  %1575 = vmatmul.bf16.gmra.mxu0 %v821
  %v1576 = vpop.f32.mrf.mxu0
  %v1577 = vadd.f32 0.0, %v1576
  %v1578 = vpop.f32.mrf.mxu0
  %v1579 = vadd.f32 0.0, %v1578
  %1580 = vmatmul.bf16.gmra.mxu0 %v824
  %v1581 = vpop.f32.mrf.mxu0
  %v1582 = vadd.f32 0.0, %v1581
  %v1583 = vpop.f32.mrf.mxu0
  %v1584 = vadd.f32 0.0, %v1583
  %1585 = vmatmul.bf16.gmra.mxu0 %v827
  %v1586 = vpop.f32.mrf.mxu0
  %v1587 = vadd.f32 0.0, %v1586
  %v1588 = vpop.f32.mrf.mxu0
  %v1589 = vadd.f32 0.0, %v1588
  %1590 = vmatmul.bf16.gmra.mxu0 %v830
  %v1591 = vpop.f32.mrf.mxu0
  %v1592 = vadd.f32 0.0, %v1591
  %v1593 = vpop.f32.mrf.mxu0
  %v1594 = vadd.f32 0.0, %v1593
  %1595 = vmatmul.bf16.gmra.mxu0 %v833
  %v1596 = vpop.f32.mrf.mxu0
  %v1597 = vadd.f32 0.0, %v1596
  %v1598 = vpop.f32.mrf.mxu0
  %v1599 = vadd.f32 0.0, %v1598
  %1600 = vmatmul.bf16.gmra.mxu0 %v836
  %v1601 = vpop.f32.mrf.mxu0
  %v1602 = vadd.f32 0.0, %v1601
  %v1603 = vpop.f32.mrf.mxu0
  %v1604 = vadd.f32 0.0, %v1603
  %1605 = vmatmul.bf16.gmra.mxu0 %v839
  %v1606 = vpop.f32.mrf.mxu0
  %v1607 = vadd.f32 0.0, %v1606
  %v1608 = vpop.f32.mrf.mxu0
  %v1609 = vadd.f32 0.0, %v1608
  %1610 = vmatmul.bf16.gmra.mxu0 %v842
  %v1611 = vpop.f32.mrf.mxu0
  %v1612 = vadd.f32 0.0, %v1611
  %v1613 = vpop.f32.mrf.mxu0
  %v1614 = vadd.f32 0.0, %v1613
  %1615 = vmatmul.bf16.gmra.mxu0 %v845
  %v1616 = vpop.f32.mrf.mxu0
  %v1617 = vadd.f32 0.0, %v1616
  %v1618 = vpop.f32.mrf.mxu0
  %v1619 = vadd.f32 0.0, %v1618
  %1620 = vmatmul.bf16.gmra.mxu0 %v848
  %v1621 = vpop.f32.mrf.mxu0
  %v1622 = vadd.f32 0.0, %v1621
  %v1623 = vpop.f32.mrf.mxu0
  %v1624 = vadd.f32 0.0, %v1623
  %1625 = vmatmul.bf16.gmra.mxu0 %v851
  %v1626 = vpop.f32.mrf.mxu0
  %v1627 = vadd.f32 0.0, %v1626
  %v1628 = vpop.f32.mrf.mxu0
  %v1629 = vadd.f32 0.0, %v1628
  %1630 = vmatmul.bf16.gmra.mxu0 %v1318
  %v1631 = vpop.f32.mrf.mxu0
  %v1632 = vadd.f32 0.0, %v1631
  %v1633 = vpop.f32.mrf.mxu0
  %v1634 = vadd.f32 0.0, %v1633
  %1635 = vdwg.mxu0
  %v1636 = vadd.f32 %v863, %v1330
  %v1637 = vadd.f32 %v942, %v1409
  %v1638 = vadd.f32 %v1021, %v1488
  %v1639 = vadd.f32 %v1100, %v1567
  %v1640 = vadd.f32 %v865, %v1332
  %v1641 = vadd.f32 %v944, %v1411
  %v1642 = vadd.f32 %v1023, %v1490
  %v1643 = vadd.f32 %v1102, %v1569
  %v1644 = vadd.f32 %v868, %v1335
  %v1645 = vadd.f32 %v947, %v1414
  %v1646 = vadd.f32 %v1026, %v1493
  %v1647 = vadd.f32 %v1105, %v1572
  %v1648 = vadd.f32 %v870, %v1337
  %v1649 = vadd.f32 %v949, %v1416
  %v1650 = vadd.f32 %v1028, %v1495
  %v1651 = vadd.f32 %v1107, %v1574
  %v1652 = vadd.f32 %v873, %v1340
  %v1653 = vadd.f32 %v952, %v1419
  %v1654 = vadd.f32 %v1031, %v1498
  %v1655 = vadd.f32 %v1110, %v1577
  %v1656 = vadd.f32 %v875, %v1342
  %v1657 = vadd.f32 %v954, %v1421
  %v1658 = vadd.f32 %v1033, %v1500
  %v1659 = vadd.f32 %v1112, %v1579
  %v1660 = vadd.f32 %v878, %v1345
  %v1661 = vadd.f32 %v957, %v1424
  %v1662 = vadd.f32 %v1036, %v1503
  %v1663 = vadd.f32 %v1115, %v1582
  %v1664 = vadd.f32 %v880, %v1347
  %v1665 = vadd.f32 %v959, %v1426
  %v1666 = vadd.f32 %v1038, %v1505
  %v1667 = vadd.f32 %v1117, %v1584
  %v1668 = vadd.f32 %v883, %v1350
  %v1669 = vadd.f32 %v962, %v1429
  %v1670 = vadd.f32 %v1041, %v1508
  %v1671 = vadd.f32 %v1120, %v1587
  %v1672 = vadd.f32 %v885, %v1352
  %v1673 = vadd.f32 %v964, %v1431
  %v1674 = vadd.f32 %v1043, %v1510
  %v1675 = vadd.f32 %v1122, %v1589
  %v1676 = vadd.f32 %v888, %v1355
  %v1677 = vadd.f32 %v967, %v1434
  %v1678 = vadd.f32 %v1046, %v1513
  %v1679 = vadd.f32 %v1125, %v1592
  %v1680 = vadd.f32 %v890, %v1357
  %v1681 = vadd.f32 %v969, %v1436
  %v1682 = vadd.f32 %v1048, %v1515
  %v1683 = vadd.f32 %v1127, %v1594
  %v1684 = vadd.f32 %v893, %v1360
  %v1685 = vadd.f32 %v972, %v1439
  %v1686 = vadd.f32 %v1051, %v1518
  %v1687 = vadd.f32 %v1130, %v1597
  %v1688 = vadd.f32 %v895, %v1362
  %v1689 = vadd.f32 %v974, %v1441
  %v1690 = vadd.f32 %v1053, %v1520
  %v1691 = vadd.f32 %v1132, %v1599
  %v1692 = vadd.f32 %v898, %v1365
  %v1693 = vadd.f32 %v977, %v1444
  %v1694 = vadd.f32 %v1056, %v1523
  %v1695 = vadd.f32 %v1135, %v1602
  %v1696 = vadd.f32 %v900, %v1367
  %v1697 = vadd.f32 %v979, %v1446
  %v1698 = vadd.f32 %v1058, %v1525
  %v1699 = vadd.f32 %v1137, %v1604
  %v1700 = vadd.f32 %v903, %v1370
  %v1701 = vadd.f32 %v982, %v1449
  %v1702 = vadd.f32 %v1061, %v1528
  %v1703 = vadd.f32 %v1140, %v1607
  %v1704 = vadd.f32 %v905, %v1372
  %v1705 = vadd.f32 %v984, %v1451
  %v1706 = vadd.f32 %v1063, %v1530
  %v1707 = vadd.f32 %v1142, %v1609
  %v1708 = vadd.f32 %v908, %v1375
  %v1709 = vadd.f32 %v987, %v1454
  %v1710 = vadd.f32 %v1066, %v1533
  %v1711 = vadd.f32 %v1145, %v1612
  %v1712 = vadd.f32 %v910, %v1377
  %v1713 = vadd.f32 %v989, %v1456
  %v1714 = vadd.f32 %v1068, %v1535
  %v1715 = vadd.f32 %v1147, %v1614
  %v1716 = vadd.f32 %v913, %v1380
  %v1717 = vadd.f32 %v992, %v1459
  %v1718 = vadd.f32 %v1071, %v1538
  %v1719 = vadd.f32 %v1150, %v1617
  %v1720 = vadd.f32 %v915, %v1382
  %v1721 = vadd.f32 %v994, %v1461
  %v1722 = vadd.f32 %v1073, %v1540
  %v1723 = vadd.f32 %v1152, %v1619
  %v1724 = vadd.f32 %v918, %v1385
  %v1725 = vadd.f32 %v997, %v1464
  %v1726 = vadd.f32 %v1076, %v1543
  %v1727 = vadd.f32 %v1155, %v1622
  %v1728 = vadd.f32 %v920, %v1387
  %v1729 = vadd.f32 %v999, %v1466
  %v1730 = vadd.f32 %v1078, %v1545
  %v1731 = vadd.f32 %v1157, %v1624
  %v1732 = vadd.f32 %v923, %v1390
  %v1733 = vadd.f32 %v1002, %v1469
  %v1734 = vadd.f32 %v1081, %v1548
  %v1735 = vadd.f32 %v1160, %v1627
  %v1736 = vadd.f32 %v925, %v1392
  %v1737 = vadd.f32 %v1004, %v1471
  %v1738 = vadd.f32 %v1083, %v1550
  %v1739 = vadd.f32 %v1162, %v1629
  %v1740 = vadd.f32 %v928, %v1395
  %v1741 = vadd.f32 %v1007, %v1474
  %v1742 = vadd.f32 %v1086, %v1553
  %v1743 = vadd.f32 %v1165, %v1632
  %v1744 = vadd.f32 %v930, %v1397
  %v1745 = vadd.f32 %v1009, %v1476
  %v1746 = vadd.f32 %v1088, %v1555
  %v1747 = vadd.f32 %v1167, %v1634
  %s1748 = scalar_lea.vmem %s1, 576
  %v1749 = vld [vmem:[%s1748] sm:$0xff]
  %v1750 = vld [vmem:[%s1748 + $0x8] sm:$0xff]
  %v1751 = vld [vmem:[%s1748 + $0x10] sm:$0xff]
  %v1752 = vld [vmem:[%s1748 + $0x18] sm:$0xff]
  %v1753 = vld [vmem:[%s1748 + $0x20] sm:$0xff]
  %v1754 = vld [vmem:[%s1748 + $0x28] sm:$0xff]
  %v1755 = vld [vmem:[%s1748 + $0x30] sm:$0xff]
  %v1756 = vld [vmem:[%s1748 + $0x38] sm:$0xff]
  %v1757 = vld [vmem:[%s1748 + $0x40] sm:$0xff]
  %v1758 = vld [vmem:[%s1748 + $0x48] sm:$0xff]
  %v1759 = vld [vmem:[%s1748 + $0x50] sm:$0xff]
  %v1760 = vld [vmem:[%s1748 + $0x58] sm:$0xff]
  %v1761 = vld [vmem:[%s1748 + $0x60] sm:$0xff]
  %v1762 = vld [vmem:[%s1748 + $0x68] sm:$0xff]
  %v1763 = vld [vmem:[%s1748 + $0x70] sm:$0xff]
  %v1764 = vld [vmem:[%s1748 + $0x78] sm:$0xff]
  %v1765 = vld [vmem:[%s1748 + $0x80] sm:$0xff]
  %v1766 = vld [vmem:[%s1748 + $0x88] sm:$0xff]
  %v1767 = vld [vmem:[%s1748 + $0x90] sm:$0xff]
  %v1768 = vld [vmem:[%s1748 + $0x98] sm:$0xff]
  %v1769 = vld [vmem:[%s1748 + $0xa0] sm:$0xff]
  %v1770 = vld [vmem:[%s1748 + $0xa8] sm:$0xff]
  %v1771 = vld [vmem:[%s1748 + $0xb0] sm:$0xff]
  %v1772 = vld [vmem:[%s1748 + $0xb8] sm:$0xff]
  %v1774 = vunpack.c.l.b16 %v75
  %v1775 = vpack.c.b16 %v1774, %v1195
  %v1800 = vunpack.c.l.b16 %v1749
  %v1801 = vunpack.c.h.b16 %v1749
  %v1802 = vunpack.c.l.b16 %v1750
  %v1803 = vunpack.c.h.b16 %v1750
  %v1804 = vunpack.c.l.b16 %v1751
  %v1805 = vunpack.c.h.b16 %v1751
  %v1806 = vunpack.c.l.b16 %v1752
  %v1807 = vunpack.c.h.b16 %v1752
  %v1808 = vunpack.c.l.b16 %v1753
  %v1809 = vunpack.c.h.b16 %v1753
  %v1810 = vunpack.c.l.b16 %v1754
  %v1811 = vunpack.c.h.b16 %v1754
  %v1812 = vunpack.c.l.b16 %v1755
  %v1813 = vunpack.c.h.b16 %v1755
  %v1814 = vunpack.c.l.b16 %v1756
  %v1815 = vunpack.c.h.b16 %v1756
  %v1816 = vunpack.c.l.b16 %v1757
  %v1817 = vunpack.c.h.b16 %v1757
  %v1818 = vunpack.c.l.b16 %v1758
  %v1819 = vunpack.c.h.b16 %v1758
  %v1820 = vunpack.c.l.b16 %v1759
  %v1821 = vunpack.c.h.b16 %v1759
  %v1822 = vunpack.c.l.b16 %v1760
  %v1823 = vunpack.c.h.b16 %v1760
  %v1824 = vunpack.c.l.b16 %v1761
  %v1825 = vunpack.c.h.b16 %v1761
  %v1826 = vunpack.c.l.b16 %v1762
  %v1827 = vunpack.c.h.b16 %v1762
  %v1828 = vunpack.c.l.b16 %v1763
  %v1829 = vunpack.c.h.b16 %v1763
  %v1830 = vunpack.c.l.b16 %v1764
  %v1831 = vunpack.c.h.b16 %v1764
  %v1832 = vunpack.c.l.b16 %v1765
  %v1833 = vunpack.c.h.b16 %v1765
  %v1834 = vunpack.c.l.b16 %v1766
  %v1835 = vunpack.c.h.b16 %v1766
  %v1836 = vunpack.c.l.b16 %v1767
  %v1837 = vunpack.c.h.b16 %v1767
  %v1838 = vunpack.c.l.b16 %v1768
  %v1839 = vunpack.c.h.b16 %v1768
  %v1840 = vunpack.c.l.b16 %v1769
  %v1841 = vunpack.c.h.b16 %v1769
  %v1842 = vunpack.c.l.b16 %v1770
  %v1843 = vunpack.c.h.b16 %v1770
  %v1844 = vunpack.c.l.b16 %v1771
  %v1845 = vunpack.c.h.b16 %v1771
  %v1846 = vunpack.c.l.b16 %v1772
  %v1847 = vunpack.c.h.b16 %v1772
  %v1848 = vpack.c.b16 %v1804, %v1800
  %v1849 = vpack.c.b16 %v1805, %v1801
  %v1850 = vpack.c.b16 %v1806, %v1802
  %v1851 = vpack.c.b16 %v1807, %v1803
  %v1852 = vpack.c.b16 %v1812, %v1808
  %v1853 = vpack.c.b16 %v1813, %v1809
  %v1854 = vpack.c.b16 %v1814, %v1810
  %v1855 = vpack.c.b16 %v1815, %v1811
  %v1856 = vpack.c.b16 %v1820, %v1816
  %v1857 = vpack.c.b16 %v1821, %v1817
  %v1858 = vpack.c.b16 %v1822, %v1818
  %v1859 = vpack.c.b16 %v1823, %v1819
  %v1860 = vpack.c.b16 %v1828, %v1824
  %v1861 = vpack.c.b16 %v1829, %v1825
  %v1862 = vpack.c.b16 %v1830, %v1826
  %v1863 = vpack.c.b16 %v1831, %v1827
  %v1864 = vpack.c.b16 %v1836, %v1832
  %v1865 = vpack.c.b16 %v1837, %v1833
  %v1866 = vpack.c.b16 %v1838, %v1834
  %v1867 = vpack.c.b16 %v1839, %v1835
  %v1868 = vpack.c.b16 %v1844, %v1840
  %v1869 = vpack.c.b16 %v1845, %v1841
  %v1870 = vpack.c.b16 %v1846, %v1842
  %v1871 = vpack.c.b16 %v1847, %v1843
  %v1897 = vsel %vm316, %v1775, 0
  %1899 = vmatpush.bf16.msra.mxu0 0
  %1900 = vmatpush.bf16.msra.mxu0 0
  %1901 = vmatpush.bf16.msra.mxu0 %v1868
  %1902 = vmatpush.bf16.msra.mxu0 %v1864
  %1903 = vmatpush.bf16.msra.mxu0 %v1860
  %1904 = vmatpush.bf16.msra.mxu0 %v1856
  %1905 = vmatpush.bf16.msra.mxu0 %v1852
  %1906 = vmatpush.bf16.msra.mxu0 %v1848
  %1907 = vmatmul.bf16.gmra.mxu0 %v321
  %v1908 = vpop.f32.mrf.mxu0
  %v1909 = vadd.f32 0.0, %v1908
  %v1910 = vpop.f32.mrf.mxu0
  %v1911 = vadd.f32 0.0, %v1910
  %1912 = vmatmul.bf16.gmra.mxu0 %v324
  %v1913 = vpop.f32.mrf.mxu0
  %v1914 = vadd.f32 0.0, %v1913
  %v1915 = vpop.f32.mrf.mxu0
  %v1916 = vadd.f32 0.0, %v1915
  %1917 = vmatmul.bf16.gmra.mxu0 %v327
  %v1918 = vpop.f32.mrf.mxu0
  %v1919 = vadd.f32 0.0, %v1918
  %v1920 = vpop.f32.mrf.mxu0
  %v1921 = vadd.f32 0.0, %v1920
  %1922 = vmatmul.bf16.gmra.mxu0 %v330
  %v1923 = vpop.f32.mrf.mxu0
  %v1924 = vadd.f32 0.0, %v1923
  %v1925 = vpop.f32.mrf.mxu0
  %v1926 = vadd.f32 0.0, %v1925
  %1927 = vmatmul.bf16.gmra.mxu0 %v333
  %v1928 = vpop.f32.mrf.mxu0
  %v1929 = vadd.f32 0.0, %v1928
  %v1930 = vpop.f32.mrf.mxu0
  %v1931 = vadd.f32 0.0, %v1930
  %1932 = vmatmul.bf16.gmra.mxu0 %v336
  %v1933 = vpop.f32.mrf.mxu0
  %v1934 = vadd.f32 0.0, %v1933
  %v1935 = vpop.f32.mrf.mxu0
  %v1936 = vadd.f32 0.0, %v1935
  %1937 = vmatmul.bf16.gmra.mxu0 %v339
  %v1938 = vpop.f32.mrf.mxu0
  %v1939 = vadd.f32 0.0, %v1938
  %v1940 = vpop.f32.mrf.mxu0
  %v1941 = vadd.f32 0.0, %v1940
  %1942 = vmatmul.bf16.gmra.mxu0 %v342
  %v1943 = vpop.f32.mrf.mxu0
  %v1944 = vadd.f32 0.0, %v1943
  %v1945 = vpop.f32.mrf.mxu0
  %v1946 = vadd.f32 0.0, %v1945
  %1947 = vmatmul.bf16.gmra.mxu0 %v345
  %v1948 = vpop.f32.mrf.mxu0
  %v1949 = vadd.f32 0.0, %v1948
  %v1950 = vpop.f32.mrf.mxu0
  %v1951 = vadd.f32 0.0, %v1950
  %1952 = vmatmul.bf16.gmra.mxu0 %v348
  %v1953 = vpop.f32.mrf.mxu0
  %v1954 = vadd.f32 0.0, %v1953
  %v1955 = vpop.f32.mrf.mxu0
  %v1956 = vadd.f32 0.0, %v1955
  %1957 = vmatmul.bf16.gmra.mxu0 %v351
  %v1958 = vpop.f32.mrf.mxu0
  %v1959 = vadd.f32 0.0, %v1958
  %v1960 = vpop.f32.mrf.mxu0
  %v1961 = vadd.f32 0.0, %v1960
  %1962 = vmatmul.bf16.gmra.mxu0 %v354
  %v1963 = vpop.f32.mrf.mxu0
  %v1964 = vadd.f32 0.0, %v1963
  %v1965 = vpop.f32.mrf.mxu0
  %v1966 = vadd.f32 0.0, %v1965
  %1967 = vmatmul.bf16.gmra.mxu0 %v357
  %v1968 = vpop.f32.mrf.mxu0
  %v1969 = vadd.f32 0.0, %v1968
  %v1970 = vpop.f32.mrf.mxu0
  %v1971 = vadd.f32 0.0, %v1970
  %1972 = vmatmul.bf16.gmra.mxu0 %v1897
  %v1973 = vpop.f32.mrf.mxu0
  %v1974 = vadd.f32 0.0, %v1973
  %v1975 = vpop.f32.mrf.mxu0
  %v1976 = vadd.f32 0.0, %v1975
  %1977 = vdwg.mxu0
  %1978 = vmatpush.bf16.msra.mxu0 0
  %1979 = vmatpush.bf16.msra.mxu0 0
  %1980 = vmatpush.bf16.msra.mxu0 %v1869
  %1981 = vmatpush.bf16.msra.mxu0 %v1865
  %1982 = vmatpush.bf16.msra.mxu0 %v1861
  %1983 = vmatpush.bf16.msra.mxu0 %v1857
  %1984 = vmatpush.bf16.msra.mxu0 %v1853
  %1985 = vmatpush.bf16.msra.mxu0 %v1849
  %1986 = vmatmul.bf16.gmra.mxu0 %v321
  %v1987 = vpop.f32.mrf.mxu0
  %v1988 = vadd.f32 0.0, %v1987
  %v1989 = vpop.f32.mrf.mxu0
  %v1990 = vadd.f32 0.0, %v1989
  %1991 = vmatmul.bf16.gmra.mxu0 %v324
  %v1992 = vpop.f32.mrf.mxu0
  %v1993 = vadd.f32 0.0, %v1992
  %v1994 = vpop.f32.mrf.mxu0
  %v1995 = vadd.f32 0.0, %v1994
  %1996 = vmatmul.bf16.gmra.mxu0 %v327
  %v1997 = vpop.f32.mrf.mxu0
  %v1998 = vadd.f32 0.0, %v1997
  %v1999 = vpop.f32.mrf.mxu0
  %v2000 = vadd.f32 0.0, %v1999
  %2001 = vmatmul.bf16.gmra.mxu0 %v330
  %v2002 = vpop.f32.mrf.mxu0
  %v2003 = vadd.f32 0.0, %v2002
  %v2004 = vpop.f32.mrf.mxu0
  %v2005 = vadd.f32 0.0, %v2004
  %2006 = vmatmul.bf16.gmra.mxu0 %v333
  %v2007 = vpop.f32.mrf.mxu0
  %v2008 = vadd.f32 0.0, %v2007
  %v2009 = vpop.f32.mrf.mxu0
  %v2010 = vadd.f32 0.0, %v2009
  %2011 = vmatmul.bf16.gmra.mxu0 %v336
  %v2012 = vpop.f32.mrf.mxu0
  %v2013 = vadd.f32 0.0, %v2012
  %v2014 = vpop.f32.mrf.mxu0
  %v2015 = vadd.f32 0.0, %v2014
  %2016 = vmatmul.bf16.gmra.mxu0 %v339
  %v2017 = vpop.f32.mrf.mxu0
  %v2018 = vadd.f32 0.0, %v2017
  %v2019 = vpop.f32.mrf.mxu0
  %v2020 = vadd.f32 0.0, %v2019
  %2021 = vmatmul.bf16.gmra.mxu0 %v342
  %v2022 = vpop.f32.mrf.mxu0
  %v2023 = vadd.f32 0.0, %v2022
  %v2024 = vpop.f32.mrf.mxu0
  %v2025 = vadd.f32 0.0, %v2024
  %2026 = vmatmul.bf16.gmra.mxu0 %v345
  %v2027 = vpop.f32.mrf.mxu0
  %v2028 = vadd.f32 0.0, %v2027
  %v2029 = vpop.f32.mrf.mxu0
  %v2030 = vadd.f32 0.0, %v2029
  %2031 = vmatmul.bf16.gmra.mxu0 %v348
  %v2032 = vpop.f32.mrf.mxu0
  %v2033 = vadd.f32 0.0, %v2032
  %v2034 = vpop.f32.mrf.mxu0
  %v2035 = vadd.f32 0.0, %v2034
  %2036 = vmatmul.bf16.gmra.mxu0 %v351
  %v2037 = vpop.f32.mrf.mxu0
  %v2038 = vadd.f32 0.0, %v2037
  %v2039 = vpop.f32.mrf.mxu0
  %v2040 = vadd.f32 0.0, %v2039
  %2041 = vmatmul.bf16.gmra.mxu0 %v354
  %v2042 = vpop.f32.mrf.mxu0
  %v2043 = vadd.f32 0.0, %v2042
  %v2044 = vpop.f32.mrf.mxu0
  %v2045 = vadd.f32 0.0, %v2044
  %2046 = vmatmul.bf16.gmra.mxu0 %v357
  %v2047 = vpop.f32.mrf.mxu0
  %v2048 = vadd.f32 0.0, %v2047
  %v2049 = vpop.f32.mrf.mxu0
  %v2050 = vadd.f32 0.0, %v2049
  %2051 = vmatmul.bf16.gmra.mxu0 %v1897
  %v2052 = vpop.f32.mrf.mxu0
  %v2053 = vadd.f32 0.0, %v2052
  %v2054 = vpop.f32.mrf.mxu0
  %v2055 = vadd.f32 0.0, %v2054
  %2056 = vdwg.mxu0
  %2057 = vmatpush.bf16.msra.mxu0 0
  %2058 = vmatpush.bf16.msra.mxu0 0
  %2059 = vmatpush.bf16.msra.mxu0 %v1870
  %2060 = vmatpush.bf16.msra.mxu0 %v1866
  %2061 = vmatpush.bf16.msra.mxu0 %v1862
  %2062 = vmatpush.bf16.msra.mxu0 %v1858
  %2063 = vmatpush.bf16.msra.mxu0 %v1854
  %2064 = vmatpush.bf16.msra.mxu0 %v1850
  %2065 = vmatmul.bf16.gmra.mxu0 %v321
  %v2066 = vpop.f32.mrf.mxu0
  %v2067 = vadd.f32 0.0, %v2066
  %v2068 = vpop.f32.mrf.mxu0
  %v2069 = vadd.f32 0.0, %v2068
  %2070 = vmatmul.bf16.gmra.mxu0 %v324
  %v2071 = vpop.f32.mrf.mxu0
  %v2072 = vadd.f32 0.0, %v2071
  %v2073 = vpop.f32.mrf.mxu0
  %v2074 = vadd.f32 0.0, %v2073
  %2075 = vmatmul.bf16.gmra.mxu0 %v327
  %v2076 = vpop.f32.mrf.mxu0
  %v2077 = vadd.f32 0.0, %v2076
  %v2078 = vpop.f32.mrf.mxu0
  %v2079 = vadd.f32 0.0, %v2078
  %2080 = vmatmul.bf16.gmra.mxu0 %v330
  %v2081 = vpop.f32.mrf.mxu0
  %v2082 = vadd.f32 0.0, %v2081
  %v2083 = vpop.f32.mrf.mxu0
  %v2084 = vadd.f32 0.0, %v2083
  %2085 = vmatmul.bf16.gmra.mxu0 %v333
  %v2086 = vpop.f32.mrf.mxu0
  %v2087 = vadd.f32 0.0, %v2086
  %v2088 = vpop.f32.mrf.mxu0
  %v2089 = vadd.f32 0.0, %v2088
  %2090 = vmatmul.bf16.gmra.mxu0 %v336
  %v2091 = vpop.f32.mrf.mxu0
  %v2092 = vadd.f32 0.0, %v2091
  %v2093 = vpop.f32.mrf.mxu0
  %v2094 = vadd.f32 0.0, %v2093
  %2095 = vmatmul.bf16.gmra.mxu0 %v339
  %v2096 = vpop.f32.mrf.mxu0
  %v2097 = vadd.f32 0.0, %v2096
  %v2098 = vpop.f32.mrf.mxu0
  %v2099 = vadd.f32 0.0, %v2098
  %2100 = vmatmul.bf16.gmra.mxu0 %v342
  %v2101 = vpop.f32.mrf.mxu0
  %v2102 = vadd.f32 0.0, %v2101
  %v2103 = vpop.f32.mrf.mxu0
  %v2104 = vadd.f32 0.0, %v2103
  %2105 = vmatmul.bf16.gmra.mxu0 %v345
  %v2106 = vpop.f32.mrf.mxu0
  %v2107 = vadd.f32 0.0, %v2106
  %v2108 = vpop.f32.mrf.mxu0
  %v2109 = vadd.f32 0.0, %v2108
  %2110 = vmatmul.bf16.gmra.mxu0 %v348
  %v2111 = vpop.f32.mrf.mxu0
  %v2112 = vadd.f32 0.0, %v2111
  %v2113 = vpop.f32.mrf.mxu0
  %v2114 = vadd.f32 0.0, %v2113
  %2115 = vmatmul.bf16.gmra.mxu0 %v351
  %v2116 = vpop.f32.mrf.mxu0
  %v2117 = vadd.f32 0.0, %v2116
  %v2118 = vpop.f32.mrf.mxu0
  %v2119 = vadd.f32 0.0, %v2118
  %2120 = vmatmul.bf16.gmra.mxu0 %v354
  %v2121 = vpop.f32.mrf.mxu0
  %v2122 = vadd.f32 0.0, %v2121
  %v2123 = vpop.f32.mrf.mxu0
  %v2124 = vadd.f32 0.0, %v2123
  %2125 = vmatmul.bf16.gmra.mxu0 %v357
  %v2126 = vpop.f32.mrf.mxu0
  %v2127 = vadd.f32 0.0, %v2126
  %v2128 = vpop.f32.mrf.mxu0
  %v2129 = vadd.f32 0.0, %v2128
  %2130 = vmatmul.bf16.gmra.mxu0 %v1897
  %v2131 = vpop.f32.mrf.mxu0
  %v2132 = vadd.f32 0.0, %v2131
  %v2133 = vpop.f32.mrf.mxu0
  %v2134 = vadd.f32 0.0, %v2133
  %2135 = vdwg.mxu0
  %2136 = vmatpush.bf16.msra.mxu0 0
  %2137 = vmatpush.bf16.msra.mxu0 0
  %2138 = vmatpush.bf16.msra.mxu0 %v1871
  %2139 = vmatpush.bf16.msra.mxu0 %v1867
  %2140 = vmatpush.bf16.msra.mxu0 %v1863
  %2141 = vmatpush.bf16.msra.mxu0 %v1859
  %2142 = vmatpush.bf16.msra.mxu0 %v1855
  %2143 = vmatpush.bf16.msra.mxu0 %v1851
  %2144 = vmatmul.bf16.gmra.mxu0 %v321
  %v2145 = vpop.f32.mrf.mxu0
  %v2146 = vadd.f32 0.0, %v2145
  %v2147 = vpop.f32.mrf.mxu0
  %v2148 = vadd.f32 0.0, %v2147
  %2149 = vmatmul.bf16.gmra.mxu0 %v324
  %v2150 = vpop.f32.mrf.mxu0
  %v2151 = vadd.f32 0.0, %v2150
  %v2152 = vpop.f32.mrf.mxu0
  %v2153 = vadd.f32 0.0, %v2152
  %2154 = vmatmul.bf16.gmra.mxu0 %v327
  %v2155 = vpop.f32.mrf.mxu0
  %v2156 = vadd.f32 0.0, %v2155
  %v2157 = vpop.f32.mrf.mxu0
  %v2158 = vadd.f32 0.0, %v2157
  %2159 = vmatmul.bf16.gmra.mxu0 %v330
  %v2160 = vpop.f32.mrf.mxu0
  %v2161 = vadd.f32 0.0, %v2160
  %v2162 = vpop.f32.mrf.mxu0
  %v2163 = vadd.f32 0.0, %v2162
  %2164 = vmatmul.bf16.gmra.mxu0 %v333
  %v2165 = vpop.f32.mrf.mxu0
  %v2166 = vadd.f32 0.0, %v2165
  %v2167 = vpop.f32.mrf.mxu0
  %v2168 = vadd.f32 0.0, %v2167
  %2169 = vmatmul.bf16.gmra.mxu0 %v336
  %v2170 = vpop.f32.mrf.mxu0
  %v2171 = vadd.f32 0.0, %v2170
  %v2172 = vpop.f32.mrf.mxu0
  %v2173 = vadd.f32 0.0, %v2172
  %2174 = vmatmul.bf16.gmra.mxu0 %v339
  %v2175 = vpop.f32.mrf.mxu0
  %v2176 = vadd.f32 0.0, %v2175
  %v2177 = vpop.f32.mrf.mxu0
  %v2178 = vadd.f32 0.0, %v2177
  %2179 = vmatmul.bf16.gmra.mxu0 %v342
  %v2180 = vpop.f32.mrf.mxu0
  %v2181 = vadd.f32 0.0, %v2180
  %v2182 = vpop.f32.mrf.mxu0
  %v2183 = vadd.f32 0.0, %v2182
  %2184 = vmatmul.bf16.gmra.mxu0 %v345
  %v2185 = vpop.f32.mrf.mxu0
  %v2186 = vadd.f32 0.0, %v2185
  %v2187 = vpop.f32.mrf.mxu0
  %v2188 = vadd.f32 0.0, %v2187
  %2189 = vmatmul.bf16.gmra.mxu0 %v348
  %v2190 = vpop.f32.mrf.mxu0
  %v2191 = vadd.f32 0.0, %v2190
  %v2192 = vpop.f32.mrf.mxu0
  %v2193 = vadd.f32 0.0, %v2192
  %2194 = vmatmul.bf16.gmra.mxu0 %v351
  %v2195 = vpop.f32.mrf.mxu0
  %v2196 = vadd.f32 0.0, %v2195
  %v2197 = vpop.f32.mrf.mxu0
  %v2198 = vadd.f32 0.0, %v2197
  %2199 = vmatmul.bf16.gmra.mxu0 %v354
  %v2200 = vpop.f32.mrf.mxu0
  %v2201 = vadd.f32 0.0, %v2200
  %v2202 = vpop.f32.mrf.mxu0
  %v2203 = vadd.f32 0.0, %v2202
  %2204 = vmatmul.bf16.gmra.mxu0 %v357
  %v2205 = vpop.f32.mrf.mxu0
  %v2206 = vadd.f32 0.0, %v2205
  %v2207 = vpop.f32.mrf.mxu0
  %v2208 = vadd.f32 0.0, %v2207
  %2209 = vmatmul.bf16.gmra.mxu0 %v1897
  %v2210 = vpop.f32.mrf.mxu0
  %v2211 = vadd.f32 0.0, %v2210
  %v2212 = vpop.f32.mrf.mxu0
  %v2213 = vadd.f32 0.0, %v2212
  %2214 = vdwg.mxu0
  %v2215 = vadd.f32 %v1636, %v1909
  %v2216 = vadd.f32 %v1637, %v1988
  %v2217 = vadd.f32 %v1638, %v2067
  %v2218 = vadd.f32 %v1639, %v2146
  %v2219 = vadd.f32 %v1640, %v1911
  %v2220 = vadd.f32 %v1641, %v1990
  %v2221 = vadd.f32 %v1642, %v2069
  %v2222 = vadd.f32 %v1643, %v2148
  %v2223 = vadd.f32 %v1644, %v1914
  %v2224 = vadd.f32 %v1645, %v1993
  %v2225 = vadd.f32 %v1646, %v2072
  %v2226 = vadd.f32 %v1647, %v2151
  %v2227 = vadd.f32 %v1648, %v1916
  %v2228 = vadd.f32 %v1649, %v1995
  %v2229 = vadd.f32 %v1650, %v2074
  %v2230 = vadd.f32 %v1651, %v2153
  %v2231 = vadd.f32 %v1652, %v1919
  %v2232 = vadd.f32 %v1653, %v1998
  %v2233 = vadd.f32 %v1654, %v2077
  %v2234 = vadd.f32 %v1655, %v2156
  %v2235 = vadd.f32 %v1656, %v1921
  %v2236 = vadd.f32 %v1657, %v2000
  %v2237 = vadd.f32 %v1658, %v2079
  %v2238 = vadd.f32 %v1659, %v2158
  %v2239 = vadd.f32 %v1660, %v1924
  %v2240 = vadd.f32 %v1661, %v2003
  %v2241 = vadd.f32 %v1662, %v2082
  %v2242 = vadd.f32 %v1663, %v2161
  %v2243 = vadd.f32 %v1664, %v1926
  %v2244 = vadd.f32 %v1665, %v2005
  %v2245 = vadd.f32 %v1666, %v2084
  %v2246 = vadd.f32 %v1667, %v2163
  %v2247 = vadd.f32 %v1668, %v1929
  %v2248 = vadd.f32 %v1669, %v2008
  %v2249 = vadd.f32 %v1670, %v2087
  %v2250 = vadd.f32 %v1671, %v2166
  %v2251 = vadd.f32 %v1672, %v1931
  %v2252 = vadd.f32 %v1673, %v2010
  %v2253 = vadd.f32 %v1674, %v2089
  %v2254 = vadd.f32 %v1675, %v2168
  %v2255 = vadd.f32 %v1676, %v1934
  %v2256 = vadd.f32 %v1677, %v2013
  %v2257 = vadd.f32 %v1678, %v2092
  %v2258 = vadd.f32 %v1679, %v2171
  %v2259 = vadd.f32 %v1680, %v1936
  %v2260 = vadd.f32 %v1681, %v2015
  %v2261 = vadd.f32 %v1682, %v2094
  %v2262 = vadd.f32 %v1683, %v2173
  %v2263 = vadd.f32 %v1684, %v1939
  %v2264 = vadd.f32 %v1685, %v2018
  %v2265 = vadd.f32 %v1686, %v2097
  %v2266 = vadd.f32 %v1687, %v2176
  %v2267 = vadd.f32 %v1688, %v1941
  %v2268 = vadd.f32 %v1689, %v2020
  %v2269 = vadd.f32 %v1690, %v2099
  %v2270 = vadd.f32 %v1691, %v2178
  %v2271 = vadd.f32 %v1692, %v1944
  %v2272 = vadd.f32 %v1693, %v2023
  %v2273 = vadd.f32 %v1694, %v2102
  %v2274 = vadd.f32 %v1695, %v2181
  %v2275 = vadd.f32 %v1696, %v1946
  %v2276 = vadd.f32 %v1697, %v2025
  %v2277 = vadd.f32 %v1698, %v2104
  %v2278 = vadd.f32 %v1699, %v2183
  %v2279 = vadd.f32 %v1700, %v1949
  %v2280 = vadd.f32 %v1701, %v2028
  %v2281 = vadd.f32 %v1702, %v2107
  %v2282 = vadd.f32 %v1703, %v2186
  %v2283 = vadd.f32 %v1704, %v1951
  %v2284 = vadd.f32 %v1705, %v2030
  %v2285 = vadd.f32 %v1706, %v2109
  %v2286 = vadd.f32 %v1707, %v2188
  %v2287 = vadd.f32 %v1708, %v1954
  %v2288 = vadd.f32 %v1709, %v2033
  %v2289 = vadd.f32 %v1710, %v2112
  %v2290 = vadd.f32 %v1711, %v2191
  %v2291 = vadd.f32 %v1712, %v1956
  %v2292 = vadd.f32 %v1713, %v2035
  %v2293 = vadd.f32 %v1714, %v2114
  %v2294 = vadd.f32 %v1715, %v2193
  %v2295 = vadd.f32 %v1716, %v1959
  %v2296 = vadd.f32 %v1717, %v2038
  %v2297 = vadd.f32 %v1718, %v2117
  %v2298 = vadd.f32 %v1719, %v2196
  %v2299 = vadd.f32 %v1720, %v1961
  %v2300 = vadd.f32 %v1721, %v2040
  %v2301 = vadd.f32 %v1722, %v2119
  %v2302 = vadd.f32 %v1723, %v2198
  %v2303 = vadd.f32 %v1724, %v1964
  %v2304 = vadd.f32 %v1725, %v2043
  %v2305 = vadd.f32 %v1726, %v2122
  %v2306 = vadd.f32 %v1727, %v2201
  %v2307 = vadd.f32 %v1728, %v1966
  %v2308 = vadd.f32 %v1729, %v2045
  %v2309 = vadd.f32 %v1730, %v2124
  %v2310 = vadd.f32 %v1731, %v2203
  %v2311 = vadd.f32 %v1732, %v1969
  %v2312 = vadd.f32 %v1733, %v2048
  %v2313 = vadd.f32 %v1734, %v2127
  %v2314 = vadd.f32 %v1735, %v2206
  %v2315 = vadd.f32 %v1736, %v1971
  %v2316 = vadd.f32 %v1737, %v2050
  %v2317 = vadd.f32 %v1738, %v2129
  %v2318 = vadd.f32 %v1739, %v2208
  %v2319 = vadd.f32 %v1740, %v1974
  %v2320 = vadd.f32 %v1741, %v2053
  %v2321 = vadd.f32 %v1742, %v2132
  %v2322 = vadd.f32 %v1743, %v2211
  %v2323 = vadd.f32 %v1744, %v1976
  %v2324 = vadd.f32 %v1745, %v2055
  %v2325 = vadd.f32 %v1746, %v2134
  %v2326 = vadd.f32 %v1747, %v2213
  %s2327 = scalar_lea.vmem %s1, 768
  %v2328 = vld [vmem:[%s2327] sm:$0xff]
  %v2329 = vld [vmem:[%s2327 + $0x8] sm:$0xff]
  %v2330 = vld [vmem:[%s2327 + $0x10] sm:$0xff]
  %v2331 = vld [vmem:[%s2327 + $0x18] sm:$0xff]
  %v2332 = vld [vmem:[%s2327 + $0x20] sm:$0xff]
  %v2333 = vld [vmem:[%s2327 + $0x28] sm:$0xff]
  %v2334 = vld [vmem:[%s2327 + $0x30] sm:$0xff]
  %v2335 = vld [vmem:[%s2327 + $0x38] sm:$0xff]
  %v2336 = vld [vmem:[%s2327 + $0x40] sm:$0xff]
  %v2337 = vld [vmem:[%s2327 + $0x48] sm:$0xff]
  %v2338 = vld [vmem:[%s2327 + $0x50] sm:$0xff]
  %v2339 = vld [vmem:[%s2327 + $0x58] sm:$0xff]
  %v2340 = vld [vmem:[%s2327 + $0x60] sm:$0xff]
  %v2341 = vld [vmem:[%s2327 + $0x68] sm:$0xff]
  %v2342 = vld [vmem:[%s2327 + $0x70] sm:$0xff]
  %v2343 = vld [vmem:[%s2327 + $0x78] sm:$0xff]
  %v2344 = vld [vmem:[%s2327 + $0x80] sm:$0xff]
  %v2345 = vld [vmem:[%s2327 + $0x88] sm:$0xff]
  %v2346 = vld [vmem:[%s2327 + $0x90] sm:$0xff]
  %v2347 = vld [vmem:[%s2327 + $0x98] sm:$0xff]
  %v2348 = vld [vmem:[%s2327 + $0xa0] sm:$0xff]
  %v2349 = vld [vmem:[%s2327 + $0xa8] sm:$0xff]
  %v2350 = vld [vmem:[%s2327 + $0xb0] sm:$0xff]
  %v2351 = vld [vmem:[%s2327 + $0xb8] sm:$0xff]
  %v2353 = vunpack.c.l.b16 %v76
  %v2354 = vpack.c.b16 %v2353, %v1774
  %v2379 = vunpack.c.l.b16 %v2328
  %v2380 = vunpack.c.h.b16 %v2328
  %v2381 = vunpack.c.l.b16 %v2329
  %v2382 = vunpack.c.h.b16 %v2329
  %v2383 = vunpack.c.l.b16 %v2330
  %v2384 = vunpack.c.h.b16 %v2330
  %v2385 = vunpack.c.l.b16 %v2331
  %v2386 = vunpack.c.h.b16 %v2331
  %v2387 = vunpack.c.l.b16 %v2332
  %v2388 = vunpack.c.h.b16 %v2332
  %v2389 = vunpack.c.l.b16 %v2333
  %v2390 = vunpack.c.h.b16 %v2333
  %v2391 = vunpack.c.l.b16 %v2334
  %v2392 = vunpack.c.h.b16 %v2334
  %v2393 = vunpack.c.l.b16 %v2335
  %v2394 = vunpack.c.h.b16 %v2335
  %v2395 = vunpack.c.l.b16 %v2336
  %v2396 = vunpack.c.h.b16 %v2336
  %v2397 = vunpack.c.l.b16 %v2337
  %v2398 = vunpack.c.h.b16 %v2337
  %v2399 = vunpack.c.l.b16 %v2338
  %v2400 = vunpack.c.h.b16 %v2338
  %v2401 = vunpack.c.l.b16 %v2339
  %v2402 = vunpack.c.h.b16 %v2339
  %v2403 = vunpack.c.l.b16 %v2340
  %v2404 = vunpack.c.h.b16 %v2340
  %v2405 = vunpack.c.l.b16 %v2341
  %v2406 = vunpack.c.h.b16 %v2341
  %v2407 = vunpack.c.l.b16 %v2342
  %v2408 = vunpack.c.h.b16 %v2342
  %v2409 = vunpack.c.l.b16 %v2343
  %v2410 = vunpack.c.h.b16 %v2343
  %v2411 = vunpack.c.l.b16 %v2344
  %v2412 = vunpack.c.h.b16 %v2344
  %v2413 = vunpack.c.l.b16 %v2345
  %v2414 = vunpack.c.h.b16 %v2345
  %v2415 = vunpack.c.l.b16 %v2346
  %v2416 = vunpack.c.h.b16 %v2346
  %v2417 = vunpack.c.l.b16 %v2347
  %v2418 = vunpack.c.h.b16 %v2347
  %v2419 = vunpack.c.l.b16 %v2348
  %v2420 = vunpack.c.h.b16 %v2348
  %v2421 = vunpack.c.l.b16 %v2349
  %v2422 = vunpack.c.h.b16 %v2349
  %v2423 = vunpack.c.l.b16 %v2350
  %v2424 = vunpack.c.h.b16 %v2350
  %v2425 = vunpack.c.l.b16 %v2351
  %v2426 = vunpack.c.h.b16 %v2351
  %v2427 = vpack.c.b16 %v2383, %v2379
  %v2428 = vpack.c.b16 %v2384, %v2380
  %v2429 = vpack.c.b16 %v2385, %v2381
  %v2430 = vpack.c.b16 %v2386, %v2382
  %v2431 = vpack.c.b16 %v2391, %v2387
  %v2432 = vpack.c.b16 %v2392, %v2388
  %v2433 = vpack.c.b16 %v2393, %v2389
  %v2434 = vpack.c.b16 %v2394, %v2390
  %v2435 = vpack.c.b16 %v2399, %v2395
  %v2436 = vpack.c.b16 %v2400, %v2396
  %v2437 = vpack.c.b16 %v2401, %v2397
  %v2438 = vpack.c.b16 %v2402, %v2398
  %v2439 = vpack.c.b16 %v2407, %v2403
  %v2440 = vpack.c.b16 %v2408, %v2404
  %v2441 = vpack.c.b16 %v2409, %v2405
  %v2442 = vpack.c.b16 %v2410, %v2406
  %v2443 = vpack.c.b16 %v2415, %v2411
  %v2444 = vpack.c.b16 %v2416, %v2412
  %v2445 = vpack.c.b16 %v2417, %v2413
  %v2446 = vpack.c.b16 %v2418, %v2414
  %v2447 = vpack.c.b16 %v2423, %v2419
  %v2448 = vpack.c.b16 %v2424, %v2420
  %v2449 = vpack.c.b16 %v2425, %v2421
  %v2450 = vpack.c.b16 %v2426, %v2422
  %v2476 = vsel %vm316, %v2354, 0
  %2478 = vmatpush.bf16.msra.mxu0 0
  %2479 = vmatpush.bf16.msra.mxu0 0
  %2480 = vmatpush.bf16.msra.mxu0 %v2447
  %2481 = vmatpush.bf16.msra.mxu0 %v2443
  %2482 = vmatpush.bf16.msra.mxu0 %v2439
  %2483 = vmatpush.bf16.msra.mxu0 %v2435
  %2484 = vmatpush.bf16.msra.mxu0 %v2431
  %2485 = vmatpush.bf16.msra.mxu0 %v2427
  %2486 = vmatmul.bf16.gmra.mxu0 %v818
  %v2487 = vpop.f32.mrf.mxu0
  %v2488 = vadd.f32 0.0, %v2487
  %v2489 = vpop.f32.mrf.mxu0
  %v2490 = vadd.f32 0.0, %v2489
  %2491 = vmatmul.bf16.gmra.mxu0 %v821
  %v2492 = vpop.f32.mrf.mxu0
  %v2493 = vadd.f32 0.0, %v2492
  %v2494 = vpop.f32.mrf.mxu0
  %v2495 = vadd.f32 0.0, %v2494
  %2496 = vmatmul.bf16.gmra.mxu0 %v824
  %v2497 = vpop.f32.mrf.mxu0
  %v2498 = vadd.f32 0.0, %v2497
  %v2499 = vpop.f32.mrf.mxu0
  %v2500 = vadd.f32 0.0, %v2499
  %2501 = vmatmul.bf16.gmra.mxu0 %v827
  %v2502 = vpop.f32.mrf.mxu0
  %v2503 = vadd.f32 0.0, %v2502
  %v2504 = vpop.f32.mrf.mxu0
  %v2505 = vadd.f32 0.0, %v2504
  %2506 = vmatmul.bf16.gmra.mxu0 %v830
  %v2507 = vpop.f32.mrf.mxu0
  %v2508 = vadd.f32 0.0, %v2507
  %v2509 = vpop.f32.mrf.mxu0
  %v2510 = vadd.f32 0.0, %v2509
  %2511 = vmatmul.bf16.gmra.mxu0 %v833
  %v2512 = vpop.f32.mrf.mxu0
  %v2513 = vadd.f32 0.0, %v2512
  %v2514 = vpop.f32.mrf.mxu0
  %v2515 = vadd.f32 0.0, %v2514
  %2516 = vmatmul.bf16.gmra.mxu0 %v836
  %v2517 = vpop.f32.mrf.mxu0
  %v2518 = vadd.f32 0.0, %v2517
  %v2519 = vpop.f32.mrf.mxu0
  %v2520 = vadd.f32 0.0, %v2519
  %2521 = vmatmul.bf16.gmra.mxu0 %v839
  %v2522 = vpop.f32.mrf.mxu0
  %v2523 = vadd.f32 0.0, %v2522
  %v2524 = vpop.f32.mrf.mxu0
  %v2525 = vadd.f32 0.0, %v2524
  %2526 = vmatmul.bf16.gmra.mxu0 %v842
  %v2527 = vpop.f32.mrf.mxu0
  %v2528 = vadd.f32 0.0, %v2527
  %v2529 = vpop.f32.mrf.mxu0
  %v2530 = vadd.f32 0.0, %v2529
  %2531 = vmatmul.bf16.gmra.mxu0 %v845
  %v2532 = vpop.f32.mrf.mxu0
  %v2533 = vadd.f32 0.0, %v2532
  %v2534 = vpop.f32.mrf.mxu0
  %v2535 = vadd.f32 0.0, %v2534
  %2536 = vmatmul.bf16.gmra.mxu0 %v848
  %v2537 = vpop.f32.mrf.mxu0
  %v2538 = vadd.f32 0.0, %v2537
  %v2539 = vpop.f32.mrf.mxu0
  %v2540 = vadd.f32 0.0, %v2539
  %2541 = vmatmul.bf16.gmra.mxu0 %v851
  %v2542 = vpop.f32.mrf.mxu0
  %v2543 = vadd.f32 0.0, %v2542
  %v2544 = vpop.f32.mrf.mxu0
  %v2545 = vadd.f32 0.0, %v2544
  %2546 = vmatmul.bf16.gmra.mxu0 %v1318
  %v2547 = vpop.f32.mrf.mxu0
  %v2548 = vadd.f32 0.0, %v2547
  %v2549 = vpop.f32.mrf.mxu0
  %v2550 = vadd.f32 0.0, %v2549
  %2551 = vmatmul.bf16.gmra.mxu0 %v2476
  %v2552 = vpop.f32.mrf.mxu0
  %v2553 = vadd.f32 0.0, %v2552
  %v2554 = vpop.f32.mrf.mxu0
  %v2555 = vadd.f32 0.0, %v2554
  %2556 = vdwg.mxu0
  %2557 = vmatpush.bf16.msra.mxu0 0
  %2558 = vmatpush.bf16.msra.mxu0 0
  %2559 = vmatpush.bf16.msra.mxu0 %v2448
  %2560 = vmatpush.bf16.msra.mxu0 %v2444
  %2561 = vmatpush.bf16.msra.mxu0 %v2440
  %2562 = vmatpush.bf16.msra.mxu0 %v2436
  %2563 = vmatpush.bf16.msra.mxu0 %v2432
  %2564 = vmatpush.bf16.msra.mxu0 %v2428
  %2565 = vmatmul.bf16.gmra.mxu0 %v818
  %v2566 = vpop.f32.mrf.mxu0
  %v2567 = vadd.f32 0.0, %v2566
  %v2568 = vpop.f32.mrf.mxu0
  %v2569 = vadd.f32 0.0, %v2568
  %2570 = vmatmul.bf16.gmra.mxu0 %v821
  %v2571 = vpop.f32.mrf.mxu0
  %v2572 = vadd.f32 0.0, %v2571
  %v2573 = vpop.f32.mrf.mxu0
  %v2574 = vadd.f32 0.0, %v2573
  %2575 = vmatmul.bf16.gmra.mxu0 %v824
  %v2576 = vpop.f32.mrf.mxu0
  %v2577 = vadd.f32 0.0, %v2576
  %v2578 = vpop.f32.mrf.mxu0
  %v2579 = vadd.f32 0.0, %v2578
  %2580 = vmatmul.bf16.gmra.mxu0 %v827
  %v2581 = vpop.f32.mrf.mxu0
  %v2582 = vadd.f32 0.0, %v2581
  %v2583 = vpop.f32.mrf.mxu0
  %v2584 = vadd.f32 0.0, %v2583
  %2585 = vmatmul.bf16.gmra.mxu0 %v830
  %v2586 = vpop.f32.mrf.mxu0
  %v2587 = vadd.f32 0.0, %v2586
  %v2588 = vpop.f32.mrf.mxu0
  %v2589 = vadd.f32 0.0, %v2588
  %2590 = vmatmul.bf16.gmra.mxu0 %v833
  %v2591 = vpop.f32.mrf.mxu0
  %v2592 = vadd.f32 0.0, %v2591
  %v2593 = vpop.f32.mrf.mxu0
  %v2594 = vadd.f32 0.0, %v2593
  %2595 = vmatmul.bf16.gmra.mxu0 %v836
  %v2596 = vpop.f32.mrf.mxu0
  %v2597 = vadd.f32 0.0, %v2596
  %v2598 = vpop.f32.mrf.mxu0
  %v2599 = vadd.f32 0.0, %v2598
  %2600 = vmatmul.bf16.gmra.mxu0 %v839
  %v2601 = vpop.f32.mrf.mxu0
  %v2602 = vadd.f32 0.0, %v2601
  %v2603 = vpop.f32.mrf.mxu0
  %v2604 = vadd.f32 0.0, %v2603
  %2605 = vmatmul.bf16.gmra.mxu0 %v842
  %v2606 = vpop.f32.mrf.mxu0
  %v2607 = vadd.f32 0.0, %v2606
  %v2608 = vpop.f32.mrf.mxu0
  %v2609 = vadd.f32 0.0, %v2608
  %2610 = vmatmul.bf16.gmra.mxu0 %v845
  %v2611 = vpop.f32.mrf.mxu0
  %v2612 = vadd.f32 0.0, %v2611
  %v2613 = vpop.f32.mrf.mxu0
  %v2614 = vadd.f32 0.0, %v2613
  %2615 = vmatmul.bf16.gmra.mxu0 %v848
  %v2616 = vpop.f32.mrf.mxu0
  %v2617 = vadd.f32 0.0, %v2616
  %v2618 = vpop.f32.mrf.mxu0
  %v2619 = vadd.f32 0.0, %v2618
  %2620 = vmatmul.bf16.gmra.mxu0 %v851
  %v2621 = vpop.f32.mrf.mxu0
  %v2622 = vadd.f32 0.0, %v2621
  %v2623 = vpop.f32.mrf.mxu0
  %v2624 = vadd.f32 0.0, %v2623
  %2625 = vmatmul.bf16.gmra.mxu0 %v1318
  %v2626 = vpop.f32.mrf.mxu0
  %v2627 = vadd.f32 0.0, %v2626
  %v2628 = vpop.f32.mrf.mxu0
  %v2629 = vadd.f32 0.0, %v2628
  %2630 = vmatmul.bf16.gmra.mxu0 %v2476
  %v2631 = vpop.f32.mrf.mxu0
  %v2632 = vadd.f32 0.0, %v2631
  %v2633 = vpop.f32.mrf.mxu0
  %v2634 = vadd.f32 0.0, %v2633
  %2635 = vdwg.mxu0
  %2636 = vmatpush.bf16.msra.mxu0 0
  %2637 = vmatpush.bf16.msra.mxu0 0
  %2638 = vmatpush.bf16.msra.mxu0 %v2449
  %2639 = vmatpush.bf16.msra.mxu0 %v2445
  %2640 = vmatpush.bf16.msra.mxu0 %v2441
  %2641 = vmatpush.bf16.msra.mxu0 %v2437
  %2642 = vmatpush.bf16.msra.mxu0 %v2433
  %2643 = vmatpush.bf16.msra.mxu0 %v2429
  %2644 = vmatmul.bf16.gmra.mxu0 %v818
  %v2645 = vpop.f32.mrf.mxu0
  %v2646 = vadd.f32 0.0, %v2645
  %v2647 = vpop.f32.mrf.mxu0
  %v2648 = vadd.f32 0.0, %v2647
  %2649 = vmatmul.bf16.gmra.mxu0 %v821
  %v2650 = vpop.f32.mrf.mxu0
  %v2651 = vadd.f32 0.0, %v2650
  %v2652 = vpop.f32.mrf.mxu0
  %v2653 = vadd.f32 0.0, %v2652
  %2654 = vmatmul.bf16.gmra.mxu0 %v824
  %v2655 = vpop.f32.mrf.mxu0
  %v2656 = vadd.f32 0.0, %v2655
  %v2657 = vpop.f32.mrf.mxu0
  %v2658 = vadd.f32 0.0, %v2657
  %2659 = vmatmul.bf16.gmra.mxu0 %v827
  %v2660 = vpop.f32.mrf.mxu0
  %v2661 = vadd.f32 0.0, %v2660
  %v2662 = vpop.f32.mrf.mxu0
  %v2663 = vadd.f32 0.0, %v2662
  %2664 = vmatmul.bf16.gmra.mxu0 %v830
  %v2665 = vpop.f32.mrf.mxu0
  %v2666 = vadd.f32 0.0, %v2665
  %v2667 = vpop.f32.mrf.mxu0
  %v2668 = vadd.f32 0.0, %v2667
  %2669 = vmatmul.bf16.gmra.mxu0 %v833
  %v2670 = vpop.f32.mrf.mxu0
  %v2671 = vadd.f32 0.0, %v2670
  %v2672 = vpop.f32.mrf.mxu0
  %v2673 = vadd.f32 0.0, %v2672
  %2674 = vmatmul.bf16.gmra.mxu0 %v836
  %v2675 = vpop.f32.mrf.mxu0
  %v2676 = vadd.f32 0.0, %v2675
  %v2677 = vpop.f32.mrf.mxu0
  %v2678 = vadd.f32 0.0, %v2677
  %2679 = vmatmul.bf16.gmra.mxu0 %v839
  %v2680 = vpop.f32.mrf.mxu0
  %v2681 = vadd.f32 0.0, %v2680
  %v2682 = vpop.f32.mrf.mxu0
  %v2683 = vadd.f32 0.0, %v2682
  %2684 = vmatmul.bf16.gmra.mxu0 %v842
  %v2685 = vpop.f32.mrf.mxu0
  %v2686 = vadd.f32 0.0, %v2685
  %v2687 = vpop.f32.mrf.mxu0
  %v2688 = vadd.f32 0.0, %v2687
  %2689 = vmatmul.bf16.gmra.mxu0 %v845
  %v2690 = vpop.f32.mrf.mxu0
  %v2691 = vadd.f32 0.0, %v2690
  %v2692 = vpop.f32.mrf.mxu0
  %v2693 = vadd.f32 0.0, %v2692
  %2694 = vmatmul.bf16.gmra.mxu0 %v848
  %v2695 = vpop.f32.mrf.mxu0
  %v2696 = vadd.f32 0.0, %v2695
  %v2697 = vpop.f32.mrf.mxu0
  %v2698 = vadd.f32 0.0, %v2697
  %2699 = vmatmul.bf16.gmra.mxu0 %v851
  %v2700 = vpop.f32.mrf.mxu0
  %v2701 = vadd.f32 0.0, %v2700
  %v2702 = vpop.f32.mrf.mxu0
  %v2703 = vadd.f32 0.0, %v2702
  %2704 = vmatmul.bf16.gmra.mxu0 %v1318
  %v2705 = vpop.f32.mrf.mxu0
  %v2706 = vadd.f32 0.0, %v2705
  %v2707 = vpop.f32.mrf.mxu0
  %v2708 = vadd.f32 0.0, %v2707
  %2709 = vmatmul.bf16.gmra.mxu0 %v2476
  %v2710 = vpop.f32.mrf.mxu0
  %v2711 = vadd.f32 0.0, %v2710
  %v2712 = vpop.f32.mrf.mxu0
  %v2713 = vadd.f32 0.0, %v2712
  %2714 = vdwg.mxu0
  %2715 = vmatpush.bf16.msra.mxu0 0
  %2716 = vmatpush.bf16.msra.mxu0 0
  %2717 = vmatpush.bf16.msra.mxu0 %v2450
  %2718 = vmatpush.bf16.msra.mxu0 %v2446
  %2719 = vmatpush.bf16.msra.mxu0 %v2442
  %2720 = vmatpush.bf16.msra.mxu0 %v2438
  %2721 = vmatpush.bf16.msra.mxu0 %v2434
  %2722 = vmatpush.bf16.msra.mxu0 %v2430
  %2723 = vmatmul.bf16.gmra.mxu0 %v818
  %v2724 = vpop.f32.mrf.mxu0
  %v2725 = vadd.f32 0.0, %v2724
  %v2726 = vpop.f32.mrf.mxu0
  %v2727 = vadd.f32 0.0, %v2726
  %2728 = vmatmul.bf16.gmra.mxu0 %v821
  %v2729 = vpop.f32.mrf.mxu0
  %v2730 = vadd.f32 0.0, %v2729
  %v2731 = vpop.f32.mrf.mxu0
  %v2732 = vadd.f32 0.0, %v2731
  %2733 = vmatmul.bf16.gmra.mxu0 %v824
  %v2734 = vpop.f32.mrf.mxu0
  %v2735 = vadd.f32 0.0, %v2734
  %v2736 = vpop.f32.mrf.mxu0
  %v2737 = vadd.f32 0.0, %v2736
  %2738 = vmatmul.bf16.gmra.mxu0 %v827
  %v2739 = vpop.f32.mrf.mxu0
  %v2740 = vadd.f32 0.0, %v2739
  %v2741 = vpop.f32.mrf.mxu0
  %v2742 = vadd.f32 0.0, %v2741
  %2743 = vmatmul.bf16.gmra.mxu0 %v830
  %v2744 = vpop.f32.mrf.mxu0
  %v2745 = vadd.f32 0.0, %v2744
  %v2746 = vpop.f32.mrf.mxu0
  %v2747 = vadd.f32 0.0, %v2746
  %2748 = vmatmul.bf16.gmra.mxu0 %v833
  %v2749 = vpop.f32.mrf.mxu0
  %v2750 = vadd.f32 0.0, %v2749
  %v2751 = vpop.f32.mrf.mxu0
  %v2752 = vadd.f32 0.0, %v2751
  %2753 = vmatmul.bf16.gmra.mxu0 %v836
  %v2754 = vpop.f32.mrf.mxu0
  %v2755 = vadd.f32 0.0, %v2754
  %v2756 = vpop.f32.mrf.mxu0
  %v2757 = vadd.f32 0.0, %v2756
  %2758 = vmatmul.bf16.gmra.mxu0 %v839
  %v2759 = vpop.f32.mrf.mxu0
  %v2760 = vadd.f32 0.0, %v2759
  %v2761 = vpop.f32.mrf.mxu0
  %v2762 = vadd.f32 0.0, %v2761
  %2763 = vmatmul.bf16.gmra.mxu0 %v842
  %v2764 = vpop.f32.mrf.mxu0
  %v2765 = vadd.f32 0.0, %v2764
  %v2766 = vpop.f32.mrf.mxu0
  %v2767 = vadd.f32 0.0, %v2766
  %2768 = vmatmul.bf16.gmra.mxu0 %v845
  %v2769 = vpop.f32.mrf.mxu0
  %v2770 = vadd.f32 0.0, %v2769
  %v2771 = vpop.f32.mrf.mxu0
  %v2772 = vadd.f32 0.0, %v2771
  %2773 = vmatmul.bf16.gmra.mxu0 %v848
  %v2774 = vpop.f32.mrf.mxu0
  %v2775 = vadd.f32 0.0, %v2774
  %v2776 = vpop.f32.mrf.mxu0
  %v2777 = vadd.f32 0.0, %v2776
  %2778 = vmatmul.bf16.gmra.mxu0 %v851
  %v2779 = vpop.f32.mrf.mxu0
  %v2780 = vadd.f32 0.0, %v2779
  %v2781 = vpop.f32.mrf.mxu0
  %v2782 = vadd.f32 0.0, %v2781
  %2783 = vmatmul.bf16.gmra.mxu0 %v1318
  %v2784 = vpop.f32.mrf.mxu0
  %v2785 = vadd.f32 0.0, %v2784
  %v2786 = vpop.f32.mrf.mxu0
  %v2787 = vadd.f32 0.0, %v2786
  %2788 = vmatmul.bf16.gmra.mxu0 %v2476
  %v2789 = vpop.f32.mrf.mxu0
  %v2790 = vadd.f32 0.0, %v2789
  %v2791 = vpop.f32.mrf.mxu0
  %v2792 = vadd.f32 0.0, %v2791
  %2793 = vdwg.mxu0
  %v2794 = vadd.f32 %v2215, %v2488
  %v2795 = vadd.f32 %v2216, %v2567
  %v2796 = vadd.f32 %v2217, %v2646
  %v2797 = vadd.f32 %v2218, %v2725
  %v2798 = vadd.f32 %v2219, %v2490
  %v2799 = vadd.f32 %v2220, %v2569
  %v2800 = vadd.f32 %v2221, %v2648
  %v2801 = vadd.f32 %v2222, %v2727
  %v2802 = vadd.f32 %v2223, %v2493
  %v2803 = vadd.f32 %v2224, %v2572
  %v2804 = vadd.f32 %v2225, %v2651
  %v2805 = vadd.f32 %v2226, %v2730
  %v2806 = vadd.f32 %v2227, %v2495
  %v2807 = vadd.f32 %v2228, %v2574
  %v2808 = vadd.f32 %v2229, %v2653
  %v2809 = vadd.f32 %v2230, %v2732
  %v2810 = vadd.f32 %v2231, %v2498
  %v2811 = vadd.f32 %v2232, %v2577
  %v2812 = vadd.f32 %v2233, %v2656
  %v2813 = vadd.f32 %v2234, %v2735
  %v2814 = vadd.f32 %v2235, %v2500
  %v2815 = vadd.f32 %v2236, %v2579
  %v2816 = vadd.f32 %v2237, %v2658
  %v2817 = vadd.f32 %v2238, %v2737
  %v2818 = vadd.f32 %v2239, %v2503
  %v2819 = vadd.f32 %v2240, %v2582
  %v2820 = vadd.f32 %v2241, %v2661
  %v2821 = vadd.f32 %v2242, %v2740
  %v2822 = vadd.f32 %v2243, %v2505
  %v2823 = vadd.f32 %v2244, %v2584
  %v2824 = vadd.f32 %v2245, %v2663
  %v2825 = vadd.f32 %v2246, %v2742
  %v2826 = vadd.f32 %v2247, %v2508
  %v2827 = vadd.f32 %v2248, %v2587
  %v2828 = vadd.f32 %v2249, %v2666
  %v2829 = vadd.f32 %v2250, %v2745
  %v2830 = vadd.f32 %v2251, %v2510
  %v2831 = vadd.f32 %v2252, %v2589
  %v2832 = vadd.f32 %v2253, %v2668
  %v2833 = vadd.f32 %v2254, %v2747
  %v2834 = vadd.f32 %v2255, %v2513
  %v2835 = vadd.f32 %v2256, %v2592
  %v2836 = vadd.f32 %v2257, %v2671
  %v2837 = vadd.f32 %v2258, %v2750
  %v2838 = vadd.f32 %v2259, %v2515
  %v2839 = vadd.f32 %v2260, %v2594
  %v2840 = vadd.f32 %v2261, %v2673
  %v2841 = vadd.f32 %v2262, %v2752
  %v2842 = vadd.f32 %v2263, %v2518
  %v2843 = vadd.f32 %v2264, %v2597
  %v2844 = vadd.f32 %v2265, %v2676
  %v2845 = vadd.f32 %v2266, %v2755
  %v2846 = vadd.f32 %v2267, %v2520
  %v2847 = vadd.f32 %v2268, %v2599
  %v2848 = vadd.f32 %v2269, %v2678
  %v2849 = vadd.f32 %v2270, %v2757
  %v2850 = vadd.f32 %v2271, %v2523
  %v2851 = vadd.f32 %v2272, %v2602
  %v2852 = vadd.f32 %v2273, %v2681
  %v2853 = vadd.f32 %v2274, %v2760
  %v2854 = vadd.f32 %v2275, %v2525
  %v2855 = vadd.f32 %v2276, %v2604
  %v2856 = vadd.f32 %v2277, %v2683
  %v2857 = vadd.f32 %v2278, %v2762
  %v2858 = vadd.f32 %v2279, %v2528
  %v2859 = vadd.f32 %v2280, %v2607
  %v2860 = vadd.f32 %v2281, %v2686
  %v2861 = vadd.f32 %v2282, %v2765
  %v2862 = vadd.f32 %v2283, %v2530
  %v2863 = vadd.f32 %v2284, %v2609
  %v2864 = vadd.f32 %v2285, %v2688
  %v2865 = vadd.f32 %v2286, %v2767
  %v2866 = vadd.f32 %v2287, %v2533
  %v2867 = vadd.f32 %v2288, %v2612
  %v2868 = vadd.f32 %v2289, %v2691
  %v2869 = vadd.f32 %v2290, %v2770
  %v2870 = vadd.f32 %v2291, %v2535
  %v2871 = vadd.f32 %v2292, %v2614
  %v2872 = vadd.f32 %v2293, %v2693
  %v2873 = vadd.f32 %v2294, %v2772
  %v2874 = vadd.f32 %v2295, %v2538
  %v2875 = vadd.f32 %v2296, %v2617
  %v2876 = vadd.f32 %v2297, %v2696
  %v2877 = vadd.f32 %v2298, %v2775
  %v2878 = vadd.f32 %v2299, %v2540
  %v2879 = vadd.f32 %v2300, %v2619
  %v2880 = vadd.f32 %v2301, %v2698
  %v2881 = vadd.f32 %v2302, %v2777
  %v2882 = vadd.f32 %v2303, %v2543
  %v2883 = vadd.f32 %v2304, %v2622
  %v2884 = vadd.f32 %v2305, %v2701
  %v2885 = vadd.f32 %v2306, %v2780
  %v2886 = vadd.f32 %v2307, %v2545
  %v2887 = vadd.f32 %v2308, %v2624
  %v2888 = vadd.f32 %v2309, %v2703
  %v2889 = vadd.f32 %v2310, %v2782
  %v2890 = vadd.f32 %v2311, %v2548
  %v2891 = vadd.f32 %v2312, %v2627
  %v2892 = vadd.f32 %v2313, %v2706
  %v2893 = vadd.f32 %v2314, %v2785
  %v2894 = vadd.f32 %v2315, %v2550
  %v2895 = vadd.f32 %v2316, %v2629
  %v2896 = vadd.f32 %v2317, %v2708
  %v2897 = vadd.f32 %v2318, %v2787
  %v2898 = vadd.f32 %v2319, %v2553
  %v2899 = vadd.f32 %v2320, %v2632
  %v2900 = vadd.f32 %v2321, %v2711
  %v2901 = vadd.f32 %v2322, %v2790
  %v2902 = vadd.f32 %v2323, %v2555
  %v2903 = vadd.f32 %v2324, %v2634
  %v2904 = vadd.f32 %v2325, %v2713
  %v2905 = vadd.f32 %v2326, %v2792
  %v2906 = vld [vmem:[%s2] sm:$0xf]
  %v2908 = vperm.slane %v2906, 0
  %v2909 = vperm.slane %v2906, 1
  %v2910 = vperm.slane %v2906, 2
  %v2911 = vperm.slane %v2906, 3
  %v2916 = vadd.f32 %v2794, %v2908
  %v2917 = vadd.f32 %v2795, %v2909
  %v2918 = vadd.f32 %v2796, %v2910
  %v2919 = vadd.f32 %v2797, %v2911
  %v2920 = vadd.f32 %v2798, %v2908
  %v2921 = vadd.f32 %v2799, %v2909
  %v2922 = vadd.f32 %v2800, %v2910
  %v2923 = vadd.f32 %v2801, %v2911
  %v2924 = vadd.f32 %v2802, %v2908
  %v2925 = vadd.f32 %v2803, %v2909
  %v2926 = vadd.f32 %v2804, %v2910
  %v2927 = vadd.f32 %v2805, %v2911
  %v2928 = vadd.f32 %v2806, %v2908
  %v2929 = vadd.f32 %v2807, %v2909
  %v2930 = vadd.f32 %v2808, %v2910
  %v2931 = vadd.f32 %v2809, %v2911
  %v2932 = vadd.f32 %v2810, %v2908
  %v2933 = vadd.f32 %v2811, %v2909
  %v2934 = vadd.f32 %v2812, %v2910
  %v2935 = vadd.f32 %v2813, %v2911
  %v2936 = vadd.f32 %v2814, %v2908
  %v2937 = vadd.f32 %v2815, %v2909
  %v2938 = vadd.f32 %v2816, %v2910
  %v2939 = vadd.f32 %v2817, %v2911
  %v2940 = vadd.f32 %v2818, %v2908
  %v2941 = vadd.f32 %v2819, %v2909
  %v2942 = vadd.f32 %v2820, %v2910
  %v2943 = vadd.f32 %v2821, %v2911
  %v2944 = vadd.f32 %v2822, %v2908
  %v2945 = vadd.f32 %v2823, %v2909
  %v2946 = vadd.f32 %v2824, %v2910
  %v2947 = vadd.f32 %v2825, %v2911
  %v2948 = vadd.f32 %v2826, %v2908
  %v2949 = vadd.f32 %v2827, %v2909
  %v2950 = vadd.f32 %v2828, %v2910
  %v2951 = vadd.f32 %v2829, %v2911
  %v2952 = vadd.f32 %v2830, %v2908
  %v2953 = vadd.f32 %v2831, %v2909
  %v2954 = vadd.f32 %v2832, %v2910
  %v2955 = vadd.f32 %v2833, %v2911
  %v2956 = vadd.f32 %v2834, %v2908
  %v2957 = vadd.f32 %v2835, %v2909
  %v2958 = vadd.f32 %v2836, %v2910
  %v2959 = vadd.f32 %v2837, %v2911
  %v2960 = vadd.f32 %v2838, %v2908
  %v2961 = vadd.f32 %v2839, %v2909
  %v2962 = vadd.f32 %v2840, %v2910
  %v2963 = vadd.f32 %v2841, %v2911
  %v2964 = vadd.f32 %v2842, %v2908
  %v2965 = vadd.f32 %v2843, %v2909
  %v2966 = vadd.f32 %v2844, %v2910
  %v2967 = vadd.f32 %v2845, %v2911
  %v2968 = vadd.f32 %v2846, %v2908
  %v2969 = vadd.f32 %v2847, %v2909
  %v2970 = vadd.f32 %v2848, %v2910
  %v2971 = vadd.f32 %v2849, %v2911
  %v2972 = vadd.f32 %v2850, %v2908
  %v2973 = vadd.f32 %v2851, %v2909
  %v2974 = vadd.f32 %v2852, %v2910
  %v2975 = vadd.f32 %v2853, %v2911
  %v2976 = vadd.f32 %v2854, %v2908
  %v2977 = vadd.f32 %v2855, %v2909
  %v2978 = vadd.f32 %v2856, %v2910
  %v2979 = vadd.f32 %v2857, %v2911
  %v2980 = vadd.f32 %v2858, %v2908
  %v2981 = vadd.f32 %v2859, %v2909
  %v2982 = vadd.f32 %v2860, %v2910
  %v2983 = vadd.f32 %v2861, %v2911
  %v2984 = vadd.f32 %v2862, %v2908
  %v2985 = vadd.f32 %v2863, %v2909
  %v2986 = vadd.f32 %v2864, %v2910
  %v2987 = vadd.f32 %v2865, %v2911
  %v2988 = vadd.f32 %v2866, %v2908
  %v2989 = vadd.f32 %v2867, %v2909
  %v2990 = vadd.f32 %v2868, %v2910
  %v2991 = vadd.f32 %v2869, %v2911
  %v2992 = vadd.f32 %v2870, %v2908
  %v2993 = vadd.f32 %v2871, %v2909
  %v2994 = vadd.f32 %v2872, %v2910
  %v2995 = vadd.f32 %v2873, %v2911
  %v2996 = vadd.f32 %v2874, %v2908
  %v2997 = vadd.f32 %v2875, %v2909
  %v2998 = vadd.f32 %v2876, %v2910
  %v2999 = vadd.f32 %v2877, %v2911
  %v3000 = vadd.f32 %v2878, %v2908
  %v3001 = vadd.f32 %v2879, %v2909
  %v3002 = vadd.f32 %v2880, %v2910
  %v3003 = vadd.f32 %v2881, %v2911
  %v3004 = vadd.f32 %v2882, %v2908
  %v3005 = vadd.f32 %v2883, %v2909
  %v3006 = vadd.f32 %v2884, %v2910
  %v3007 = vadd.f32 %v2885, %v2911
  %v3008 = vadd.f32 %v2886, %v2908
  %v3009 = vadd.f32 %v2887, %v2909
  %v3010 = vadd.f32 %v2888, %v2910
  %v3011 = vadd.f32 %v2889, %v2911
  %v3012 = vadd.f32 %v2890, %v2908
  %v3013 = vadd.f32 %v2891, %v2909
  %v3014 = vadd.f32 %v2892, %v2910
  %v3015 = vadd.f32 %v2893, %v2911
  %v3016 = vadd.f32 %v2894, %v2908
  %v3017 = vadd.f32 %v2895, %v2909
  %v3018 = vadd.f32 %v2896, %v2910
  %v3019 = vadd.f32 %v2897, %v2911
  %v3020 = vadd.f32 %v2898, %v2908
  %v3021 = vadd.f32 %v2899, %v2909
  %v3022 = vadd.f32 %v2900, %v2910
  %v3023 = vadd.f32 %v2901, %v2911
  %v3024 = vadd.f32 %v2902, %v2908
  %v3025 = vadd.f32 %v2903, %v2909
  %v3026 = vadd.f32 %v2904, %v2910
  %v3027 = vadd.f32 %v2905, %v2911
  %v3028 = vmax.f32 %v2916, %v2920
  %v3029 = vmax.f32 %v2917, %v2921
  %v3030 = vmax.f32 %v2918, %v2922
  %v3031 = vmax.f32 %v2919, %v2923
  %v3032 = vmax.f32 %v2924, %v2928
  %v3033 = vmax.f32 %v2925, %v2929
  %v3034 = vmax.f32 %v2926, %v2930
  %v3035 = vmax.f32 %v2927, %v2931
  %v3036 = vmax.f32 %v2932, %v2936
  %v3037 = vmax.f32 %v2933, %v2937
  %v3038 = vmax.f32 %v2934, %v2938
  %v3039 = vmax.f32 %v2935, %v2939
  %v3040 = vmax.f32 %v2940, %v2944
  %v3041 = vmax.f32 %v2941, %v2945
  %v3042 = vmax.f32 %v2942, %v2946
  %v3043 = vmax.f32 %v2943, %v2947
  %v3044 = vmax.f32 %v2948, %v2952
  %v3045 = vmax.f32 %v2949, %v2953
  %v3046 = vmax.f32 %v2950, %v2954
  %v3047 = vmax.f32 %v2951, %v2955
  %v3048 = vmax.f32 %v2956, %v2960
  %v3049 = vmax.f32 %v2957, %v2961
  %v3050 = vmax.f32 %v2958, %v2962
  %v3051 = vmax.f32 %v2959, %v2963
  %v3052 = vmax.f32 %v2964, %v2968
  %v3053 = vmax.f32 %v2965, %v2969
  %v3054 = vmax.f32 %v2966, %v2970
  %v3055 = vmax.f32 %v2967, %v2971
  %v3056 = vmax.f32 %v2972, %v2976
  %v3057 = vmax.f32 %v2973, %v2977
  %v3058 = vmax.f32 %v2974, %v2978
  %v3059 = vmax.f32 %v2975, %v2979
  %v3060 = vmax.f32 %v2980, %v2984
  %v3061 = vmax.f32 %v2981, %v2985
  %v3062 = vmax.f32 %v2982, %v2986
  %v3063 = vmax.f32 %v2983, %v2987
  %v3064 = vmax.f32 %v2988, %v2992
  %v3065 = vmax.f32 %v2989, %v2993
  %v3066 = vmax.f32 %v2990, %v2994
  %v3067 = vmax.f32 %v2991, %v2995
  %v3068 = vmax.f32 %v2996, %v3000
  %v3069 = vmax.f32 %v2997, %v3001
  %v3070 = vmax.f32 %v2998, %v3002
  %v3071 = vmax.f32 %v2999, %v3003
  %v3072 = vmax.f32 %v3004, %v3008
  %v3073 = vmax.f32 %v3005, %v3009
  %v3074 = vmax.f32 %v3006, %v3010
  %v3075 = vmax.f32 %v3007, %v3011
  %v3076 = vmax.f32 %v3012, %v3016
  %v3077 = vmax.f32 %v3013, %v3017
  %v3078 = vmax.f32 %v3014, %v3018
  %v3079 = vmax.f32 %v3015, %v3019
  %v3080 = vmax.f32 %v3020, %v3024
  %v3081 = vmax.f32 %v3021, %v3025
  %v3082 = vmax.f32 %v3022, %v3026
  %v3083 = vmax.f32 %v3023, %v3027
  %v3084 = vpack.c.bf16 %v3032, %v3028
  %v3085 = vpack.c.bf16 %v3033, %v3029
  %v3086 = vpack.c.bf16 %v3034, %v3030
  %v3087 = vpack.c.bf16 %v3035, %v3031
  %v3088 = vpack.c.bf16 %v3040, %v3036
  %v3089 = vpack.c.bf16 %v3041, %v3037
  %v3090 = vpack.c.bf16 %v3042, %v3038
  %v3091 = vpack.c.bf16 %v3043, %v3039
  %v3092 = vpack.c.bf16 %v3048, %v3044
  %v3093 = vpack.c.bf16 %v3049, %v3045
  %v3094 = vpack.c.bf16 %v3050, %v3046
  %v3095 = vpack.c.bf16 %v3051, %v3047
  %v3096 = vpack.c.bf16 %v3056, %v3052
  %v3097 = vpack.c.bf16 %v3057, %v3053
  %v3098 = vpack.c.bf16 %v3058, %v3054
  %v3099 = vpack.c.bf16 %v3059, %v3055
  %v3100 = vpack.c.bf16 %v3064, %v3060
  %v3101 = vpack.c.bf16 %v3065, %v3061
  %v3102 = vpack.c.bf16 %v3066, %v3062
  %v3103 = vpack.c.bf16 %v3067, %v3063
  %v3104 = vpack.c.bf16 %v3072, %v3068
  %v3105 = vpack.c.bf16 %v3073, %v3069
  %v3106 = vpack.c.bf16 %v3074, %v3070
  %v3107 = vpack.c.bf16 %v3075, %v3071
  %v3108 = vpack.c.bf16 %v3080, %v3076
  %v3109 = vpack.c.bf16 %v3081, %v3077
  %v3110 = vpack.c.bf16 %v3082, %v3078
  %v3111 = vpack.c.bf16 %v3083, %v3079
  %v3112 = vld [vmem:[%s5] sm:$0xff]
  %v3113 = vld [vmem:[%s5 + $0x8] sm:$0xff]
  %v3114 = vld [vmem:[%s5 + $0x10] sm:$0xff]
  %v3115 = vld [vmem:[%s5 + $0x18] sm:$0xff]
  %v3116 = vld [vmem:[%s5 + $0x20] sm:$0xff]
  %v3117 = vld [vmem:[%s5 + $0x28] sm:$0xff]
  %v3118 = vld [vmem:[%s5 + $0x30] sm:$0xff]
  %v3119 = vld [vmem:[%s5 + $0x38] sm:$0xff]
  %v3120 = vld [vmem:[%s5 + $0x40] sm:$0xff]
  %v3121 = vld [vmem:[%s5 + $0x48] sm:$0xff]
  %v3122 = vld [vmem:[%s5 + $0x50] sm:$0xff]
  %v3123 = vld [vmem:[%s5 + $0x58] sm:$0xff]
  %v3124 = vld [vmem:[%s5 + $0x60] sm:$0xff]
  %v3125 = vld [vmem:[%s5 + $0x68] sm:$0xff]
  %v3126 = vld [vmem:[%s5 + $0x70] sm:$0xff]
  %v3127 = vld [vmem:[%s5 + $0x78] sm:$0xff]
  %v3128 = vld [vmem:[%s5 + $0x80] sm:$0xff]
  %v3129 = vld [vmem:[%s5 + $0x88] sm:$0xff]
  %v3130 = vld [vmem:[%s5 + $0x90] sm:$0xff]
  %v3131 = vld [vmem:[%s5 + $0x98] sm:$0xff]
  %v3132 = vld [vmem:[%s5 + $0xa0] sm:$0xff]
  %v3133 = vld [vmem:[%s5 + $0xa8] sm:$0xff]
  %v3134 = vld [vmem:[%s5 + $0xb0] sm:$0xff]
  %v3135 = vld [vmem:[%s5 + $0xb8] sm:$0xff]
  %v3136 = vld [vmem:[%s5 + $0xc0] sm:$0xff]
  %v3137 = vld [vmem:[%s5 + $0xc8] sm:$0xff]
  %v3138 = vld [vmem:[%s5 + $0xd0] sm:$0xff]
  %v3139 = vld [vmem:[%s5 + $0xd8] sm:$0xff]
  %v3140 = vld [vmem:[%s5 + $0xe0] sm:$0xff]
  %v3141 = vld [vmem:[%s5 + $0xe8] sm:$0xff]
  %v3142 = vld [vmem:[%s5 + $0xf0] sm:$0xff]
  %v3143 = vld [vmem:[%s5 + $0xf8] sm:$0xff]
  %v3144 = vld [vmem:[%s5 + $0x100] sm:$0xff]
  %v3145 = vld [vmem:[%s5 + $0x108] sm:$0xff]
  %v3146 = vld [vmem:[%s5 + $0x110] sm:$0xff]
  %v3147 = vld [vmem:[%s5 + $0x118] sm:$0xff]
  %v3148 = vld [vmem:[%s5 + $0x120] sm:$0xff]
  %v3149 = vld [vmem:[%s5 + $0x128] sm:$0xff]
  %v3150 = vld [vmem:[%s5 + $0x130] sm:$0xff]
  %v3151 = vld [vmem:[%s5 + $0x138] sm:$0xff]
  %v3152 = vld [vmem:[%s5 + $0x140] sm:$0xff]
  %v3153 = vld [vmem:[%s5 + $0x148] sm:$0xff]
  %v3154 = vld [vmem:[%s5 + $0x150] sm:$0xff]
  %v3155 = vld [vmem:[%s5 + $0x158] sm:$0xff]
  %v3156 = vld [vmem:[%s5 + $0x160] sm:$0xff]
  %v3157 = vld [vmem:[%s5 + $0x168] sm:$0xff]
  %v3158 = vld [vmem:[%s5 + $0x170] sm:$0xff]
  %v3159 = vld [vmem:[%s5 + $0x178] sm:$0xff]
  %v3160 = vld [vmem:[%s5 + $0x180] sm:$0xff]
  %v3161 = vld [vmem:[%s5 + $0x188] sm:$0xff]
  %v3162 = vld [vmem:[%s5 + $0x190] sm:$0xff]
  %v3163 = vld [vmem:[%s5 + $0x198] sm:$0xff]
  %v3164 = vld [vmem:[%s5 + $0x1a0] sm:$0xff]
  %v3165 = vld [vmem:[%s5 + $0x1a8] sm:$0xff]
  %v3166 = vld [vmem:[%s5 + $0x1b0] sm:$0xff]
  %v3167 = vld [vmem:[%s5 + $0x1b8] sm:$0xff]
  %v3224 = vunpack.c.l.b16 %v3112
  %v3225 = vunpack.c.h.b16 %v3112
  %v3226 = vunpack.c.l.b16 %v3113
  %v3227 = vunpack.c.h.b16 %v3113
  %v3228 = vunpack.c.l.b16 %v3114
  %v3229 = vunpack.c.h.b16 %v3114
  %v3230 = vunpack.c.l.b16 %v3115
  %v3231 = vunpack.c.h.b16 %v3115
  %v3232 = vunpack.c.l.b16 %v3116
  %v3233 = vunpack.c.h.b16 %v3116
  %v3234 = vunpack.c.l.b16 %v3117
  %v3235 = vunpack.c.h.b16 %v3117
  %v3236 = vunpack.c.l.b16 %v3118
  %v3237 = vunpack.c.h.b16 %v3118
  %v3238 = vunpack.c.l.b16 %v3119
  %v3239 = vunpack.c.h.b16 %v3119
  %v3240 = vunpack.c.l.b16 %v3120
  %v3241 = vunpack.c.h.b16 %v3120
  %v3242 = vunpack.c.l.b16 %v3121
  %v3243 = vunpack.c.h.b16 %v3121
  %v3244 = vunpack.c.l.b16 %v3122
  %v3245 = vunpack.c.h.b16 %v3122
  %v3246 = vunpack.c.l.b16 %v3123
  %v3247 = vunpack.c.h.b16 %v3123
  %v3248 = vunpack.c.l.b16 %v3124
  %v3249 = vunpack.c.h.b16 %v3124
  %v3250 = vunpack.c.l.b16 %v3125
  %v3251 = vunpack.c.h.b16 %v3125
  %v3252 = vunpack.c.l.b16 %v3126
  %v3253 = vunpack.c.h.b16 %v3126
  %v3254 = vunpack.c.l.b16 %v3127
  %v3255 = vunpack.c.h.b16 %v3127
  %v3256 = vunpack.c.l.b16 %v3128
  %v3257 = vunpack.c.h.b16 %v3128
  %v3258 = vunpack.c.l.b16 %v3129
  %v3259 = vunpack.c.h.b16 %v3129
  %v3260 = vunpack.c.l.b16 %v3130
  %v3261 = vunpack.c.h.b16 %v3130
  %v3262 = vunpack.c.l.b16 %v3131
  %v3263 = vunpack.c.h.b16 %v3131
  %v3264 = vunpack.c.l.b16 %v3132
  %v3265 = vunpack.c.h.b16 %v3132
  %v3266 = vunpack.c.l.b16 %v3133
  %v3267 = vunpack.c.h.b16 %v3133
  %v3268 = vunpack.c.l.b16 %v3134
  %v3269 = vunpack.c.h.b16 %v3134
  %v3270 = vunpack.c.l.b16 %v3135
  %v3271 = vunpack.c.h.b16 %v3135
  %v3272 = vunpack.c.l.b16 %v3136
  %v3273 = vunpack.c.h.b16 %v3136
  %v3274 = vunpack.c.l.b16 %v3137
  %v3275 = vunpack.c.h.b16 %v3137
  %v3276 = vunpack.c.l.b16 %v3138
  %v3277 = vunpack.c.h.b16 %v3138
  %v3278 = vunpack.c.l.b16 %v3139
  %v3279 = vunpack.c.h.b16 %v3139
  %v3280 = vunpack.c.l.b16 %v3140
  %v3281 = vunpack.c.h.b16 %v3140
  %v3282 = vunpack.c.l.b16 %v3141
  %v3283 = vunpack.c.h.b16 %v3141
  %v3284 = vunpack.c.l.b16 %v3142
  %v3285 = vunpack.c.h.b16 %v3142
  %v3286 = vunpack.c.l.b16 %v3143
  %v3287 = vunpack.c.h.b16 %v3143
  %v3288 = vunpack.c.l.b16 %v3144
  %v3289 = vunpack.c.h.b16 %v3144
  %v3290 = vunpack.c.l.b16 %v3145
  %v3291 = vunpack.c.h.b16 %v3145
  %v3292 = vunpack.c.l.b16 %v3146
  %v3293 = vunpack.c.h.b16 %v3146
  %v3294 = vunpack.c.l.b16 %v3147
  %v3295 = vunpack.c.h.b16 %v3147
  %v3296 = vunpack.c.l.b16 %v3148
  %v3297 = vunpack.c.h.b16 %v3148
  %v3298 = vunpack.c.l.b16 %v3149
  %v3299 = vunpack.c.h.b16 %v3149
  %v3300 = vunpack.c.l.b16 %v3150
  %v3301 = vunpack.c.h.b16 %v3150
  %v3302 = vunpack.c.l.b16 %v3151
  %v3303 = vunpack.c.h.b16 %v3151
  %v3304 = vunpack.c.l.b16 %v3152
  %v3305 = vunpack.c.h.b16 %v3152
  %v3306 = vunpack.c.l.b16 %v3153
  %v3307 = vunpack.c.h.b16 %v3153
  %v3308 = vunpack.c.l.b16 %v3154
  %v3309 = vunpack.c.h.b16 %v3154
  %v3310 = vunpack.c.l.b16 %v3155
  %v3311 = vunpack.c.h.b16 %v3155
  %v3312 = vunpack.c.l.b16 %v3156
  %v3313 = vunpack.c.h.b16 %v3156
  %v3314 = vunpack.c.l.b16 %v3157
  %v3315 = vunpack.c.h.b16 %v3157
  %v3316 = vunpack.c.l.b16 %v3158
  %v3317 = vunpack.c.h.b16 %v3158
  %v3318 = vunpack.c.l.b16 %v3159
  %v3319 = vunpack.c.h.b16 %v3159
  %v3320 = vunpack.c.l.b16 %v3160
  %v3321 = vunpack.c.h.b16 %v3160
  %v3322 = vunpack.c.l.b16 %v3161
  %v3323 = vunpack.c.h.b16 %v3161
  %v3324 = vunpack.c.l.b16 %v3162
  %v3325 = vunpack.c.h.b16 %v3162
  %v3326 = vunpack.c.l.b16 %v3163
  %v3327 = vunpack.c.h.b16 %v3163
  %v3328 = vunpack.c.l.b16 %v3164
  %v3329 = vunpack.c.h.b16 %v3164
  %v3330 = vunpack.c.l.b16 %v3165
  %v3331 = vunpack.c.h.b16 %v3165
  %v3332 = vunpack.c.l.b16 %v3166
  %v3333 = vunpack.c.h.b16 %v3166
  %v3334 = vunpack.c.l.b16 %v3167
  %v3335 = vunpack.c.h.b16 %v3167
  %v3336 = vpack.c.b16 %v3226, %v3224
  %v3337 = vpack.c.b16 %v3227, %v3225
  %v3338 = vpack.c.b16 %v3230, %v3228
  %v3339 = vpack.c.b16 %v3231, %v3229
  %v3340 = vpack.c.b16 %v3234, %v3232
  %v3341 = vpack.c.b16 %v3235, %v3233
  %v3342 = vpack.c.b16 %v3238, %v3236
  %v3343 = vpack.c.b16 %v3239, %v3237
  %v3344 = vpack.c.b16 %v3242, %v3240
  %v3345 = vpack.c.b16 %v3243, %v3241
  %v3346 = vpack.c.b16 %v3246, %v3244
  %v3347 = vpack.c.b16 %v3247, %v3245
  %v3348 = vpack.c.b16 %v3250, %v3248
  %v3349 = vpack.c.b16 %v3251, %v3249
  %v3350 = vpack.c.b16 %v3254, %v3252
  %v3351 = vpack.c.b16 %v3255, %v3253
  %v3352 = vpack.c.b16 %v3258, %v3256
  %v3353 = vpack.c.b16 %v3259, %v3257
  %v3354 = vpack.c.b16 %v3262, %v3260
  %v3355 = vpack.c.b16 %v3263, %v3261
  %v3356 = vpack.c.b16 %v3266, %v3264
  %v3357 = vpack.c.b16 %v3267, %v3265
  %v3358 = vpack.c.b16 %v3270, %v3268
  %v3359 = vpack.c.b16 %v3271, %v3269
  %v3360 = vpack.c.b16 %v3274, %v3272
  %v3361 = vpack.c.b16 %v3275, %v3273
  %v3362 = vpack.c.b16 %v3278, %v3276
  %v3363 = vpack.c.b16 %v3279, %v3277
  %v3364 = vpack.c.b16 %v3282, %v3280
  %v3365 = vpack.c.b16 %v3283, %v3281
  %v3366 = vpack.c.b16 %v3286, %v3284
  %v3367 = vpack.c.b16 %v3287, %v3285
  %v3368 = vpack.c.b16 %v3290, %v3288
  %v3369 = vpack.c.b16 %v3291, %v3289
  %v3370 = vpack.c.b16 %v3294, %v3292
  %v3371 = vpack.c.b16 %v3295, %v3293
  %v3372 = vpack.c.b16 %v3298, %v3296
  %v3373 = vpack.c.b16 %v3299, %v3297
  %v3374 = vpack.c.b16 %v3302, %v3300
  %v3375 = vpack.c.b16 %v3303, %v3301
  %v3376 = vpack.c.b16 %v3306, %v3304
  %v3377 = vpack.c.b16 %v3307, %v3305
  %v3378 = vpack.c.b16 %v3310, %v3308
  %v3379 = vpack.c.b16 %v3311, %v3309
  %v3380 = vpack.c.b16 %v3314, %v3312
  %v3381 = vpack.c.b16 %v3315, %v3313
  %v3382 = vpack.c.b16 %v3318, %v3316
  %v3383 = vpack.c.b16 %v3319, %v3317
  %v3384 = vpack.c.b16 %v3322, %v3320
  %v3385 = vpack.c.b16 %v3323, %v3321
  %v3386 = vpack.c.b16 %v3326, %v3324
  %v3387 = vpack.c.b16 %v3327, %v3325
  %v3388 = vpack.c.b16 %v3330, %v3328
  %v3389 = vpack.c.b16 %v3331, %v3329
  %v3390 = vpack.c.b16 %v3334, %v3332
  %v3391 = vpack.c.b16 %v3335, %v3333
  %vm3448 = vcmask 523264
  %v3450 = vsel %vm3448, %v3087, 0
  %v3453 = vsel %vm3448, %v3091, 0
  %v3456 = vsel %vm3448, %v3095, 0
  %v3459 = vsel %vm3448, %v3099, 0
  %v3462 = vsel %vm3448, %v3103, 0
  %v3465 = vsel %vm3448, %v3107, 0
  %v3468 = vsel %vm3448, %v3111, 0
  %3470 = vmatpush.bf16.msra.mxu0 %v3350
  %3471 = vmatpush.bf16.msra.mxu0 %v3348
  %3472 = vmatpush.bf16.msra.mxu0 %v3346
  %3473 = vmatpush.bf16.msra.mxu0 %v3344
  %3474 = vmatpush.bf16.msra.mxu0 %v3342
  %3475 = vmatpush.bf16.msra.mxu0 %v3340
  %3476 = vmatpush.bf16.msra.mxu0 %v3338
  %3477 = vmatpush.bf16.msra.mxu0 %v3336
  %3478 = vmatmul.bf16.gmra.mxu0 %v3084
  %v3479 = vpop.f32.mrf.mxu0
  %v3480 = vadd.f32 0.0, %v3479
  %v3481 = vpop.f32.mrf.mxu0
  %v3482 = vadd.f32 0.0, %v3481
  %3483 = vmatmul.bf16.gmra.mxu0 %v3088
  %v3484 = vpop.f32.mrf.mxu0
  %v3485 = vadd.f32 0.0, %v3484
  %v3486 = vpop.f32.mrf.mxu0
  %v3487 = vadd.f32 0.0, %v3486
  %3488 = vmatmul.bf16.gmra.mxu0 %v3092
  %v3489 = vpop.f32.mrf.mxu0
  %v3490 = vadd.f32 0.0, %v3489
  %v3491 = vpop.f32.mrf.mxu0
  %v3492 = vadd.f32 0.0, %v3491
  %3493 = vmatmul.bf16.gmra.mxu0 %v3096
  %v3494 = vpop.f32.mrf.mxu0
  %v3495 = vadd.f32 0.0, %v3494
  %v3496 = vpop.f32.mrf.mxu0
  %v3497 = vadd.f32 0.0, %v3496
  %3498 = vmatmul.bf16.gmra.mxu0 %v3100
  %v3499 = vpop.f32.mrf.mxu0
  %v3500 = vadd.f32 0.0, %v3499
  %v3501 = vpop.f32.mrf.mxu0
  %v3502 = vadd.f32 0.0, %v3501
  %3503 = vmatmul.bf16.gmra.mxu0 %v3104
  %v3504 = vpop.f32.mrf.mxu0
  %v3505 = vadd.f32 0.0, %v3504
  %v3506 = vpop.f32.mrf.mxu0
  %v3507 = vadd.f32 0.0, %v3506
  %3508 = vmatmul.bf16.gmra.mxu0 %v3108
  %v3509 = vpop.f32.mrf.mxu0
  %v3510 = vadd.f32 0.0, %v3509
  %v3511 = vpop.f32.mrf.mxu0
  %v3512 = vadd.f32 0.0, %v3511
  %3513 = vdwg.mxu0
  %3514 = vmatpush.bf16.msra.mxu0 %v3366
  %3515 = vmatpush.bf16.msra.mxu0 %v3364
  %3516 = vmatpush.bf16.msra.mxu0 %v3362
  %3517 = vmatpush.bf16.msra.mxu0 %v3360
  %3518 = vmatpush.bf16.msra.mxu0 %v3358
  %3519 = vmatpush.bf16.msra.mxu0 %v3356
  %3520 = vmatpush.bf16.msra.mxu0 %v3354
  %3521 = vmatpush.bf16.msra.mxu0 %v3352
  %3522 = vmatmul.bf16.gmra.mxu0 %v3085
  %v3523 = vpop.f32.mrf.mxu0
  %v3524 = vadd.f32 %v3480, %v3523
  %v3525 = vpop.f32.mrf.mxu0
  %v3526 = vadd.f32 %v3482, %v3525
  %3527 = vmatmul.bf16.gmra.mxu0 %v3089
  %v3528 = vpop.f32.mrf.mxu0
  %v3529 = vadd.f32 %v3485, %v3528
  %v3530 = vpop.f32.mrf.mxu0
  %v3531 = vadd.f32 %v3487, %v3530
  %3532 = vmatmul.bf16.gmra.mxu0 %v3093
  %v3533 = vpop.f32.mrf.mxu0
  %v3534 = vadd.f32 %v3490, %v3533
  %v3535 = vpop.f32.mrf.mxu0
  %v3536 = vadd.f32 %v3492, %v3535
  %3537 = vmatmul.bf16.gmra.mxu0 %v3097
  %v3538 = vpop.f32.mrf.mxu0
  %v3539 = vadd.f32 %v3495, %v3538
  %v3540 = vpop.f32.mrf.mxu0
  %v3541 = vadd.f32 %v3497, %v3540
  %3542 = vmatmul.bf16.gmra.mxu0 %v3101
  %v3543 = vpop.f32.mrf.mxu0
  %v3544 = vadd.f32 %v3500, %v3543
  %v3545 = vpop.f32.mrf.mxu0
  %v3546 = vadd.f32 %v3502, %v3545
  %3547 = vmatmul.bf16.gmra.mxu0 %v3105
  %v3548 = vpop.f32.mrf.mxu0
  %v3549 = vadd.f32 %v3505, %v3548
  %v3550 = vpop.f32.mrf.mxu0
  %v3551 = vadd.f32 %v3507, %v3550
  %3552 = vmatmul.bf16.gmra.mxu0 %v3109
  %v3553 = vpop.f32.mrf.mxu0
  %v3554 = vadd.f32 %v3510, %v3553
  %v3555 = vpop.f32.mrf.mxu0
  %v3556 = vadd.f32 %v3512, %v3555
  %3557 = vdwg.mxu0
  %3558 = vmatpush.bf16.msra.mxu0 %v3382
  %3559 = vmatpush.bf16.msra.mxu0 %v3380
  %3560 = vmatpush.bf16.msra.mxu0 %v3378
  %3561 = vmatpush.bf16.msra.mxu0 %v3376
  %3562 = vmatpush.bf16.msra.mxu0 %v3374
  %3563 = vmatpush.bf16.msra.mxu0 %v3372
  %3564 = vmatpush.bf16.msra.mxu0 %v3370
  %3565 = vmatpush.bf16.msra.mxu0 %v3368
  %3566 = vmatmul.bf16.gmra.mxu0 %v3086
  %v3567 = vpop.f32.mrf.mxu0
  %v3568 = vadd.f32 %v3524, %v3567
  %v3569 = vpop.f32.mrf.mxu0
  %v3570 = vadd.f32 %v3526, %v3569
  %3571 = vmatmul.bf16.gmra.mxu0 %v3090
  %v3572 = vpop.f32.mrf.mxu0
  %v3573 = vadd.f32 %v3529, %v3572
  %v3574 = vpop.f32.mrf.mxu0
  %v3575 = vadd.f32 %v3531, %v3574
  %3576 = vmatmul.bf16.gmra.mxu0 %v3094
  %v3577 = vpop.f32.mrf.mxu0
  %v3578 = vadd.f32 %v3534, %v3577
  %v3579 = vpop.f32.mrf.mxu0
  %v3580 = vadd.f32 %v3536, %v3579
  %3581 = vmatmul.bf16.gmra.mxu0 %v3098
  %v3582 = vpop.f32.mrf.mxu0
  %v3583 = vadd.f32 %v3539, %v3582
  %v3584 = vpop.f32.mrf.mxu0
  %v3585 = vadd.f32 %v3541, %v3584
  %3586 = vmatmul.bf16.gmra.mxu0 %v3102
  %v3587 = vpop.f32.mrf.mxu0
  %v3588 = vadd.f32 %v3544, %v3587
  %v3589 = vpop.f32.mrf.mxu0
  %v3590 = vadd.f32 %v3546, %v3589
  %3591 = vmatmul.bf16.gmra.mxu0 %v3106
  %v3592 = vpop.f32.mrf.mxu0
  %v3593 = vadd.f32 %v3549, %v3592
  %v3594 = vpop.f32.mrf.mxu0
  %v3595 = vadd.f32 %v3551, %v3594
  %3596 = vmatmul.bf16.gmra.mxu0 %v3110
  %v3597 = vpop.f32.mrf.mxu0
  %v3598 = vadd.f32 %v3554, %v3597
  %v3599 = vpop.f32.mrf.mxu0
  %v3600 = vadd.f32 %v3556, %v3599
  %3601 = vdwg.mxu0
  %3602 = vmatpush.bf16.msra.mxu0 0
  %3603 = vmatpush.bf16.msra.mxu0 0
  %3604 = vmatpush.bf16.msra.mxu0 0
  %3605 = vmatpush.bf16.msra.mxu0 0
  %3606 = vmatpush.bf16.msra.mxu0 %v3390
  %3607 = vmatpush.bf16.msra.mxu0 %v3388
  %3608 = vmatpush.bf16.msra.mxu0 %v3386
  %3609 = vmatpush.bf16.msra.mxu0 %v3384
  %3610 = vmatmul.bf16.gmra.mxu0 %v3450
  %v3611 = vpop.f32.mrf.mxu0
  %v3612 = vadd.f32 %v3568, %v3611
  %v3613 = vpop.f32.mrf.mxu0
  %v3614 = vadd.f32 %v3570, %v3613
  %3615 = vmatmul.bf16.gmra.mxu0 %v3453
  %v3616 = vpop.f32.mrf.mxu0
  %v3617 = vadd.f32 %v3573, %v3616
  %v3618 = vpop.f32.mrf.mxu0
  %v3619 = vadd.f32 %v3575, %v3618
  %3620 = vmatmul.bf16.gmra.mxu0 %v3456
  %v3621 = vpop.f32.mrf.mxu0
  %v3622 = vadd.f32 %v3578, %v3621
  %v3623 = vpop.f32.mrf.mxu0
  %v3624 = vadd.f32 %v3580, %v3623
  %3625 = vmatmul.bf16.gmra.mxu0 %v3459
  %v3626 = vpop.f32.mrf.mxu0
  %v3627 = vadd.f32 %v3583, %v3626
  %v3628 = vpop.f32.mrf.mxu0
  %v3629 = vadd.f32 %v3585, %v3628
  %3630 = vmatmul.bf16.gmra.mxu0 %v3462
  %v3631 = vpop.f32.mrf.mxu0
  %v3632 = vadd.f32 %v3588, %v3631
  %v3633 = vpop.f32.mrf.mxu0
  %v3634 = vadd.f32 %v3590, %v3633
  %3635 = vmatmul.bf16.gmra.mxu0 %v3465
  %v3636 = vpop.f32.mrf.mxu0
  %v3637 = vadd.f32 %v3593, %v3636
  %v3638 = vpop.f32.mrf.mxu0
  %v3639 = vadd.f32 %v3595, %v3638
  %3640 = vmatmul.bf16.gmra.mxu0 %v3468
  %v3641 = vpop.f32.mrf.mxu0
  %v3642 = vadd.f32 %v3598, %v3641
  %v3643 = vpop.f32.mrf.mxu0
  %v3644 = vadd.f32 %v3600, %v3643
  %3645 = vdwg.mxu0
  %3646 = vmatpush.bf16.msra.mxu0 %v3351
  %3647 = vmatpush.bf16.msra.mxu0 %v3349
  %3648 = vmatpush.bf16.msra.mxu0 %v3347
  %3649 = vmatpush.bf16.msra.mxu0 %v3345
  %3650 = vmatpush.bf16.msra.mxu0 %v3343
  %3651 = vmatpush.bf16.msra.mxu0 %v3341
  %3652 = vmatpush.bf16.msra.mxu0 %v3339
  %3653 = vmatpush.bf16.msra.mxu0 %v3337
  %3654 = vmatmul.bf16.gmra.mxu0 %v3084
  %v3655 = vpop.f32.mrf.mxu0
  %v3656 = vadd.f32 0.0, %v3655
  %v3657 = vpop.f32.mrf.mxu0
  %v3658 = vadd.f32 0.0, %v3657
  %3659 = vmatmul.bf16.gmra.mxu0 %v3088
  %v3660 = vpop.f32.mrf.mxu0
  %v3661 = vadd.f32 0.0, %v3660
  %v3662 = vpop.f32.mrf.mxu0
  %v3663 = vadd.f32 0.0, %v3662
  %3664 = vmatmul.bf16.gmra.mxu0 %v3092
  %v3665 = vpop.f32.mrf.mxu0
  %v3666 = vadd.f32 0.0, %v3665
  %v3667 = vpop.f32.mrf.mxu0
  %v3668 = vadd.f32 0.0, %v3667
  %3669 = vmatmul.bf16.gmra.mxu0 %v3096
  %v3670 = vpop.f32.mrf.mxu0
  %v3671 = vadd.f32 0.0, %v3670
  %v3672 = vpop.f32.mrf.mxu0
  %v3673 = vadd.f32 0.0, %v3672
  %3674 = vmatmul.bf16.gmra.mxu0 %v3100
  %v3675 = vpop.f32.mrf.mxu0
  %v3676 = vadd.f32 0.0, %v3675
  %v3677 = vpop.f32.mrf.mxu0
  %v3678 = vadd.f32 0.0, %v3677
  %3679 = vmatmul.bf16.gmra.mxu0 %v3104
  %v3680 = vpop.f32.mrf.mxu0
  %v3681 = vadd.f32 0.0, %v3680
  %v3682 = vpop.f32.mrf.mxu0
  %v3683 = vadd.f32 0.0, %v3682
  %3684 = vmatmul.bf16.gmra.mxu0 %v3108
  %v3685 = vpop.f32.mrf.mxu0
  %v3686 = vadd.f32 0.0, %v3685
  %v3687 = vpop.f32.mrf.mxu0
  %v3688 = vadd.f32 0.0, %v3687
  %3689 = vdwg.mxu0
  %3690 = vmatpush.bf16.msra.mxu0 %v3367
  %3691 = vmatpush.bf16.msra.mxu0 %v3365
  %3692 = vmatpush.bf16.msra.mxu0 %v3363
  %3693 = vmatpush.bf16.msra.mxu0 %v3361
  %3694 = vmatpush.bf16.msra.mxu0 %v3359
  %3695 = vmatpush.bf16.msra.mxu0 %v3357
  %3696 = vmatpush.bf16.msra.mxu0 %v3355
  %3697 = vmatpush.bf16.msra.mxu0 %v3353
  %3698 = vmatmul.bf16.gmra.mxu0 %v3085
  %v3699 = vpop.f32.mrf.mxu0
  %v3700 = vadd.f32 %v3656, %v3699
  %v3701 = vpop.f32.mrf.mxu0
  %v3702 = vadd.f32 %v3658, %v3701
  %3703 = vmatmul.bf16.gmra.mxu0 %v3089
  %v3704 = vpop.f32.mrf.mxu0
  %v3705 = vadd.f32 %v3661, %v3704
  %v3706 = vpop.f32.mrf.mxu0
  %v3707 = vadd.f32 %v3663, %v3706
  %3708 = vmatmul.bf16.gmra.mxu0 %v3093
  %v3709 = vpop.f32.mrf.mxu0
  %v3710 = vadd.f32 %v3666, %v3709
  %v3711 = vpop.f32.mrf.mxu0
  %v3712 = vadd.f32 %v3668, %v3711
  %3713 = vmatmul.bf16.gmra.mxu0 %v3097
  %v3714 = vpop.f32.mrf.mxu0
  %v3715 = vadd.f32 %v3671, %v3714
  %v3716 = vpop.f32.mrf.mxu0
  %v3717 = vadd.f32 %v3673, %v3716
  %3718 = vmatmul.bf16.gmra.mxu0 %v3101
  %v3719 = vpop.f32.mrf.mxu0
  %v3720 = vadd.f32 %v3676, %v3719
  %v3721 = vpop.f32.mrf.mxu0
  %v3722 = vadd.f32 %v3678, %v3721
  %3723 = vmatmul.bf16.gmra.mxu0 %v3105
  %v3724 = vpop.f32.mrf.mxu0
  %v3725 = vadd.f32 %v3681, %v3724
  %v3726 = vpop.f32.mrf.mxu0
  %v3727 = vadd.f32 %v3683, %v3726
  %3728 = vmatmul.bf16.gmra.mxu0 %v3109
  %v3729 = vpop.f32.mrf.mxu0
  %v3730 = vadd.f32 %v3686, %v3729
  %v3731 = vpop.f32.mrf.mxu0
  %v3732 = vadd.f32 %v3688, %v3731
  %3733 = vdwg.mxu0
  %3734 = vmatpush.bf16.msra.mxu0 %v3383
  %3735 = vmatpush.bf16.msra.mxu0 %v3381
  %3736 = vmatpush.bf16.msra.mxu0 %v3379
  %3737 = vmatpush.bf16.msra.mxu0 %v3377
  %3738 = vmatpush.bf16.msra.mxu0 %v3375
  %3739 = vmatpush.bf16.msra.mxu0 %v3373
  %3740 = vmatpush.bf16.msra.mxu0 %v3371
  %3741 = vmatpush.bf16.msra.mxu0 %v3369
  %3742 = vmatmul.bf16.gmra.mxu0 %v3086
  %v3743 = vpop.f32.mrf.mxu0
  %v3744 = vadd.f32 %v3700, %v3743
  %v3745 = vpop.f32.mrf.mxu0
  %v3746 = vadd.f32 %v3702, %v3745
  %3747 = vmatmul.bf16.gmra.mxu0 %v3090
  %v3748 = vpop.f32.mrf.mxu0
  %v3749 = vadd.f32 %v3705, %v3748
  %v3750 = vpop.f32.mrf.mxu0
  %v3751 = vadd.f32 %v3707, %v3750
  %3752 = vmatmul.bf16.gmra.mxu0 %v3094
  %v3753 = vpop.f32.mrf.mxu0
  %v3754 = vadd.f32 %v3710, %v3753
  %v3755 = vpop.f32.mrf.mxu0
  %v3756 = vadd.f32 %v3712, %v3755
  %3757 = vmatmul.bf16.gmra.mxu0 %v3098
  %v3758 = vpop.f32.mrf.mxu0
  %v3759 = vadd.f32 %v3715, %v3758
  %v3760 = vpop.f32.mrf.mxu0
  %v3761 = vadd.f32 %v3717, %v3760
  %3762 = vmatmul.bf16.gmra.mxu0 %v3102
  %v3763 = vpop.f32.mrf.mxu0
  %v3764 = vadd.f32 %v3720, %v3763
  %v3765 = vpop.f32.mrf.mxu0
  %v3766 = vadd.f32 %v3722, %v3765
  %3767 = vmatmul.bf16.gmra.mxu0 %v3106
  %v3768 = vpop.f32.mrf.mxu0
  %v3769 = vadd.f32 %v3725, %v3768
  %v3770 = vpop.f32.mrf.mxu0
  %v3771 = vadd.f32 %v3727, %v3770
  %3772 = vmatmul.bf16.gmra.mxu0 %v3110
  %v3773 = vpop.f32.mrf.mxu0
  %v3774 = vadd.f32 %v3730, %v3773
  %v3775 = vpop.f32.mrf.mxu0
  %v3776 = vadd.f32 %v3732, %v3775
  %3777 = vdwg.mxu0
  %3778 = vmatpush.bf16.msra.mxu0 0
  %3779 = vmatpush.bf16.msra.mxu0 0
  %3780 = vmatpush.bf16.msra.mxu0 0
  %3781 = vmatpush.bf16.msra.mxu0 0
  %3782 = vmatpush.bf16.msra.mxu0 %v3391
  %3783 = vmatpush.bf16.msra.mxu0 %v3389
  %3784 = vmatpush.bf16.msra.mxu0 %v3387
  %3785 = vmatpush.bf16.msra.mxu0 %v3385
  %3786 = vmatmul.bf16.gmra.mxu0 %v3450
  %v3787 = vpop.f32.mrf.mxu0
  %v3788 = vadd.f32 %v3744, %v3787
  %v3789 = vpop.f32.mrf.mxu0
  %v3790 = vadd.f32 %v3746, %v3789
  %3791 = vmatmul.bf16.gmra.mxu0 %v3453
  %v3792 = vpop.f32.mrf.mxu0
  %v3793 = vadd.f32 %v3749, %v3792
  %v3794 = vpop.f32.mrf.mxu0
  %v3795 = vadd.f32 %v3751, %v3794
  %3796 = vmatmul.bf16.gmra.mxu0 %v3456
  %v3797 = vpop.f32.mrf.mxu0
  %v3798 = vadd.f32 %v3754, %v3797
  %v3799 = vpop.f32.mrf.mxu0
  %v3800 = vadd.f32 %v3756, %v3799
  %3801 = vmatmul.bf16.gmra.mxu0 %v3459
  %v3802 = vpop.f32.mrf.mxu0
  %v3803 = vadd.f32 %v3759, %v3802
  %v3804 = vpop.f32.mrf.mxu0
  %v3805 = vadd.f32 %v3761, %v3804
  %3806 = vmatmul.bf16.gmra.mxu0 %v3462
  %v3807 = vpop.f32.mrf.mxu0
  %v3808 = vadd.f32 %v3764, %v3807
  %v3809 = vpop.f32.mrf.mxu0
  %v3810 = vadd.f32 %v3766, %v3809
  %3811 = vmatmul.bf16.gmra.mxu0 %v3465
  %v3812 = vpop.f32.mrf.mxu0
  %v3813 = vadd.f32 %v3769, %v3812
  %v3814 = vpop.f32.mrf.mxu0
  %v3815 = vadd.f32 %v3771, %v3814
  %3816 = vmatmul.bf16.gmra.mxu0 %v3468
  %v3817 = vpop.f32.mrf.mxu0
  %v3818 = vadd.f32 %v3774, %v3817
  %v3819 = vpop.f32.mrf.mxu0
  %v3820 = vadd.f32 %v3776, %v3819
  %3821 = vdwg.mxu0
  %v3822 = vld [vmem:[%s6] sm:$0xff]
  %v3823 = vld [vmem:[%s6 + $0x8] sm:$0xff]
  %v3824 = vld [vmem:[%s6 + $0x10] sm:$0xff]
  %v3825 = vld [vmem:[%s6 + $0x18] sm:$0xff]
  %v3826 = vld [vmem:[%s6 + $0x20] sm:$0xff]
  %v3827 = vld [vmem:[%s6 + $0x28] sm:$0xff]
  %v3828 = vld [vmem:[%s6 + $0x30] sm:$0xff]
  %v3829 = vld [vmem:[%s6 + $0x38] sm:$0xff]
  %v3830 = vld [vmem:[%s6 + $0x40] sm:$0xff]
  %v3831 = vld [vmem:[%s6 + $0x48] sm:$0xff]
  %v3832 = vld [vmem:[%s6 + $0x50] sm:$0xff]
  %v3833 = vld [vmem:[%s6 + $0x58] sm:$0xff]
  %v3834 = vld [vmem:[%s6 + $0x60] sm:$0xff]
  %v3835 = vld [vmem:[%s6 + $0x68] sm:$0xff]
  %v3836 = vld [vmem:[%s6 + $0x70] sm:$0xff]
  %v3837 = vld [vmem:[%s6 + $0x78] sm:$0xff]
  %v3838 = vld [vmem:[%s6 + $0x80] sm:$0xff]
  %v3839 = vld [vmem:[%s6 + $0x88] sm:$0xff]
  %v3840 = vld [vmem:[%s6 + $0x90] sm:$0xff]
  %v3841 = vld [vmem:[%s6 + $0x98] sm:$0xff]
  %v3842 = vld [vmem:[%s6 + $0xa0] sm:$0xff]
  %v3843 = vld [vmem:[%s6 + $0xa8] sm:$0xff]
  %v3844 = vld [vmem:[%s6 + $0xb0] sm:$0xff]
  %v3845 = vld [vmem:[%s6 + $0xb8] sm:$0xff]
  %v3846 = vld [vmem:[%s6 + $0xc0] sm:$0xff]
  %v3847 = vld [vmem:[%s6 + $0xc8] sm:$0xff]
  %v3848 = vld [vmem:[%s6 + $0xd0] sm:$0xff]
  %v3849 = vld [vmem:[%s6 + $0xd8] sm:$0xff]
  %v3850 = vld [vmem:[%s6 + $0xe0] sm:$0xff]
  %v3851 = vld [vmem:[%s6 + $0xe8] sm:$0xff]
  %v3852 = vld [vmem:[%s6 + $0xf0] sm:$0xff]
  %v3853 = vld [vmem:[%s6 + $0xf8] sm:$0xff]
  %v3854 = vld [vmem:[%s6 + $0x100] sm:$0xff]
  %v3855 = vld [vmem:[%s6 + $0x108] sm:$0xff]
  %v3856 = vld [vmem:[%s6 + $0x110] sm:$0xff]
  %v3857 = vld [vmem:[%s6 + $0x118] sm:$0xff]
  %v3858 = vld [vmem:[%s6 + $0x120] sm:$0xff]
  %v3859 = vld [vmem:[%s6 + $0x128] sm:$0xff]
  %v3860 = vld [vmem:[%s6 + $0x130] sm:$0xff]
  %v3861 = vld [vmem:[%s6 + $0x138] sm:$0xff]
  %v3862 = vld [vmem:[%s6 + $0x140] sm:$0xff]
  %v3863 = vld [vmem:[%s6 + $0x148] sm:$0xff]
  %v3864 = vld [vmem:[%s6 + $0x150] sm:$0xff]
  %v3865 = vld [vmem:[%s6 + $0x158] sm:$0xff]
  %v3866 = vld [vmem:[%s6 + $0x160] sm:$0xff]
  %v3867 = vld [vmem:[%s6 + $0x168] sm:$0xff]
  %v3868 = vld [vmem:[%s6 + $0x170] sm:$0xff]
  %v3869 = vld [vmem:[%s6 + $0x178] sm:$0xff]
  %v3870 = vld [vmem:[%s6 + $0x180] sm:$0xff]
  %v3871 = vld [vmem:[%s6 + $0x188] sm:$0xff]
  %v3872 = vld [vmem:[%s6 + $0x190] sm:$0xff]
  %v3873 = vld [vmem:[%s6 + $0x198] sm:$0xff]
  %v3874 = vld [vmem:[%s6 + $0x1a0] sm:$0xff]
  %v3875 = vld [vmem:[%s6 + $0x1a8] sm:$0xff]
  %v3876 = vld [vmem:[%s6 + $0x1b0] sm:$0xff]
  %v3877 = vld [vmem:[%s6 + $0x1b8] sm:$0xff]
  %v3934 = vunpack.c.l.b16 %v3822
  %v3935 = vunpack.c.h.b16 %v3822
  %v3936 = vunpack.c.l.b16 %v3823
  %v3937 = vunpack.c.h.b16 %v3823
  %v3938 = vunpack.c.l.b16 %v3824
  %v3939 = vunpack.c.h.b16 %v3824
  %v3940 = vunpack.c.l.b16 %v3825
  %v3941 = vunpack.c.h.b16 %v3825
  %v3942 = vunpack.c.l.b16 %v3826
  %v3943 = vunpack.c.h.b16 %v3826
  %v3944 = vunpack.c.l.b16 %v3827
  %v3945 = vunpack.c.h.b16 %v3827
  %v3946 = vunpack.c.l.b16 %v3828
  %v3947 = vunpack.c.h.b16 %v3828
  %v3948 = vunpack.c.l.b16 %v3829
  %v3949 = vunpack.c.h.b16 %v3829
  %v3950 = vunpack.c.l.b16 %v3830
  %v3951 = vunpack.c.h.b16 %v3830
  %v3952 = vunpack.c.l.b16 %v3831
  %v3953 = vunpack.c.h.b16 %v3831
  %v3954 = vunpack.c.l.b16 %v3832
  %v3955 = vunpack.c.h.b16 %v3832
  %v3956 = vunpack.c.l.b16 %v3833
  %v3957 = vunpack.c.h.b16 %v3833
  %v3958 = vunpack.c.l.b16 %v3834
  %v3959 = vunpack.c.h.b16 %v3834
  %v3960 = vunpack.c.l.b16 %v3835
  %v3961 = vunpack.c.h.b16 %v3835
  %v3962 = vunpack.c.l.b16 %v3836
  %v3963 = vunpack.c.h.b16 %v3836
  %v3964 = vunpack.c.l.b16 %v3837
  %v3965 = vunpack.c.h.b16 %v3837
  %v3966 = vunpack.c.l.b16 %v3838
  %v3967 = vunpack.c.h.b16 %v3838
  %v3968 = vunpack.c.l.b16 %v3839
  %v3969 = vunpack.c.h.b16 %v3839
  %v3970 = vunpack.c.l.b16 %v3840
  %v3971 = vunpack.c.h.b16 %v3840
  %v3972 = vunpack.c.l.b16 %v3841
  %v3973 = vunpack.c.h.b16 %v3841
  %v3974 = vunpack.c.l.b16 %v3842
  %v3975 = vunpack.c.h.b16 %v3842
  %v3976 = vunpack.c.l.b16 %v3843
  %v3977 = vunpack.c.h.b16 %v3843
  %v3978 = vunpack.c.l.b16 %v3844
  %v3979 = vunpack.c.h.b16 %v3844
  %v3980 = vunpack.c.l.b16 %v3845
  %v3981 = vunpack.c.h.b16 %v3845
  %v3982 = vunpack.c.l.b16 %v3846
  %v3983 = vunpack.c.h.b16 %v3846
  %v3984 = vunpack.c.l.b16 %v3847
  %v3985 = vunpack.c.h.b16 %v3847
  %v3986 = vunpack.c.l.b16 %v3848
  %v3987 = vunpack.c.h.b16 %v3848
  %v3988 = vunpack.c.l.b16 %v3849
  %v3989 = vunpack.c.h.b16 %v3849
  %v3990 = vunpack.c.l.b16 %v3850
  %v3991 = vunpack.c.h.b16 %v3850
  %v3992 = vunpack.c.l.b16 %v3851
  %v3993 = vunpack.c.h.b16 %v3851
  %v3994 = vunpack.c.l.b16 %v3852
  %v3995 = vunpack.c.h.b16 %v3852
  %v3996 = vunpack.c.l.b16 %v3853
  %v3997 = vunpack.c.h.b16 %v3853
  %v3998 = vunpack.c.l.b16 %v3854
  %v3999 = vunpack.c.h.b16 %v3854
  %v4000 = vunpack.c.l.b16 %v3855
  %v4001 = vunpack.c.h.b16 %v3855
  %v4002 = vunpack.c.l.b16 %v3856
  %v4003 = vunpack.c.h.b16 %v3856
  %v4004 = vunpack.c.l.b16 %v3857
  %v4005 = vunpack.c.h.b16 %v3857
  %v4006 = vunpack.c.l.b16 %v3858
  %v4007 = vunpack.c.h.b16 %v3858
  %v4008 = vunpack.c.l.b16 %v3859
  %v4009 = vunpack.c.h.b16 %v3859
  %v4010 = vunpack.c.l.b16 %v3860
  %v4011 = vunpack.c.h.b16 %v3860
  %v4012 = vunpack.c.l.b16 %v3861
  %v4013 = vunpack.c.h.b16 %v3861
  %v4014 = vunpack.c.l.b16 %v3862
  %v4015 = vunpack.c.h.b16 %v3862
  %v4016 = vunpack.c.l.b16 %v3863
  %v4017 = vunpack.c.h.b16 %v3863
  %v4018 = vunpack.c.l.b16 %v3864
  %v4019 = vunpack.c.h.b16 %v3864
  %v4020 = vunpack.c.l.b16 %v3865
  %v4021 = vunpack.c.h.b16 %v3865
  %v4022 = vunpack.c.l.b16 %v3866
  %v4023 = vunpack.c.h.b16 %v3866
  %v4024 = vunpack.c.l.b16 %v3867
  %v4025 = vunpack.c.h.b16 %v3867
  %v4026 = vunpack.c.l.b16 %v3868
  %v4027 = vunpack.c.h.b16 %v3868
  %v4028 = vunpack.c.l.b16 %v3869
  %v4029 = vunpack.c.h.b16 %v3869
  %v4030 = vunpack.c.l.b16 %v3870
  %v4031 = vunpack.c.h.b16 %v3870
  %v4032 = vunpack.c.l.b16 %v3871
  %v4033 = vunpack.c.h.b16 %v3871
  %v4034 = vunpack.c.l.b16 %v3872
  %v4035 = vunpack.c.h.b16 %v3872
  %v4036 = vunpack.c.l.b16 %v3873
  %v4037 = vunpack.c.h.b16 %v3873
  %v4038 = vunpack.c.l.b16 %v3874
  %v4039 = vunpack.c.h.b16 %v3874
  %v4040 = vunpack.c.l.b16 %v3875
  %v4041 = vunpack.c.h.b16 %v3875
  %v4042 = vunpack.c.l.b16 %v3876
  %v4043 = vunpack.c.h.b16 %v3876
  %v4044 = vunpack.c.l.b16 %v3877
  %v4045 = vunpack.c.h.b16 %v3877
  %v4046 = vpack.c.b16 %v3936, %v3934
  %v4047 = vpack.c.b16 %v3937, %v3935
  %v4048 = vpack.c.b16 %v3940, %v3938
  %v4049 = vpack.c.b16 %v3941, %v3939
  %v4050 = vpack.c.b16 %v3944, %v3942
  %v4051 = vpack.c.b16 %v3945, %v3943
  %v4052 = vpack.c.b16 %v3948, %v3946
  %v4053 = vpack.c.b16 %v3949, %v3947
  %v4054 = vpack.c.b16 %v3952, %v3950
  %v4055 = vpack.c.b16 %v3953, %v3951
  %v4056 = vpack.c.b16 %v3956, %v3954
  %v4057 = vpack.c.b16 %v3957, %v3955
  %v4058 = vpack.c.b16 %v3960, %v3958
  %v4059 = vpack.c.b16 %v3961, %v3959
  %v4060 = vpack.c.b16 %v3964, %v3962
  %v4061 = vpack.c.b16 %v3965, %v3963
  %v4062 = vpack.c.b16 %v3968, %v3966
  %v4063 = vpack.c.b16 %v3969, %v3967
  %v4064 = vpack.c.b16 %v3972, %v3970
  %v4065 = vpack.c.b16 %v3973, %v3971
  %v4066 = vpack.c.b16 %v3976, %v3974
  %v4067 = vpack.c.b16 %v3977, %v3975
  %v4068 = vpack.c.b16 %v3980, %v3978
  %v4069 = vpack.c.b16 %v3981, %v3979
  %v4070 = vpack.c.b16 %v3984, %v3982
  %v4071 = vpack.c.b16 %v3985, %v3983
  %v4072 = vpack.c.b16 %v3988, %v3986
  %v4073 = vpack.c.b16 %v3989, %v3987
  %v4074 = vpack.c.b16 %v3992, %v3990
  %v4075 = vpack.c.b16 %v3993, %v3991
  %v4076 = vpack.c.b16 %v3996, %v3994
  %v4077 = vpack.c.b16 %v3997, %v3995
  %v4078 = vpack.c.b16 %v4000, %v3998
  %v4079 = vpack.c.b16 %v4001, %v3999
  %v4080 = vpack.c.b16 %v4004, %v4002
  %v4081 = vpack.c.b16 %v4005, %v4003
  %v4082 = vpack.c.b16 %v4008, %v4006
  %v4083 = vpack.c.b16 %v4009, %v4007
  %v4084 = vpack.c.b16 %v4012, %v4010
  %v4085 = vpack.c.b16 %v4013, %v4011
  %v4086 = vpack.c.b16 %v4016, %v4014
  %v4087 = vpack.c.b16 %v4017, %v4015
  %v4088 = vpack.c.b16 %v4020, %v4018
  %v4089 = vpack.c.b16 %v4021, %v4019
  %v4090 = vpack.c.b16 %v4024, %v4022
  %v4091 = vpack.c.b16 %v4025, %v4023
  %v4092 = vpack.c.b16 %v4028, %v4026
  %v4093 = vpack.c.b16 %v4029, %v4027
  %v4094 = vpack.c.b16 %v4032, %v4030
  %v4095 = vpack.c.b16 %v4033, %v4031
  %v4096 = vpack.c.b16 %v4036, %v4034
  %v4097 = vpack.c.b16 %v4037, %v4035
  %v4098 = vpack.c.b16 %v4040, %v4038
  %v4099 = vpack.c.b16 %v4041, %v4039
  %v4100 = vpack.c.b16 %v4044, %v4042
  %v4101 = vpack.c.b16 %v4045, %v4043
  %4158 = vmatpush.bf16.msra.mxu0 %v4060
  %4159 = vmatpush.bf16.msra.mxu0 %v4058
  %4160 = vmatpush.bf16.msra.mxu0 %v4056
  %4161 = vmatpush.bf16.msra.mxu0 %v4054
  %4162 = vmatpush.bf16.msra.mxu0 %v4052
  %4163 = vmatpush.bf16.msra.mxu0 %v4050
  %4164 = vmatpush.bf16.msra.mxu0 %v4048
  %4165 = vmatpush.bf16.msra.mxu0 %v4046
  %4166 = vmatmul.bf16.gmra.mxu0 %v3084
  %v4167 = vpop.f32.mrf.mxu0
  %v4168 = vadd.f32 0.0, %v4167
  %v4169 = vpop.f32.mrf.mxu0
  %v4170 = vadd.f32 0.0, %v4169
  %4171 = vmatmul.bf16.gmra.mxu0 %v3088
  %v4172 = vpop.f32.mrf.mxu0
  %v4173 = vadd.f32 0.0, %v4172
  %v4174 = vpop.f32.mrf.mxu0
  %v4175 = vadd.f32 0.0, %v4174
  %4176 = vmatmul.bf16.gmra.mxu0 %v3092
  %v4177 = vpop.f32.mrf.mxu0
  %v4178 = vadd.f32 0.0, %v4177
  %v4179 = vpop.f32.mrf.mxu0
  %v4180 = vadd.f32 0.0, %v4179
  %4181 = vmatmul.bf16.gmra.mxu0 %v3096
  %v4182 = vpop.f32.mrf.mxu0
  %v4183 = vadd.f32 0.0, %v4182
  %v4184 = vpop.f32.mrf.mxu0
  %v4185 = vadd.f32 0.0, %v4184
  %4186 = vmatmul.bf16.gmra.mxu0 %v3100
  %v4187 = vpop.f32.mrf.mxu0
  %v4188 = vadd.f32 0.0, %v4187
  %v4189 = vpop.f32.mrf.mxu0
  %v4190 = vadd.f32 0.0, %v4189
  %4191 = vmatmul.bf16.gmra.mxu0 %v3104
  %v4192 = vpop.f32.mrf.mxu0
  %v4193 = vadd.f32 0.0, %v4192
  %v4194 = vpop.f32.mrf.mxu0
  %v4195 = vadd.f32 0.0, %v4194
  %4196 = vmatmul.bf16.gmra.mxu0 %v3108
  %v4197 = vpop.f32.mrf.mxu0
  %v4198 = vadd.f32 0.0, %v4197
  %v4199 = vpop.f32.mrf.mxu0
  %v4200 = vadd.f32 0.0, %v4199
  %4201 = vdwg.mxu0
  %4202 = vmatpush.bf16.msra.mxu0 %v4076
  %4203 = vmatpush.bf16.msra.mxu0 %v4074
  %4204 = vmatpush.bf16.msra.mxu0 %v4072
  %4205 = vmatpush.bf16.msra.mxu0 %v4070
  %4206 = vmatpush.bf16.msra.mxu0 %v4068
  %4207 = vmatpush.bf16.msra.mxu0 %v4066
  %4208 = vmatpush.bf16.msra.mxu0 %v4064
  %4209 = vmatpush.bf16.msra.mxu0 %v4062
  %4210 = vmatmul.bf16.gmra.mxu0 %v3085
  %v4211 = vpop.f32.mrf.mxu0
  %v4212 = vadd.f32 %v4168, %v4211
  %v4213 = vpop.f32.mrf.mxu0
  %v4214 = vadd.f32 %v4170, %v4213
  %4215 = vmatmul.bf16.gmra.mxu0 %v3089
  %v4216 = vpop.f32.mrf.mxu0
  %v4217 = vadd.f32 %v4173, %v4216
  %v4218 = vpop.f32.mrf.mxu0
  %v4219 = vadd.f32 %v4175, %v4218
  %4220 = vmatmul.bf16.gmra.mxu0 %v3093
  %v4221 = vpop.f32.mrf.mxu0
  %v4222 = vadd.f32 %v4178, %v4221
  %v4223 = vpop.f32.mrf.mxu0
  %v4224 = vadd.f32 %v4180, %v4223
  %4225 = vmatmul.bf16.gmra.mxu0 %v3097
  %v4226 = vpop.f32.mrf.mxu0
  %v4227 = vadd.f32 %v4183, %v4226
  %v4228 = vpop.f32.mrf.mxu0
  %v4229 = vadd.f32 %v4185, %v4228
  %4230 = vmatmul.bf16.gmra.mxu0 %v3101
  %v4231 = vpop.f32.mrf.mxu0
  %v4232 = vadd.f32 %v4188, %v4231
  %v4233 = vpop.f32.mrf.mxu0
  %v4234 = vadd.f32 %v4190, %v4233
  %4235 = vmatmul.bf16.gmra.mxu0 %v3105
  %v4236 = vpop.f32.mrf.mxu0
  %v4237 = vadd.f32 %v4193, %v4236
  %v4238 = vpop.f32.mrf.mxu0
  %v4239 = vadd.f32 %v4195, %v4238
  %4240 = vmatmul.bf16.gmra.mxu0 %v3109
  %v4241 = vpop.f32.mrf.mxu0
  %v4242 = vadd.f32 %v4198, %v4241
  %v4243 = vpop.f32.mrf.mxu0
  %v4244 = vadd.f32 %v4200, %v4243
  %4245 = vdwg.mxu0
  %4246 = vmatpush.bf16.msra.mxu0 %v4092
  %4247 = vmatpush.bf16.msra.mxu0 %v4090
  %4248 = vmatpush.bf16.msra.mxu0 %v4088
  %4249 = vmatpush.bf16.msra.mxu0 %v4086
  %4250 = vmatpush.bf16.msra.mxu0 %v4084
  %4251 = vmatpush.bf16.msra.mxu0 %v4082
  %4252 = vmatpush.bf16.msra.mxu0 %v4080
  %4253 = vmatpush.bf16.msra.mxu0 %v4078
  %4254 = vmatmul.bf16.gmra.mxu0 %v3086
  %v4255 = vpop.f32.mrf.mxu0
  %v4256 = vadd.f32 %v4212, %v4255
  %v4257 = vpop.f32.mrf.mxu0
  %v4258 = vadd.f32 %v4214, %v4257
  %4259 = vmatmul.bf16.gmra.mxu0 %v3090
  %v4260 = vpop.f32.mrf.mxu0
  %v4261 = vadd.f32 %v4217, %v4260
  %v4262 = vpop.f32.mrf.mxu0
  %v4263 = vadd.f32 %v4219, %v4262
  %4264 = vmatmul.bf16.gmra.mxu0 %v3094
  %v4265 = vpop.f32.mrf.mxu0
  %v4266 = vadd.f32 %v4222, %v4265
  %v4267 = vpop.f32.mrf.mxu0
  %v4268 = vadd.f32 %v4224, %v4267
  %4269 = vmatmul.bf16.gmra.mxu0 %v3098
  %v4270 = vpop.f32.mrf.mxu0
  %v4271 = vadd.f32 %v4227, %v4270
  %v4272 = vpop.f32.mrf.mxu0
  %v4273 = vadd.f32 %v4229, %v4272
  %4274 = vmatmul.bf16.gmra.mxu0 %v3102
  %v4275 = vpop.f32.mrf.mxu0
  %v4276 = vadd.f32 %v4232, %v4275
  %v4277 = vpop.f32.mrf.mxu0
  %v4278 = vadd.f32 %v4234, %v4277
  %4279 = vmatmul.bf16.gmra.mxu0 %v3106
  %v4280 = vpop.f32.mrf.mxu0
  %v4281 = vadd.f32 %v4237, %v4280
  %v4282 = vpop.f32.mrf.mxu0
  %v4283 = vadd.f32 %v4239, %v4282
  %4284 = vmatmul.bf16.gmra.mxu0 %v3110
  %v4285 = vpop.f32.mrf.mxu0
  %v4286 = vadd.f32 %v4242, %v4285
  %v4287 = vpop.f32.mrf.mxu0
  %v4288 = vadd.f32 %v4244, %v4287
  %4289 = vdwg.mxu0
  %4290 = vmatpush.bf16.msra.mxu0 0
  %4291 = vmatpush.bf16.msra.mxu0 0
  %4292 = vmatpush.bf16.msra.mxu0 0
  %4293 = vmatpush.bf16.msra.mxu0 0
  %4294 = vmatpush.bf16.msra.mxu0 %v4100
  %4295 = vmatpush.bf16.msra.mxu0 %v4098
  %4296 = vmatpush.bf16.msra.mxu0 %v4096
  %4297 = vmatpush.bf16.msra.mxu0 %v4094
  %4298 = vmatmul.bf16.gmra.mxu0 %v3450
  %v4299 = vpop.f32.mrf.mxu0
  %v4300 = vadd.f32 %v4256, %v4299
  %v4301 = vpop.f32.mrf.mxu0
  %v4302 = vadd.f32 %v4258, %v4301
  %4303 = vmatmul.bf16.gmra.mxu0 %v3453
  %v4304 = vpop.f32.mrf.mxu0
  %v4305 = vadd.f32 %v4261, %v4304
  %v4306 = vpop.f32.mrf.mxu0
  %v4307 = vadd.f32 %v4263, %v4306
  %4308 = vmatmul.bf16.gmra.mxu0 %v3456
  %v4309 = vpop.f32.mrf.mxu0
  %v4310 = vadd.f32 %v4266, %v4309
  %v4311 = vpop.f32.mrf.mxu0
  %v4312 = vadd.f32 %v4268, %v4311
  %4313 = vmatmul.bf16.gmra.mxu0 %v3459
  %v4314 = vpop.f32.mrf.mxu0
  %v4315 = vadd.f32 %v4271, %v4314
  %v4316 = vpop.f32.mrf.mxu0
  %v4317 = vadd.f32 %v4273, %v4316
  %4318 = vmatmul.bf16.gmra.mxu0 %v3462
  %v4319 = vpop.f32.mrf.mxu0
  %v4320 = vadd.f32 %v4276, %v4319
  %v4321 = vpop.f32.mrf.mxu0
  %v4322 = vadd.f32 %v4278, %v4321
  %4323 = vmatmul.bf16.gmra.mxu0 %v3465
  %v4324 = vpop.f32.mrf.mxu0
  %v4325 = vadd.f32 %v4281, %v4324
  %v4326 = vpop.f32.mrf.mxu0
  %v4327 = vadd.f32 %v4283, %v4326
  %4328 = vmatmul.bf16.gmra.mxu0 %v3468
  %v4329 = vpop.f32.mrf.mxu0
  %v4330 = vadd.f32 %v4286, %v4329
  %v4331 = vpop.f32.mrf.mxu0
  %v4332 = vadd.f32 %v4288, %v4331
  %4333 = vdwg.mxu0
  %4334 = vmatpush.bf16.msra.mxu0 %v4061
  %4335 = vmatpush.bf16.msra.mxu0 %v4059
  %4336 = vmatpush.bf16.msra.mxu0 %v4057
  %4337 = vmatpush.bf16.msra.mxu0 %v4055
  %4338 = vmatpush.bf16.msra.mxu0 %v4053
  %4339 = vmatpush.bf16.msra.mxu0 %v4051
  %4340 = vmatpush.bf16.msra.mxu0 %v4049
  %4341 = vmatpush.bf16.msra.mxu0 %v4047
  %4342 = vmatmul.bf16.gmra.mxu0 %v3084
  %v4343 = vpop.f32.mrf.mxu0
  %v4344 = vadd.f32 0.0, %v4343
  %v4345 = vpop.f32.mrf.mxu0
  %v4346 = vadd.f32 0.0, %v4345
  %4347 = vmatmul.bf16.gmra.mxu0 %v3088
  %v4348 = vpop.f32.mrf.mxu0
  %v4349 = vadd.f32 0.0, %v4348
  %v4350 = vpop.f32.mrf.mxu0
  %v4351 = vadd.f32 0.0, %v4350
  %4352 = vmatmul.bf16.gmra.mxu0 %v3092
  %v4353 = vpop.f32.mrf.mxu0
  %v4354 = vadd.f32 0.0, %v4353
  %v4355 = vpop.f32.mrf.mxu0
  %v4356 = vadd.f32 0.0, %v4355
  %4357 = vmatmul.bf16.gmra.mxu0 %v3096
  %v4358 = vpop.f32.mrf.mxu0
  %v4359 = vadd.f32 0.0, %v4358
  %v4360 = vpop.f32.mrf.mxu0
  %v4361 = vadd.f32 0.0, %v4360
  %4362 = vmatmul.bf16.gmra.mxu0 %v3100
  %v4363 = vpop.f32.mrf.mxu0
  %v4364 = vadd.f32 0.0, %v4363
  %v4365 = vpop.f32.mrf.mxu0
  %v4366 = vadd.f32 0.0, %v4365
  %4367 = vmatmul.bf16.gmra.mxu0 %v3104
  %v4368 = vpop.f32.mrf.mxu0
  %v4369 = vadd.f32 0.0, %v4368
  %v4370 = vpop.f32.mrf.mxu0
  %v4371 = vadd.f32 0.0, %v4370
  %4372 = vmatmul.bf16.gmra.mxu0 %v3108
  %v4373 = vpop.f32.mrf.mxu0
  %v4374 = vadd.f32 0.0, %v4373
  %v4375 = vpop.f32.mrf.mxu0
  %v4376 = vadd.f32 0.0, %v4375
  %4377 = vdwg.mxu0
  %4378 = vmatpush.bf16.msra.mxu0 %v4077
  %4379 = vmatpush.bf16.msra.mxu0 %v4075
  %4380 = vmatpush.bf16.msra.mxu0 %v4073
  %4381 = vmatpush.bf16.msra.mxu0 %v4071
  %4382 = vmatpush.bf16.msra.mxu0 %v4069
  %4383 = vmatpush.bf16.msra.mxu0 %v4067
  %4384 = vmatpush.bf16.msra.mxu0 %v4065
  %4385 = vmatpush.bf16.msra.mxu0 %v4063
  %4386 = vmatmul.bf16.gmra.mxu0 %v3085
  %v4387 = vpop.f32.mrf.mxu0
  %v4388 = vadd.f32 %v4344, %v4387
  %v4389 = vpop.f32.mrf.mxu0
  %v4390 = vadd.f32 %v4346, %v4389
  %4391 = vmatmul.bf16.gmra.mxu0 %v3089
  %v4392 = vpop.f32.mrf.mxu0
  %v4393 = vadd.f32 %v4349, %v4392
  %v4394 = vpop.f32.mrf.mxu0
  %v4395 = vadd.f32 %v4351, %v4394
  %4396 = vmatmul.bf16.gmra.mxu0 %v3093
  %v4397 = vpop.f32.mrf.mxu0
  %v4398 = vadd.f32 %v4354, %v4397
  %v4399 = vpop.f32.mrf.mxu0
  %v4400 = vadd.f32 %v4356, %v4399
  %4401 = vmatmul.bf16.gmra.mxu0 %v3097
  %v4402 = vpop.f32.mrf.mxu0
  %v4403 = vadd.f32 %v4359, %v4402
  %v4404 = vpop.f32.mrf.mxu0
  %v4405 = vadd.f32 %v4361, %v4404
  %4406 = vmatmul.bf16.gmra.mxu0 %v3101
  %v4407 = vpop.f32.mrf.mxu0
  %v4408 = vadd.f32 %v4364, %v4407
  %v4409 = vpop.f32.mrf.mxu0
  %v4410 = vadd.f32 %v4366, %v4409
  %4411 = vmatmul.bf16.gmra.mxu0 %v3105
  %v4412 = vpop.f32.mrf.mxu0
  %v4413 = vadd.f32 %v4369, %v4412
  %v4414 = vpop.f32.mrf.mxu0
  %v4415 = vadd.f32 %v4371, %v4414
  %4416 = vmatmul.bf16.gmra.mxu0 %v3109
  %v4417 = vpop.f32.mrf.mxu0
  %v4418 = vadd.f32 %v4374, %v4417
  %v4419 = vpop.f32.mrf.mxu0
  %v4420 = vadd.f32 %v4376, %v4419
  %4421 = vdwg.mxu0
  %4422 = vmatpush.bf16.msra.mxu0 %v4093
  %4423 = vmatpush.bf16.msra.mxu0 %v4091
  %4424 = vmatpush.bf16.msra.mxu0 %v4089
  %4425 = vmatpush.bf16.msra.mxu0 %v4087
  %4426 = vmatpush.bf16.msra.mxu0 %v4085
  %4427 = vmatpush.bf16.msra.mxu0 %v4083
  %4428 = vmatpush.bf16.msra.mxu0 %v4081
  %4429 = vmatpush.bf16.msra.mxu0 %v4079
  %4430 = vmatmul.bf16.gmra.mxu0 %v3086
  %v4431 = vpop.f32.mrf.mxu0
  %v4432 = vadd.f32 %v4388, %v4431
  %v4433 = vpop.f32.mrf.mxu0
  %v4434 = vadd.f32 %v4390, %v4433
  %4435 = vmatmul.bf16.gmra.mxu0 %v3090
  %v4436 = vpop.f32.mrf.mxu0
  %v4437 = vadd.f32 %v4393, %v4436
  %v4438 = vpop.f32.mrf.mxu0
  %v4439 = vadd.f32 %v4395, %v4438
  %4440 = vmatmul.bf16.gmra.mxu0 %v3094
  %v4441 = vpop.f32.mrf.mxu0
  %v4442 = vadd.f32 %v4398, %v4441
  %v4443 = vpop.f32.mrf.mxu0
  %v4444 = vadd.f32 %v4400, %v4443
  %4445 = vmatmul.bf16.gmra.mxu0 %v3098
  %v4446 = vpop.f32.mrf.mxu0
  %v4447 = vadd.f32 %v4403, %v4446
  %v4448 = vpop.f32.mrf.mxu0
  %v4449 = vadd.f32 %v4405, %v4448
  %4450 = vmatmul.bf16.gmra.mxu0 %v3102
  %v4451 = vpop.f32.mrf.mxu0
  %v4452 = vadd.f32 %v4408, %v4451
  %v4453 = vpop.f32.mrf.mxu0
  %v4454 = vadd.f32 %v4410, %v4453
  %4455 = vmatmul.bf16.gmra.mxu0 %v3106
  %v4456 = vpop.f32.mrf.mxu0
  %v4457 = vadd.f32 %v4413, %v4456
  %v4458 = vpop.f32.mrf.mxu0
  %v4459 = vadd.f32 %v4415, %v4458
  %4460 = vmatmul.bf16.gmra.mxu0 %v3110
  %v4461 = vpop.f32.mrf.mxu0
  %v4462 = vadd.f32 %v4418, %v4461
  %v4463 = vpop.f32.mrf.mxu0
  %v4464 = vadd.f32 %v4420, %v4463
  %4465 = vdwg.mxu0
  %4466 = vmatpush.bf16.msra.mxu0 0
  %4467 = vmatpush.bf16.msra.mxu0 0
  %4468 = vmatpush.bf16.msra.mxu0 0
  %4469 = vmatpush.bf16.msra.mxu0 0
  %4470 = vmatpush.bf16.msra.mxu0 %v4101
  %4471 = vmatpush.bf16.msra.mxu0 %v4099
  %4472 = vmatpush.bf16.msra.mxu0 %v4097
  %4473 = vmatpush.bf16.msra.mxu0 %v4095
  %4474 = vmatmul.bf16.gmra.mxu0 %v3450
  %v4475 = vpop.f32.mrf.mxu0
  %v4476 = vadd.f32 %v4432, %v4475
  %v4477 = vpop.f32.mrf.mxu0
  %v4478 = vadd.f32 %v4434, %v4477
  %4479 = vmatmul.bf16.gmra.mxu0 %v3453
  %v4480 = vpop.f32.mrf.mxu0
  %v4481 = vadd.f32 %v4437, %v4480
  %v4482 = vpop.f32.mrf.mxu0
  %v4483 = vadd.f32 %v4439, %v4482
  %4484 = vmatmul.bf16.gmra.mxu0 %v3456
  %v4485 = vpop.f32.mrf.mxu0
  %v4486 = vadd.f32 %v4442, %v4485
  %v4487 = vpop.f32.mrf.mxu0
  %v4488 = vadd.f32 %v4444, %v4487
  %4489 = vmatmul.bf16.gmra.mxu0 %v3459
  %v4490 = vpop.f32.mrf.mxu0
  %v4491 = vadd.f32 %v4447, %v4490
  %v4492 = vpop.f32.mrf.mxu0
  %v4493 = vadd.f32 %v4449, %v4492
  %4494 = vmatmul.bf16.gmra.mxu0 %v3462
  %v4495 = vpop.f32.mrf.mxu0
  %v4496 = vadd.f32 %v4452, %v4495
  %v4497 = vpop.f32.mrf.mxu0
  %v4498 = vadd.f32 %v4454, %v4497
  %4499 = vmatmul.bf16.gmra.mxu0 %v3465
  %v4500 = vpop.f32.mrf.mxu0
  %v4501 = vadd.f32 %v4457, %v4500
  %v4502 = vpop.f32.mrf.mxu0
  %v4503 = vadd.f32 %v4459, %v4502
  %4504 = vmatmul.bf16.gmra.mxu0 %v3468
  %v4505 = vpop.f32.mrf.mxu0
  %v4506 = vadd.f32 %v4462, %v4505
  %v4507 = vpop.f32.mrf.mxu0
  %v4508 = vadd.f32 %v4464, %v4507
  %4509 = vdwg.mxu0
  %v4510 = vmax.f32 %v3612, %v4300
  %v4511 = vmax.f32 %v3788, %v4476
  %v4512 = vmax.f32 %v3614, %v4302
  %v4513 = vmax.f32 %v3790, %v4478
  %v4514 = vmax.f32 %v3617, %v4305
  %v4515 = vmax.f32 %v3793, %v4481
  %v4516 = vmax.f32 %v3619, %v4307
  %v4517 = vmax.f32 %v3795, %v4483
  %v4518 = vmax.f32 %v3622, %v4310
  %v4519 = vmax.f32 %v3798, %v4486
  %v4520 = vmax.f32 %v3624, %v4312
  %v4521 = vmax.f32 %v3800, %v4488
  %v4522 = vmax.f32 %v3627, %v4315
  %v4523 = vmax.f32 %v3803, %v4491
  %v4524 = vmax.f32 %v3629, %v4317
  %v4525 = vmax.f32 %v3805, %v4493
  %v4526 = vmax.f32 %v3632, %v4320
  %v4527 = vmax.f32 %v3808, %v4496
  %v4528 = vmax.f32 %v3634, %v4322
  %v4529 = vmax.f32 %v3810, %v4498
  %v4530 = vmax.f32 %v3637, %v4325
  %v4531 = vmax.f32 %v3813, %v4501
  %v4532 = vmax.f32 %v3639, %v4327
  %v4533 = vmax.f32 %v3815, %v4503
  %v4534 = vmax.f32 %v3642, %v4330
  %v4535 = vmax.f32 %v3818, %v4506
  %v4536 = vmax.f32 %v3644, %v4332
  %v4537 = vmax.f32 %v3820, %v4508
  %v4538 = vpack.c.bf16 %v4511, %v4510
  %v4539 = vpack.c.bf16 %v4513, %v4512
  %v4540 = vpack.c.bf16 %v4515, %v4514
  %v4541 = vpack.c.bf16 %v4517, %v4516
  %v4542 = vpack.c.bf16 %v4519, %v4518
  %v4543 = vpack.c.bf16 %v4521, %v4520
  %v4544 = vpack.c.bf16 %v4523, %v4522
  %v4545 = vpack.c.bf16 %v4525, %v4524
  %v4546 = vpack.c.bf16 %v4527, %v4526
  %v4547 = vpack.c.bf16 %v4529, %v4528
  %v4548 = vpack.c.bf16 %v4531, %v4530
  %v4549 = vpack.c.bf16 %v4533, %v4532
  %v4550 = vpack.c.bf16 %v4535, %v4534
  %v4551 = vpack.c.bf16 %v4537, %v4536
  %v4552 = vld [vmem:[%s3] sm:$0xff]
  %v4553 = vld [vmem:[%s3 + $0x8] sm:$0xf]
  %v4554 = vld [vmem:[%s3 + $0xc] sm:$0xff]
  %v4555 = vld [vmem:[%s3 + $0x14] sm:$0xf]
  %v4556 = vld [vmem:[%s3 + $0x18] sm:$0xff]
  %v4557 = vld [vmem:[%s3 + $0x20] sm:$0xf]
  %v4558 = vld [vmem:[%s3 + $0x24] sm:$0xff]
  %v4559 = vld [vmem:[%s3 + $0x2c] sm:$0xf]
  %v4560 = vld [vmem:[%s3 + $0x30] sm:$0xff]
  %v4561 = vld [vmem:[%s3 + $0x38] sm:$0xf]
  %v4562 = vld [vmem:[%s3 + $0x3c] sm:$0xff]
  %v4563 = vld [vmem:[%s3 + $0x44] sm:$0xf]
  %v4564 = vld [vmem:[%s3 + $0x48] sm:$0xff]
  %v4565 = vld [vmem:[%s3 + $0x50] sm:$0xf]
  %v4566 = vld [vmem:[%s3 + $0x54] sm:$0xff]
  %v4567 = vld [vmem:[%s3 + $0x5c] sm:$0xf]
  %v4568 = vld [vmem:[%s3 + $0x60] sm:$0xff]
  %v4569 = vld [vmem:[%s3 + $0x68] sm:$0xf]
  %v4570 = vld [vmem:[%s3 + $0x6c] sm:$0xff]
  %v4571 = vld [vmem:[%s3 + $0x74] sm:$0xf]
  %v4572 = vld [vmem:[%s3 + $0x78] sm:$0xff]
  %v4573 = vld [vmem:[%s3 + $0x80] sm:$0xf]
  %v4574 = vld [vmem:[%s3 + $0x84] sm:$0xff]
  %v4575 = vld [vmem:[%s3 + $0x8c] sm:$0xf]
  %v4576 = vld [vmem:[%s3 + $0x90] sm:$0xff]
  %v4577 = vld [vmem:[%s3 + $0x98] sm:$0xf]
  %v4578 = vld [vmem:[%s3 + $0x9c] sm:$0xff]
  %v4579 = vld [vmem:[%s3 + $0xa4] sm:$0xf]
  %v4580 = vld [vmem:[%s3 + $0xa8] sm:$0xff]
  %v4581 = vld [vmem:[%s3 + $0xb0] sm:$0xf]
  %v4582 = vld [vmem:[%s3 + $0xb4] sm:$0xff]
  %v4583 = vld [vmem:[%s3 + $0xbc] sm:$0xf]
  %v4584 = vld [vmem:[%s3 + $0xc0] sm:$0xff]
  %v4585 = vld [vmem:[%s3 + $0xc8] sm:$0xf]
  %v4586 = vld [vmem:[%s3 + $0xcc] sm:$0xff]
  %v4587 = vld [vmem:[%s3 + $0xd4] sm:$0xf]
  %v4588 = vld [vmem:[%s3 + $0xd8] sm:$0xff]
  %v4589 = vld [vmem:[%s3 + $0xe0] sm:$0xf]
  %v4590 = vld [vmem:[%s3 + $0xe4] sm:$0xff]
  %v4591 = vld [vmem:[%s3 + $0xec] sm:$0xf]
  %v4592 = vld [vmem:[%s3 + $0xf0] sm:$0xff]
  %v4593 = vld [vmem:[%s3 + $0xf8] sm:$0xf]
  %v4594 = vld [vmem:[%s3 + $0xfc] sm:$0xff]
  %v4595 = vld [vmem:[%s3 + $0x104] sm:$0xf]
  %v4596 = vld [vmem:[%s3 + $0x108] sm:$0xff]
  %v4597 = vld [vmem:[%s3 + $0x110] sm:$0xf]
  %v4598 = vld [vmem:[%s3 + $0x114] sm:$0xff]
  %v4599 = vld [vmem:[%s3 + $0x11c] sm:$0xf]
  %v4600 = vld [vmem:[%s3 + $0x120] sm:$0xff]
  %v4601 = vld [vmem:[%s3 + $0x128] sm:$0xf]
  %v4602 = vld [vmem:[%s3 + $0x12c] sm:$0xff]
  %v4603 = vld [vmem:[%s3 + $0x134] sm:$0xf]
  %v4604 = vld [vmem:[%s3 + $0x138] sm:$0xff]
  %v4605 = vld [vmem:[%s3 + $0x140] sm:$0xf]
  %v4606 = vld [vmem:[%s3 + $0x144] sm:$0xff]
  %v4607 = vld [vmem:[%s3 + $0x14c] sm:$0xf]
  %s4608 = scalar_lea.vmem %s3, 336
  %v4609 = vld [vmem:[%s4608] sm:$0xff]
  %v4610 = vld [vmem:[%s4608 + $0x8] sm:$0xf]
  %v4611 = vld [vmem:[%s4608 + $0xc] sm:$0xff]
  %v4612 = vld [vmem:[%s4608 + $0x14] sm:$0xf]
  %v4613 = vld [vmem:[%s4608 + $0x18] sm:$0xff]
  %v4614 = vld [vmem:[%s4608 + $0x20] sm:$0xf]
  %v4615 = vld [vmem:[%s4608 + $0x24] sm:$0xff]
  %v4616 = vld [vmem:[%s4608 + $0x2c] sm:$0xf]
  %v4617 = vld [vmem:[%s4608 + $0x30] sm:$0xff]
  %v4618 = vld [vmem:[%s4608 + $0x38] sm:$0xf]
  %v4619 = vld [vmem:[%s4608 + $0x3c] sm:$0xff]
  %v4620 = vld [vmem:[%s4608 + $0x44] sm:$0xf]
  %v4621 = vld [vmem:[%s4608 + $0x48] sm:$0xff]
  %v4622 = vld [vmem:[%s4608 + $0x50] sm:$0xf]
  %v4623 = vld [vmem:[%s4608 + $0x54] sm:$0xff]
  %v4624 = vld [vmem:[%s4608 + $0x5c] sm:$0xf]
  %v4625 = vld [vmem:[%s4608 + $0x60] sm:$0xff]
  %v4626 = vld [vmem:[%s4608 + $0x68] sm:$0xf]
  %v4627 = vld [vmem:[%s4608 + $0x6c] sm:$0xff]
  %v4628 = vld [vmem:[%s4608 + $0x74] sm:$0xf]
  %v4629 = vld [vmem:[%s4608 + $0x78] sm:$0xff]
  %v4630 = vld [vmem:[%s4608 + $0x80] sm:$0xf]
  %v4631 = vld [vmem:[%s4608 + $0x84] sm:$0xff]
  %v4632 = vld [vmem:[%s4608 + $0x8c] sm:$0xf]
  %v4633 = vld [vmem:[%s4608 + $0x90] sm:$0xff]
  %v4634 = vld [vmem:[%s4608 + $0x98] sm:$0xf]
  %v4635 = vld [vmem:[%s4608 + $0x9c] sm:$0xff]
  %v4636 = vld [vmem:[%s4608 + $0xa4] sm:$0xf]
  %v4637 = vld [vmem:[%s4608 + $0xa8] sm:$0xff]
  %v4638 = vld [vmem:[%s4608 + $0xb0] sm:$0xf]
  %v4639 = vld [vmem:[%s4608 + $0xb4] sm:$0xff]
  %v4640 = vld [vmem:[%s4608 + $0xbc] sm:$0xf]
  %v4641 = vld [vmem:[%s4608 + $0xc0] sm:$0xff]
  %v4642 = vld [vmem:[%s4608 + $0xc8] sm:$0xf]
  %v4643 = vld [vmem:[%s4608 + $0xcc] sm:$0xff]
  %v4644 = vld [vmem:[%s4608 + $0xd4] sm:$0xf]
  %v4645 = vld [vmem:[%s4608 + $0xd8] sm:$0xff]
  %v4646 = vld [vmem:[%s4608 + $0xe0] sm:$0xf]
  %v4647 = vld [vmem:[%s4608 + $0xe4] sm:$0xff]
  %v4648 = vld [vmem:[%s4608 + $0xec] sm:$0xf]
  %v4649 = vld [vmem:[%s4608 + $0xf0] sm:$0xff]
  %v4650 = vld [vmem:[%s4608 + $0xf8] sm:$0xf]
  %v4651 = vld [vmem:[%s4608 + $0xfc] sm:$0xff]
  %v4652 = vld [vmem:[%s4608 + $0x104] sm:$0xf]
  %v4653 = vld [vmem:[%s4608 + $0x108] sm:$0xff]
  %v4654 = vld [vmem:[%s4608 + $0x110] sm:$0xf]
  %v4655 = vld [vmem:[%s4608 + $0x114] sm:$0xff]
  %v4656 = vld [vmem:[%s4608 + $0x11c] sm:$0xf]
  %v4657 = vld [vmem:[%s4608 + $0x120] sm:$0xff]
  %v4658 = vld [vmem:[%s4608 + $0x128] sm:$0xf]
  %v4659 = vld [vmem:[%s4608 + $0x12c] sm:$0xff]
  %v4660 = vld [vmem:[%s4608 + $0x134] sm:$0xf]
  %v4661 = vld [vmem:[%s4608 + $0x138] sm:$0xff]
  %v4662 = vld [vmem:[%s4608 + $0x140] sm:$0xf]
  %v4663 = vld [vmem:[%s4608 + $0x144] sm:$0xff]
  %v4664 = vld [vmem:[%s4608 + $0x14c] sm:$0xf]
  %v4675 = vunpack.c.l.b16 %v4539
  %v4676 = vunpack.c.h.b16 %v4539
  %v4677 = vunpack.c.l.b16 %v4540
  %v4678 = vunpack.c.h.b16 %v4540
  %v4679 = vunpack.c.l.b16 %v4541
  %v4680 = vunpack.c.h.b16 %v4541
  %v4681 = vunpack.c.l.b16 %v4542
  %v4682 = vunpack.c.h.b16 %v4542
  %v4683 = vunpack.c.l.b16 %v4543
  %v4684 = vunpack.c.h.b16 %v4543
  %v4685 = vunpack.c.l.b16 %v4544
  %v4686 = vunpack.c.h.b16 %v4544
  %v4687 = vunpack.c.l.b16 %v4545
  %v4688 = vunpack.c.h.b16 %v4545
  %v4689 = vunpack.c.l.b16 %v4546
  %v4690 = vunpack.c.h.b16 %v4546
  %v4691 = vunpack.c.l.b16 %v4547
  %v4692 = vunpack.c.h.b16 %v4547
  %v4693 = vunpack.c.l.b16 %v4548
  %v4694 = vunpack.c.h.b16 %v4548
  %v4695 = vpack.c.b16 %v4677, %v4675
  %v4696 = vpack.c.b16 %v4678, %v4676
  %v4697 = vpack.c.b16 %v4681, %v4679
  %v4698 = vpack.c.b16 %v4682, %v4680
  %v4699 = vpack.c.b16 %v4685, %v4683
  %v4700 = vpack.c.b16 %v4686, %v4684
  %v4701 = vpack.c.b16 %v4689, %v4687
  %v4702 = vpack.c.b16 %v4690, %v4688
  %v4703 = vpack.c.b16 %v4693, %v4691
  %v4704 = vpack.c.b16 %v4694, %v4692
  %v4766 = vunpack.c.l.b16 %v4609
  %v4767 = vunpack.c.h.b16 %v4609
  %v4768 = vunpack.c.l.b16 %v4610
  %v4769 = vunpack.c.l.b16 %v4611
  %v4770 = vunpack.c.h.b16 %v4611
  %v4771 = vunpack.c.l.b16 %v4612
  %v4772 = vunpack.c.l.b16 %v4613
  %v4773 = vunpack.c.h.b16 %v4613
  %v4774 = vunpack.c.l.b16 %v4614
  %v4775 = vunpack.c.l.b16 %v4615
  %v4776 = vunpack.c.h.b16 %v4615
  %v4777 = vunpack.c.l.b16 %v4616
  %v4778 = vunpack.c.l.b16 %v4617
  %v4779 = vunpack.c.h.b16 %v4617
  %v4780 = vunpack.c.l.b16 %v4618
  %v4781 = vunpack.c.l.b16 %v4619
  %v4782 = vunpack.c.h.b16 %v4619
  %v4783 = vunpack.c.l.b16 %v4620
  %v4784 = vunpack.c.l.b16 %v4621
  %v4785 = vunpack.c.h.b16 %v4621
  %v4786 = vunpack.c.l.b16 %v4622
  %v4787 = vunpack.c.l.b16 %v4623
  %v4788 = vunpack.c.h.b16 %v4623
  %v4789 = vunpack.c.l.b16 %v4624
  %v4790 = vunpack.c.l.b16 %v4625
  %v4791 = vunpack.c.h.b16 %v4625
  %v4792 = vunpack.c.l.b16 %v4626
  %v4793 = vunpack.c.l.b16 %v4627
  %v4794 = vunpack.c.h.b16 %v4627
  %v4795 = vunpack.c.l.b16 %v4628
  %v4796 = vunpack.c.l.b16 %v4629
  %v4797 = vunpack.c.h.b16 %v4629
  %v4798 = vunpack.c.l.b16 %v4630
  %v4799 = vunpack.c.l.b16 %v4631
  %v4800 = vunpack.c.h.b16 %v4631
  %v4801 = vunpack.c.l.b16 %v4632
  %v4802 = vunpack.c.l.b16 %v4633
  %v4803 = vunpack.c.h.b16 %v4633
  %v4804 = vunpack.c.l.b16 %v4634
  %v4805 = vunpack.c.l.b16 %v4635
  %v4806 = vunpack.c.h.b16 %v4635
  %v4807 = vunpack.c.l.b16 %v4636
  %v4808 = vunpack.c.l.b16 %v4637
  %v4809 = vunpack.c.h.b16 %v4637
  %v4810 = vunpack.c.l.b16 %v4638
  %v4811 = vunpack.c.l.b16 %v4639
  %v4812 = vunpack.c.h.b16 %v4639
  %v4813 = vunpack.c.l.b16 %v4640
  %v4814 = vunpack.c.l.b16 %v4641
  %v4815 = vunpack.c.h.b16 %v4641
  %v4816 = vunpack.c.l.b16 %v4642
  %v4817 = vunpack.c.l.b16 %v4643
  %v4818 = vunpack.c.h.b16 %v4643
  %v4819 = vunpack.c.l.b16 %v4644
  %v4820 = vunpack.c.l.b16 %v4645
  %v4821 = vunpack.c.h.b16 %v4645
  %v4822 = vunpack.c.l.b16 %v4646
  %v4823 = vunpack.c.l.b16 %v4647
  %v4824 = vunpack.c.h.b16 %v4647
  %v4825 = vunpack.c.l.b16 %v4648
  %v4826 = vunpack.c.l.b16 %v4649
  %v4827 = vunpack.c.h.b16 %v4649
  %v4828 = vunpack.c.l.b16 %v4650
  %v4829 = vunpack.c.l.b16 %v4651
  %v4830 = vunpack.c.h.b16 %v4651
  %v4831 = vunpack.c.l.b16 %v4652
  %v4832 = vunpack.c.l.b16 %v4653
  %v4833 = vunpack.c.h.b16 %v4653
  %v4834 = vunpack.c.l.b16 %v4654
  %v4835 = vunpack.c.l.b16 %v4655
  %v4836 = vunpack.c.h.b16 %v4655
  %v4837 = vunpack.c.l.b16 %v4656
  %v4838 = vunpack.c.l.b16 %v4657
  %v4839 = vunpack.c.h.b16 %v4657
  %v4840 = vunpack.c.l.b16 %v4658
  %v4841 = vunpack.c.l.b16 %v4659
  %v4842 = vunpack.c.h.b16 %v4659
  %v4843 = vunpack.c.l.b16 %v4660
  %v4844 = vunpack.c.l.b16 %v4661
  %v4845 = vunpack.c.h.b16 %v4661
  %v4846 = vunpack.c.l.b16 %v4662
  %v4847 = vunpack.c.l.b16 %v4663
  %v4848 = vunpack.c.h.b16 %v4663
  %v4849 = vunpack.c.l.b16 %v4664
  %v4850 = vpack.c.b16 %v4769, %v4766
  %v4851 = vpack.c.b16 %v4770, %v4767
  %v4852 = vpack.c.b16 %v4771, %v4768
  %v4853 = vpack.c.b16 %v4775, %v4772
  %v4854 = vpack.c.b16 %v4776, %v4773
  %v4855 = vpack.c.b16 %v4777, %v4774
  %v4856 = vpack.c.b16 %v4781, %v4778
  %v4857 = vpack.c.b16 %v4782, %v4779
  %v4858 = vpack.c.b16 %v4783, %v4780
  %v4859 = vpack.c.b16 %v4787, %v4784
  %v4860 = vpack.c.b16 %v4788, %v4785
  %v4861 = vpack.c.b16 %v4789, %v4786
  %v4862 = vpack.c.b16 %v4793, %v4790
  %v4863 = vpack.c.b16 %v4794, %v4791
  %v4864 = vpack.c.b16 %v4795, %v4792
  %v4865 = vpack.c.b16 %v4799, %v4796
  %v4866 = vpack.c.b16 %v4800, %v4797
  %v4867 = vpack.c.b16 %v4801, %v4798
  %v4868 = vpack.c.b16 %v4805, %v4802
  %v4869 = vpack.c.b16 %v4806, %v4803
  %v4870 = vpack.c.b16 %v4807, %v4804
  %v4871 = vpack.c.b16 %v4811, %v4808
  %v4872 = vpack.c.b16 %v4812, %v4809
  %v4873 = vpack.c.b16 %v4813, %v4810
  %v4874 = vpack.c.b16 %v4817, %v4814
  %v4875 = vpack.c.b16 %v4818, %v4815
  %v4876 = vpack.c.b16 %v4819, %v4816
  %v4877 = vpack.c.b16 %v4823, %v4820
  %v4878 = vpack.c.b16 %v4824, %v4821
  %v4879 = vpack.c.b16 %v4825, %v4822
  %v4880 = vpack.c.b16 %v4829, %v4826
  %v4881 = vpack.c.b16 %v4830, %v4827
  %v4882 = vpack.c.b16 %v4831, %v4828
  %v4883 = vpack.c.b16 %v4835, %v4832
  %v4884 = vpack.c.b16 %v4836, %v4833
  %v4885 = vpack.c.b16 %v4837, %v4834
  %v4886 = vpack.c.b16 %v4841, %v4838
  %v4887 = vpack.c.b16 %v4842, %v4839
  %v4888 = vpack.c.b16 %v4843, %v4840
  %v4889 = vpack.c.b16 %v4847, %v4844
  %v4890 = vpack.c.b16 %v4848, %v4845
  %v4891 = vpack.c.b16 %v4849, %v4846
  %v4935 = vsel %vm316, %v4696, 0
  %v4938 = vsel %vm316, %v4698, 0
  %v4941 = vsel %vm316, %v4700, 0
  %v4944 = vsel %vm316, %v4702, 0
  %v4947 = vsel %vm316, %v4704, 0
  %4949 = vmatpush.bf16.msra.mxu0 %v4871
  %4950 = vmatpush.bf16.msra.mxu0 %v4868
  %4951 = vmatpush.bf16.msra.mxu0 %v4865
  %4952 = vmatpush.bf16.msra.mxu0 %v4862
  %4953 = vmatpush.bf16.msra.mxu0 %v4859
  %4954 = vmatpush.bf16.msra.mxu0 %v4856
  %4955 = vmatpush.bf16.msra.mxu0 %v4853
  %4956 = vmatpush.bf16.msra.mxu0 %v4850
  %4957 = vmatmul.bf16.gmra.mxu0 %v4695
  %v4958 = vpop.f32.mrf.mxu0
  %v4959 = vadd.f32 0.0, %v4958
  %v4960 = vpop.f32.mrf.mxu0
  %v4961 = vadd.f32 0.0, %v4960
  %4962 = vmatmul.bf16.gmra.mxu0 %v4697
  %v4963 = vpop.f32.mrf.mxu0
  %v4964 = vadd.f32 0.0, %v4963
  %v4965 = vpop.f32.mrf.mxu0
  %v4966 = vadd.f32 0.0, %v4965
  %4967 = vmatmul.bf16.gmra.mxu0 %v4699
  %v4968 = vpop.f32.mrf.mxu0
  %v4969 = vadd.f32 0.0, %v4968
  %v4970 = vpop.f32.mrf.mxu0
  %v4971 = vadd.f32 0.0, %v4970
  %4972 = vmatmul.bf16.gmra.mxu0 %v4701
  %v4973 = vpop.f32.mrf.mxu0
  %v4974 = vadd.f32 0.0, %v4973
  %v4975 = vpop.f32.mrf.mxu0
  %v4976 = vadd.f32 0.0, %v4975
  %4977 = vmatmul.bf16.gmra.mxu0 %v4703
  %v4978 = vpop.f32.mrf.mxu0
  %v4979 = vadd.f32 0.0, %v4978
  %v4980 = vpop.f32.mrf.mxu0
  %v4981 = vadd.f32 0.0, %v4980
  %4982 = vdwg.mxu0
  %4983 = vmatpush.bf16.msra.mxu0 0
  %4984 = vmatpush.bf16.msra.mxu0 0
  %4985 = vmatpush.bf16.msra.mxu0 %v4889
  %4986 = vmatpush.bf16.msra.mxu0 %v4886
  %4987 = vmatpush.bf16.msra.mxu0 %v4883
  %4988 = vmatpush.bf16.msra.mxu0 %v4880
  %4989 = vmatpush.bf16.msra.mxu0 %v4877
  %4990 = vmatpush.bf16.msra.mxu0 %v4874
  %4991 = vmatmul.bf16.gmra.mxu0 %v4935
  %v4992 = vpop.f32.mrf.mxu0
  %v4993 = vadd.f32 %v4959, %v4992
  %v4994 = vpop.f32.mrf.mxu0
  %v4995 = vadd.f32 %v4961, %v4994
  %4996 = vmatmul.bf16.gmra.mxu0 %v4938
  %v4997 = vpop.f32.mrf.mxu0
  %v4998 = vadd.f32 %v4964, %v4997
  %v4999 = vpop.f32.mrf.mxu0
  %v5000 = vadd.f32 %v4966, %v4999
  %5001 = vmatmul.bf16.gmra.mxu0 %v4941
  %v5002 = vpop.f32.mrf.mxu0
  %v5003 = vadd.f32 %v4969, %v5002
  %v5004 = vpop.f32.mrf.mxu0
  %v5005 = vadd.f32 %v4971, %v5004
  %5006 = vmatmul.bf16.gmra.mxu0 %v4944
  %v5007 = vpop.f32.mrf.mxu0
  %v5008 = vadd.f32 %v4974, %v5007
  %v5009 = vpop.f32.mrf.mxu0
  %v5010 = vadd.f32 %v4976, %v5009
  %5011 = vmatmul.bf16.gmra.mxu0 %v4947
  %v5012 = vpop.f32.mrf.mxu0
  %v5013 = vadd.f32 %v4979, %v5012
  %v5014 = vpop.f32.mrf.mxu0
  %v5015 = vadd.f32 %v4981, %v5014
  %5016 = vdwg.mxu0
  %5017 = vmatpush.bf16.msra.mxu0 %v4872
  %5018 = vmatpush.bf16.msra.mxu0 %v4869
  %5019 = vmatpush.bf16.msra.mxu0 %v4866
  %5020 = vmatpush.bf16.msra.mxu0 %v4863
  %5021 = vmatpush.bf16.msra.mxu0 %v4860
  %5022 = vmatpush.bf16.msra.mxu0 %v4857
  %5023 = vmatpush.bf16.msra.mxu0 %v4854
  %5024 = vmatpush.bf16.msra.mxu0 %v4851
  %5025 = vmatmul.bf16.gmra.mxu0 %v4695
  %v5026 = vpop.f32.mrf.mxu0
  %v5027 = vadd.f32 0.0, %v5026
  %v5028 = vpop.f32.mrf.mxu0
  %v5029 = vadd.f32 0.0, %v5028
  %5030 = vmatmul.bf16.gmra.mxu0 %v4697
  %v5031 = vpop.f32.mrf.mxu0
  %v5032 = vadd.f32 0.0, %v5031
  %v5033 = vpop.f32.mrf.mxu0
  %v5034 = vadd.f32 0.0, %v5033
  %5035 = vmatmul.bf16.gmra.mxu0 %v4699
  %v5036 = vpop.f32.mrf.mxu0
  %v5037 = vadd.f32 0.0, %v5036
  %v5038 = vpop.f32.mrf.mxu0
  %v5039 = vadd.f32 0.0, %v5038
  %5040 = vmatmul.bf16.gmra.mxu0 %v4701
  %v5041 = vpop.f32.mrf.mxu0
  %v5042 = vadd.f32 0.0, %v5041
  %v5043 = vpop.f32.mrf.mxu0
  %v5044 = vadd.f32 0.0, %v5043
  %5045 = vmatmul.bf16.gmra.mxu0 %v4703
  %v5046 = vpop.f32.mrf.mxu0
  %v5047 = vadd.f32 0.0, %v5046
  %v5048 = vpop.f32.mrf.mxu0
  %v5049 = vadd.f32 0.0, %v5048
  %5050 = vdwg.mxu0
  %5051 = vmatpush.bf16.msra.mxu0 0
  %5052 = vmatpush.bf16.msra.mxu0 0
  %5053 = vmatpush.bf16.msra.mxu0 %v4890
  %5054 = vmatpush.bf16.msra.mxu0 %v4887
  %5055 = vmatpush.bf16.msra.mxu0 %v4884
  %5056 = vmatpush.bf16.msra.mxu0 %v4881
  %5057 = vmatpush.bf16.msra.mxu0 %v4878
  %5058 = vmatpush.bf16.msra.mxu0 %v4875
  %5059 = vmatmul.bf16.gmra.mxu0 %v4935
  %v5060 = vpop.f32.mrf.mxu0
  %v5061 = vadd.f32 %v5027, %v5060
  %v5062 = vpop.f32.mrf.mxu0
  %v5063 = vadd.f32 %v5029, %v5062
  %5064 = vmatmul.bf16.gmra.mxu0 %v4938
  %v5065 = vpop.f32.mrf.mxu0
  %v5066 = vadd.f32 %v5032, %v5065
  %v5067 = vpop.f32.mrf.mxu0
  %v5068 = vadd.f32 %v5034, %v5067
  %5069 = vmatmul.bf16.gmra.mxu0 %v4941
  %v5070 = vpop.f32.mrf.mxu0
  %v5071 = vadd.f32 %v5037, %v5070
  %v5072 = vpop.f32.mrf.mxu0
  %v5073 = vadd.f32 %v5039, %v5072
  %5074 = vmatmul.bf16.gmra.mxu0 %v4944
  %v5075 = vpop.f32.mrf.mxu0
  %v5076 = vadd.f32 %v5042, %v5075
  %v5077 = vpop.f32.mrf.mxu0
  %v5078 = vadd.f32 %v5044, %v5077
  %5079 = vmatmul.bf16.gmra.mxu0 %v4947
  %v5080 = vpop.f32.mrf.mxu0
  %v5081 = vadd.f32 %v5047, %v5080
  %v5082 = vpop.f32.mrf.mxu0
  %v5083 = vadd.f32 %v5049, %v5082
  %5084 = vdwg.mxu0
  %5085 = vmatpush.bf16.msra.mxu0 %v4873
  %5086 = vmatpush.bf16.msra.mxu0 %v4870
  %5087 = vmatpush.bf16.msra.mxu0 %v4867
  %5088 = vmatpush.bf16.msra.mxu0 %v4864
  %5089 = vmatpush.bf16.msra.mxu0 %v4861
  %5090 = vmatpush.bf16.msra.mxu0 %v4858
  %5091 = vmatpush.bf16.msra.mxu0 %v4855
  %5092 = vmatpush.bf16.msra.mxu0 %v4852
  %5093 = vmatmul.bf16.gmra.mxu0 %v4695
  %v5094 = vpop.f32.mrf.mxu0
  %v5095 = vadd.f32 0.0, %v5094
  %v5096 = vpop.f32.mrf.mxu0
  %v5097 = vadd.f32 0.0, %v5096
  %5098 = vmatmul.bf16.gmra.mxu0 %v4697
  %v5099 = vpop.f32.mrf.mxu0
  %v5100 = vadd.f32 0.0, %v5099
  %v5101 = vpop.f32.mrf.mxu0
  %v5102 = vadd.f32 0.0, %v5101
  %5103 = vmatmul.bf16.gmra.mxu0 %v4699
  %v5104 = vpop.f32.mrf.mxu0
  %v5105 = vadd.f32 0.0, %v5104
  %v5106 = vpop.f32.mrf.mxu0
  %v5107 = vadd.f32 0.0, %v5106
  %5108 = vmatmul.bf16.gmra.mxu0 %v4701
  %v5109 = vpop.f32.mrf.mxu0
  %v5110 = vadd.f32 0.0, %v5109
  %v5111 = vpop.f32.mrf.mxu0
  %v5112 = vadd.f32 0.0, %v5111
  %5113 = vmatmul.bf16.gmra.mxu0 %v4703
  %v5114 = vpop.f32.mrf.mxu0
  %v5115 = vadd.f32 0.0, %v5114
  %v5116 = vpop.f32.mrf.mxu0
  %v5117 = vadd.f32 0.0, %v5116
  %5118 = vdwg.mxu0
  %5119 = vmatpush.bf16.msra.mxu0 0
  %5120 = vmatpush.bf16.msra.mxu0 0
  %5121 = vmatpush.bf16.msra.mxu0 %v4891
  %5122 = vmatpush.bf16.msra.mxu0 %v4888
  %5123 = vmatpush.bf16.msra.mxu0 %v4885
  %5124 = vmatpush.bf16.msra.mxu0 %v4882
  %5125 = vmatpush.bf16.msra.mxu0 %v4879
  %5126 = vmatpush.bf16.msra.mxu0 %v4876
  %5127 = vmatmul.bf16.gmra.mxu0 %v4935
  %v5128 = vpop.f32.mrf.mxu0
  %v5129 = vadd.f32 %v5095, %v5128
  %v5130 = vpop.f32.mrf.mxu0
  %v5131 = vadd.f32 %v5097, %v5130
  %5132 = vmatmul.bf16.gmra.mxu0 %v4938
  %v5133 = vpop.f32.mrf.mxu0
  %v5134 = vadd.f32 %v5100, %v5133
  %v5135 = vpop.f32.mrf.mxu0
  %v5136 = vadd.f32 %v5102, %v5135
  %5137 = vmatmul.bf16.gmra.mxu0 %v4941
  %v5138 = vpop.f32.mrf.mxu0
  %v5139 = vadd.f32 %v5105, %v5138
  %v5140 = vpop.f32.mrf.mxu0
  %v5141 = vadd.f32 %v5107, %v5140
  %5142 = vmatmul.bf16.gmra.mxu0 %v4944
  %v5143 = vpop.f32.mrf.mxu0
  %v5144 = vadd.f32 %v5110, %v5143
  %v5145 = vpop.f32.mrf.mxu0
  %v5146 = vadd.f32 %v5112, %v5145
  %5147 = vmatmul.bf16.gmra.mxu0 %v4947
  %v5148 = vpop.f32.mrf.mxu0
  %v5149 = vadd.f32 %v5115, %v5148
  %v5150 = vpop.f32.mrf.mxu0
  %v5151 = vadd.f32 %v5117, %v5150
  %5152 = vdwg.mxu0
  %v5154 = vunpack.c.l.b16 %v4538
  %v5155 = vunpack.c.h.b16 %v4538
  %v5156 = vpack.c.b16 %v4675, %v5154
  %v5157 = vpack.c.b16 %v4676, %v5155
  %v5158 = vpack.c.b16 %v4679, %v4677
  %v5159 = vpack.c.b16 %v4680, %v4678
  %v5160 = vpack.c.b16 %v4683, %v4681
  %v5161 = vpack.c.b16 %v4684, %v4682
  %v5162 = vpack.c.b16 %v4687, %v4685
  %v5163 = vpack.c.b16 %v4688, %v4686
  %v5164 = vpack.c.b16 %v4691, %v4689
  %v5165 = vpack.c.b16 %v4692, %v4690
  %v5227 = vunpack.c.l.b16 %v4552
  %v5228 = vunpack.c.h.b16 %v4552
  %v5229 = vunpack.c.l.b16 %v4553
  %v5230 = vunpack.c.l.b16 %v4554
  %v5231 = vunpack.c.h.b16 %v4554
  %v5232 = vunpack.c.l.b16 %v4555
  %v5233 = vunpack.c.l.b16 %v4556
  %v5234 = vunpack.c.h.b16 %v4556
  %v5235 = vunpack.c.l.b16 %v4557
  %v5236 = vunpack.c.l.b16 %v4558
  %v5237 = vunpack.c.h.b16 %v4558
  %v5238 = vunpack.c.l.b16 %v4559
  %v5239 = vunpack.c.l.b16 %v4560
  %v5240 = vunpack.c.h.b16 %v4560
  %v5241 = vunpack.c.l.b16 %v4561
  %v5242 = vunpack.c.l.b16 %v4562
  %v5243 = vunpack.c.h.b16 %v4562
  %v5244 = vunpack.c.l.b16 %v4563
  %v5245 = vunpack.c.l.b16 %v4564
  %v5246 = vunpack.c.h.b16 %v4564
  %v5247 = vunpack.c.l.b16 %v4565
  %v5248 = vunpack.c.l.b16 %v4566
  %v5249 = vunpack.c.h.b16 %v4566
  %v5250 = vunpack.c.l.b16 %v4567
  %v5251 = vunpack.c.l.b16 %v4568
  %v5252 = vunpack.c.h.b16 %v4568
  %v5253 = vunpack.c.l.b16 %v4569
  %v5254 = vunpack.c.l.b16 %v4570
  %v5255 = vunpack.c.h.b16 %v4570
  %v5256 = vunpack.c.l.b16 %v4571
  %v5257 = vunpack.c.l.b16 %v4572
  %v5258 = vunpack.c.h.b16 %v4572
  %v5259 = vunpack.c.l.b16 %v4573
  %v5260 = vunpack.c.l.b16 %v4574
  %v5261 = vunpack.c.h.b16 %v4574
  %v5262 = vunpack.c.l.b16 %v4575
  %v5263 = vunpack.c.l.b16 %v4576
  %v5264 = vunpack.c.h.b16 %v4576
  %v5265 = vunpack.c.l.b16 %v4577
  %v5266 = vunpack.c.l.b16 %v4578
  %v5267 = vunpack.c.h.b16 %v4578
  %v5268 = vunpack.c.l.b16 %v4579
  %v5269 = vunpack.c.l.b16 %v4580
  %v5270 = vunpack.c.h.b16 %v4580
  %v5271 = vunpack.c.l.b16 %v4581
  %v5272 = vunpack.c.l.b16 %v4582
  %v5273 = vunpack.c.h.b16 %v4582
  %v5274 = vunpack.c.l.b16 %v4583
  %v5275 = vunpack.c.l.b16 %v4584
  %v5276 = vunpack.c.h.b16 %v4584
  %v5277 = vunpack.c.l.b16 %v4585
  %v5278 = vunpack.c.l.b16 %v4586
  %v5279 = vunpack.c.h.b16 %v4586
  %v5280 = vunpack.c.l.b16 %v4587
  %v5281 = vunpack.c.l.b16 %v4588
  %v5282 = vunpack.c.h.b16 %v4588
  %v5283 = vunpack.c.l.b16 %v4589
  %v5284 = vunpack.c.l.b16 %v4590
  %v5285 = vunpack.c.h.b16 %v4590
  %v5286 = vunpack.c.l.b16 %v4591
  %v5287 = vunpack.c.l.b16 %v4592
  %v5288 = vunpack.c.h.b16 %v4592
  %v5289 = vunpack.c.l.b16 %v4593
  %v5290 = vunpack.c.l.b16 %v4594
  %v5291 = vunpack.c.h.b16 %v4594
  %v5292 = vunpack.c.l.b16 %v4595
  %v5293 = vunpack.c.l.b16 %v4596
  %v5294 = vunpack.c.h.b16 %v4596
  %v5295 = vunpack.c.l.b16 %v4597
  %v5296 = vunpack.c.l.b16 %v4598
  %v5297 = vunpack.c.h.b16 %v4598
  %v5298 = vunpack.c.l.b16 %v4599
  %v5299 = vunpack.c.l.b16 %v4600
  %v5300 = vunpack.c.h.b16 %v4600
  %v5301 = vunpack.c.l.b16 %v4601
  %v5302 = vunpack.c.l.b16 %v4602
  %v5303 = vunpack.c.h.b16 %v4602
  %v5304 = vunpack.c.l.b16 %v4603
  %v5305 = vunpack.c.l.b16 %v4604
  %v5306 = vunpack.c.h.b16 %v4604
  %v5307 = vunpack.c.l.b16 %v4605
  %v5308 = vunpack.c.l.b16 %v4606
  %v5309 = vunpack.c.h.b16 %v4606
  %v5310 = vunpack.c.l.b16 %v4607
  %v5311 = vpack.c.b16 %v5230, %v5227
  %v5312 = vpack.c.b16 %v5231, %v5228
  %v5313 = vpack.c.b16 %v5232, %v5229
  %v5314 = vpack.c.b16 %v5236, %v5233
  %v5315 = vpack.c.b16 %v5237, %v5234
  %v5316 = vpack.c.b16 %v5238, %v5235
  %v5317 = vpack.c.b16 %v5242, %v5239
  %v5318 = vpack.c.b16 %v5243, %v5240
  %v5319 = vpack.c.b16 %v5244, %v5241
  %v5320 = vpack.c.b16 %v5248, %v5245
  %v5321 = vpack.c.b16 %v5249, %v5246
  %v5322 = vpack.c.b16 %v5250, %v5247
  %v5323 = vpack.c.b16 %v5254, %v5251
  %v5324 = vpack.c.b16 %v5255, %v5252
  %v5325 = vpack.c.b16 %v5256, %v5253
  %v5326 = vpack.c.b16 %v5260, %v5257
  %v5327 = vpack.c.b16 %v5261, %v5258
  %v5328 = vpack.c.b16 %v5262, %v5259
  %v5329 = vpack.c.b16 %v5266, %v5263
  %v5330 = vpack.c.b16 %v5267, %v5264
  %v5331 = vpack.c.b16 %v5268, %v5265
  %v5332 = vpack.c.b16 %v5272, %v5269
  %v5333 = vpack.c.b16 %v5273, %v5270
  %v5334 = vpack.c.b16 %v5274, %v5271
  %v5335 = vpack.c.b16 %v5278, %v5275
  %v5336 = vpack.c.b16 %v5279, %v5276
  %v5337 = vpack.c.b16 %v5280, %v5277
  %v5338 = vpack.c.b16 %v5284, %v5281
  %v5339 = vpack.c.b16 %v5285, %v5282
  %v5340 = vpack.c.b16 %v5286, %v5283
  %v5341 = vpack.c.b16 %v5290, %v5287
  %v5342 = vpack.c.b16 %v5291, %v5288
  %v5343 = vpack.c.b16 %v5292, %v5289
  %v5344 = vpack.c.b16 %v5296, %v5293
  %v5345 = vpack.c.b16 %v5297, %v5294
  %v5346 = vpack.c.b16 %v5298, %v5295
  %v5347 = vpack.c.b16 %v5302, %v5299
  %v5348 = vpack.c.b16 %v5303, %v5300
  %v5349 = vpack.c.b16 %v5304, %v5301
  %v5350 = vpack.c.b16 %v5308, %v5305
  %v5351 = vpack.c.b16 %v5309, %v5306
  %v5352 = vpack.c.b16 %v5310, %v5307
  %v5396 = vsel %vm316, %v5157, 0
  %v5399 = vsel %vm316, %v5159, 0
  %v5402 = vsel %vm316, %v5161, 0
  %v5405 = vsel %vm316, %v5163, 0
  %v5408 = vsel %vm316, %v5165, 0
  %5410 = vmatpush.bf16.msra.mxu0 %v5332
  %5411 = vmatpush.bf16.msra.mxu0 %v5329
  %5412 = vmatpush.bf16.msra.mxu0 %v5326
  %5413 = vmatpush.bf16.msra.mxu0 %v5323
  %5414 = vmatpush.bf16.msra.mxu0 %v5320
  %5415 = vmatpush.bf16.msra.mxu0 %v5317
  %5416 = vmatpush.bf16.msra.mxu0 %v5314
  %5417 = vmatpush.bf16.msra.mxu0 %v5311
  %5418 = vmatmul.bf16.gmra.mxu0 %v5156
  %v5419 = vpop.f32.mrf.mxu0
  %v5420 = vadd.f32 %v4993, %v5419
  %v5421 = vpop.f32.mrf.mxu0
  %v5422 = vadd.f32 %v4995, %v5421
  %5423 = vmatmul.bf16.gmra.mxu0 %v5158
  %v5424 = vpop.f32.mrf.mxu0
  %v5425 = vadd.f32 %v4998, %v5424
  %v5426 = vpop.f32.mrf.mxu0
  %v5427 = vadd.f32 %v5000, %v5426
  %5428 = vmatmul.bf16.gmra.mxu0 %v5160
  %v5429 = vpop.f32.mrf.mxu0
  %v5430 = vadd.f32 %v5003, %v5429
  %v5431 = vpop.f32.mrf.mxu0
  %v5432 = vadd.f32 %v5005, %v5431
  %5433 = vmatmul.bf16.gmra.mxu0 %v5162
  %v5434 = vpop.f32.mrf.mxu0
  %v5435 = vadd.f32 %v5008, %v5434
  %v5436 = vpop.f32.mrf.mxu0
  %v5437 = vadd.f32 %v5010, %v5436
  %5438 = vmatmul.bf16.gmra.mxu0 %v5164
  %v5439 = vpop.f32.mrf.mxu0
  %v5440 = vadd.f32 %v5013, %v5439
  %v5441 = vpop.f32.mrf.mxu0
  %v5442 = vadd.f32 %v5015, %v5441
  %5443 = vdwg.mxu0
  %5444 = vmatpush.bf16.msra.mxu0 0
  %5445 = vmatpush.bf16.msra.mxu0 0
  %5446 = vmatpush.bf16.msra.mxu0 %v5350
  %5447 = vmatpush.bf16.msra.mxu0 %v5347
  %5448 = vmatpush.bf16.msra.mxu0 %v5344
  %5449 = vmatpush.bf16.msra.mxu0 %v5341
  %5450 = vmatpush.bf16.msra.mxu0 %v5338
  %5451 = vmatpush.bf16.msra.mxu0 %v5335
  %5452 = vmatmul.bf16.gmra.mxu0 %v5396
  %v5453 = vpop.f32.mrf.mxu0
  %v5454 = vadd.f32 %v5420, %v5453
  %v5455 = vpop.f32.mrf.mxu0
  %v5456 = vadd.f32 %v5422, %v5455
  %5457 = vmatmul.bf16.gmra.mxu0 %v5399
  %v5458 = vpop.f32.mrf.mxu0
  %v5459 = vadd.f32 %v5425, %v5458
  %v5460 = vpop.f32.mrf.mxu0
  %v5461 = vadd.f32 %v5427, %v5460
  %5462 = vmatmul.bf16.gmra.mxu0 %v5402
  %v5463 = vpop.f32.mrf.mxu0
  %v5464 = vadd.f32 %v5430, %v5463
  %v5465 = vpop.f32.mrf.mxu0
  %v5466 = vadd.f32 %v5432, %v5465
  %5467 = vmatmul.bf16.gmra.mxu0 %v5405
  %v5468 = vpop.f32.mrf.mxu0
  %v5469 = vadd.f32 %v5435, %v5468
  %v5470 = vpop.f32.mrf.mxu0
  %v5471 = vadd.f32 %v5437, %v5470
  %5472 = vmatmul.bf16.gmra.mxu0 %v5408
  %v5473 = vpop.f32.mrf.mxu0
  %v5474 = vadd.f32 %v5440, %v5473
  %v5475 = vpop.f32.mrf.mxu0
  %v5476 = vadd.f32 %v5442, %v5475
  %5477 = vdwg.mxu0
  %5478 = vmatpush.bf16.msra.mxu0 %v5333
  %5479 = vmatpush.bf16.msra.mxu0 %v5330
  %5480 = vmatpush.bf16.msra.mxu0 %v5327
  %5481 = vmatpush.bf16.msra.mxu0 %v5324
  %5482 = vmatpush.bf16.msra.mxu0 %v5321
  %5483 = vmatpush.bf16.msra.mxu0 %v5318
  %5484 = vmatpush.bf16.msra.mxu0 %v5315
  %5485 = vmatpush.bf16.msra.mxu0 %v5312
  %5486 = vmatmul.bf16.gmra.mxu0 %v5156
  %v5487 = vpop.f32.mrf.mxu0
  %v5488 = vadd.f32 %v5061, %v5487
  %v5489 = vpop.f32.mrf.mxu0
  %v5490 = vadd.f32 %v5063, %v5489
  %5491 = vmatmul.bf16.gmra.mxu0 %v5158
  %v5492 = vpop.f32.mrf.mxu0
  %v5493 = vadd.f32 %v5066, %v5492
  %v5494 = vpop.f32.mrf.mxu0
  %v5495 = vadd.f32 %v5068, %v5494
  %5496 = vmatmul.bf16.gmra.mxu0 %v5160
  %v5497 = vpop.f32.mrf.mxu0
  %v5498 = vadd.f32 %v5071, %v5497
  %v5499 = vpop.f32.mrf.mxu0
  %v5500 = vadd.f32 %v5073, %v5499
  %5501 = vmatmul.bf16.gmra.mxu0 %v5162
  %v5502 = vpop.f32.mrf.mxu0
  %v5503 = vadd.f32 %v5076, %v5502
  %v5504 = vpop.f32.mrf.mxu0
  %v5505 = vadd.f32 %v5078, %v5504
  %5506 = vmatmul.bf16.gmra.mxu0 %v5164
  %v5507 = vpop.f32.mrf.mxu0
  %v5508 = vadd.f32 %v5081, %v5507
  %v5509 = vpop.f32.mrf.mxu0
  %v5510 = vadd.f32 %v5083, %v5509
  %5511 = vdwg.mxu0
  %5512 = vmatpush.bf16.msra.mxu0 0
  %5513 = vmatpush.bf16.msra.mxu0 0
  %5514 = vmatpush.bf16.msra.mxu0 %v5351
  %5515 = vmatpush.bf16.msra.mxu0 %v5348
  %5516 = vmatpush.bf16.msra.mxu0 %v5345
  %5517 = vmatpush.bf16.msra.mxu0 %v5342
  %5518 = vmatpush.bf16.msra.mxu0 %v5339
  %5519 = vmatpush.bf16.msra.mxu0 %v5336
  %5520 = vmatmul.bf16.gmra.mxu0 %v5396
  %v5521 = vpop.f32.mrf.mxu0
  %v5522 = vadd.f32 %v5488, %v5521
  %v5523 = vpop.f32.mrf.mxu0
  %v5524 = vadd.f32 %v5490, %v5523
  %5525 = vmatmul.bf16.gmra.mxu0 %v5399
  %v5526 = vpop.f32.mrf.mxu0
  %v5527 = vadd.f32 %v5493, %v5526
  %v5528 = vpop.f32.mrf.mxu0
  %v5529 = vadd.f32 %v5495, %v5528
  %5530 = vmatmul.bf16.gmra.mxu0 %v5402
  %v5531 = vpop.f32.mrf.mxu0
  %v5532 = vadd.f32 %v5498, %v5531
  %v5533 = vpop.f32.mrf.mxu0
  %v5534 = vadd.f32 %v5500, %v5533
  %5535 = vmatmul.bf16.gmra.mxu0 %v5405
  %v5536 = vpop.f32.mrf.mxu0
  %v5537 = vadd.f32 %v5503, %v5536
  %v5538 = vpop.f32.mrf.mxu0
  %v5539 = vadd.f32 %v5505, %v5538
  %5540 = vmatmul.bf16.gmra.mxu0 %v5408
  %v5541 = vpop.f32.mrf.mxu0
  %v5542 = vadd.f32 %v5508, %v5541
  %v5543 = vpop.f32.mrf.mxu0
  %v5544 = vadd.f32 %v5510, %v5543
  %5545 = vdwg.mxu0
  %5546 = vmatpush.bf16.msra.mxu0 %v5334
  %5547 = vmatpush.bf16.msra.mxu0 %v5331
  %5548 = vmatpush.bf16.msra.mxu0 %v5328
  %5549 = vmatpush.bf16.msra.mxu0 %v5325
  %5550 = vmatpush.bf16.msra.mxu0 %v5322
  %5551 = vmatpush.bf16.msra.mxu0 %v5319
  %5552 = vmatpush.bf16.msra.mxu0 %v5316
  %5553 = vmatpush.bf16.msra.mxu0 %v5313
  %5554 = vmatmul.bf16.gmra.mxu0 %v5156
  %v5555 = vpop.f32.mrf.mxu0
  %v5556 = vadd.f32 %v5129, %v5555
  %v5557 = vpop.f32.mrf.mxu0
  %v5558 = vadd.f32 %v5131, %v5557
  %5559 = vmatmul.bf16.gmra.mxu0 %v5158
  %v5560 = vpop.f32.mrf.mxu0
  %v5561 = vadd.f32 %v5134, %v5560
  %v5562 = vpop.f32.mrf.mxu0
  %v5563 = vadd.f32 %v5136, %v5562
  %5564 = vmatmul.bf16.gmra.mxu0 %v5160
  %v5565 = vpop.f32.mrf.mxu0
  %v5566 = vadd.f32 %v5139, %v5565
  %v5567 = vpop.f32.mrf.mxu0
  %v5568 = vadd.f32 %v5141, %v5567
  %5569 = vmatmul.bf16.gmra.mxu0 %v5162
  %v5570 = vpop.f32.mrf.mxu0
  %v5571 = vadd.f32 %v5144, %v5570
  %v5572 = vpop.f32.mrf.mxu0
  %v5573 = vadd.f32 %v5146, %v5572
  %5574 = vmatmul.bf16.gmra.mxu0 %v5164
  %v5575 = vpop.f32.mrf.mxu0
  %v5576 = vadd.f32 %v5149, %v5575
  %v5577 = vpop.f32.mrf.mxu0
  %v5578 = vadd.f32 %v5151, %v5577
  %5579 = vdwg.mxu0
  %5580 = vmatpush.bf16.msra.mxu0 0
  %5581 = vmatpush.bf16.msra.mxu0 0
  %5582 = vmatpush.bf16.msra.mxu0 %v5352
  %5583 = vmatpush.bf16.msra.mxu0 %v5349
  %5584 = vmatpush.bf16.msra.mxu0 %v5346
  %5585 = vmatpush.bf16.msra.mxu0 %v5343
  %5586 = vmatpush.bf16.msra.mxu0 %v5340
  %5587 = vmatpush.bf16.msra.mxu0 %v5337
  %5588 = vmatmul.bf16.gmra.mxu0 %v5396
  %v5589 = vpop.f32.mrf.mxu0
  %v5590 = vadd.f32 %v5556, %v5589
  %v5591 = vpop.f32.mrf.mxu0
  %v5592 = vadd.f32 %v5558, %v5591
  %5593 = vmatmul.bf16.gmra.mxu0 %v5399
  %v5594 = vpop.f32.mrf.mxu0
  %v5595 = vadd.f32 %v5561, %v5594
  %v5596 = vpop.f32.mrf.mxu0
  %v5597 = vadd.f32 %v5563, %v5596
  %5598 = vmatmul.bf16.gmra.mxu0 %v5402
  %v5599 = vpop.f32.mrf.mxu0
  %v5600 = vadd.f32 %v5566, %v5599
  %v5601 = vpop.f32.mrf.mxu0
  %v5602 = vadd.f32 %v5568, %v5601
  %5603 = vmatmul.bf16.gmra.mxu0 %v5405
  %v5604 = vpop.f32.mrf.mxu0
  %v5605 = vadd.f32 %v5571, %v5604
  %v5606 = vpop.f32.mrf.mxu0
  %v5607 = vadd.f32 %v5573, %v5606
  %5608 = vmatmul.bf16.gmra.mxu0 %v5408
  %v5609 = vpop.f32.mrf.mxu0
  %v5610 = vadd.f32 %v5576, %v5609
  %v5611 = vpop.f32.mrf.mxu0
  %v5612 = vadd.f32 %v5578, %v5611
  %5613 = vdwg.mxu0
  %s5614 = scalar_lea.vmem %s3, 672
  %v5615 = vld [vmem:[%s5614] sm:$0xff]
  %v5616 = vld [vmem:[%s5614 + $0x8] sm:$0xf]
  %v5617 = vld [vmem:[%s5614 + $0xc] sm:$0xff]
  %v5618 = vld [vmem:[%s5614 + $0x14] sm:$0xf]
  %v5619 = vld [vmem:[%s5614 + $0x18] sm:$0xff]
  %v5620 = vld [vmem:[%s5614 + $0x20] sm:$0xf]
  %v5621 = vld [vmem:[%s5614 + $0x24] sm:$0xff]
  %v5622 = vld [vmem:[%s5614 + $0x2c] sm:$0xf]
  %v5623 = vld [vmem:[%s5614 + $0x30] sm:$0xff]
  %v5624 = vld [vmem:[%s5614 + $0x38] sm:$0xf]
  %v5625 = vld [vmem:[%s5614 + $0x3c] sm:$0xff]
  %v5626 = vld [vmem:[%s5614 + $0x44] sm:$0xf]
  %v5627 = vld [vmem:[%s5614 + $0x48] sm:$0xff]
  %v5628 = vld [vmem:[%s5614 + $0x50] sm:$0xf]
  %v5629 = vld [vmem:[%s5614 + $0x54] sm:$0xff]
  %v5630 = vld [vmem:[%s5614 + $0x5c] sm:$0xf]
  %v5631 = vld [vmem:[%s5614 + $0x60] sm:$0xff]
  %v5632 = vld [vmem:[%s5614 + $0x68] sm:$0xf]
  %v5633 = vld [vmem:[%s5614 + $0x6c] sm:$0xff]
  %v5634 = vld [vmem:[%s5614 + $0x74] sm:$0xf]
  %v5635 = vld [vmem:[%s5614 + $0x78] sm:$0xff]
  %v5636 = vld [vmem:[%s5614 + $0x80] sm:$0xf]
  %v5637 = vld [vmem:[%s5614 + $0x84] sm:$0xff]
  %v5638 = vld [vmem:[%s5614 + $0x8c] sm:$0xf]
  %v5639 = vld [vmem:[%s5614 + $0x90] sm:$0xff]
  %v5640 = vld [vmem:[%s5614 + $0x98] sm:$0xf]
  %v5641 = vld [vmem:[%s5614 + $0x9c] sm:$0xff]
  %v5642 = vld [vmem:[%s5614 + $0xa4] sm:$0xf]
  %v5643 = vld [vmem:[%s5614 + $0xa8] sm:$0xff]
  %v5644 = vld [vmem:[%s5614 + $0xb0] sm:$0xf]
  %v5645 = vld [vmem:[%s5614 + $0xb4] sm:$0xff]
  %v5646 = vld [vmem:[%s5614 + $0xbc] sm:$0xf]
  %v5647 = vld [vmem:[%s5614 + $0xc0] sm:$0xff]
  %v5648 = vld [vmem:[%s5614 + $0xc8] sm:$0xf]
  %v5649 = vld [vmem:[%s5614 + $0xcc] sm:$0xff]
  %v5650 = vld [vmem:[%s5614 + $0xd4] sm:$0xf]
  %v5651 = vld [vmem:[%s5614 + $0xd8] sm:$0xff]
  %v5652 = vld [vmem:[%s5614 + $0xe0] sm:$0xf]
  %v5653 = vld [vmem:[%s5614 + $0xe4] sm:$0xff]
  %v5654 = vld [vmem:[%s5614 + $0xec] sm:$0xf]
  %v5655 = vld [vmem:[%s5614 + $0xf0] sm:$0xff]
  %v5656 = vld [vmem:[%s5614 + $0xf8] sm:$0xf]
  %v5657 = vld [vmem:[%s5614 + $0xfc] sm:$0xff]
  %v5658 = vld [vmem:[%s5614 + $0x104] sm:$0xf]
  %v5659 = vld [vmem:[%s5614 + $0x108] sm:$0xff]
  %v5660 = vld [vmem:[%s5614 + $0x110] sm:$0xf]
  %v5661 = vld [vmem:[%s5614 + $0x114] sm:$0xff]
  %v5662 = vld [vmem:[%s5614 + $0x11c] sm:$0xf]
  %v5663 = vld [vmem:[%s5614 + $0x120] sm:$0xff]
  %v5664 = vld [vmem:[%s5614 + $0x128] sm:$0xf]
  %v5665 = vld [vmem:[%s5614 + $0x12c] sm:$0xff]
  %v5666 = vld [vmem:[%s5614 + $0x134] sm:$0xf]
  %v5667 = vld [vmem:[%s5614 + $0x138] sm:$0xff]
  %v5668 = vld [vmem:[%s5614 + $0x140] sm:$0xf]
  %v5669 = vld [vmem:[%s5614 + $0x144] sm:$0xff]
  %v5670 = vld [vmem:[%s5614 + $0x14c] sm:$0xf]
  %v5672 = vunpack.c.l.b16 %v4549
  %v5673 = vunpack.c.h.b16 %v4549
  %v5674 = vpack.c.b16 %v5672, %v4693
  %v5675 = vpack.c.b16 %v5673, %v4694
  %v5733 = vunpack.c.l.b16 %v5615
  %v5734 = vunpack.c.h.b16 %v5615
  %v5735 = vunpack.c.l.b16 %v5616
  %v5736 = vunpack.c.l.b16 %v5617
  %v5737 = vunpack.c.h.b16 %v5617
  %v5738 = vunpack.c.l.b16 %v5618
  %v5739 = vunpack.c.l.b16 %v5619
  %v5740 = vunpack.c.h.b16 %v5619
  %v5741 = vunpack.c.l.b16 %v5620
  %v5742 = vunpack.c.l.b16 %v5621
  %v5743 = vunpack.c.h.b16 %v5621
  %v5744 = vunpack.c.l.b16 %v5622
  %v5745 = vunpack.c.l.b16 %v5623
  %v5746 = vunpack.c.h.b16 %v5623
  %v5747 = vunpack.c.l.b16 %v5624
  %v5748 = vunpack.c.l.b16 %v5625
  %v5749 = vunpack.c.h.b16 %v5625
  %v5750 = vunpack.c.l.b16 %v5626
  %v5751 = vunpack.c.l.b16 %v5627
  %v5752 = vunpack.c.h.b16 %v5627
  %v5753 = vunpack.c.l.b16 %v5628
  %v5754 = vunpack.c.l.b16 %v5629
  %v5755 = vunpack.c.h.b16 %v5629
  %v5756 = vunpack.c.l.b16 %v5630
  %v5757 = vunpack.c.l.b16 %v5631
  %v5758 = vunpack.c.h.b16 %v5631
  %v5759 = vunpack.c.l.b16 %v5632
  %v5760 = vunpack.c.l.b16 %v5633
  %v5761 = vunpack.c.h.b16 %v5633
  %v5762 = vunpack.c.l.b16 %v5634
  %v5763 = vunpack.c.l.b16 %v5635
  %v5764 = vunpack.c.h.b16 %v5635
  %v5765 = vunpack.c.l.b16 %v5636
  %v5766 = vunpack.c.l.b16 %v5637
  %v5767 = vunpack.c.h.b16 %v5637
  %v5768 = vunpack.c.l.b16 %v5638
  %v5769 = vunpack.c.l.b16 %v5639
  %v5770 = vunpack.c.h.b16 %v5639
  %v5771 = vunpack.c.l.b16 %v5640
  %v5772 = vunpack.c.l.b16 %v5641
  %v5773 = vunpack.c.h.b16 %v5641
  %v5774 = vunpack.c.l.b16 %v5642
  %v5775 = vunpack.c.l.b16 %v5643
  %v5776 = vunpack.c.h.b16 %v5643
  %v5777 = vunpack.c.l.b16 %v5644
  %v5778 = vunpack.c.l.b16 %v5645
  %v5779 = vunpack.c.h.b16 %v5645
  %v5780 = vunpack.c.l.b16 %v5646
  %v5781 = vunpack.c.l.b16 %v5647
  %v5782 = vunpack.c.h.b16 %v5647
  %v5783 = vunpack.c.l.b16 %v5648
  %v5784 = vunpack.c.l.b16 %v5649
  %v5785 = vunpack.c.h.b16 %v5649
  %v5786 = vunpack.c.l.b16 %v5650
  %v5787 = vunpack.c.l.b16 %v5651
  %v5788 = vunpack.c.h.b16 %v5651
  %v5789 = vunpack.c.l.b16 %v5652
  %v5790 = vunpack.c.l.b16 %v5653
  %v5791 = vunpack.c.h.b16 %v5653
  %v5792 = vunpack.c.l.b16 %v5654
  %v5793 = vunpack.c.l.b16 %v5655
  %v5794 = vunpack.c.h.b16 %v5655
  %v5795 = vunpack.c.l.b16 %v5656
  %v5796 = vunpack.c.l.b16 %v5657
  %v5797 = vunpack.c.h.b16 %v5657
  %v5798 = vunpack.c.l.b16 %v5658
  %v5799 = vunpack.c.l.b16 %v5659
  %v5800 = vunpack.c.h.b16 %v5659
  %v5801 = vunpack.c.l.b16 %v5660
  %v5802 = vunpack.c.l.b16 %v5661
  %v5803 = vunpack.c.h.b16 %v5661
  %v5804 = vunpack.c.l.b16 %v5662
  %v5805 = vunpack.c.l.b16 %v5663
  %v5806 = vunpack.c.h.b16 %v5663
  %v5807 = vunpack.c.l.b16 %v5664
  %v5808 = vunpack.c.l.b16 %v5665
  %v5809 = vunpack.c.h.b16 %v5665
  %v5810 = vunpack.c.l.b16 %v5666
  %v5811 = vunpack.c.l.b16 %v5667
  %v5812 = vunpack.c.h.b16 %v5667
  %v5813 = vunpack.c.l.b16 %v5668
  %v5814 = vunpack.c.l.b16 %v5669
  %v5815 = vunpack.c.h.b16 %v5669
  %v5816 = vunpack.c.l.b16 %v5670
  %v5817 = vpack.c.b16 %v5736, %v5733
  %v5818 = vpack.c.b16 %v5737, %v5734
  %v5819 = vpack.c.b16 %v5738, %v5735
  %v5820 = vpack.c.b16 %v5742, %v5739
  %v5821 = vpack.c.b16 %v5743, %v5740
  %v5822 = vpack.c.b16 %v5744, %v5741
  %v5823 = vpack.c.b16 %v5748, %v5745
  %v5824 = vpack.c.b16 %v5749, %v5746
  %v5825 = vpack.c.b16 %v5750, %v5747
  %v5826 = vpack.c.b16 %v5754, %v5751
  %v5827 = vpack.c.b16 %v5755, %v5752
  %v5828 = vpack.c.b16 %v5756, %v5753
  %v5829 = vpack.c.b16 %v5760, %v5757
  %v5830 = vpack.c.b16 %v5761, %v5758
  %v5831 = vpack.c.b16 %v5762, %v5759
  %v5832 = vpack.c.b16 %v5766, %v5763
  %v5833 = vpack.c.b16 %v5767, %v5764
  %v5834 = vpack.c.b16 %v5768, %v5765
  %v5835 = vpack.c.b16 %v5772, %v5769
  %v5836 = vpack.c.b16 %v5773, %v5770
  %v5837 = vpack.c.b16 %v5774, %v5771
  %v5838 = vpack.c.b16 %v5778, %v5775
  %v5839 = vpack.c.b16 %v5779, %v5776
  %v5840 = vpack.c.b16 %v5780, %v5777
  %v5841 = vpack.c.b16 %v5784, %v5781
  %v5842 = vpack.c.b16 %v5785, %v5782
  %v5843 = vpack.c.b16 %v5786, %v5783
  %v5844 = vpack.c.b16 %v5790, %v5787
  %v5845 = vpack.c.b16 %v5791, %v5788
  %v5846 = vpack.c.b16 %v5792, %v5789
  %v5847 = vpack.c.b16 %v5796, %v5793
  %v5848 = vpack.c.b16 %v5797, %v5794
  %v5849 = vpack.c.b16 %v5798, %v5795
  %v5850 = vpack.c.b16 %v5802, %v5799
  %v5851 = vpack.c.b16 %v5803, %v5800
  %v5852 = vpack.c.b16 %v5804, %v5801
  %v5853 = vpack.c.b16 %v5808, %v5805
  %v5854 = vpack.c.b16 %v5809, %v5806
  %v5855 = vpack.c.b16 %v5810, %v5807
  %v5856 = vpack.c.b16 %v5814, %v5811
  %v5857 = vpack.c.b16 %v5815, %v5812
  %v5858 = vpack.c.b16 %v5816, %v5813
  %v5902 = vsel %vm316, %v5675, 0
  %5904 = vmatpush.bf16.msra.mxu0 %v5838
  %5905 = vmatpush.bf16.msra.mxu0 %v5835
  %5906 = vmatpush.bf16.msra.mxu0 %v5832
  %5907 = vmatpush.bf16.msra.mxu0 %v5829
  %5908 = vmatpush.bf16.msra.mxu0 %v5826
  %5909 = vmatpush.bf16.msra.mxu0 %v5823
  %5910 = vmatpush.bf16.msra.mxu0 %v5820
  %5911 = vmatpush.bf16.msra.mxu0 %v5817
  %5912 = vmatmul.bf16.gmra.mxu0 %v5158
  %v5913 = vpop.f32.mrf.mxu0
  %v5914 = vadd.f32 0.0, %v5913
  %v5915 = vpop.f32.mrf.mxu0
  %v5916 = vadd.f32 0.0, %v5915
  %5917 = vmatmul.bf16.gmra.mxu0 %v5160
  %v5918 = vpop.f32.mrf.mxu0
  %v5919 = vadd.f32 0.0, %v5918
  %v5920 = vpop.f32.mrf.mxu0
  %v5921 = vadd.f32 0.0, %v5920
  %5922 = vmatmul.bf16.gmra.mxu0 %v5162
  %v5923 = vpop.f32.mrf.mxu0
  %v5924 = vadd.f32 0.0, %v5923
  %v5925 = vpop.f32.mrf.mxu0
  %v5926 = vadd.f32 0.0, %v5925
  %5927 = vmatmul.bf16.gmra.mxu0 %v5164
  %v5928 = vpop.f32.mrf.mxu0
  %v5929 = vadd.f32 0.0, %v5928
  %v5930 = vpop.f32.mrf.mxu0
  %v5931 = vadd.f32 0.0, %v5930
  %5932 = vmatmul.bf16.gmra.mxu0 %v5674
  %v5933 = vpop.f32.mrf.mxu0
  %v5934 = vadd.f32 0.0, %v5933
  %v5935 = vpop.f32.mrf.mxu0
  %v5936 = vadd.f32 0.0, %v5935
  %5937 = vdwg.mxu0
  %5938 = vmatpush.bf16.msra.mxu0 0
  %5939 = vmatpush.bf16.msra.mxu0 0
  %5940 = vmatpush.bf16.msra.mxu0 %v5856
  %5941 = vmatpush.bf16.msra.mxu0 %v5853
  %5942 = vmatpush.bf16.msra.mxu0 %v5850
  %5943 = vmatpush.bf16.msra.mxu0 %v5847
  %5944 = vmatpush.bf16.msra.mxu0 %v5844
  %5945 = vmatpush.bf16.msra.mxu0 %v5841
  %5946 = vmatmul.bf16.gmra.mxu0 %v5399
  %v5947 = vpop.f32.mrf.mxu0
  %v5948 = vadd.f32 %v5914, %v5947
  %v5949 = vpop.f32.mrf.mxu0
  %v5950 = vadd.f32 %v5916, %v5949
  %5951 = vmatmul.bf16.gmra.mxu0 %v5402
  %v5952 = vpop.f32.mrf.mxu0
  %v5953 = vadd.f32 %v5919, %v5952
  %v5954 = vpop.f32.mrf.mxu0
  %v5955 = vadd.f32 %v5921, %v5954
  %5956 = vmatmul.bf16.gmra.mxu0 %v5405
  %v5957 = vpop.f32.mrf.mxu0
  %v5958 = vadd.f32 %v5924, %v5957
  %v5959 = vpop.f32.mrf.mxu0
  %v5960 = vadd.f32 %v5926, %v5959
  %5961 = vmatmul.bf16.gmra.mxu0 %v5408
  %v5962 = vpop.f32.mrf.mxu0
  %v5963 = vadd.f32 %v5929, %v5962
  %v5964 = vpop.f32.mrf.mxu0
  %v5965 = vadd.f32 %v5931, %v5964
  %5966 = vmatmul.bf16.gmra.mxu0 %v5902
  %v5967 = vpop.f32.mrf.mxu0
  %v5968 = vadd.f32 %v5934, %v5967
  %v5969 = vpop.f32.mrf.mxu0
  %v5970 = vadd.f32 %v5936, %v5969
  %5971 = vdwg.mxu0
  %5972 = vmatpush.bf16.msra.mxu0 %v5839
  %5973 = vmatpush.bf16.msra.mxu0 %v5836
  %5974 = vmatpush.bf16.msra.mxu0 %v5833
  %5975 = vmatpush.bf16.msra.mxu0 %v5830
  %5976 = vmatpush.bf16.msra.mxu0 %v5827
  %5977 = vmatpush.bf16.msra.mxu0 %v5824
  %5978 = vmatpush.bf16.msra.mxu0 %v5821
  %5979 = vmatpush.bf16.msra.mxu0 %v5818
  %5980 = vmatmul.bf16.gmra.mxu0 %v5158
  %v5981 = vpop.f32.mrf.mxu0
  %v5982 = vadd.f32 0.0, %v5981
  %v5983 = vpop.f32.mrf.mxu0
  %v5984 = vadd.f32 0.0, %v5983
  %5985 = vmatmul.bf16.gmra.mxu0 %v5160
  %v5986 = vpop.f32.mrf.mxu0
  %v5987 = vadd.f32 0.0, %v5986
  %v5988 = vpop.f32.mrf.mxu0
  %v5989 = vadd.f32 0.0, %v5988
  %5990 = vmatmul.bf16.gmra.mxu0 %v5162
  %v5991 = vpop.f32.mrf.mxu0
  %v5992 = vadd.f32 0.0, %v5991
  %v5993 = vpop.f32.mrf.mxu0
  %v5994 = vadd.f32 0.0, %v5993
  %5995 = vmatmul.bf16.gmra.mxu0 %v5164
  %v5996 = vpop.f32.mrf.mxu0
  %v5997 = vadd.f32 0.0, %v5996
  %v5998 = vpop.f32.mrf.mxu0
  %v5999 = vadd.f32 0.0, %v5998
  %6000 = vmatmul.bf16.gmra.mxu0 %v5674
  %v6001 = vpop.f32.mrf.mxu0
  %v6002 = vadd.f32 0.0, %v6001
  %v6003 = vpop.f32.mrf.mxu0
  %v6004 = vadd.f32 0.0, %v6003
  %6005 = vdwg.mxu0
  %6006 = vmatpush.bf16.msra.mxu0 0
  %6007 = vmatpush.bf16.msra.mxu0 0
  %6008 = vmatpush.bf16.msra.mxu0 %v5857
  %6009 = vmatpush.bf16.msra.mxu0 %v5854
  %6010 = vmatpush.bf16.msra.mxu0 %v5851
  %6011 = vmatpush.bf16.msra.mxu0 %v5848
  %6012 = vmatpush.bf16.msra.mxu0 %v5845
  %6013 = vmatpush.bf16.msra.mxu0 %v5842
  %6014 = vmatmul.bf16.gmra.mxu0 %v5399
  %v6015 = vpop.f32.mrf.mxu0
  %v6016 = vadd.f32 %v5982, %v6015
  %v6017 = vpop.f32.mrf.mxu0
  %v6018 = vadd.f32 %v5984, %v6017
  %6019 = vmatmul.bf16.gmra.mxu0 %v5402
  %v6020 = vpop.f32.mrf.mxu0
  %v6021 = vadd.f32 %v5987, %v6020
  %v6022 = vpop.f32.mrf.mxu0
  %v6023 = vadd.f32 %v5989, %v6022
  %6024 = vmatmul.bf16.gmra.mxu0 %v5405
  %v6025 = vpop.f32.mrf.mxu0
  %v6026 = vadd.f32 %v5992, %v6025
  %v6027 = vpop.f32.mrf.mxu0
  %v6028 = vadd.f32 %v5994, %v6027
  %6029 = vmatmul.bf16.gmra.mxu0 %v5408
  %v6030 = vpop.f32.mrf.mxu0
  %v6031 = vadd.f32 %v5997, %v6030
  %v6032 = vpop.f32.mrf.mxu0
  %v6033 = vadd.f32 %v5999, %v6032
  %6034 = vmatmul.bf16.gmra.mxu0 %v5902
  %v6035 = vpop.f32.mrf.mxu0
  %v6036 = vadd.f32 %v6002, %v6035
  %v6037 = vpop.f32.mrf.mxu0
  %v6038 = vadd.f32 %v6004, %v6037
  %6039 = vdwg.mxu0
  %6040 = vmatpush.bf16.msra.mxu0 %v5840
  %6041 = vmatpush.bf16.msra.mxu0 %v5837
  %6042 = vmatpush.bf16.msra.mxu0 %v5834
  %6043 = vmatpush.bf16.msra.mxu0 %v5831
  %6044 = vmatpush.bf16.msra.mxu0 %v5828
  %6045 = vmatpush.bf16.msra.mxu0 %v5825
  %6046 = vmatpush.bf16.msra.mxu0 %v5822
  %6047 = vmatpush.bf16.msra.mxu0 %v5819
  %6048 = vmatmul.bf16.gmra.mxu0 %v5158
  %v6049 = vpop.f32.mrf.mxu0
  %v6050 = vadd.f32 0.0, %v6049
  %v6051 = vpop.f32.mrf.mxu0
  %v6052 = vadd.f32 0.0, %v6051
  %6053 = vmatmul.bf16.gmra.mxu0 %v5160
  %v6054 = vpop.f32.mrf.mxu0
  %v6055 = vadd.f32 0.0, %v6054
  %v6056 = vpop.f32.mrf.mxu0
  %v6057 = vadd.f32 0.0, %v6056
  %6058 = vmatmul.bf16.gmra.mxu0 %v5162
  %v6059 = vpop.f32.mrf.mxu0
  %v6060 = vadd.f32 0.0, %v6059
  %v6061 = vpop.f32.mrf.mxu0
  %v6062 = vadd.f32 0.0, %v6061
  %6063 = vmatmul.bf16.gmra.mxu0 %v5164
  %v6064 = vpop.f32.mrf.mxu0
  %v6065 = vadd.f32 0.0, %v6064
  %v6066 = vpop.f32.mrf.mxu0
  %v6067 = vadd.f32 0.0, %v6066
  %6068 = vmatmul.bf16.gmra.mxu0 %v5674
  %v6069 = vpop.f32.mrf.mxu0
  %v6070 = vadd.f32 0.0, %v6069
  %v6071 = vpop.f32.mrf.mxu0
  %v6072 = vadd.f32 0.0, %v6071
  %6073 = vdwg.mxu0
  %6074 = vmatpush.bf16.msra.mxu0 0
  %6075 = vmatpush.bf16.msra.mxu0 0
  %6076 = vmatpush.bf16.msra.mxu0 %v5858
  %6077 = vmatpush.bf16.msra.mxu0 %v5855
  %6078 = vmatpush.bf16.msra.mxu0 %v5852
  %6079 = vmatpush.bf16.msra.mxu0 %v5849
  %6080 = vmatpush.bf16.msra.mxu0 %v5846
  %6081 = vmatpush.bf16.msra.mxu0 %v5843
  %6082 = vmatmul.bf16.gmra.mxu0 %v5399
  %v6083 = vpop.f32.mrf.mxu0
  %v6084 = vadd.f32 %v6050, %v6083
  %v6085 = vpop.f32.mrf.mxu0
  %v6086 = vadd.f32 %v6052, %v6085
  %6087 = vmatmul.bf16.gmra.mxu0 %v5402
  %v6088 = vpop.f32.mrf.mxu0
  %v6089 = vadd.f32 %v6055, %v6088
  %v6090 = vpop.f32.mrf.mxu0
  %v6091 = vadd.f32 %v6057, %v6090
  %6092 = vmatmul.bf16.gmra.mxu0 %v5405
  %v6093 = vpop.f32.mrf.mxu0
  %v6094 = vadd.f32 %v6060, %v6093
  %v6095 = vpop.f32.mrf.mxu0
  %v6096 = vadd.f32 %v6062, %v6095
  %6097 = vmatmul.bf16.gmra.mxu0 %v5408
  %v6098 = vpop.f32.mrf.mxu0
  %v6099 = vadd.f32 %v6065, %v6098
  %v6100 = vpop.f32.mrf.mxu0
  %v6101 = vadd.f32 %v6067, %v6100
  %6102 = vmatmul.bf16.gmra.mxu0 %v5902
  %v6103 = vpop.f32.mrf.mxu0
  %v6104 = vadd.f32 %v6070, %v6103
  %v6105 = vpop.f32.mrf.mxu0
  %v6106 = vadd.f32 %v6072, %v6105
  %6107 = vdwg.mxu0
  %v6108 = vadd.f32 %v5454, %v5948
  %v6109 = vadd.f32 %v5522, %v6016
  %v6110 = vadd.f32 %v5590, %v6084
  %v6111 = vadd.f32 %v5456, %v5950
  %v6112 = vadd.f32 %v5524, %v6018
  %v6113 = vadd.f32 %v5592, %v6086
  %v6114 = vadd.f32 %v5459, %v5953
  %v6115 = vadd.f32 %v5527, %v6021
  %v6116 = vadd.f32 %v5595, %v6089
  %v6117 = vadd.f32 %v5461, %v5955
  %v6118 = vadd.f32 %v5529, %v6023
  %v6119 = vadd.f32 %v5597, %v6091
  %v6120 = vadd.f32 %v5464, %v5958
  %v6121 = vadd.f32 %v5532, %v6026
  %v6122 = vadd.f32 %v5600, %v6094
  %v6123 = vadd.f32 %v5466, %v5960
  %v6124 = vadd.f32 %v5534, %v6028
  %v6125 = vadd.f32 %v5602, %v6096
  %v6126 = vadd.f32 %v5469, %v5963
  %v6127 = vadd.f32 %v5537, %v6031
  %v6128 = vadd.f32 %v5605, %v6099
  %v6129 = vadd.f32 %v5471, %v5965
  %v6130 = vadd.f32 %v5539, %v6033
  %v6131 = vadd.f32 %v5607, %v6101
  %v6132 = vadd.f32 %v5474, %v5968
  %v6133 = vadd.f32 %v5542, %v6036
  %v6134 = vadd.f32 %v5610, %v6104
  %v6135 = vadd.f32 %v5476, %v5970
  %v6136 = vadd.f32 %v5544, %v6038
  %v6137 = vadd.f32 %v5612, %v6106
  %s6138 = scalar_lea.vmem %s3, 1008
  %v6139 = vld [vmem:[%s6138] sm:$0xff]
  %v6140 = vld [vmem:[%s6138 + $0x8] sm:$0xf]
  %v6141 = vld [vmem:[%s6138 + $0xc] sm:$0xff]
  %v6142 = vld [vmem:[%s6138 + $0x14] sm:$0xf]
  %v6143 = vld [vmem:[%s6138 + $0x18] sm:$0xff]
  %v6144 = vld [vmem:[%s6138 + $0x20] sm:$0xf]
  %v6145 = vld [vmem:[%s6138 + $0x24] sm:$0xff]
  %v6146 = vld [vmem:[%s6138 + $0x2c] sm:$0xf]
  %v6147 = vld [vmem:[%s6138 + $0x30] sm:$0xff]
  %v6148 = vld [vmem:[%s6138 + $0x38] sm:$0xf]
  %v6149 = vld [vmem:[%s6138 + $0x3c] sm:$0xff]
  %v6150 = vld [vmem:[%s6138 + $0x44] sm:$0xf]
  %v6151 = vld [vmem:[%s6138 + $0x48] sm:$0xff]
  %v6152 = vld [vmem:[%s6138 + $0x50] sm:$0xf]
  %v6153 = vld [vmem:[%s6138 + $0x54] sm:$0xff]
  %v6154 = vld [vmem:[%s6138 + $0x5c] sm:$0xf]
  %v6155 = vld [vmem:[%s6138 + $0x60] sm:$0xff]
  %v6156 = vld [vmem:[%s6138 + $0x68] sm:$0xf]
  %v6157 = vld [vmem:[%s6138 + $0x6c] sm:$0xff]
  %v6158 = vld [vmem:[%s6138 + $0x74] sm:$0xf]
  %v6159 = vld [vmem:[%s6138 + $0x78] sm:$0xff]
  %v6160 = vld [vmem:[%s6138 + $0x80] sm:$0xf]
  %v6161 = vld [vmem:[%s6138 + $0x84] sm:$0xff]
  %v6162 = vld [vmem:[%s6138 + $0x8c] sm:$0xf]
  %v6163 = vld [vmem:[%s6138 + $0x90] sm:$0xff]
  %v6164 = vld [vmem:[%s6138 + $0x98] sm:$0xf]
  %v6165 = vld [vmem:[%s6138 + $0x9c] sm:$0xff]
  %v6166 = vld [vmem:[%s6138 + $0xa4] sm:$0xf]
  %v6167 = vld [vmem:[%s6138 + $0xa8] sm:$0xff]
  %v6168 = vld [vmem:[%s6138 + $0xb0] sm:$0xf]
  %v6169 = vld [vmem:[%s6138 + $0xb4] sm:$0xff]
  %v6170 = vld [vmem:[%s6138 + $0xbc] sm:$0xf]
  %v6171 = vld [vmem:[%s6138 + $0xc0] sm:$0xff]
  %v6172 = vld [vmem:[%s6138 + $0xc8] sm:$0xf]
  %v6173 = vld [vmem:[%s6138 + $0xcc] sm:$0xff]
  %v6174 = vld [vmem:[%s6138 + $0xd4] sm:$0xf]
  %v6175 = vld [vmem:[%s6138 + $0xd8] sm:$0xff]
  %v6176 = vld [vmem:[%s6138 + $0xe0] sm:$0xf]
  %v6177 = vld [vmem:[%s6138 + $0xe4] sm:$0xff]
  %v6178 = vld [vmem:[%s6138 + $0xec] sm:$0xf]
  %v6179 = vld [vmem:[%s6138 + $0xf0] sm:$0xff]
  %v6180 = vld [vmem:[%s6138 + $0xf8] sm:$0xf]
  %v6181 = vld [vmem:[%s6138 + $0xfc] sm:$0xff]
  %v6182 = vld [vmem:[%s6138 + $0x104] sm:$0xf]
  %v6183 = vld [vmem:[%s6138 + $0x108] sm:$0xff]
  %v6184 = vld [vmem:[%s6138 + $0x110] sm:$0xf]
  %v6185 = vld [vmem:[%s6138 + $0x114] sm:$0xff]
  %v6186 = vld [vmem:[%s6138 + $0x11c] sm:$0xf]
  %v6187 = vld [vmem:[%s6138 + $0x120] sm:$0xff]
  %v6188 = vld [vmem:[%s6138 + $0x128] sm:$0xf]
  %v6189 = vld [vmem:[%s6138 + $0x12c] sm:$0xff]
  %v6190 = vld [vmem:[%s6138 + $0x134] sm:$0xf]
  %v6191 = vld [vmem:[%s6138 + $0x138] sm:$0xff]
  %v6192 = vld [vmem:[%s6138 + $0x140] sm:$0xf]
  %v6193 = vld [vmem:[%s6138 + $0x144] sm:$0xff]
  %v6194 = vld [vmem:[%s6138 + $0x14c] sm:$0xf]
  %v6196 = vunpack.c.l.b16 %v4550
  %v6197 = vunpack.c.h.b16 %v4550
  %v6198 = vpack.c.b16 %v6196, %v5672
  %v6199 = vpack.c.b16 %v6197, %v5673
  %v6257 = vunpack.c.l.b16 %v6139
  %v6258 = vunpack.c.h.b16 %v6139
  %v6259 = vunpack.c.l.b16 %v6140
  %v6260 = vunpack.c.l.b16 %v6141
  %v6261 = vunpack.c.h.b16 %v6141
  %v6262 = vunpack.c.l.b16 %v6142
  %v6263 = vunpack.c.l.b16 %v6143
  %v6264 = vunpack.c.h.b16 %v6143
  %v6265 = vunpack.c.l.b16 %v6144
  %v6266 = vunpack.c.l.b16 %v6145
  %v6267 = vunpack.c.h.b16 %v6145
  %v6268 = vunpack.c.l.b16 %v6146
  %v6269 = vunpack.c.l.b16 %v6147
  %v6270 = vunpack.c.h.b16 %v6147
  %v6271 = vunpack.c.l.b16 %v6148
  %v6272 = vunpack.c.l.b16 %v6149
  %v6273 = vunpack.c.h.b16 %v6149
  %v6274 = vunpack.c.l.b16 %v6150
  %v6275 = vunpack.c.l.b16 %v6151
  %v6276 = vunpack.c.h.b16 %v6151
  %v6277 = vunpack.c.l.b16 %v6152
  %v6278 = vunpack.c.l.b16 %v6153
  %v6279 = vunpack.c.h.b16 %v6153
  %v6280 = vunpack.c.l.b16 %v6154
  %v6281 = vunpack.c.l.b16 %v6155
  %v6282 = vunpack.c.h.b16 %v6155
  %v6283 = vunpack.c.l.b16 %v6156
  %v6284 = vunpack.c.l.b16 %v6157
  %v6285 = vunpack.c.h.b16 %v6157
  %v6286 = vunpack.c.l.b16 %v6158
  %v6287 = vunpack.c.l.b16 %v6159
  %v6288 = vunpack.c.h.b16 %v6159
  %v6289 = vunpack.c.l.b16 %v6160
  %v6290 = vunpack.c.l.b16 %v6161
  %v6291 = vunpack.c.h.b16 %v6161
  %v6292 = vunpack.c.l.b16 %v6162
  %v6293 = vunpack.c.l.b16 %v6163
  %v6294 = vunpack.c.h.b16 %v6163
  %v6295 = vunpack.c.l.b16 %v6164
  %v6296 = vunpack.c.l.b16 %v6165
  %v6297 = vunpack.c.h.b16 %v6165
  %v6298 = vunpack.c.l.b16 %v6166
  %v6299 = vunpack.c.l.b16 %v6167
  %v6300 = vunpack.c.h.b16 %v6167
  %v6301 = vunpack.c.l.b16 %v6168
  %v6302 = vunpack.c.l.b16 %v6169
  %v6303 = vunpack.c.h.b16 %v6169
  %v6304 = vunpack.c.l.b16 %v6170
  %v6305 = vunpack.c.l.b16 %v6171
  %v6306 = vunpack.c.h.b16 %v6171
  %v6307 = vunpack.c.l.b16 %v6172
  %v6308 = vunpack.c.l.b16 %v6173
  %v6309 = vunpack.c.h.b16 %v6173
  %v6310 = vunpack.c.l.b16 %v6174
  %v6311 = vunpack.c.l.b16 %v6175
  %v6312 = vunpack.c.h.b16 %v6175
  %v6313 = vunpack.c.l.b16 %v6176
  %v6314 = vunpack.c.l.b16 %v6177
  %v6315 = vunpack.c.h.b16 %v6177
  %v6316 = vunpack.c.l.b16 %v6178
  %v6317 = vunpack.c.l.b16 %v6179
  %v6318 = vunpack.c.h.b16 %v6179
  %v6319 = vunpack.c.l.b16 %v6180
  %v6320 = vunpack.c.l.b16 %v6181
  %v6321 = vunpack.c.h.b16 %v6181
  %v6322 = vunpack.c.l.b16 %v6182
  %v6323 = vunpack.c.l.b16 %v6183
  %v6324 = vunpack.c.h.b16 %v6183
  %v6325 = vunpack.c.l.b16 %v6184
  %v6326 = vunpack.c.l.b16 %v6185
  %v6327 = vunpack.c.h.b16 %v6185
  %v6328 = vunpack.c.l.b16 %v6186
  %v6329 = vunpack.c.l.b16 %v6187
  %v6330 = vunpack.c.h.b16 %v6187
  %v6331 = vunpack.c.l.b16 %v6188
  %v6332 = vunpack.c.l.b16 %v6189
  %v6333 = vunpack.c.h.b16 %v6189
  %v6334 = vunpack.c.l.b16 %v6190
  %v6335 = vunpack.c.l.b16 %v6191
  %v6336 = vunpack.c.h.b16 %v6191
  %v6337 = vunpack.c.l.b16 %v6192
  %v6338 = vunpack.c.l.b16 %v6193
  %v6339 = vunpack.c.h.b16 %v6193
  %v6340 = vunpack.c.l.b16 %v6194
  %v6341 = vpack.c.b16 %v6260, %v6257
  %v6342 = vpack.c.b16 %v6261, %v6258
  %v6343 = vpack.c.b16 %v6262, %v6259
  %v6344 = vpack.c.b16 %v6266, %v6263
  %v6345 = vpack.c.b16 %v6267, %v6264
  %v6346 = vpack.c.b16 %v6268, %v6265
  %v6347 = vpack.c.b16 %v6272, %v6269
  %v6348 = vpack.c.b16 %v6273, %v6270
  %v6349 = vpack.c.b16 %v6274, %v6271
  %v6350 = vpack.c.b16 %v6278, %v6275
  %v6351 = vpack.c.b16 %v6279, %v6276
  %v6352 = vpack.c.b16 %v6280, %v6277
  %v6353 = vpack.c.b16 %v6284, %v6281
  %v6354 = vpack.c.b16 %v6285, %v6282
  %v6355 = vpack.c.b16 %v6286, %v6283
  %v6356 = vpack.c.b16 %v6290, %v6287
  %v6357 = vpack.c.b16 %v6291, %v6288
  %v6358 = vpack.c.b16 %v6292, %v6289
  %v6359 = vpack.c.b16 %v6296, %v6293
  %v6360 = vpack.c.b16 %v6297, %v6294
  %v6361 = vpack.c.b16 %v6298, %v6295
  %v6362 = vpack.c.b16 %v6302, %v6299
  %v6363 = vpack.c.b16 %v6303, %v6300
  %v6364 = vpack.c.b16 %v6304, %v6301
  %v6365 = vpack.c.b16 %v6308, %v6305
  %v6366 = vpack.c.b16 %v6309, %v6306
  %v6367 = vpack.c.b16 %v6310, %v6307
  %v6368 = vpack.c.b16 %v6314, %v6311
  %v6369 = vpack.c.b16 %v6315, %v6312
  %v6370 = vpack.c.b16 %v6316, %v6313
  %v6371 = vpack.c.b16 %v6320, %v6317
  %v6372 = vpack.c.b16 %v6321, %v6318
  %v6373 = vpack.c.b16 %v6322, %v6319
  %v6374 = vpack.c.b16 %v6326, %v6323
  %v6375 = vpack.c.b16 %v6327, %v6324
  %v6376 = vpack.c.b16 %v6328, %v6325
  %v6377 = vpack.c.b16 %v6332, %v6329
  %v6378 = vpack.c.b16 %v6333, %v6330
  %v6379 = vpack.c.b16 %v6334, %v6331
  %v6380 = vpack.c.b16 %v6338, %v6335
  %v6381 = vpack.c.b16 %v6339, %v6336
  %v6382 = vpack.c.b16 %v6340, %v6337
  %v6426 = vsel %vm316, %v6199, 0
  %6428 = vmatpush.bf16.msra.mxu0 %v6362
  %6429 = vmatpush.bf16.msra.mxu0 %v6359
  %6430 = vmatpush.bf16.msra.mxu0 %v6356
  %6431 = vmatpush.bf16.msra.mxu0 %v6353
  %6432 = vmatpush.bf16.msra.mxu0 %v6350
  %6433 = vmatpush.bf16.msra.mxu0 %v6347
  %6434 = vmatpush.bf16.msra.mxu0 %v6344
  %6435 = vmatpush.bf16.msra.mxu0 %v6341
  %6436 = vmatmul.bf16.gmra.mxu0 %v4697
  %v6437 = vpop.f32.mrf.mxu0
  %v6438 = vadd.f32 0.0, %v6437
  %v6439 = vpop.f32.mrf.mxu0
  %v6440 = vadd.f32 0.0, %v6439
  %6441 = vmatmul.bf16.gmra.mxu0 %v4699
  %v6442 = vpop.f32.mrf.mxu0
  %v6443 = vadd.f32 0.0, %v6442
  %v6444 = vpop.f32.mrf.mxu0
  %v6445 = vadd.f32 0.0, %v6444
  %6446 = vmatmul.bf16.gmra.mxu0 %v4701
  %v6447 = vpop.f32.mrf.mxu0
  %v6448 = vadd.f32 0.0, %v6447
  %v6449 = vpop.f32.mrf.mxu0
  %v6450 = vadd.f32 0.0, %v6449
  %6451 = vmatmul.bf16.gmra.mxu0 %v4703
  %v6452 = vpop.f32.mrf.mxu0
  %v6453 = vadd.f32 0.0, %v6452
  %v6454 = vpop.f32.mrf.mxu0
  %v6455 = vadd.f32 0.0, %v6454
  %6456 = vmatmul.bf16.gmra.mxu0 %v6198
  %v6457 = vpop.f32.mrf.mxu0
  %v6458 = vadd.f32 0.0, %v6457
  %v6459 = vpop.f32.mrf.mxu0
  %v6460 = vadd.f32 0.0, %v6459
  %6461 = vdwg.mxu0
  %6462 = vmatpush.bf16.msra.mxu0 0
  %6463 = vmatpush.bf16.msra.mxu0 0
  %6464 = vmatpush.bf16.msra.mxu0 %v6380
  %6465 = vmatpush.bf16.msra.mxu0 %v6377
  %6466 = vmatpush.bf16.msra.mxu0 %v6374
  %6467 = vmatpush.bf16.msra.mxu0 %v6371
  %6468 = vmatpush.bf16.msra.mxu0 %v6368
  %6469 = vmatpush.bf16.msra.mxu0 %v6365
  %6470 = vmatmul.bf16.gmra.mxu0 %v4938
  %v6471 = vpop.f32.mrf.mxu0
  %v6472 = vadd.f32 %v6438, %v6471
  %v6473 = vpop.f32.mrf.mxu0
  %v6474 = vadd.f32 %v6440, %v6473
  %6475 = vmatmul.bf16.gmra.mxu0 %v4941
  %v6476 = vpop.f32.mrf.mxu0
  %v6477 = vadd.f32 %v6443, %v6476
  %v6478 = vpop.f32.mrf.mxu0
  %v6479 = vadd.f32 %v6445, %v6478
  %6480 = vmatmul.bf16.gmra.mxu0 %v4944
  %v6481 = vpop.f32.mrf.mxu0
  %v6482 = vadd.f32 %v6448, %v6481
  %v6483 = vpop.f32.mrf.mxu0
  %v6484 = vadd.f32 %v6450, %v6483
  %6485 = vmatmul.bf16.gmra.mxu0 %v4947
  %v6486 = vpop.f32.mrf.mxu0
  %v6487 = vadd.f32 %v6453, %v6486
  %v6488 = vpop.f32.mrf.mxu0
  %v6489 = vadd.f32 %v6455, %v6488
  %6490 = vmatmul.bf16.gmra.mxu0 %v6426
  %v6491 = vpop.f32.mrf.mxu0
  %v6492 = vadd.f32 %v6458, %v6491
  %v6493 = vpop.f32.mrf.mxu0
  %v6494 = vadd.f32 %v6460, %v6493
  %6495 = vdwg.mxu0
  %6496 = vmatpush.bf16.msra.mxu0 %v6363
  %6497 = vmatpush.bf16.msra.mxu0 %v6360
  %6498 = vmatpush.bf16.msra.mxu0 %v6357
  %6499 = vmatpush.bf16.msra.mxu0 %v6354
  %6500 = vmatpush.bf16.msra.mxu0 %v6351
  %6501 = vmatpush.bf16.msra.mxu0 %v6348
  %6502 = vmatpush.bf16.msra.mxu0 %v6345
  %6503 = vmatpush.bf16.msra.mxu0 %v6342
  %6504 = vmatmul.bf16.gmra.mxu0 %v4697
  %v6505 = vpop.f32.mrf.mxu0
  %v6506 = vadd.f32 0.0, %v6505
  %v6507 = vpop.f32.mrf.mxu0
  %v6508 = vadd.f32 0.0, %v6507
  %6509 = vmatmul.bf16.gmra.mxu0 %v4699
  %v6510 = vpop.f32.mrf.mxu0
  %v6511 = vadd.f32 0.0, %v6510
  %v6512 = vpop.f32.mrf.mxu0
  %v6513 = vadd.f32 0.0, %v6512
  %6514 = vmatmul.bf16.gmra.mxu0 %v4701
  %v6515 = vpop.f32.mrf.mxu0
  %v6516 = vadd.f32 0.0, %v6515
  %v6517 = vpop.f32.mrf.mxu0
  %v6518 = vadd.f32 0.0, %v6517
  %6519 = vmatmul.bf16.gmra.mxu0 %v4703
  %v6520 = vpop.f32.mrf.mxu0
  %v6521 = vadd.f32 0.0, %v6520
  %v6522 = vpop.f32.mrf.mxu0
  %v6523 = vadd.f32 0.0, %v6522
  %6524 = vmatmul.bf16.gmra.mxu0 %v6198
  %v6525 = vpop.f32.mrf.mxu0
  %v6526 = vadd.f32 0.0, %v6525
  %v6527 = vpop.f32.mrf.mxu0
  %v6528 = vadd.f32 0.0, %v6527
  %6529 = vdwg.mxu0
  %6530 = vmatpush.bf16.msra.mxu0 0
  %6531 = vmatpush.bf16.msra.mxu0 0
  %6532 = vmatpush.bf16.msra.mxu0 %v6381
  %6533 = vmatpush.bf16.msra.mxu0 %v6378
  %6534 = vmatpush.bf16.msra.mxu0 %v6375
  %6535 = vmatpush.bf16.msra.mxu0 %v6372
  %6536 = vmatpush.bf16.msra.mxu0 %v6369
  %6537 = vmatpush.bf16.msra.mxu0 %v6366
  %6538 = vmatmul.bf16.gmra.mxu0 %v4938
  %v6539 = vpop.f32.mrf.mxu0
  %v6540 = vadd.f32 %v6506, %v6539
  %v6541 = vpop.f32.mrf.mxu0
  %v6542 = vadd.f32 %v6508, %v6541
  %6543 = vmatmul.bf16.gmra.mxu0 %v4941
  %v6544 = vpop.f32.mrf.mxu0
  %v6545 = vadd.f32 %v6511, %v6544
  %v6546 = vpop.f32.mrf.mxu0
  %v6547 = vadd.f32 %v6513, %v6546
  %6548 = vmatmul.bf16.gmra.mxu0 %v4944
  %v6549 = vpop.f32.mrf.mxu0
  %v6550 = vadd.f32 %v6516, %v6549
  %v6551 = vpop.f32.mrf.mxu0
  %v6552 = vadd.f32 %v6518, %v6551
  %6553 = vmatmul.bf16.gmra.mxu0 %v4947
  %v6554 = vpop.f32.mrf.mxu0
  %v6555 = vadd.f32 %v6521, %v6554
  %v6556 = vpop.f32.mrf.mxu0
  %v6557 = vadd.f32 %v6523, %v6556
  %6558 = vmatmul.bf16.gmra.mxu0 %v6426
  %v6559 = vpop.f32.mrf.mxu0
  %v6560 = vadd.f32 %v6526, %v6559
  %v6561 = vpop.f32.mrf.mxu0
  %v6562 = vadd.f32 %v6528, %v6561
  %6563 = vdwg.mxu0
  %6564 = vmatpush.bf16.msra.mxu0 %v6364
  %6565 = vmatpush.bf16.msra.mxu0 %v6361
  %6566 = vmatpush.bf16.msra.mxu0 %v6358
  %6567 = vmatpush.bf16.msra.mxu0 %v6355
  %6568 = vmatpush.bf16.msra.mxu0 %v6352
  %6569 = vmatpush.bf16.msra.mxu0 %v6349
  %6570 = vmatpush.bf16.msra.mxu0 %v6346
  %6571 = vmatpush.bf16.msra.mxu0 %v6343
  %6572 = vmatmul.bf16.gmra.mxu0 %v4697
  %v6573 = vpop.f32.mrf.mxu0
  %v6574 = vadd.f32 0.0, %v6573
  %v6575 = vpop.f32.mrf.mxu0
  %v6576 = vadd.f32 0.0, %v6575
  %6577 = vmatmul.bf16.gmra.mxu0 %v4699
  %v6578 = vpop.f32.mrf.mxu0
  %v6579 = vadd.f32 0.0, %v6578
  %v6580 = vpop.f32.mrf.mxu0
  %v6581 = vadd.f32 0.0, %v6580
  %6582 = vmatmul.bf16.gmra.mxu0 %v4701
  %v6583 = vpop.f32.mrf.mxu0
  %v6584 = vadd.f32 0.0, %v6583
  %v6585 = vpop.f32.mrf.mxu0
  %v6586 = vadd.f32 0.0, %v6585
  %6587 = vmatmul.bf16.gmra.mxu0 %v4703
  %v6588 = vpop.f32.mrf.mxu0
  %v6589 = vadd.f32 0.0, %v6588
  %v6590 = vpop.f32.mrf.mxu0
  %v6591 = vadd.f32 0.0, %v6590
  %6592 = vmatmul.bf16.gmra.mxu0 %v6198
  %v6593 = vpop.f32.mrf.mxu0
  %v6594 = vadd.f32 0.0, %v6593
  %v6595 = vpop.f32.mrf.mxu0
  %v6596 = vadd.f32 0.0, %v6595
  %6597 = vdwg.mxu0
  %6598 = vmatpush.bf16.msra.mxu0 0
  %6599 = vmatpush.bf16.msra.mxu0 0
  %6600 = vmatpush.bf16.msra.mxu0 %v6382
  %6601 = vmatpush.bf16.msra.mxu0 %v6379
  %6602 = vmatpush.bf16.msra.mxu0 %v6376
  %6603 = vmatpush.bf16.msra.mxu0 %v6373
  %6604 = vmatpush.bf16.msra.mxu0 %v6370
  %6605 = vmatpush.bf16.msra.mxu0 %v6367
  %6606 = vmatmul.bf16.gmra.mxu0 %v4938
  %v6607 = vpop.f32.mrf.mxu0
  %v6608 = vadd.f32 %v6574, %v6607
  %v6609 = vpop.f32.mrf.mxu0
  %v6610 = vadd.f32 %v6576, %v6609
  %6611 = vmatmul.bf16.gmra.mxu0 %v4941
  %v6612 = vpop.f32.mrf.mxu0
  %v6613 = vadd.f32 %v6579, %v6612
  %v6614 = vpop.f32.mrf.mxu0
  %v6615 = vadd.f32 %v6581, %v6614
  %6616 = vmatmul.bf16.gmra.mxu0 %v4944
  %v6617 = vpop.f32.mrf.mxu0
  %v6618 = vadd.f32 %v6584, %v6617
  %v6619 = vpop.f32.mrf.mxu0
  %v6620 = vadd.f32 %v6586, %v6619
  %6621 = vmatmul.bf16.gmra.mxu0 %v4947
  %v6622 = vpop.f32.mrf.mxu0
  %v6623 = vadd.f32 %v6589, %v6622
  %v6624 = vpop.f32.mrf.mxu0
  %v6625 = vadd.f32 %v6591, %v6624
  %6626 = vmatmul.bf16.gmra.mxu0 %v6426
  %v6627 = vpop.f32.mrf.mxu0
  %v6628 = vadd.f32 %v6594, %v6627
  %v6629 = vpop.f32.mrf.mxu0
  %v6630 = vadd.f32 %v6596, %v6629
  %6631 = vdwg.mxu0
  %v6632 = vadd.f32 %v6108, %v6472
  %v6633 = vadd.f32 %v6109, %v6540
  %v6634 = vadd.f32 %v6110, %v6608
  %v6635 = vadd.f32 %v6111, %v6474
  %v6636 = vadd.f32 %v6112, %v6542
  %v6637 = vadd.f32 %v6113, %v6610
  %v6638 = vadd.f32 %v6114, %v6477
  %v6639 = vadd.f32 %v6115, %v6545
  %v6640 = vadd.f32 %v6116, %v6613
  %v6641 = vadd.f32 %v6117, %v6479
  %v6642 = vadd.f32 %v6118, %v6547
  %v6643 = vadd.f32 %v6119, %v6615
  %v6644 = vadd.f32 %v6120, %v6482
  %v6645 = vadd.f32 %v6121, %v6550
  %v6646 = vadd.f32 %v6122, %v6618
  %v6647 = vadd.f32 %v6123, %v6484
  %v6648 = vadd.f32 %v6124, %v6552
  %v6649 = vadd.f32 %v6125, %v6620
  %v6650 = vadd.f32 %v6126, %v6487
  %v6651 = vadd.f32 %v6127, %v6555
  %v6652 = vadd.f32 %v6128, %v6623
  %v6653 = vadd.f32 %v6129, %v6489
  %v6654 = vadd.f32 %v6130, %v6557
  %v6655 = vadd.f32 %v6131, %v6625
  %v6656 = vadd.f32 %v6132, %v6492
  %v6657 = vadd.f32 %v6133, %v6560
  %v6658 = vadd.f32 %v6134, %v6628
  %v6659 = vadd.f32 %v6135, %v6494
  %v6660 = vadd.f32 %v6136, %v6562
  %v6661 = vadd.f32 %v6137, %v6630
  %s6662 = scalar_lea.vmem %s3, 1344
  %v6663 = vld [vmem:[%s6662] sm:$0xff]
  %v6664 = vld [vmem:[%s6662 + $0x8] sm:$0xf]
  %v6665 = vld [vmem:[%s6662 + $0xc] sm:$0xff]
  %v6666 = vld [vmem:[%s6662 + $0x14] sm:$0xf]
  %v6667 = vld [vmem:[%s6662 + $0x18] sm:$0xff]
  %v6668 = vld [vmem:[%s6662 + $0x20] sm:$0xf]
  %v6669 = vld [vmem:[%s6662 + $0x24] sm:$0xff]
  %v6670 = vld [vmem:[%s6662 + $0x2c] sm:$0xf]
  %v6671 = vld [vmem:[%s6662 + $0x30] sm:$0xff]
  %v6672 = vld [vmem:[%s6662 + $0x38] sm:$0xf]
  %v6673 = vld [vmem:[%s6662 + $0x3c] sm:$0xff]
  %v6674 = vld [vmem:[%s6662 + $0x44] sm:$0xf]
  %v6675 = vld [vmem:[%s6662 + $0x48] sm:$0xff]
  %v6676 = vld [vmem:[%s6662 + $0x50] sm:$0xf]
  %v6677 = vld [vmem:[%s6662 + $0x54] sm:$0xff]
  %v6678 = vld [vmem:[%s6662 + $0x5c] sm:$0xf]
  %v6679 = vld [vmem:[%s6662 + $0x60] sm:$0xff]
  %v6680 = vld [vmem:[%s6662 + $0x68] sm:$0xf]
  %v6681 = vld [vmem:[%s6662 + $0x6c] sm:$0xff]
  %v6682 = vld [vmem:[%s6662 + $0x74] sm:$0xf]
  %v6683 = vld [vmem:[%s6662 + $0x78] sm:$0xff]
  %v6684 = vld [vmem:[%s6662 + $0x80] sm:$0xf]
  %v6685 = vld [vmem:[%s6662 + $0x84] sm:$0xff]
  %v6686 = vld [vmem:[%s6662 + $0x8c] sm:$0xf]
  %v6687 = vld [vmem:[%s6662 + $0x90] sm:$0xff]
  %v6688 = vld [vmem:[%s6662 + $0x98] sm:$0xf]
  %v6689 = vld [vmem:[%s6662 + $0x9c] sm:$0xff]
  %v6690 = vld [vmem:[%s6662 + $0xa4] sm:$0xf]
  %v6691 = vld [vmem:[%s6662 + $0xa8] sm:$0xff]
  %v6692 = vld [vmem:[%s6662 + $0xb0] sm:$0xf]
  %v6693 = vld [vmem:[%s6662 + $0xb4] sm:$0xff]
  %v6694 = vld [vmem:[%s6662 + $0xbc] sm:$0xf]
  %v6695 = vld [vmem:[%s6662 + $0xc0] sm:$0xff]
  %v6696 = vld [vmem:[%s6662 + $0xc8] sm:$0xf]
  %v6697 = vld [vmem:[%s6662 + $0xcc] sm:$0xff]
  %v6698 = vld [vmem:[%s6662 + $0xd4] sm:$0xf]
  %v6699 = vld [vmem:[%s6662 + $0xd8] sm:$0xff]
  %v6700 = vld [vmem:[%s6662 + $0xe0] sm:$0xf]
  %v6701 = vld [vmem:[%s6662 + $0xe4] sm:$0xff]
  %v6702 = vld [vmem:[%s6662 + $0xec] sm:$0xf]
  %v6703 = vld [vmem:[%s6662 + $0xf0] sm:$0xff]
  %v6704 = vld [vmem:[%s6662 + $0xf8] sm:$0xf]
  %v6705 = vld [vmem:[%s6662 + $0xfc] sm:$0xff]
  %v6706 = vld [vmem:[%s6662 + $0x104] sm:$0xf]
  %v6707 = vld [vmem:[%s6662 + $0x108] sm:$0xff]
  %v6708 = vld [vmem:[%s6662 + $0x110] sm:$0xf]
  %v6709 = vld [vmem:[%s6662 + $0x114] sm:$0xff]
  %v6710 = vld [vmem:[%s6662 + $0x11c] sm:$0xf]
  %v6711 = vld [vmem:[%s6662 + $0x120] sm:$0xff]
  %v6712 = vld [vmem:[%s6662 + $0x128] sm:$0xf]
  %v6713 = vld [vmem:[%s6662 + $0x12c] sm:$0xff]
  %v6714 = vld [vmem:[%s6662 + $0x134] sm:$0xf]
  %v6715 = vld [vmem:[%s6662 + $0x138] sm:$0xff]
  %v6716 = vld [vmem:[%s6662 + $0x140] sm:$0xf]
  %v6717 = vld [vmem:[%s6662 + $0x144] sm:$0xff]
  %v6718 = vld [vmem:[%s6662 + $0x14c] sm:$0xf]
  %v6720 = vunpack.c.l.b16 %v4551
  %v6721 = vunpack.c.h.b16 %v4551
  %v6722 = vpack.c.b16 %v6720, %v6196
  %v6723 = vpack.c.b16 %v6721, %v6197
  %v6781 = vunpack.c.l.b16 %v6663
  %v6782 = vunpack.c.h.b16 %v6663
  %v6783 = vunpack.c.l.b16 %v6664
  %v6784 = vunpack.c.l.b16 %v6665
  %v6785 = vunpack.c.h.b16 %v6665
  %v6786 = vunpack.c.l.b16 %v6666
  %v6787 = vunpack.c.l.b16 %v6667
  %v6788 = vunpack.c.h.b16 %v6667
  %v6789 = vunpack.c.l.b16 %v6668
  %v6790 = vunpack.c.l.b16 %v6669
  %v6791 = vunpack.c.h.b16 %v6669
  %v6792 = vunpack.c.l.b16 %v6670
  %v6793 = vunpack.c.l.b16 %v6671
  %v6794 = vunpack.c.h.b16 %v6671
  %v6795 = vunpack.c.l.b16 %v6672
  %v6796 = vunpack.c.l.b16 %v6673
  %v6797 = vunpack.c.h.b16 %v6673
  %v6798 = vunpack.c.l.b16 %v6674
  %v6799 = vunpack.c.l.b16 %v6675
  %v6800 = vunpack.c.h.b16 %v6675
  %v6801 = vunpack.c.l.b16 %v6676
  %v6802 = vunpack.c.l.b16 %v6677
  %v6803 = vunpack.c.h.b16 %v6677
  %v6804 = vunpack.c.l.b16 %v6678
  %v6805 = vunpack.c.l.b16 %v6679
  %v6806 = vunpack.c.h.b16 %v6679
  %v6807 = vunpack.c.l.b16 %v6680
  %v6808 = vunpack.c.l.b16 %v6681
  %v6809 = vunpack.c.h.b16 %v6681
  %v6810 = vunpack.c.l.b16 %v6682
  %v6811 = vunpack.c.l.b16 %v6683
  %v6812 = vunpack.c.h.b16 %v6683
  %v6813 = vunpack.c.l.b16 %v6684
  %v6814 = vunpack.c.l.b16 %v6685
  %v6815 = vunpack.c.h.b16 %v6685
  %v6816 = vunpack.c.l.b16 %v6686
  %v6817 = vunpack.c.l.b16 %v6687
  %v6818 = vunpack.c.h.b16 %v6687
  %v6819 = vunpack.c.l.b16 %v6688
  %v6820 = vunpack.c.l.b16 %v6689
  %v6821 = vunpack.c.h.b16 %v6689
  %v6822 = vunpack.c.l.b16 %v6690
  %v6823 = vunpack.c.l.b16 %v6691
  %v6824 = vunpack.c.h.b16 %v6691
  %v6825 = vunpack.c.l.b16 %v6692
  %v6826 = vunpack.c.l.b16 %v6693
  %v6827 = vunpack.c.h.b16 %v6693
  %v6828 = vunpack.c.l.b16 %v6694
  %v6829 = vunpack.c.l.b16 %v6695
  %v6830 = vunpack.c.h.b16 %v6695
  %v6831 = vunpack.c.l.b16 %v6696
  %v6832 = vunpack.c.l.b16 %v6697
  %v6833 = vunpack.c.h.b16 %v6697
  %v6834 = vunpack.c.l.b16 %v6698
  %v6835 = vunpack.c.l.b16 %v6699
  %v6836 = vunpack.c.h.b16 %v6699
  %v6837 = vunpack.c.l.b16 %v6700
  %v6838 = vunpack.c.l.b16 %v6701
  %v6839 = vunpack.c.h.b16 %v6701
  %v6840 = vunpack.c.l.b16 %v6702
  %v6841 = vunpack.c.l.b16 %v6703
  %v6842 = vunpack.c.h.b16 %v6703
  %v6843 = vunpack.c.l.b16 %v6704
  %v6844 = vunpack.c.l.b16 %v6705
  %v6845 = vunpack.c.h.b16 %v6705
  %v6846 = vunpack.c.l.b16 %v6706
  %v6847 = vunpack.c.l.b16 %v6707
  %v6848 = vunpack.c.h.b16 %v6707
  %v6849 = vunpack.c.l.b16 %v6708
  %v6850 = vunpack.c.l.b16 %v6709
  %v6851 = vunpack.c.h.b16 %v6709
  %v6852 = vunpack.c.l.b16 %v6710
  %v6853 = vunpack.c.l.b16 %v6711
  %v6854 = vunpack.c.h.b16 %v6711
  %v6855 = vunpack.c.l.b16 %v6712
  %v6856 = vunpack.c.l.b16 %v6713
  %v6857 = vunpack.c.h.b16 %v6713
  %v6858 = vunpack.c.l.b16 %v6714
  %v6859 = vunpack.c.l.b16 %v6715
  %v6860 = vunpack.c.h.b16 %v6715
  %v6861 = vunpack.c.l.b16 %v6716
  %v6862 = vunpack.c.l.b16 %v6717
  %v6863 = vunpack.c.h.b16 %v6717
  %v6864 = vunpack.c.l.b16 %v6718
  %v6865 = vpack.c.b16 %v6784, %v6781
  %v6866 = vpack.c.b16 %v6785, %v6782
  %v6867 = vpack.c.b16 %v6786, %v6783
  %v6868 = vpack.c.b16 %v6790, %v6787
  %v6869 = vpack.c.b16 %v6791, %v6788
  %v6870 = vpack.c.b16 %v6792, %v6789
  %v6871 = vpack.c.b16 %v6796, %v6793
  %v6872 = vpack.c.b16 %v6797, %v6794
  %v6873 = vpack.c.b16 %v6798, %v6795
  %v6874 = vpack.c.b16 %v6802, %v6799
  %v6875 = vpack.c.b16 %v6803, %v6800
  %v6876 = vpack.c.b16 %v6804, %v6801
  %v6877 = vpack.c.b16 %v6808, %v6805
  %v6878 = vpack.c.b16 %v6809, %v6806
  %v6879 = vpack.c.b16 %v6810, %v6807
  %v6880 = vpack.c.b16 %v6814, %v6811
  %v6881 = vpack.c.b16 %v6815, %v6812
  %v6882 = vpack.c.b16 %v6816, %v6813
  %v6883 = vpack.c.b16 %v6820, %v6817
  %v6884 = vpack.c.b16 %v6821, %v6818
  %v6885 = vpack.c.b16 %v6822, %v6819
  %v6886 = vpack.c.b16 %v6826, %v6823
  %v6887 = vpack.c.b16 %v6827, %v6824
  %v6888 = vpack.c.b16 %v6828, %v6825
  %v6889 = vpack.c.b16 %v6832, %v6829
  %v6890 = vpack.c.b16 %v6833, %v6830
  %v6891 = vpack.c.b16 %v6834, %v6831
  %v6892 = vpack.c.b16 %v6838, %v6835
  %v6893 = vpack.c.b16 %v6839, %v6836
  %v6894 = vpack.c.b16 %v6840, %v6837
  %v6895 = vpack.c.b16 %v6844, %v6841
  %v6896 = vpack.c.b16 %v6845, %v6842
  %v6897 = vpack.c.b16 %v6846, %v6843
  %v6898 = vpack.c.b16 %v6850, %v6847
  %v6899 = vpack.c.b16 %v6851, %v6848
  %v6900 = vpack.c.b16 %v6852, %v6849
  %v6901 = vpack.c.b16 %v6856, %v6853
  %v6902 = vpack.c.b16 %v6857, %v6854
  %v6903 = vpack.c.b16 %v6858, %v6855
  %v6904 = vpack.c.b16 %v6862, %v6859
  %v6905 = vpack.c.b16 %v6863, %v6860
  %v6906 = vpack.c.b16 %v6864, %v6861
  %v6950 = vsel %vm316, %v6723, 0
  %6952 = vmatpush.bf16.msra.mxu0 %v6886
  %6953 = vmatpush.bf16.msra.mxu0 %v6883
  %6954 = vmatpush.bf16.msra.mxu0 %v6880
  %6955 = vmatpush.bf16.msra.mxu0 %v6877
  %6956 = vmatpush.bf16.msra.mxu0 %v6874
  %6957 = vmatpush.bf16.msra.mxu0 %v6871
  %6958 = vmatpush.bf16.msra.mxu0 %v6868
  %6959 = vmatpush.bf16.msra.mxu0 %v6865
  %6960 = vmatmul.bf16.gmra.mxu0 %v5160
  %v6961 = vpop.f32.mrf.mxu0
  %v6962 = vadd.f32 0.0, %v6961
  %v6963 = vpop.f32.mrf.mxu0
  %v6964 = vadd.f32 0.0, %v6963
  %6965 = vmatmul.bf16.gmra.mxu0 %v5162
  %v6966 = vpop.f32.mrf.mxu0
  %v6967 = vadd.f32 0.0, %v6966
  %v6968 = vpop.f32.mrf.mxu0
  %v6969 = vadd.f32 0.0, %v6968
  %6970 = vmatmul.bf16.gmra.mxu0 %v5164
  %v6971 = vpop.f32.mrf.mxu0
  %v6972 = vadd.f32 0.0, %v6971
  %v6973 = vpop.f32.mrf.mxu0
  %v6974 = vadd.f32 0.0, %v6973
  %6975 = vmatmul.bf16.gmra.mxu0 %v5674
  %v6976 = vpop.f32.mrf.mxu0
  %v6977 = vadd.f32 0.0, %v6976
  %v6978 = vpop.f32.mrf.mxu0
  %v6979 = vadd.f32 0.0, %v6978
  %6980 = vmatmul.bf16.gmra.mxu0 %v6722
  %v6981 = vpop.f32.mrf.mxu0
  %v6982 = vadd.f32 0.0, %v6981
  %v6983 = vpop.f32.mrf.mxu0
  %v6984 = vadd.f32 0.0, %v6983
  %6985 = vdwg.mxu0
  %6986 = vmatpush.bf16.msra.mxu0 0
  %6987 = vmatpush.bf16.msra.mxu0 0
  %6988 = vmatpush.bf16.msra.mxu0 %v6904
  %6989 = vmatpush.bf16.msra.mxu0 %v6901
  %6990 = vmatpush.bf16.msra.mxu0 %v6898
  %6991 = vmatpush.bf16.msra.mxu0 %v6895
  %6992 = vmatpush.bf16.msra.mxu0 %v6892
  %6993 = vmatpush.bf16.msra.mxu0 %v6889
  %6994 = vmatmul.bf16.gmra.mxu0 %v5402
  %v6995 = vpop.f32.mrf.mxu0
  %v6996 = vadd.f32 %v6962, %v6995
  %v6997 = vpop.f32.mrf.mxu0
  %v6998 = vadd.f32 %v6964, %v6997
  %6999 = vmatmul.bf16.gmra.mxu0 %v5405
  %v7000 = vpop.f32.mrf.mxu0
  %v7001 = vadd.f32 %v6967, %v7000
  %v7002 = vpop.f32.mrf.mxu0
  %v7003 = vadd.f32 %v6969, %v7002
  %7004 = vmatmul.bf16.gmra.mxu0 %v5408
  %v7005 = vpop.f32.mrf.mxu0
  %v7006 = vadd.f32 %v6972, %v7005
  %v7007 = vpop.f32.mrf.mxu0
  %v7008 = vadd.f32 %v6974, %v7007
  %7009 = vmatmul.bf16.gmra.mxu0 %v5902
  %v7010 = vpop.f32.mrf.mxu0
  %v7011 = vadd.f32 %v6977, %v7010
  %v7012 = vpop.f32.mrf.mxu0
  %v7013 = vadd.f32 %v6979, %v7012
  %7014 = vmatmul.bf16.gmra.mxu0 %v6950
  %v7015 = vpop.f32.mrf.mxu0
  %v7016 = vadd.f32 %v6982, %v7015
  %v7017 = vpop.f32.mrf.mxu0
  %v7018 = vadd.f32 %v6984, %v7017
  %7019 = vdwg.mxu0
  %7020 = vmatpush.bf16.msra.mxu0 %v6887
  %7021 = vmatpush.bf16.msra.mxu0 %v6884
  %7022 = vmatpush.bf16.msra.mxu0 %v6881
  %7023 = vmatpush.bf16.msra.mxu0 %v6878
  %7024 = vmatpush.bf16.msra.mxu0 %v6875
  %7025 = vmatpush.bf16.msra.mxu0 %v6872
  %7026 = vmatpush.bf16.msra.mxu0 %v6869
  %7027 = vmatpush.bf16.msra.mxu0 %v6866
  %7028 = vmatmul.bf16.gmra.mxu0 %v5160
  %v7029 = vpop.f32.mrf.mxu0
  %v7030 = vadd.f32 0.0, %v7029
  %v7031 = vpop.f32.mrf.mxu0
  %v7032 = vadd.f32 0.0, %v7031
  %7033 = vmatmul.bf16.gmra.mxu0 %v5162
  %v7034 = vpop.f32.mrf.mxu0
  %v7035 = vadd.f32 0.0, %v7034
  %v7036 = vpop.f32.mrf.mxu0
  %v7037 = vadd.f32 0.0, %v7036
  %7038 = vmatmul.bf16.gmra.mxu0 %v5164
  %v7039 = vpop.f32.mrf.mxu0
  %v7040 = vadd.f32 0.0, %v7039
  %v7041 = vpop.f32.mrf.mxu0
  %v7042 = vadd.f32 0.0, %v7041
  %7043 = vmatmul.bf16.gmra.mxu0 %v5674
  %v7044 = vpop.f32.mrf.mxu0
  %v7045 = vadd.f32 0.0, %v7044
  %v7046 = vpop.f32.mrf.mxu0
  %v7047 = vadd.f32 0.0, %v7046
  %7048 = vmatmul.bf16.gmra.mxu0 %v6722
  %v7049 = vpop.f32.mrf.mxu0
  %v7050 = vadd.f32 0.0, %v7049
  %v7051 = vpop.f32.mrf.mxu0
  %v7052 = vadd.f32 0.0, %v7051
  %7053 = vdwg.mxu0
  %7054 = vmatpush.bf16.msra.mxu0 0
  %7055 = vmatpush.bf16.msra.mxu0 0
  %7056 = vmatpush.bf16.msra.mxu0 %v6905
  %7057 = vmatpush.bf16.msra.mxu0 %v6902
  %7058 = vmatpush.bf16.msra.mxu0 %v6899
  %7059 = vmatpush.bf16.msra.mxu0 %v6896
  %7060 = vmatpush.bf16.msra.mxu0 %v6893
  %7061 = vmatpush.bf16.msra.mxu0 %v6890
  %7062 = vmatmul.bf16.gmra.mxu0 %v5402
  %v7063 = vpop.f32.mrf.mxu0
  %v7064 = vadd.f32 %v7030, %v7063
  %v7065 = vpop.f32.mrf.mxu0
  %v7066 = vadd.f32 %v7032, %v7065
  %7067 = vmatmul.bf16.gmra.mxu0 %v5405
  %v7068 = vpop.f32.mrf.mxu0
  %v7069 = vadd.f32 %v7035, %v7068
  %v7070 = vpop.f32.mrf.mxu0
  %v7071 = vadd.f32 %v7037, %v7070
  %7072 = vmatmul.bf16.gmra.mxu0 %v5408
  %v7073 = vpop.f32.mrf.mxu0
  %v7074 = vadd.f32 %v7040, %v7073
  %v7075 = vpop.f32.mrf.mxu0
  %v7076 = vadd.f32 %v7042, %v7075
  %7077 = vmatmul.bf16.gmra.mxu0 %v5902
  %v7078 = vpop.f32.mrf.mxu0
  %v7079 = vadd.f32 %v7045, %v7078
  %v7080 = vpop.f32.mrf.mxu0
  %v7081 = vadd.f32 %v7047, %v7080
  %7082 = vmatmul.bf16.gmra.mxu0 %v6950
  %v7083 = vpop.f32.mrf.mxu0
  %v7084 = vadd.f32 %v7050, %v7083
  %v7085 = vpop.f32.mrf.mxu0
  %v7086 = vadd.f32 %v7052, %v7085
  %7087 = vdwg.mxu0
  %7088 = vmatpush.bf16.msra.mxu0 %v6888
  %7089 = vmatpush.bf16.msra.mxu0 %v6885
  %7090 = vmatpush.bf16.msra.mxu0 %v6882
  %7091 = vmatpush.bf16.msra.mxu0 %v6879
  %7092 = vmatpush.bf16.msra.mxu0 %v6876
  %7093 = vmatpush.bf16.msra.mxu0 %v6873
  %7094 = vmatpush.bf16.msra.mxu0 %v6870
  %7095 = vmatpush.bf16.msra.mxu0 %v6867
  %7096 = vmatmul.bf16.gmra.mxu0 %v5160
  %v7097 = vpop.f32.mrf.mxu0
  %v7098 = vadd.f32 0.0, %v7097
  %v7099 = vpop.f32.mrf.mxu0
  %v7100 = vadd.f32 0.0, %v7099
  %7101 = vmatmul.bf16.gmra.mxu0 %v5162
  %v7102 = vpop.f32.mrf.mxu0
  %v7103 = vadd.f32 0.0, %v7102
  %v7104 = vpop.f32.mrf.mxu0
  %v7105 = vadd.f32 0.0, %v7104
  %7106 = vmatmul.bf16.gmra.mxu0 %v5164
  %v7107 = vpop.f32.mrf.mxu0
  %v7108 = vadd.f32 0.0, %v7107
  %v7109 = vpop.f32.mrf.mxu0
  %v7110 = vadd.f32 0.0, %v7109
  %7111 = vmatmul.bf16.gmra.mxu0 %v5674
  %v7112 = vpop.f32.mrf.mxu0
  %v7113 = vadd.f32 0.0, %v7112
  %v7114 = vpop.f32.mrf.mxu0
  %v7115 = vadd.f32 0.0, %v7114
  %7116 = vmatmul.bf16.gmra.mxu0 %v6722
  %v7117 = vpop.f32.mrf.mxu0
  %v7118 = vadd.f32 0.0, %v7117
  %v7119 = vpop.f32.mrf.mxu0
  %v7120 = vadd.f32 0.0, %v7119
  %7121 = vdwg.mxu0
  %7122 = vmatpush.bf16.msra.mxu0 0
  %7123 = vmatpush.bf16.msra.mxu0 0
  %7124 = vmatpush.bf16.msra.mxu0 %v6906
  %7125 = vmatpush.bf16.msra.mxu0 %v6903
  %7126 = vmatpush.bf16.msra.mxu0 %v6900
  %7127 = vmatpush.bf16.msra.mxu0 %v6897
  %7128 = vmatpush.bf16.msra.mxu0 %v6894
  %7129 = vmatpush.bf16.msra.mxu0 %v6891
  %7130 = vmatmul.bf16.gmra.mxu0 %v5402
  %v7131 = vpop.f32.mrf.mxu0
  %v7132 = vadd.f32 %v7098, %v7131
  %v7133 = vpop.f32.mrf.mxu0
  %v7134 = vadd.f32 %v7100, %v7133
  %7135 = vmatmul.bf16.gmra.mxu0 %v5405
  %v7136 = vpop.f32.mrf.mxu0
  %v7137 = vadd.f32 %v7103, %v7136
  %v7138 = vpop.f32.mrf.mxu0
  %v7139 = vadd.f32 %v7105, %v7138
  %7140 = vmatmul.bf16.gmra.mxu0 %v5408
  %v7141 = vpop.f32.mrf.mxu0
  %v7142 = vadd.f32 %v7108, %v7141
  %v7143 = vpop.f32.mrf.mxu0
  %v7144 = vadd.f32 %v7110, %v7143
  %7145 = vmatmul.bf16.gmra.mxu0 %v5902
  %v7146 = vpop.f32.mrf.mxu0
  %v7147 = vadd.f32 %v7113, %v7146
  %v7148 = vpop.f32.mrf.mxu0
  %v7149 = vadd.f32 %v7115, %v7148
  %7150 = vmatmul.bf16.gmra.mxu0 %v6950
  %v7151 = vpop.f32.mrf.mxu0
  %v7152 = vadd.f32 %v7118, %v7151
  %v7153 = vpop.f32.mrf.mxu0
  %v7154 = vadd.f32 %v7120, %v7153
  %7155 = vdwg.mxu0
  %v7156 = vadd.f32 %v6632, %v6996
  %v7157 = vadd.f32 %v6633, %v7064
  %v7158 = vadd.f32 %v6634, %v7132
  %v7159 = vadd.f32 %v6635, %v6998
  %v7160 = vadd.f32 %v6636, %v7066
  %v7161 = vadd.f32 %v6637, %v7134
  %v7162 = vadd.f32 %v6638, %v7001
  %v7163 = vadd.f32 %v6639, %v7069
  %v7164 = vadd.f32 %v6640, %v7137
  %v7165 = vadd.f32 %v6641, %v7003
  %v7166 = vadd.f32 %v6642, %v7071
  %v7167 = vadd.f32 %v6643, %v7139
  %v7168 = vadd.f32 %v6644, %v7006
  %v7169 = vadd.f32 %v6645, %v7074
  %v7170 = vadd.f32 %v6646, %v7142
  %v7171 = vadd.f32 %v6647, %v7008
  %v7172 = vadd.f32 %v6648, %v7076
  %v7173 = vadd.f32 %v6649, %v7144
  %v7174 = vadd.f32 %v6650, %v7011
  %v7175 = vadd.f32 %v6651, %v7079
  %v7176 = vadd.f32 %v6652, %v7147
  %v7177 = vadd.f32 %v6653, %v7013
  %v7178 = vadd.f32 %v6654, %v7081
  %v7179 = vadd.f32 %v6655, %v7149
  %v7180 = vadd.f32 %v6656, %v7016
  %v7181 = vadd.f32 %v6657, %v7084
  %v7182 = vadd.f32 %v6658, %v7152
  %v7183 = vadd.f32 %v6659, %v7018
  %v7184 = vadd.f32 %v6660, %v7086
  %v7185 = vadd.f32 %v6661, %v7154
  %v7186 = vld [vmem:[%s4] sm:$0x7]
  %v7188 = vperm.slane %v7186, 0
  %v7189 = vperm.slane %v7186, 1
  %v7190 = vperm.slane %v7186, 2
  %v7194 = vadd.f32 %v7156, %v7188
  %v7195 = vadd.f32 %v7157, %v7189
  %v7196 = vadd.f32 %v7158, %v7190
  %v7197 = vadd.f32 %v7159, %v7188
  %v7198 = vadd.f32 %v7160, %v7189
  %v7199 = vadd.f32 %v7161, %v7190
  %v7200 = vadd.f32 %v7162, %v7188
  %v7201 = vadd.f32 %v7163, %v7189
  %v7202 = vadd.f32 %v7164, %v7190
  %v7203 = vadd.f32 %v7165, %v7188
  %v7204 = vadd.f32 %v7166, %v7189
  %v7205 = vadd.f32 %v7167, %v7190
  %v7206 = vadd.f32 %v7168, %v7188
  %v7207 = vadd.f32 %v7169, %v7189
  %v7208 = vadd.f32 %v7170, %v7190
  %v7209 = vadd.f32 %v7171, %v7188
  %v7210 = vadd.f32 %v7172, %v7189
  %v7211 = vadd.f32 %v7173, %v7190
  %v7212 = vadd.f32 %v7174, %v7188
  %v7213 = vadd.f32 %v7175, %v7189
  %v7214 = vadd.f32 %v7176, %v7190
  %v7215 = vadd.f32 %v7177, %v7188
  %v7216 = vadd.f32 %v7178, %v7189
  %v7217 = vadd.f32 %v7179, %v7190
  %v7218 = vadd.f32 %v7180, %v7188
  %v7219 = vadd.f32 %v7181, %v7189
  %v7220 = vadd.f32 %v7182, %v7190
  %v7221 = vadd.f32 %v7183, %v7188
  %v7222 = vadd.f32 %v7184, %v7189
  %v7223 = vadd.f32 %v7185, %v7190
  %v7224 = vmax.f32 %v7194, %v7197
  %v7225 = vmax.f32 %v7195, %v7198
  %v7226 = vmax.f32 %v7196, %v7199
  %v7227 = vmax.f32 %v7200, %v7203
  %v7228 = vmax.f32 %v7201, %v7204
  %v7229 = vmax.f32 %v7202, %v7205
  %v7230 = vmax.f32 %v7206, %v7209
  %v7231 = vmax.f32 %v7207, %v7210
  %v7232 = vmax.f32 %v7208, %v7211
  %v7233 = vmax.f32 %v7212, %v7215
  %v7234 = vmax.f32 %v7213, %v7216
  %v7235 = vmax.f32 %v7214, %v7217
  %v7236 = vmax.f32 %v7218, %v7221
  %v7237 = vmax.f32 %v7219, %v7222
  %v7238 = vmax.f32 %v7220, %v7223
  %v7239 = vpack.c.bf16 %v7227, %v7224
  %v7240 = vpack.c.bf16 %v7228, %v7225
  %v7241 = vpack.c.bf16 %v7229, %v7226
  %v7242 = vpack.c.bf16 %v7233, %v7230
  %v7243 = vpack.c.bf16 %v7234, %v7231
  %v7244 = vpack.c.bf16 %v7235, %v7232
  %v7245 = vpack.c.bf16 %v7236, %v7236
  %v7246 = vpack.c.bf16 %v7237, %v7237
  %v7247 = vpack.c.bf16 %v7238, %v7238
  %v7248 = vld [vmem:[%s7] sm:$0xff]
  %v7249 = vld [vmem:[%s7 + $0x8] sm:$0xff]
  %v7250 = vld [vmem:[%s7 + $0x10] sm:$0xff]
  %v7251 = vld [vmem:[%s7 + $0x18] sm:$0xff]
  %v7252 = vld [vmem:[%s7 + $0x20] sm:$0xff]
  %v7253 = vld [vmem:[%s7 + $0x28] sm:$0xff]
  %v7254 = vld [vmem:[%s7 + $0x30] sm:$0xff]
  %v7255 = vld [vmem:[%s7 + $0x38] sm:$0xff]
  %v7256 = vld [vmem:[%s7 + $0x40] sm:$0xff]
  %v7257 = vld [vmem:[%s7 + $0x48] sm:$0xff]
  %v7258 = vld [vmem:[%s7 + $0x50] sm:$0xff]
  %v7259 = vld [vmem:[%s7 + $0x58] sm:$0xff]
  %v7260 = vld [vmem:[%s7 + $0x60] sm:$0xff]
  %v7261 = vld [vmem:[%s7 + $0x68] sm:$0xff]
  %v7262 = vld [vmem:[%s7 + $0x70] sm:$0xff]
  %v7263 = vld [vmem:[%s7 + $0x78] sm:$0xff]
  %v7264 = vld [vmem:[%s7 + $0x80] sm:$0xff]
  %v7265 = vld [vmem:[%s7 + $0x88] sm:$0xff]
  %v7266 = vld [vmem:[%s7 + $0x90] sm:$0xff]
  %v7267 = vld [vmem:[%s7 + $0x98] sm:$0xff]
  %v7268 = vld [vmem:[%s7 + $0xa0] sm:$0xff]
  %v7269 = vld [vmem:[%s7 + $0xa8] sm:$0xff]
  %v7270 = vld [vmem:[%s7 + $0xb0] sm:$0xff]
  %v7271 = vld [vmem:[%s7 + $0xb8] sm:$0xff]
  %v7272 = vld [vmem:[%s7 + $0xc0] sm:$0xff]
  %v7273 = vld [vmem:[%s7 + $0xc8] sm:$0xff]
  %v7274 = vld [vmem:[%s7 + $0xd0] sm:$0xff]
  %v7275 = vld [vmem:[%s7 + $0xd8] sm:$0xff]
  %v7276 = vld [vmem:[%s7 + $0xe0] sm:$0xff]
  %v7277 = vld [vmem:[%s7 + $0xe8] sm:$0xff]
  %v7278 = vld [vmem:[%s7 + $0xf0] sm:$0xff]
  %v7279 = vld [vmem:[%s7 + $0xf8] sm:$0xff]
  %v7280 = vld [vmem:[%s7 + $0x100] sm:$0xff]
  %v7281 = vld [vmem:[%s7 + $0x108] sm:$0xff]
  %v7282 = vld [vmem:[%s7 + $0x110] sm:$0xff]
  %v7283 = vld [vmem:[%s7 + $0x118] sm:$0xff]
  %v7284 = vld [vmem:[%s7 + $0x120] sm:$0xff]
  %v7285 = vld [vmem:[%s7 + $0x128] sm:$0xff]
  %v7286 = vld [vmem:[%s7 + $0x130] sm:$0xff]
  %v7287 = vld [vmem:[%s7 + $0x138] sm:$0xff]
  %v7328 = vunpack.c.l.b16 %v7248
  %v7329 = vunpack.c.h.b16 %v7248
  %v7330 = vunpack.c.l.b16 %v7249
  %v7331 = vunpack.c.h.b16 %v7249
  %v7332 = vunpack.c.l.b16 %v7250
  %v7333 = vunpack.c.h.b16 %v7250
  %v7334 = vunpack.c.l.b16 %v7251
  %v7335 = vunpack.c.h.b16 %v7251
  %v7336 = vunpack.c.l.b16 %v7252
  %v7337 = vunpack.c.h.b16 %v7252
  %v7338 = vunpack.c.l.b16 %v7253
  %v7339 = vunpack.c.h.b16 %v7253
  %v7340 = vunpack.c.l.b16 %v7254
  %v7341 = vunpack.c.h.b16 %v7254
  %v7342 = vunpack.c.l.b16 %v7255
  %v7343 = vunpack.c.h.b16 %v7255
  %v7344 = vunpack.c.l.b16 %v7256
  %v7345 = vunpack.c.h.b16 %v7256
  %v7346 = vunpack.c.l.b16 %v7257
  %v7347 = vunpack.c.h.b16 %v7257
  %v7348 = vunpack.c.l.b16 %v7258
  %v7349 = vunpack.c.h.b16 %v7258
  %v7350 = vunpack.c.l.b16 %v7259
  %v7351 = vunpack.c.h.b16 %v7259
  %v7352 = vunpack.c.l.b16 %v7260
  %v7353 = vunpack.c.h.b16 %v7260
  %v7354 = vunpack.c.l.b16 %v7261
  %v7355 = vunpack.c.h.b16 %v7261
  %v7356 = vunpack.c.l.b16 %v7262
  %v7357 = vunpack.c.h.b16 %v7262
  %v7358 = vunpack.c.l.b16 %v7263
  %v7359 = vunpack.c.h.b16 %v7263
  %v7360 = vunpack.c.l.b16 %v7264
  %v7361 = vunpack.c.h.b16 %v7264
  %v7362 = vunpack.c.l.b16 %v7265
  %v7363 = vunpack.c.h.b16 %v7265
  %v7364 = vunpack.c.l.b16 %v7266
  %v7365 = vunpack.c.h.b16 %v7266
  %v7366 = vunpack.c.l.b16 %v7267
  %v7367 = vunpack.c.h.b16 %v7267
  %v7368 = vunpack.c.l.b16 %v7268
  %v7369 = vunpack.c.h.b16 %v7268
  %v7370 = vunpack.c.l.b16 %v7269
  %v7371 = vunpack.c.h.b16 %v7269
  %v7372 = vunpack.c.l.b16 %v7270
  %v7373 = vunpack.c.h.b16 %v7270
  %v7374 = vunpack.c.l.b16 %v7271
  %v7375 = vunpack.c.h.b16 %v7271
  %v7376 = vunpack.c.l.b16 %v7272
  %v7377 = vunpack.c.h.b16 %v7272
  %v7378 = vunpack.c.l.b16 %v7273
  %v7379 = vunpack.c.h.b16 %v7273
  %v7380 = vunpack.c.l.b16 %v7274
  %v7381 = vunpack.c.h.b16 %v7274
  %v7382 = vunpack.c.l.b16 %v7275
  %v7383 = vunpack.c.h.b16 %v7275
  %v7384 = vunpack.c.l.b16 %v7276
  %v7385 = vunpack.c.h.b16 %v7276
  %v7386 = vunpack.c.l.b16 %v7277
  %v7387 = vunpack.c.h.b16 %v7277
  %v7388 = vunpack.c.l.b16 %v7278
  %v7389 = vunpack.c.h.b16 %v7278
  %v7390 = vunpack.c.l.b16 %v7279
  %v7391 = vunpack.c.h.b16 %v7279
  %v7392 = vunpack.c.l.b16 %v7280
  %v7393 = vunpack.c.h.b16 %v7280
  %v7394 = vunpack.c.l.b16 %v7281
  %v7395 = vunpack.c.h.b16 %v7281
  %v7396 = vunpack.c.l.b16 %v7282
  %v7397 = vunpack.c.h.b16 %v7282
  %v7398 = vunpack.c.l.b16 %v7283
  %v7399 = vunpack.c.h.b16 %v7283
  %v7400 = vunpack.c.l.b16 %v7284
  %v7401 = vunpack.c.h.b16 %v7284
  %v7402 = vunpack.c.l.b16 %v7285
  %v7403 = vunpack.c.h.b16 %v7285
  %v7404 = vunpack.c.l.b16 %v7286
  %v7405 = vunpack.c.h.b16 %v7286
  %v7406 = vunpack.c.l.b16 %v7287
  %v7407 = vunpack.c.h.b16 %v7287
  %v7408 = vpack.c.b16 %v7330, %v7328
  %v7409 = vpack.c.b16 %v7331, %v7329
  %v7410 = vpack.c.b16 %v7334, %v7332
  %v7411 = vpack.c.b16 %v7335, %v7333
  %v7412 = vpack.c.b16 %v7338, %v7336
  %v7413 = vpack.c.b16 %v7339, %v7337
  %v7414 = vpack.c.b16 %v7342, %v7340
  %v7415 = vpack.c.b16 %v7343, %v7341
  %v7416 = vpack.c.b16 %v7346, %v7344
  %v7417 = vpack.c.b16 %v7347, %v7345
  %v7418 = vpack.c.b16 %v7350, %v7348
  %v7419 = vpack.c.b16 %v7351, %v7349
  %v7420 = vpack.c.b16 %v7354, %v7352
  %v7421 = vpack.c.b16 %v7355, %v7353
  %v7422 = vpack.c.b16 %v7358, %v7356
  %v7423 = vpack.c.b16 %v7359, %v7357
  %v7424 = vpack.c.b16 %v7362, %v7360
  %v7425 = vpack.c.b16 %v7363, %v7361
  %v7426 = vpack.c.b16 %v7366, %v7364
  %v7427 = vpack.c.b16 %v7367, %v7365
  %v7428 = vpack.c.b16 %v7370, %v7368
  %v7429 = vpack.c.b16 %v7371, %v7369
  %v7430 = vpack.c.b16 %v7374, %v7372
  %v7431 = vpack.c.b16 %v7375, %v7373
  %v7432 = vpack.c.b16 %v7378, %v7376
  %v7433 = vpack.c.b16 %v7379, %v7377
  %v7434 = vpack.c.b16 %v7382, %v7380
  %v7435 = vpack.c.b16 %v7383, %v7381
  %v7436 = vpack.c.b16 %v7386, %v7384
  %v7437 = vpack.c.b16 %v7387, %v7385
  %v7438 = vpack.c.b16 %v7390, %v7388
  %v7439 = vpack.c.b16 %v7391, %v7389
  %v7440 = vpack.c.b16 %v7394, %v7392
  %v7441 = vpack.c.b16 %v7395, %v7393
  %v7442 = vpack.c.b16 %v7398, %v7396
  %v7443 = vpack.c.b16 %v7399, %v7397
  %v7444 = vpack.c.b16 %v7402, %v7400
  %v7445 = vpack.c.b16 %v7403, %v7401
  %v7446 = vpack.c.b16 %v7406, %v7404
  %v7447 = vpack.c.b16 %v7407, %v7405
  %v7489 = vsel %vm3448, %v7241, 0
  %v7492 = vsel %vm3448, %v7244, 0
  %v7495 = vsel %vm3448, %v7247, 0
  %7497 = vmatpush.bf16.msra.mxu0 %v7422
  %7498 = vmatpush.bf16.msra.mxu0 %v7420
  %7499 = vmatpush.bf16.msra.mxu0 %v7418
  %7500 = vmatpush.bf16.msra.mxu0 %v7416
  %7501 = vmatpush.bf16.msra.mxu0 %v7414
  %7502 = vmatpush.bf16.msra.mxu0 %v7412
  %7503 = vmatpush.bf16.msra.mxu0 %v7410
  %7504 = vmatpush.bf16.msra.mxu0 %v7408
  %7505 = vmatmul.bf16.gmra.mxu0 %v7239
  %v7506 = vpop.f32.mrf.mxu0
  %v7507 = vadd.f32 0.0, %v7506
  %v7508 = vpop.f32.mrf.mxu0
  %v7509 = vadd.f32 0.0, %v7508
  %7510 = vmatmul.bf16.gmra.mxu0 %v7242
  %v7511 = vpop.f32.mrf.mxu0
  %v7512 = vadd.f32 0.0, %v7511
  %v7513 = vpop.f32.mrf.mxu0
  %v7514 = vadd.f32 0.0, %v7513
  %7515 = vmatmul.bf16.gmra.mxu0 %v7245
  %v7516 = vpop.f32.mrf.mxu0
  %v7517 = vadd.f32 0.0, %v7516
  %v7518 = vpop.f32.mrf.mxu0
  %7519 = vdwg.mxu0
  %7520 = vmatpush.bf16.msra.mxu0 %v7438
  %7521 = vmatpush.bf16.msra.mxu0 %v7436
  %7522 = vmatpush.bf16.msra.mxu0 %v7434
  %7523 = vmatpush.bf16.msra.mxu0 %v7432
  %7524 = vmatpush.bf16.msra.mxu0 %v7430
  %7525 = vmatpush.bf16.msra.mxu0 %v7428
  %7526 = vmatpush.bf16.msra.mxu0 %v7426
  %7527 = vmatpush.bf16.msra.mxu0 %v7424
  %7528 = vmatmul.bf16.gmra.mxu0 %v7240
  %v7529 = vpop.f32.mrf.mxu0
  %v7530 = vadd.f32 %v7507, %v7529
  %v7531 = vpop.f32.mrf.mxu0
  %v7532 = vadd.f32 %v7509, %v7531
  %7533 = vmatmul.bf16.gmra.mxu0 %v7243
  %v7534 = vpop.f32.mrf.mxu0
  %v7535 = vadd.f32 %v7512, %v7534
  %v7536 = vpop.f32.mrf.mxu0
  %v7537 = vadd.f32 %v7514, %v7536
  %7538 = vmatmul.bf16.gmra.mxu0 %v7246
  %v7539 = vpop.f32.mrf.mxu0
  %v7540 = vadd.f32 %v7517, %v7539
  %v7541 = vpop.f32.mrf.mxu0
  %7542 = vdwg.mxu0
  %7543 = vmatpush.bf16.msra.mxu0 0
  %7544 = vmatpush.bf16.msra.mxu0 0
  %7545 = vmatpush.bf16.msra.mxu0 0
  %7546 = vmatpush.bf16.msra.mxu0 0
  %7547 = vmatpush.bf16.msra.mxu0 %v7446
  %7548 = vmatpush.bf16.msra.mxu0 %v7444
  %7549 = vmatpush.bf16.msra.mxu0 %v7442
  %7550 = vmatpush.bf16.msra.mxu0 %v7440
  %7551 = vmatmul.bf16.gmra.mxu0 %v7489
  %v7552 = vpop.f32.mrf.mxu0
  %v7553 = vadd.f32 %v7530, %v7552
  %v7554 = vpop.f32.mrf.mxu0
  %v7555 = vadd.f32 %v7532, %v7554
  %7556 = vmatmul.bf16.gmra.mxu0 %v7492
  %v7557 = vpop.f32.mrf.mxu0
  %v7558 = vadd.f32 %v7535, %v7557
  %v7559 = vpop.f32.mrf.mxu0
  %v7560 = vadd.f32 %v7537, %v7559
  %7561 = vmatmul.bf16.gmra.mxu0 %v7495
  %v7562 = vpop.f32.mrf.mxu0
  %v7563 = vadd.f32 %v7540, %v7562
  %v7564 = vpop.f32.mrf.mxu0
  %7565 = vdwg.mxu0
  %7566 = vmatpush.bf16.msra.mxu0 %v7423
  %7567 = vmatpush.bf16.msra.mxu0 %v7421
  %7568 = vmatpush.bf16.msra.mxu0 %v7419
  %7569 = vmatpush.bf16.msra.mxu0 %v7417
  %7570 = vmatpush.bf16.msra.mxu0 %v7415
  %7571 = vmatpush.bf16.msra.mxu0 %v7413
  %7572 = vmatpush.bf16.msra.mxu0 %v7411
  %7573 = vmatpush.bf16.msra.mxu0 %v7409
  %7574 = vmatmul.bf16.gmra.mxu0 %v7239
  %v7575 = vpop.f32.mrf.mxu0
  %v7576 = vadd.f32 0.0, %v7575
  %v7577 = vpop.f32.mrf.mxu0
  %v7578 = vadd.f32 0.0, %v7577
  %7579 = vmatmul.bf16.gmra.mxu0 %v7242
  %v7580 = vpop.f32.mrf.mxu0
  %v7581 = vadd.f32 0.0, %v7580
  %v7582 = vpop.f32.mrf.mxu0
  %v7583 = vadd.f32 0.0, %v7582
  %7584 = vmatmul.bf16.gmra.mxu0 %v7245
  %v7585 = vpop.f32.mrf.mxu0
  %v7586 = vadd.f32 0.0, %v7585
  %v7587 = vpop.f32.mrf.mxu0
  %7588 = vdwg.mxu0
  %7589 = vmatpush.bf16.msra.mxu0 %v7439
  %7590 = vmatpush.bf16.msra.mxu0 %v7437
  %7591 = vmatpush.bf16.msra.mxu0 %v7435
  %7592 = vmatpush.bf16.msra.mxu0 %v7433
  %7593 = vmatpush.bf16.msra.mxu0 %v7431
  %7594 = vmatpush.bf16.msra.mxu0 %v7429
  %7595 = vmatpush.bf16.msra.mxu0 %v7427
  %7596 = vmatpush.bf16.msra.mxu0 %v7425
  %7597 = vmatmul.bf16.gmra.mxu0 %v7240
  %v7598 = vpop.f32.mrf.mxu0
  %v7599 = vadd.f32 %v7576, %v7598
  %v7600 = vpop.f32.mrf.mxu0
  %v7601 = vadd.f32 %v7578, %v7600
  %7602 = vmatmul.bf16.gmra.mxu0 %v7243
  %v7603 = vpop.f32.mrf.mxu0
  %v7604 = vadd.f32 %v7581, %v7603
  %v7605 = vpop.f32.mrf.mxu0
  %v7606 = vadd.f32 %v7583, %v7605
  %7607 = vmatmul.bf16.gmra.mxu0 %v7246
  %v7608 = vpop.f32.mrf.mxu0
  %v7609 = vadd.f32 %v7586, %v7608
  %v7610 = vpop.f32.mrf.mxu0
  %7611 = vdwg.mxu0
  %7612 = vmatpush.bf16.msra.mxu0 0
  %7613 = vmatpush.bf16.msra.mxu0 0
  %7614 = vmatpush.bf16.msra.mxu0 0
  %7615 = vmatpush.bf16.msra.mxu0 0
  %7616 = vmatpush.bf16.msra.mxu0 %v7447
  %7617 = vmatpush.bf16.msra.mxu0 %v7445
  %7618 = vmatpush.bf16.msra.mxu0 %v7443
  %7619 = vmatpush.bf16.msra.mxu0 %v7441
  %7620 = vmatmul.bf16.gmra.mxu0 %v7489
  %v7621 = vpop.f32.mrf.mxu0
  %v7622 = vadd.f32 %v7599, %v7621
  %v7623 = vpop.f32.mrf.mxu0
  %v7624 = vadd.f32 %v7601, %v7623
  %7625 = vmatmul.bf16.gmra.mxu0 %v7492
  %v7626 = vpop.f32.mrf.mxu0
  %v7627 = vadd.f32 %v7604, %v7626
  %v7628 = vpop.f32.mrf.mxu0
  %v7629 = vadd.f32 %v7606, %v7628
  %7630 = vmatmul.bf16.gmra.mxu0 %v7495
  %v7631 = vpop.f32.mrf.mxu0
  %v7632 = vadd.f32 %v7609, %v7631
  %v7633 = vpop.f32.mrf.mxu0
  %7634 = vdwg.mxu0
  %v7635 = vld [vmem:[%s8] sm:$0xff]
  %v7636 = vld [vmem:[%s8 + $0x8] sm:$0xff]
  %v7637 = vld [vmem:[%s8 + $0x10] sm:$0xff]
  %v7638 = vld [vmem:[%s8 + $0x18] sm:$0xff]
  %v7639 = vld [vmem:[%s8 + $0x20] sm:$0xff]
  %v7640 = vld [vmem:[%s8 + $0x28] sm:$0xff]
  %v7641 = vld [vmem:[%s8 + $0x30] sm:$0xff]
  %v7642 = vld [vmem:[%s8 + $0x38] sm:$0xff]
  %v7643 = vld [vmem:[%s8 + $0x40] sm:$0xff]
  %v7644 = vld [vmem:[%s8 + $0x48] sm:$0xff]
  %v7645 = vld [vmem:[%s8 + $0x50] sm:$0xff]
  %v7646 = vld [vmem:[%s8 + $0x58] sm:$0xff]
  %v7647 = vld [vmem:[%s8 + $0x60] sm:$0xff]
  %v7648 = vld [vmem:[%s8 + $0x68] sm:$0xff]
  %v7649 = vld [vmem:[%s8 + $0x70] sm:$0xff]
  %v7650 = vld [vmem:[%s8 + $0x78] sm:$0xff]
  %v7651 = vld [vmem:[%s8 + $0x80] sm:$0xff]
  %v7652 = vld [vmem:[%s8 + $0x88] sm:$0xff]
  %v7653 = vld [vmem:[%s8 + $0x90] sm:$0xff]
  %v7654 = vld [vmem:[%s8 + $0x98] sm:$0xff]
  %v7655 = vld [vmem:[%s8 + $0xa0] sm:$0xff]
  %v7656 = vld [vmem:[%s8 + $0xa8] sm:$0xff]
  %v7657 = vld [vmem:[%s8 + $0xb0] sm:$0xff]
  %v7658 = vld [vmem:[%s8 + $0xb8] sm:$0xff]
  %v7659 = vld [vmem:[%s8 + $0xc0] sm:$0xff]
  %v7660 = vld [vmem:[%s8 + $0xc8] sm:$0xff]
  %v7661 = vld [vmem:[%s8 + $0xd0] sm:$0xff]
  %v7662 = vld [vmem:[%s8 + $0xd8] sm:$0xff]
  %v7663 = vld [vmem:[%s8 + $0xe0] sm:$0xff]
  %v7664 = vld [vmem:[%s8 + $0xe8] sm:$0xff]
  %v7665 = vld [vmem:[%s8 + $0xf0] sm:$0xff]
  %v7666 = vld [vmem:[%s8 + $0xf8] sm:$0xff]
  %v7667 = vld [vmem:[%s8 + $0x100] sm:$0xff]
  %v7668 = vld [vmem:[%s8 + $0x108] sm:$0xff]
  %v7669 = vld [vmem:[%s8 + $0x110] sm:$0xff]
  %v7670 = vld [vmem:[%s8 + $0x118] sm:$0xff]
  %v7671 = vld [vmem:[%s8 + $0x120] sm:$0xff]
  %v7672 = vld [vmem:[%s8 + $0x128] sm:$0xff]
  %v7673 = vld [vmem:[%s8 + $0x130] sm:$0xff]
  %v7674 = vld [vmem:[%s8 + $0x138] sm:$0xff]
  %v7715 = vunpack.c.l.b16 %v7635
  %v7716 = vunpack.c.h.b16 %v7635
  %v7717 = vunpack.c.l.b16 %v7636
  %v7718 = vunpack.c.h.b16 %v7636
  %v7719 = vunpack.c.l.b16 %v7637
  %v7720 = vunpack.c.h.b16 %v7637
  %v7721 = vunpack.c.l.b16 %v7638
  %v7722 = vunpack.c.h.b16 %v7638
  %v7723 = vunpack.c.l.b16 %v7639
  %v7724 = vunpack.c.h.b16 %v7639
  %v7725 = vunpack.c.l.b16 %v7640
  %v7726 = vunpack.c.h.b16 %v7640
  %v7727 = vunpack.c.l.b16 %v7641
  %v7728 = vunpack.c.h.b16 %v7641
  %v7729 = vunpack.c.l.b16 %v7642
  %v7730 = vunpack.c.h.b16 %v7642
  %v7731 = vunpack.c.l.b16 %v7643
  %v7732 = vunpack.c.h.b16 %v7643
  %v7733 = vunpack.c.l.b16 %v7644
  %v7734 = vunpack.c.h.b16 %v7644
  %v7735 = vunpack.c.l.b16 %v7645
  %v7736 = vunpack.c.h.b16 %v7645
  %v7737 = vunpack.c.l.b16 %v7646
  %v7738 = vunpack.c.h.b16 %v7646
  %v7739 = vunpack.c.l.b16 %v7647
  %v7740 = vunpack.c.h.b16 %v7647
  %v7741 = vunpack.c.l.b16 %v7648
  %v7742 = vunpack.c.h.b16 %v7648
  %v7743 = vunpack.c.l.b16 %v7649
  %v7744 = vunpack.c.h.b16 %v7649
  %v7745 = vunpack.c.l.b16 %v7650
  %v7746 = vunpack.c.h.b16 %v7650
  %v7747 = vunpack.c.l.b16 %v7651
  %v7748 = vunpack.c.h.b16 %v7651
  %v7749 = vunpack.c.l.b16 %v7652
  %v7750 = vunpack.c.h.b16 %v7652
  %v7751 = vunpack.c.l.b16 %v7653
  %v7752 = vunpack.c.h.b16 %v7653
  %v7753 = vunpack.c.l.b16 %v7654
  %v7754 = vunpack.c.h.b16 %v7654
  %v7755 = vunpack.c.l.b16 %v7655
  %v7756 = vunpack.c.h.b16 %v7655
  %v7757 = vunpack.c.l.b16 %v7656
  %v7758 = vunpack.c.h.b16 %v7656
  %v7759 = vunpack.c.l.b16 %v7657
  %v7760 = vunpack.c.h.b16 %v7657
  %v7761 = vunpack.c.l.b16 %v7658
  %v7762 = vunpack.c.h.b16 %v7658
  %v7763 = vunpack.c.l.b16 %v7659
  %v7764 = vunpack.c.h.b16 %v7659
  %v7765 = vunpack.c.l.b16 %v7660
  %v7766 = vunpack.c.h.b16 %v7660
  %v7767 = vunpack.c.l.b16 %v7661
  %v7768 = vunpack.c.h.b16 %v7661
  %v7769 = vunpack.c.l.b16 %v7662
  %v7770 = vunpack.c.h.b16 %v7662
  %v7771 = vunpack.c.l.b16 %v7663
  %v7772 = vunpack.c.h.b16 %v7663
  %v7773 = vunpack.c.l.b16 %v7664
  %v7774 = vunpack.c.h.b16 %v7664
  %v7775 = vunpack.c.l.b16 %v7665
  %v7776 = vunpack.c.h.b16 %v7665
  %v7777 = vunpack.c.l.b16 %v7666
  %v7778 = vunpack.c.h.b16 %v7666
  %v7779 = vunpack.c.l.b16 %v7667
  %v7780 = vunpack.c.h.b16 %v7667
  %v7781 = vunpack.c.l.b16 %v7668
  %v7782 = vunpack.c.h.b16 %v7668
  %v7783 = vunpack.c.l.b16 %v7669
  %v7784 = vunpack.c.h.b16 %v7669
  %v7785 = vunpack.c.l.b16 %v7670
  %v7786 = vunpack.c.h.b16 %v7670
  %v7787 = vunpack.c.l.b16 %v7671
  %v7788 = vunpack.c.h.b16 %v7671
  %v7789 = vunpack.c.l.b16 %v7672
  %v7790 = vunpack.c.h.b16 %v7672
  %v7791 = vunpack.c.l.b16 %v7673
  %v7792 = vunpack.c.h.b16 %v7673
  %v7793 = vunpack.c.l.b16 %v7674
  %v7794 = vunpack.c.h.b16 %v7674
  %v7795 = vpack.c.b16 %v7717, %v7715
  %v7796 = vpack.c.b16 %v7718, %v7716
  %v7797 = vpack.c.b16 %v7721, %v7719
  %v7798 = vpack.c.b16 %v7722, %v7720
  %v7799 = vpack.c.b16 %v7725, %v7723
  %v7800 = vpack.c.b16 %v7726, %v7724
  %v7801 = vpack.c.b16 %v7729, %v7727
  %v7802 = vpack.c.b16 %v7730, %v7728
  %v7803 = vpack.c.b16 %v7733, %v7731
  %v7804 = vpack.c.b16 %v7734, %v7732
  %v7805 = vpack.c.b16 %v7737, %v7735
  %v7806 = vpack.c.b16 %v7738, %v7736
  %v7807 = vpack.c.b16 %v7741, %v7739
  %v7808 = vpack.c.b16 %v7742, %v7740
  %v7809 = vpack.c.b16 %v7745, %v7743
  %v7810 = vpack.c.b16 %v7746, %v7744
  %v7811 = vpack.c.b16 %v7749, %v7747
  %v7812 = vpack.c.b16 %v7750, %v7748
  %v7813 = vpack.c.b16 %v7753, %v7751
  %v7814 = vpack.c.b16 %v7754, %v7752
  %v7815 = vpack.c.b16 %v7757, %v7755
  %v7816 = vpack.c.b16 %v7758, %v7756
  %v7817 = vpack.c.b16 %v7761, %v7759
  %v7818 = vpack.c.b16 %v7762, %v7760
  %v7819 = vpack.c.b16 %v7765, %v7763
  %v7820 = vpack.c.b16 %v7766, %v7764
  %v7821 = vpack.c.b16 %v7769, %v7767
  %v7822 = vpack.c.b16 %v7770, %v7768
  %v7823 = vpack.c.b16 %v7773, %v7771
  %v7824 = vpack.c.b16 %v7774, %v7772
  %v7825 = vpack.c.b16 %v7777, %v7775
  %v7826 = vpack.c.b16 %v7778, %v7776
  %v7827 = vpack.c.b16 %v7781, %v7779
  %v7828 = vpack.c.b16 %v7782, %v7780
  %v7829 = vpack.c.b16 %v7785, %v7783
  %v7830 = vpack.c.b16 %v7786, %v7784
  %v7831 = vpack.c.b16 %v7789, %v7787
  %v7832 = vpack.c.b16 %v7790, %v7788
  %v7833 = vpack.c.b16 %v7793, %v7791
  %v7834 = vpack.c.b16 %v7794, %v7792
  %7875 = vmatpush.bf16.msra.mxu0 %v7809
  %7876 = vmatpush.bf16.msra.mxu0 %v7807
  %7877 = vmatpush.bf16.msra.mxu0 %v7805
  %7878 = vmatpush.bf16.msra.mxu0 %v7803
  %7879 = vmatpush.bf16.msra.mxu0 %v7801
  %7880 = vmatpush.bf16.msra.mxu0 %v7799
  %7881 = vmatpush.bf16.msra.mxu0 %v7797
  %7882 = vmatpush.bf16.msra.mxu0 %v7795
  %7883 = vmatmul.bf16.gmra.mxu0 %v7239
  %v7884 = vpop.f32.mrf.mxu0
  %v7885 = vadd.f32 0.0, %v7884
  %v7886 = vpop.f32.mrf.mxu0
  %v7887 = vadd.f32 0.0, %v7886
  %7888 = vmatmul.bf16.gmra.mxu0 %v7242
  %v7889 = vpop.f32.mrf.mxu0
  %v7890 = vadd.f32 0.0, %v7889
  %v7891 = vpop.f32.mrf.mxu0
  %v7892 = vadd.f32 0.0, %v7891
  %7893 = vmatmul.bf16.gmra.mxu0 %v7245
  %v7894 = vpop.f32.mrf.mxu0
  %v7895 = vadd.f32 0.0, %v7894
  %v7896 = vpop.f32.mrf.mxu0
  %7897 = vdwg.mxu0
  %7898 = vmatpush.bf16.msra.mxu0 %v7825
  %7899 = vmatpush.bf16.msra.mxu0 %v7823
  %7900 = vmatpush.bf16.msra.mxu0 %v7821
  %7901 = vmatpush.bf16.msra.mxu0 %v7819
  %7902 = vmatpush.bf16.msra.mxu0 %v7817
  %7903 = vmatpush.bf16.msra.mxu0 %v7815
  %7904 = vmatpush.bf16.msra.mxu0 %v7813
  %7905 = vmatpush.bf16.msra.mxu0 %v7811
  %7906 = vmatmul.bf16.gmra.mxu0 %v7240
  %v7907 = vpop.f32.mrf.mxu0
  %v7908 = vadd.f32 %v7885, %v7907
  %v7909 = vpop.f32.mrf.mxu0
  %v7910 = vadd.f32 %v7887, %v7909
  %7911 = vmatmul.bf16.gmra.mxu0 %v7243
  %v7912 = vpop.f32.mrf.mxu0
  %v7913 = vadd.f32 %v7890, %v7912
  %v7914 = vpop.f32.mrf.mxu0
  %v7915 = vadd.f32 %v7892, %v7914
  %7916 = vmatmul.bf16.gmra.mxu0 %v7246
  %v7917 = vpop.f32.mrf.mxu0
  %v7918 = vadd.f32 %v7895, %v7917
  %v7919 = vpop.f32.mrf.mxu0
  %7920 = vdwg.mxu0
  %7921 = vmatpush.bf16.msra.mxu0 0
  %7922 = vmatpush.bf16.msra.mxu0 0
  %7923 = vmatpush.bf16.msra.mxu0 0
  %7924 = vmatpush.bf16.msra.mxu0 0
  %7925 = vmatpush.bf16.msra.mxu0 %v7833
  %7926 = vmatpush.bf16.msra.mxu0 %v7831
  %7927 = vmatpush.bf16.msra.mxu0 %v7829
  %7928 = vmatpush.bf16.msra.mxu0 %v7827
  %7929 = vmatmul.bf16.gmra.mxu0 %v7489
  %v7930 = vpop.f32.mrf.mxu0
  %v7931 = vadd.f32 %v7908, %v7930
  %v7932 = vpop.f32.mrf.mxu0
  %v7933 = vadd.f32 %v7910, %v7932
  %7934 = vmatmul.bf16.gmra.mxu0 %v7492
  %v7935 = vpop.f32.mrf.mxu0
  %v7936 = vadd.f32 %v7913, %v7935
  %v7937 = vpop.f32.mrf.mxu0
  %v7938 = vadd.f32 %v7915, %v7937
  %7939 = vmatmul.bf16.gmra.mxu0 %v7495
  %v7940 = vpop.f32.mrf.mxu0
  %v7941 = vadd.f32 %v7918, %v7940
  %v7942 = vpop.f32.mrf.mxu0
  %7943 = vdwg.mxu0
  %7944 = vmatpush.bf16.msra.mxu0 %v7810
  %7945 = vmatpush.bf16.msra.mxu0 %v7808
  %7946 = vmatpush.bf16.msra.mxu0 %v7806
  %7947 = vmatpush.bf16.msra.mxu0 %v7804
  %7948 = vmatpush.bf16.msra.mxu0 %v7802
  %7949 = vmatpush.bf16.msra.mxu0 %v7800
  %7950 = vmatpush.bf16.msra.mxu0 %v7798
  %7951 = vmatpush.bf16.msra.mxu0 %v7796
  %7952 = vmatmul.bf16.gmra.mxu0 %v7239
  %v7953 = vpop.f32.mrf.mxu0
  %v7954 = vadd.f32 0.0, %v7953
  %v7955 = vpop.f32.mrf.mxu0
  %v7956 = vadd.f32 0.0, %v7955
  %7957 = vmatmul.bf16.gmra.mxu0 %v7242
  %v7958 = vpop.f32.mrf.mxu0
  %v7959 = vadd.f32 0.0, %v7958
  %v7960 = vpop.f32.mrf.mxu0
  %v7961 = vadd.f32 0.0, %v7960
  %7962 = vmatmul.bf16.gmra.mxu0 %v7245
  %v7963 = vpop.f32.mrf.mxu0
  %v7964 = vadd.f32 0.0, %v7963
  %v7965 = vpop.f32.mrf.mxu0
  %7966 = vdwg.mxu0
  %7967 = vmatpush.bf16.msra.mxu0 %v7826
  %7968 = vmatpush.bf16.msra.mxu0 %v7824
  %7969 = vmatpush.bf16.msra.mxu0 %v7822
  %7970 = vmatpush.bf16.msra.mxu0 %v7820
  %7971 = vmatpush.bf16.msra.mxu0 %v7818
  %7972 = vmatpush.bf16.msra.mxu0 %v7816
  %7973 = vmatpush.bf16.msra.mxu0 %v7814
  %7974 = vmatpush.bf16.msra.mxu0 %v7812
  %7975 = vmatmul.bf16.gmra.mxu0 %v7240
  %v7976 = vpop.f32.mrf.mxu0
  %v7977 = vadd.f32 %v7954, %v7976
  %v7978 = vpop.f32.mrf.mxu0
  %v7979 = vadd.f32 %v7956, %v7978
  %7980 = vmatmul.bf16.gmra.mxu0 %v7243
  %v7981 = vpop.f32.mrf.mxu0
  %v7982 = vadd.f32 %v7959, %v7981
  %v7983 = vpop.f32.mrf.mxu0
  %v7984 = vadd.f32 %v7961, %v7983
  %7985 = vmatmul.bf16.gmra.mxu0 %v7246
  %v7986 = vpop.f32.mrf.mxu0
  %v7987 = vadd.f32 %v7964, %v7986
  %v7988 = vpop.f32.mrf.mxu0
  %7989 = vdwg.mxu0
  %7990 = vmatpush.bf16.msra.mxu0 0
  %7991 = vmatpush.bf16.msra.mxu0 0
  %7992 = vmatpush.bf16.msra.mxu0 0
  %7993 = vmatpush.bf16.msra.mxu0 0
  %7994 = vmatpush.bf16.msra.mxu0 %v7834
  %7995 = vmatpush.bf16.msra.mxu0 %v7832
  %7996 = vmatpush.bf16.msra.mxu0 %v7830
  %7997 = vmatpush.bf16.msra.mxu0 %v7828
  %7998 = vmatmul.bf16.gmra.mxu0 %v7489
  %v7999 = vpop.f32.mrf.mxu0
  %v8000 = vadd.f32 %v7977, %v7999
  %v8001 = vpop.f32.mrf.mxu0
  %v8002 = vadd.f32 %v7979, %v8001
  %8003 = vmatmul.bf16.gmra.mxu0 %v7492
  %v8004 = vpop.f32.mrf.mxu0
  %v8005 = vadd.f32 %v7982, %v8004
  %v8006 = vpop.f32.mrf.mxu0
  %v8007 = vadd.f32 %v7984, %v8006
  %8008 = vmatmul.bf16.gmra.mxu0 %v7495
  %v8009 = vpop.f32.mrf.mxu0
  %v8010 = vadd.f32 %v7987, %v8009
  %v8011 = vpop.f32.mrf.mxu0
  %8012 = vdwg.mxu0
  %v8013 = vmax.f32 %v7553, %v7931
  %v8014 = vmax.f32 %v7622, %v8000
  %v8015 = vmax.f32 %v7555, %v7933
  %v8016 = vmax.f32 %v7624, %v8002
  %v8017 = vmax.f32 %v7558, %v7936
  %v8018 = vmax.f32 %v7627, %v8005
  %v8019 = vmax.f32 %v7560, %v7938
  %v8020 = vmax.f32 %v7629, %v8007
  %v8021 = vmax.f32 %v7563, %v7941
  %v8022 = vmax.f32 %v7632, %v8010
  %v8023 = vpack.c.bf16 %v8014, %v8013
  %v8024 = vpack.c.bf16 %v8016, %v8015
  %v8025 = vpack.c.bf16 %v8018, %v8017
  %v8026 = vpack.c.bf16 %v8020, %v8019
  %v8027 = vpack.c.bf16 %v8022, %v8021
  %v8028 = vld [vmem:[%s9] sm:$0xf]
  %v8029 = vld [vmem:[%s9 + $0x4] sm:$0xf]
  %v8030 = vld [vmem:[%s9 + $0x8] sm:$0xf]
  %v8031 = vld [vmem:[%s9 + $0xc] sm:$0xf]
  %v8032 = vld [vmem:[%s9 + $0x10] sm:$0xf]
  %v8033 = vld [vmem:[%s9 + $0x14] sm:$0xf]
  %v8034 = vld [vmem:[%s9 + $0x18] sm:$0xf]
  %v8035 = vld [vmem:[%s9 + $0x1c] sm:$0xf]
  %v8036 = vld [vmem:[%s9 + $0x20] sm:$0xf]
  %v8037 = vld [vmem:[%s9 + $0x24] sm:$0xf]
  %v8038 = vld [vmem:[%s9 + $0x28] sm:$0xf]
  %v8039 = vld [vmem:[%s9 + $0x2c] sm:$0xf]
  %v8040 = vld [vmem:[%s9 + $0x30] sm:$0xf]
  %v8041 = vld [vmem:[%s9 + $0x34] sm:$0xf]
  %v8042 = vld [vmem:[%s9 + $0x38] sm:$0xf]
  %v8043 = vld [vmem:[%s9 + $0x3c] sm:$0xf]
  %v8044 = vld [vmem:[%s9 + $0x40] sm:$0xf]
  %v8045 = vld [vmem:[%s9 + $0x44] sm:$0xf]
  %v8046 = vld [vmem:[%s9 + $0x48] sm:$0xf]
  %v8047 = vld [vmem:[%s9 + $0x4c] sm:$0xf]
  %s8048 = scalar_lea.vmem %s9, 80
  %v8049 = vld [vmem:[%s8048] sm:$0xf]
  %v8050 = vld [vmem:[%s8048 + $0x4] sm:$0xf]
  %v8051 = vld [vmem:[%s8048 + $0x8] sm:$0xf]
  %v8052 = vld [vmem:[%s8048 + $0xc] sm:$0xf]
  %v8053 = vld [vmem:[%s8048 + $0x10] sm:$0xf]
  %v8054 = vld [vmem:[%s8048 + $0x14] sm:$0xf]
  %v8055 = vld [vmem:[%s8048 + $0x18] sm:$0xf]
  %v8056 = vld [vmem:[%s8048 + $0x1c] sm:$0xf]
  %v8057 = vld [vmem:[%s8048 + $0x20] sm:$0xf]
  %v8058 = vld [vmem:[%s8048 + $0x24] sm:$0xf]
  %v8059 = vld [vmem:[%s8048 + $0x28] sm:$0xf]
  %v8060 = vld [vmem:[%s8048 + $0x2c] sm:$0xf]
  %v8061 = vld [vmem:[%s8048 + $0x30] sm:$0xf]
  %v8062 = vld [vmem:[%s8048 + $0x34] sm:$0xf]
  %v8063 = vld [vmem:[%s8048 + $0x38] sm:$0xf]
  %v8064 = vld [vmem:[%s8048 + $0x3c] sm:$0xf]
  %v8065 = vld [vmem:[%s8048 + $0x40] sm:$0xf]
  %v8066 = vld [vmem:[%s8048 + $0x44] sm:$0xf]
  %v8067 = vld [vmem:[%s8048 + $0x48] sm:$0xf]
  %v8068 = vld [vmem:[%s8048 + $0x4c] sm:$0xf]
  %v8070 = vunpack.c.l.b16 %v8024
  %v8071 = vunpack.c.h.b16 %v8024
  %v8072 = vpack.c.b16 %v8070, %v8070
  %v8073 = vpack.c.b16 %v8071, %v8071
  %v8095 = vunpack.c.l.b16 %v8049
  %v8096 = vunpack.c.l.b16 %v8050
  %v8097 = vunpack.c.l.b16 %v8051
  %v8098 = vunpack.c.l.b16 %v8052
  %v8099 = vunpack.c.l.b16 %v8053
  %v8100 = vunpack.c.l.b16 %v8054
  %v8101 = vunpack.c.l.b16 %v8055
  %v8102 = vunpack.c.l.b16 %v8056
  %v8103 = vunpack.c.l.b16 %v8057
  %v8104 = vunpack.c.l.b16 %v8058
  %v8105 = vunpack.c.l.b16 %v8059
  %v8106 = vunpack.c.l.b16 %v8060
  %v8107 = vunpack.c.l.b16 %v8061
  %v8108 = vunpack.c.l.b16 %v8062
  %v8109 = vunpack.c.l.b16 %v8063
  %v8110 = vunpack.c.l.b16 %v8064
  %v8111 = vunpack.c.l.b16 %v8065
  %v8112 = vunpack.c.l.b16 %v8066
  %v8113 = vunpack.c.l.b16 %v8067
  %v8114 = vunpack.c.l.b16 %v8068
  %v8115 = vpack.c.b16 %v8096, %v8095
  %v8116 = vpack.c.b16 %v8098, %v8097
  %v8117 = vpack.c.b16 %v8100, %v8099
  %v8118 = vpack.c.b16 %v8102, %v8101
  %v8119 = vpack.c.b16 %v8104, %v8103
  %v8120 = vpack.c.b16 %v8106, %v8105
  %v8121 = vpack.c.b16 %v8108, %v8107
  %v8122 = vpack.c.b16 %v8110, %v8109
  %v8123 = vpack.c.b16 %v8112, %v8111
  %v8124 = vpack.c.b16 %v8114, %v8113
  %vm8135 = vcmask 261120
  %v8137 = vsel %vm8135, %v8073, 0
  %8139 = vmatpush.bf16.msra.mxu0 %v8122
  %8140 = vmatpush.bf16.msra.mxu0 %v8121
  %8141 = vmatpush.bf16.msra.mxu0 %v8120
  %8142 = vmatpush.bf16.msra.mxu0 %v8119
  %8143 = vmatpush.bf16.msra.mxu0 %v8118
  %8144 = vmatpush.bf16.msra.mxu0 %v8117
  %8145 = vmatpush.bf16.msra.mxu0 %v8116
  %8146 = vmatpush.bf16.msra.mxu0 %v8115
  %8147 = vmatmul.bf16.gmra.mxu0 %v8072
  %v8148 = vpop.f32.mrf.mxu0
  %v8149 = vadd.f32 0.0, %v8148
  %v8150 = vpop.f32.mrf.mxu0
  %8151 = vdwg.mxu0
  %8152 = vmatpush.bf16.msra.mxu0 0
  %8153 = vmatpush.bf16.msra.mxu0 0
  %8154 = vmatpush.bf16.msra.mxu0 0
  %8155 = vmatpush.bf16.msra.mxu0 0
  %8156 = vmatpush.bf16.msra.mxu0 0
  %8157 = vmatpush.bf16.msra.mxu0 0
  %8158 = vmatpush.bf16.msra.mxu0 %v8124
  %8159 = vmatpush.bf16.msra.mxu0 %v8123
  %8160 = vmatmul.bf16.gmra.mxu0 %v8137
  %v8161 = vpop.f32.mrf.mxu0
  %v8162 = vadd.f32 %v8149, %v8161
  %v8163 = vpop.f32.mrf.mxu0
  %8164 = vdwg.mxu0
  %v8166 = vunpack.c.l.b16 %v8023
  %v8167 = vunpack.c.h.b16 %v8023
  %v8168 = vpack.c.b16 %v8166, %v8166
  %v8169 = vpack.c.b16 %v8167, %v8167
  %v8191 = vunpack.c.l.b16 %v8028
  %v8192 = vunpack.c.l.b16 %v8029
  %v8193 = vunpack.c.l.b16 %v8030
  %v8194 = vunpack.c.l.b16 %v8031
  %v8195 = vunpack.c.l.b16 %v8032
  %v8196 = vunpack.c.l.b16 %v8033
  %v8197 = vunpack.c.l.b16 %v8034
  %v8198 = vunpack.c.l.b16 %v8035
  %v8199 = vunpack.c.l.b16 %v8036
  %v8200 = vunpack.c.l.b16 %v8037
  %v8201 = vunpack.c.l.b16 %v8038
  %v8202 = vunpack.c.l.b16 %v8039
  %v8203 = vunpack.c.l.b16 %v8040
  %v8204 = vunpack.c.l.b16 %v8041
  %v8205 = vunpack.c.l.b16 %v8042
  %v8206 = vunpack.c.l.b16 %v8043
  %v8207 = vunpack.c.l.b16 %v8044
  %v8208 = vunpack.c.l.b16 %v8045
  %v8209 = vunpack.c.l.b16 %v8046
  %v8210 = vunpack.c.l.b16 %v8047
  %v8211 = vpack.c.b16 %v8192, %v8191
  %v8212 = vpack.c.b16 %v8194, %v8193
  %v8213 = vpack.c.b16 %v8196, %v8195
  %v8214 = vpack.c.b16 %v8198, %v8197
  %v8215 = vpack.c.b16 %v8200, %v8199
  %v8216 = vpack.c.b16 %v8202, %v8201
  %v8217 = vpack.c.b16 %v8204, %v8203
  %v8218 = vpack.c.b16 %v8206, %v8205
  %v8219 = vpack.c.b16 %v8208, %v8207
  %v8220 = vpack.c.b16 %v8210, %v8209
  %v8232 = vsel %vm8135, %v8169, 0
  %8234 = vmatpush.bf16.msra.mxu0 %v8218
  %8235 = vmatpush.bf16.msra.mxu0 %v8217
  %8236 = vmatpush.bf16.msra.mxu0 %v8216
  %8237 = vmatpush.bf16.msra.mxu0 %v8215
  %8238 = vmatpush.bf16.msra.mxu0 %v8214
  %8239 = vmatpush.bf16.msra.mxu0 %v8213
  %8240 = vmatpush.bf16.msra.mxu0 %v8212
  %8241 = vmatpush.bf16.msra.mxu0 %v8211
  %8242 = vmatmul.bf16.gmra.mxu0 %v8168
  %v8243 = vpop.f32.mrf.mxu0
  %v8244 = vadd.f32 %v8162, %v8243
  %v8245 = vpop.f32.mrf.mxu0
  %8246 = vdwg.mxu0
  %8247 = vmatpush.bf16.msra.mxu0 0
  %8248 = vmatpush.bf16.msra.mxu0 0
  %8249 = vmatpush.bf16.msra.mxu0 0
  %8250 = vmatpush.bf16.msra.mxu0 0
  %8251 = vmatpush.bf16.msra.mxu0 0
  %8252 = vmatpush.bf16.msra.mxu0 0
  %8253 = vmatpush.bf16.msra.mxu0 %v8220
  %8254 = vmatpush.bf16.msra.mxu0 %v8219
  %8255 = vmatmul.bf16.gmra.mxu0 %v8232
  %v8256 = vpop.f32.mrf.mxu0
  %v8257 = vadd.f32 %v8244, %v8256
  %v8258 = vpop.f32.mrf.mxu0
  %8259 = vdwg.mxu0
  %s8260 = scalar_lea.vmem %s9, 160
  %v8261 = vld [vmem:[%s8260] sm:$0xf]
  %v8262 = vld [vmem:[%s8260 + $0x4] sm:$0xf]
  %v8263 = vld [vmem:[%s8260 + $0x8] sm:$0xf]
  %v8264 = vld [vmem:[%s8260 + $0xc] sm:$0xf]
  %v8265 = vld [vmem:[%s8260 + $0x10] sm:$0xf]
  %v8266 = vld [vmem:[%s8260 + $0x14] sm:$0xf]
  %v8267 = vld [vmem:[%s8260 + $0x18] sm:$0xf]
  %v8268 = vld [vmem:[%s8260 + $0x1c] sm:$0xf]
  %v8269 = vld [vmem:[%s8260 + $0x20] sm:$0xf]
  %v8270 = vld [vmem:[%s8260 + $0x24] sm:$0xf]
  %v8271 = vld [vmem:[%s8260 + $0x28] sm:$0xf]
  %v8272 = vld [vmem:[%s8260 + $0x2c] sm:$0xf]
  %v8273 = vld [vmem:[%s8260 + $0x30] sm:$0xf]
  %v8274 = vld [vmem:[%s8260 + $0x34] sm:$0xf]
  %v8275 = vld [vmem:[%s8260 + $0x38] sm:$0xf]
  %v8276 = vld [vmem:[%s8260 + $0x3c] sm:$0xf]
  %v8277 = vld [vmem:[%s8260 + $0x40] sm:$0xf]
  %v8278 = vld [vmem:[%s8260 + $0x44] sm:$0xf]
  %v8279 = vld [vmem:[%s8260 + $0x48] sm:$0xf]
  %v8280 = vld [vmem:[%s8260 + $0x4c] sm:$0xf]
  %v8282 = vunpack.c.l.b16 %v8025
  %v8283 = vunpack.c.h.b16 %v8025
  %v8284 = vpack.c.b16 %v8282, %v8282
  %v8285 = vpack.c.b16 %v8283, %v8283
  %v8307 = vunpack.c.l.b16 %v8261
  %v8308 = vunpack.c.l.b16 %v8262
  %v8309 = vunpack.c.l.b16 %v8263
  %v8310 = vunpack.c.l.b16 %v8264
  %v8311 = vunpack.c.l.b16 %v8265
  %v8312 = vunpack.c.l.b16 %v8266
  %v8313 = vunpack.c.l.b16 %v8267
  %v8314 = vunpack.c.l.b16 %v8268
  %v8315 = vunpack.c.l.b16 %v8269
  %v8316 = vunpack.c.l.b16 %v8270
  %v8317 = vunpack.c.l.b16 %v8271
  %v8318 = vunpack.c.l.b16 %v8272
  %v8319 = vunpack.c.l.b16 %v8273
  %v8320 = vunpack.c.l.b16 %v8274
  %v8321 = vunpack.c.l.b16 %v8275
  %v8322 = vunpack.c.l.b16 %v8276
  %v8323 = vunpack.c.l.b16 %v8277
  %v8324 = vunpack.c.l.b16 %v8278
  %v8325 = vunpack.c.l.b16 %v8279
  %v8326 = vunpack.c.l.b16 %v8280
  %v8327 = vpack.c.b16 %v8308, %v8307
  %v8328 = vpack.c.b16 %v8310, %v8309
  %v8329 = vpack.c.b16 %v8312, %v8311
  %v8330 = vpack.c.b16 %v8314, %v8313
  %v8331 = vpack.c.b16 %v8316, %v8315
  %v8332 = vpack.c.b16 %v8318, %v8317
  %v8333 = vpack.c.b16 %v8320, %v8319
  %v8334 = vpack.c.b16 %v8322, %v8321
  %v8335 = vpack.c.b16 %v8324, %v8323
  %v8336 = vpack.c.b16 %v8326, %v8325
  %v8348 = vsel %vm8135, %v8285, 0
  %8350 = vmatpush.bf16.msra.mxu0 %v8334
  %8351 = vmatpush.bf16.msra.mxu0 %v8333
  %8352 = vmatpush.bf16.msra.mxu0 %v8332
  %8353 = vmatpush.bf16.msra.mxu0 %v8331
  %8354 = vmatpush.bf16.msra.mxu0 %v8330
  %8355 = vmatpush.bf16.msra.mxu0 %v8329
  %8356 = vmatpush.bf16.msra.mxu0 %v8328
  %8357 = vmatpush.bf16.msra.mxu0 %v8327
  %8358 = vmatmul.bf16.gmra.mxu0 %v8284
  %v8359 = vpop.f32.mrf.mxu0
  %v8360 = vadd.f32 0.0, %v8359
  %v8361 = vpop.f32.mrf.mxu0
  %8362 = vdwg.mxu0
  %8363 = vmatpush.bf16.msra.mxu0 0
  %8364 = vmatpush.bf16.msra.mxu0 0
  %8365 = vmatpush.bf16.msra.mxu0 0
  %8366 = vmatpush.bf16.msra.mxu0 0
  %8367 = vmatpush.bf16.msra.mxu0 0
  %8368 = vmatpush.bf16.msra.mxu0 0
  %8369 = vmatpush.bf16.msra.mxu0 %v8336
  %8370 = vmatpush.bf16.msra.mxu0 %v8335
  %8371 = vmatmul.bf16.gmra.mxu0 %v8348
  %v8372 = vpop.f32.mrf.mxu0
  %v8373 = vadd.f32 %v8360, %v8372
  %v8374 = vpop.f32.mrf.mxu0
  %8375 = vdwg.mxu0
  %v8376 = vadd.f32 %v8257, %v8373
  %s8377 = scalar_lea.vmem %s9, 240
  %v8378 = vld [vmem:[%s8377] sm:$0xf]
  %v8379 = vld [vmem:[%s8377 + $0x4] sm:$0xf]
  %v8380 = vld [vmem:[%s8377 + $0x8] sm:$0xf]
  %v8381 = vld [vmem:[%s8377 + $0xc] sm:$0xf]
  %v8382 = vld [vmem:[%s8377 + $0x10] sm:$0xf]
  %v8383 = vld [vmem:[%s8377 + $0x14] sm:$0xf]
  %v8384 = vld [vmem:[%s8377 + $0x18] sm:$0xf]
  %v8385 = vld [vmem:[%s8377 + $0x1c] sm:$0xf]
  %v8386 = vld [vmem:[%s8377 + $0x20] sm:$0xf]
  %v8387 = vld [vmem:[%s8377 + $0x24] sm:$0xf]
  %v8388 = vld [vmem:[%s8377 + $0x28] sm:$0xf]
  %v8389 = vld [vmem:[%s8377 + $0x2c] sm:$0xf]
  %v8390 = vld [vmem:[%s8377 + $0x30] sm:$0xf]
  %v8391 = vld [vmem:[%s8377 + $0x34] sm:$0xf]
  %v8392 = vld [vmem:[%s8377 + $0x38] sm:$0xf]
  %v8393 = vld [vmem:[%s8377 + $0x3c] sm:$0xf]
  %v8394 = vld [vmem:[%s8377 + $0x40] sm:$0xf]
  %v8395 = vld [vmem:[%s8377 + $0x44] sm:$0xf]
  %v8396 = vld [vmem:[%s8377 + $0x48] sm:$0xf]
  %v8397 = vld [vmem:[%s8377 + $0x4c] sm:$0xf]
  %v8399 = vunpack.c.l.b16 %v8026
  %v8400 = vunpack.c.h.b16 %v8026
  %v8401 = vpack.c.b16 %v8399, %v8399
  %v8402 = vpack.c.b16 %v8400, %v8400
  %v8424 = vunpack.c.l.b16 %v8378
  %v8425 = vunpack.c.l.b16 %v8379
  %v8426 = vunpack.c.l.b16 %v8380
  %v8427 = vunpack.c.l.b16 %v8381
  %v8428 = vunpack.c.l.b16 %v8382
  %v8429 = vunpack.c.l.b16 %v8383
  %v8430 = vunpack.c.l.b16 %v8384
  %v8431 = vunpack.c.l.b16 %v8385
  %v8432 = vunpack.c.l.b16 %v8386
  %v8433 = vunpack.c.l.b16 %v8387
  %v8434 = vunpack.c.l.b16 %v8388
  %v8435 = vunpack.c.l.b16 %v8389
  %v8436 = vunpack.c.l.b16 %v8390
  %v8437 = vunpack.c.l.b16 %v8391
  %v8438 = vunpack.c.l.b16 %v8392
  %v8439 = vunpack.c.l.b16 %v8393
  %v8440 = vunpack.c.l.b16 %v8394
  %v8441 = vunpack.c.l.b16 %v8395
  %v8442 = vunpack.c.l.b16 %v8396
  %v8443 = vunpack.c.l.b16 %v8397
  %v8444 = vpack.c.b16 %v8425, %v8424
  %v8445 = vpack.c.b16 %v8427, %v8426
  %v8446 = vpack.c.b16 %v8429, %v8428
  %v8447 = vpack.c.b16 %v8431, %v8430
  %v8448 = vpack.c.b16 %v8433, %v8432
  %v8449 = vpack.c.b16 %v8435, %v8434
  %v8450 = vpack.c.b16 %v8437, %v8436
  %v8451 = vpack.c.b16 %v8439, %v8438
  %v8452 = vpack.c.b16 %v8441, %v8440
  %v8453 = vpack.c.b16 %v8443, %v8442
  %v8465 = vsel %vm8135, %v8402, 0
  %8467 = vmatpush.bf16.msra.mxu0 %v8451
  %8468 = vmatpush.bf16.msra.mxu0 %v8450
  %8469 = vmatpush.bf16.msra.mxu0 %v8449
  %8470 = vmatpush.bf16.msra.mxu0 %v8448
  %8471 = vmatpush.bf16.msra.mxu0 %v8447
  %8472 = vmatpush.bf16.msra.mxu0 %v8446
  %8473 = vmatpush.bf16.msra.mxu0 %v8445
  %8474 = vmatpush.bf16.msra.mxu0 %v8444
  %8475 = vmatmul.bf16.gmra.mxu0 %v8401
  %v8476 = vpop.f32.mrf.mxu0
  %v8477 = vadd.f32 0.0, %v8476
  %v8478 = vpop.f32.mrf.mxu0
  %8479 = vdwg.mxu0
  %8480 = vmatpush.bf16.msra.mxu0 0
  %8481 = vmatpush.bf16.msra.mxu0 0
  %8482 = vmatpush.bf16.msra.mxu0 0
  %8483 = vmatpush.bf16.msra.mxu0 0
  %8484 = vmatpush.bf16.msra.mxu0 0
  %8485 = vmatpush.bf16.msra.mxu0 0
  %8486 = vmatpush.bf16.msra.mxu0 %v8453
  %8487 = vmatpush.bf16.msra.mxu0 %v8452
  %8488 = vmatmul.bf16.gmra.mxu0 %v8465
  %v8489 = vpop.f32.mrf.mxu0
  %v8490 = vadd.f32 %v8477, %v8489
  %v8491 = vpop.f32.mrf.mxu0
  %8492 = vdwg.mxu0
  %v8493 = vadd.f32 %v8376, %v8490
  %s8494 = scalar_lea.vmem %s9, 320
  %v8495 = vld [vmem:[%s8494] sm:$0xf]
  %v8496 = vld [vmem:[%s8494 + $0x4] sm:$0xf]
  %v8497 = vld [vmem:[%s8494 + $0x8] sm:$0xf]
  %v8498 = vld [vmem:[%s8494 + $0xc] sm:$0xf]
  %v8499 = vld [vmem:[%s8494 + $0x10] sm:$0xf]
  %v8500 = vld [vmem:[%s8494 + $0x14] sm:$0xf]
  %v8501 = vld [vmem:[%s8494 + $0x18] sm:$0xf]
  %v8502 = vld [vmem:[%s8494 + $0x1c] sm:$0xf]
  %v8503 = vld [vmem:[%s8494 + $0x20] sm:$0xf]
  %v8504 = vld [vmem:[%s8494 + $0x24] sm:$0xf]
  %v8505 = vld [vmem:[%s8494 + $0x28] sm:$0xf]
  %v8506 = vld [vmem:[%s8494 + $0x2c] sm:$0xf]
  %v8507 = vld [vmem:[%s8494 + $0x30] sm:$0xf]
  %v8508 = vld [vmem:[%s8494 + $0x34] sm:$0xf]
  %v8509 = vld [vmem:[%s8494 + $0x38] sm:$0xf]
  %v8510 = vld [vmem:[%s8494 + $0x3c] sm:$0xf]
  %v8511 = vld [vmem:[%s8494 + $0x40] sm:$0xf]
  %v8512 = vld [vmem:[%s8494 + $0x44] sm:$0xf]
  %v8513 = vld [vmem:[%s8494 + $0x48] sm:$0xf]
  %v8514 = vld [vmem:[%s8494 + $0x4c] sm:$0xf]
  %v8516 = vunpack.c.l.b16 %v8027
  %v8517 = vunpack.c.h.b16 %v8027
  %v8518 = vpack.c.b16 %v8516, %v8516
  %v8519 = vpack.c.b16 %v8517, %v8517
  %v8541 = vunpack.c.l.b16 %v8495
  %v8542 = vunpack.c.l.b16 %v8496
  %v8543 = vunpack.c.l.b16 %v8497
  %v8544 = vunpack.c.l.b16 %v8498
  %v8545 = vunpack.c.l.b16 %v8499
  %v8546 = vunpack.c.l.b16 %v8500
  %v8547 = vunpack.c.l.b16 %v8501
  %v8548 = vunpack.c.l.b16 %v8502
  %v8549 = vunpack.c.l.b16 %v8503
  %v8550 = vunpack.c.l.b16 %v8504
  %v8551 = vunpack.c.l.b16 %v8505
  %v8552 = vunpack.c.l.b16 %v8506
  %v8553 = vunpack.c.l.b16 %v8507
  %v8554 = vunpack.c.l.b16 %v8508
  %v8555 = vunpack.c.l.b16 %v8509
  %v8556 = vunpack.c.l.b16 %v8510
  %v8557 = vunpack.c.l.b16 %v8511
  %v8558 = vunpack.c.l.b16 %v8512
  %v8559 = vunpack.c.l.b16 %v8513
  %v8560 = vunpack.c.l.b16 %v8514
  %v8561 = vpack.c.b16 %v8542, %v8541
  %v8562 = vpack.c.b16 %v8544, %v8543
  %v8563 = vpack.c.b16 %v8546, %v8545
  %v8564 = vpack.c.b16 %v8548, %v8547
  %v8565 = vpack.c.b16 %v8550, %v8549
  %v8566 = vpack.c.b16 %v8552, %v8551
  %v8567 = vpack.c.b16 %v8554, %v8553
  %v8568 = vpack.c.b16 %v8556, %v8555
  %v8569 = vpack.c.b16 %v8558, %v8557
  %v8570 = vpack.c.b16 %v8560, %v8559
  %v8582 = vsel %vm8135, %v8519, 0
  %8584 = vmatpush.bf16.msra.mxu0 %v8568
  %8585 = vmatpush.bf16.msra.mxu0 %v8567
  %8586 = vmatpush.bf16.msra.mxu0 %v8566
  %8587 = vmatpush.bf16.msra.mxu0 %v8565
  %8588 = vmatpush.bf16.msra.mxu0 %v8564
  %8589 = vmatpush.bf16.msra.mxu0 %v8563
  %8590 = vmatpush.bf16.msra.mxu0 %v8562
  %8591 = vmatpush.bf16.msra.mxu0 %v8561
  %8592 = vmatmul.bf16.gmra.mxu0 %v8518
  %v8593 = vpop.f32.mrf.mxu0
  %v8594 = vadd.f32 0.0, %v8593
  %v8595 = vpop.f32.mrf.mxu0
  %8596 = vdwg.mxu0
  %8597 = vmatpush.bf16.msra.mxu0 0
  %8598 = vmatpush.bf16.msra.mxu0 0
  %8599 = vmatpush.bf16.msra.mxu0 0
  %8600 = vmatpush.bf16.msra.mxu0 0
  %8601 = vmatpush.bf16.msra.mxu0 0
  %8602 = vmatpush.bf16.msra.mxu0 0
  %8603 = vmatpush.bf16.msra.mxu0 %v8570
  %8604 = vmatpush.bf16.msra.mxu0 %v8569
  %8605 = vmatmul.bf16.gmra.mxu0 %v8582
  %v8606 = vpop.f32.mrf.mxu0
  %v8607 = vadd.f32 %v8594, %v8606
  %v8608 = vpop.f32.mrf.mxu0
  %8609 = vdwg.mxu0
  %v8610 = vadd.f32 %v8493, %v8607
  %v8611 = vld [vmem:[%s10] sm:$0x1]
  %v8613 = vperm.slane %v8611, 0
  %v8615 = vadd.f32 %v8610, %v8613
  %v8616 = vmax.f32 %v8615, 0.0
  %v8617 = vpack.c.bf16 %v8616, %v8616
  %v8618 = vld [vmem:[%s11] sm:$0xf]
  %v8619 = vld [vmem:[%s11 + $0x4] sm:$0xf]
  %v8620 = vld [vmem:[%s11 + $0x8] sm:$0xf]
  %v8621 = vld [vmem:[%s11 + $0xc] sm:$0xf]
  %v8622 = vld [vmem:[%s12] sm:$0x1]
  %v8624 = vperm.slane %v8622, 0
  %v8630 = vunpack.c.l.b16 %v8618
  %v8631 = vunpack.c.l.b16 %v8619
  %v8632 = vunpack.c.l.b16 %v8620
  %v8633 = vunpack.c.l.b16 %v8621
  %v8634 = vpack.c.b16 %v8631, %v8630
  %v8635 = vpack.c.b16 %v8633, %v8632
  %v8639 = vsel %vm8135, %v8617, 0
  %8641 = vmatpush.bf16.msra.mxu0 0
  %8642 = vmatpush.bf16.msra.mxu0 0
  %8643 = vmatpush.bf16.msra.mxu0 0
  %8644 = vmatpush.bf16.msra.mxu0 0
  %8645 = vmatpush.bf16.msra.mxu0 0
  %8646 = vmatpush.bf16.msra.mxu0 0
  %8647 = vmatpush.bf16.msra.mxu0 %v8635
  %8648 = vmatpush.bf16.msra.mxu0 %v8634
  %8649 = vmatmul.bf16.gmra.mxu0 %v8639
  %v8650 = vpop.f32.mrf.mxu0
  %v8651 = vadd.f32 %v8624, %v8650
  %v8652 = vpop.f32.mrf.mxu0
  %8653 = vdwg.mxu0
  %vm8654 = vcmask 80896
  %8655 = vst.msk [vmem:[%s13] sm:$0xff] %vm8654, %v8651
  // Predicated region
  $region54: #{lenet5_forward.1} parent=0 // pred_check
    _
  $region55: #{lenet5_forward.1} parent=0 // pred_check_branch
    %8657 = sbr.rel (0) target = $region57
  $region56: #{lenet5_forward.1} parent=0 // pred_region
    _
  $region57: #{lenet5_forward.1} parent=0 // pred_fallthru
    _
  // Predicated region
  $region58: #{lenet5_forward.1} parent=0 // pred_check
    _
  $region59: #{lenet5_forward.1} parent=0 // pred_check_branch
    %8659 = sbr.rel (0) target = $region61
  $region60: #{lenet5_forward.1} parent=0 // pred_region
    _
  $region61: #{lenet5_forward.1} parent=0 // pred_fallthru
    _

</llo_original>
